<compile_context>
chip_gen: v6e
topology: v6e:2x2x1
jax: 0.10.0
libtpu: 0.0.40
codegen_flags: <defaults>
</compile_context>

<pallas_src>
import jax
import jax.numpy as jnp
from jax.experimental import pallas as pl
from jax.experimental.pallas import tpu as pltpu


# ----------------------------------------------------------------------------
# Pallas kernels
# ----------------------------------------------------------------------------
def _conv_pool_kernel(x00_ref, x01_ref, x10_ref, x11_ref, w_ref, b_ref, o_ref):
    """Fused 5x5 'same' conv + bias + 2x2 max-pool for one row tile.

    x??_ref : (tile_m, 25*Cin) bf16 im2col patches, one per pool-window slot
    w_ref   : (25*Cin, Cout)   bf16 weights
    b_ref   : (1, Cout)        f32 bias
    o_ref   : (tile_m, Cout)   pooled output rows (tile of N*(H/2)*(W/2))
    """
    w = w_ref[...]

    def mm(x_ref):
        return jnp.dot(x_ref[...], w, preferred_element_type=jnp.float32)

    y = jnp.maximum(jnp.maximum(mm(x00_ref), mm(x01_ref)),
                    jnp.maximum(mm(x10_ref), mm(x11_ref)))
    o_ref[...] = (y + b_ref[...]).astype(o_ref.dtype)


def _linear_kernel(x_ref, w_ref, b_ref, o_ref):
    """o = x @ w + b (single fused FC: fc1 and fc2 collapsed at prep time)."""
    o_ref[...] = (
        jnp.dot(x_ref[...], w_ref[...], preferred_element_type=jnp.float32)
        + b_ref[...]
    ).astype(o_ref.dtype)


# ----------------------------------------------------------------------------
# Wrappers (JAX glue is pad / strided-slice / concat / reshape only)
# ----------------------------------------------------------------------------
def _pick_row_tile(m, target=512):
    """Largest 8-aligned tile <= target dividing m, else the full extent."""
    if m <= target:
        return m
    t = target
    while t >= 8:
        if m % t == 0:
            return t
        t //= 2
    return m


def conv5x5_pool2(x_nhwc, w_mat, b, *, ksize=5, pad=2):
    """x_nhwc: (N,H,W,Cin); w_mat: (25*Cin, Cout) bf16; b: (Cout,) f32.

    Returns pooled activations (N, H/2, W/2, Cout) in bf16.
    """
    n, h, wd, cin = x_nhwc.shape
    k = ksize * ksize * cin
    cout = w_mat.shape[1]
    h2, w2 = h // 2, wd // 2
    m4 = n * h2 * w2

    xp = jnp.pad(x_nhwc.astype(jnp.bfloat16),
                 ((0, 0), (pad, pad), (pad, pad), (0, 0)))

    def patches(dh, dw):
        # im2col rows for conv-output locations (2*oh+dh, 2*ow+dw);
        # channel order = (kh, kw, cin), matching the prepared weight rows.
        cols = [xp[:, dh + kh: dh + kh + h: 2, dw + kw: dw + kw + wd: 2, :]
                for kh in range(ksize) for kw in range(ksize)]
        return jnp.concatenate(cols, axis=-1).reshape(m4, k)

    p00, p01, p10, p11 = (patches(0, 0), patches(0, 1),
                          patches(1, 0), patches(1, 1))

    tile_m = _pick_row_tile(m4)
    x_spec = pl.BlockSpec((tile_m, k), lambda i: (i, 0))

    out = pl.pallas_call(
        _conv_pool_kernel,
        out_shape=jax.ShapeDtypeStruct((m4, cout), jnp.bfloat16),
        grid=(m4 // tile_m,),
        in_specs=[x_spec, x_spec, x_spec, x_spec,
                  pl.BlockSpec((k, cout), lambda i: (0, 0)),
                  pl.BlockSpec((1, cout), lambda i: (0, 0))],
        out_specs=pl.BlockSpec((tile_m, cout), lambda i: (i, 0)),
        compiler_params=pltpu.CompilerParams(
            dimension_semantics=("parallel",)),
    )(p00, p01, p10, p11, w_mat, b.reshape(1, cout))
    return out.reshape(n, h2, w2, cout)


def linear(x, w, b):
    """x: (N, in) -> (N, out) in f32.  w: (in, out) bf16; b: (out,) f32."""
    n, kin = x.shape
    out_f = w.shape[1]
    tile_n = _pick_row_tile(n)
    return pl.pallas_call(
        _linear_kernel,
        out_shape=jax.ShapeDtypeStruct((n, out_f), jnp.float32),
        grid=(n // tile_n,),
        in_specs=[pl.BlockSpec((tile_n, kin), lambda i: (i, 0)),
                  pl.BlockSpec((kin, out_f), lambda i: (0, 0)),
                  pl.BlockSpec((1, out_f), lambda i: (0, 0))],
        out_specs=pl.BlockSpec((tile_n, out_f), lambda i: (i, 0)),
        compiler_params=pltpu.CompilerParams(
            dimension_semantics=("parallel",)),
    )(x.astype(jnp.bfloat16), w, b.reshape(1, out_f))


# ----------------------------------------------------------------------------
# Parameters: synthetic init in PyTorch layouts + one-time kernel-layout prep
# ----------------------------------------------------------------------------
def init_params_torch_layout(key):
    """Deterministic synthetic params in the nn.Module's own layouts."""
    ks = jax.random.split(key, 10)

    def conv_w(k, cout, cin):
        scale = 1.0 / jnp.sqrt(cin * 25.0)
        return jax.random.normal(k, (cout, cin, 5, 5), jnp.float32) * scale

    def fc_w(k, fout, fin):
        scale = 1.0 / jnp.sqrt(float(fin))
        return jax.random.normal(k, (fout, fin), jnp.float32) * scale

    return dict(
        c1_w=conv_w(ks[0], 32, 3),
        c1_b=jax.random.normal(ks[1], (32,), jnp.float32) * 0.01,
        c2_w=conv_w(ks[2], 32, 32),
        c2_b=jax.random.normal(ks[3], (32,), jnp.float32) * 0.01,
        c3_w=conv_w(ks[4], 64, 32),
        c3_b=jax.random.normal(ks[5], (64,), jnp.float32) * 0.01,
        f1_w=fc_w(ks[6], 64, 64 * 4 * 4),
        f1_b=jax.random.normal(ks[7], (64,), jnp.float32) * 0.01,
        f2_w=fc_w(ks[8], 10, 64),
        f2_b=jax.random.normal(ks[9], (10,), jnp.float32) * 0.01,
    )


def prepare_params(pt):
    """One-time prep: PyTorch layouts -> kernel layouts (bf16 matmul weights)."""
    def conv_mat(w):  # (Cout, Cin, 5, 5) -> (25*Cin, Cout), im2col row order
        cout, cin = w.shape[0], w.shape[1]
        return jnp.transpose(w, (2, 3, 1, 0)).reshape(25 * cin, cout)

    # Collapse fc2(fc1(x)) into a single affine map (HGL has no nonlinearity
    # between the two Linear layers) ...
    wf = pt["f1_w"].T @ pt["f2_w"].T                 # (1024, 10)
    bf = pt["f1_b"] @ pt["f2_w"].T + pt["f2_b"]      # (10,)
    # ... and permute its rows from PyTorch's NCHW-flatten order to the
    # NHWC-flatten order produced by the conv stack (removes a transpose/fwd).
    wf = wf.reshape(64, 4, 4, 10).transpose(1, 2, 0, 3).reshape(64 * 4 * 4, 10)

    bf16 = jnp.bfloat16
    return dict(
        c1_w=conv_mat(pt["c1_w"]).astype(bf16), c1_b=pt["c1_b"],
        c2_w=conv_mat(pt["c2_w"]).astype(bf16), c2_b=pt["c2_b"],
        c3_w=conv_mat(pt["c3_w"]).astype(bf16), c3_b=pt["c3_b"],
        fc_w=wf.astype(bf16), fc_b=bf,
    )


# ----------------------------------------------------------------------------
# Forward pass (mirrors nn.Sequential; 4 pallas_calls total)
# ----------------------------------------------------------------------------
@jax.jit
def hgl_forward(params, x_nchw):
    x = jnp.transpose(x_nchw, (0, 2, 3, 1))                  # NCHW -> NHWC
    x = conv5x5_pool2(x, params["c1_w"], params["c1_b"])     # (N,16,16,32)
    x = conv5x5_pool2(x, params["c2_w"], params["c2_b"])     # (N, 8, 8,32)
    x = conv5x5_pool2(x, params["c3_w"], params["c3_b"])     # (N, 4, 4,64)
    x = x.reshape(x.shape[0], 64 * 4 * 4)                    # NHWC flatten
    return linear(x, params["fc_w"], params["fc_b"])         # (N, 10)


# ----------------------------------------------------------------------------
# Pure-JAX reference (PyTorch semantics, all f32) for a loose self-check
# ----------------------------------------------------------------------------
def hgl_reference(pt, x_nchw):
    def conv(x, w, b):
        y = jax.lax.conv_general_dilated(
            x, w, window_strides=(1, 1), padding=((2, 2), (2, 2)),
            dimension_numbers=("NCHW", "OIHW", "NCHW"))
        return y + b[None, :, None, None]

    def pool(x):
        n, c, h, w = x.shape
        return x.reshape(n, c, h // 2, 2, w // 2, 2).max(axis=(3, 5))

    x = pool(conv(x_nchw, pt["c1_w"], pt["c1_b"]))
    x = pool(conv(x, pt["c2_w"], pt["c2_b"]))
    x = pool(conv(x, pt["c3_w"], pt["c3_b"]))
    x = x.reshape(x.shape[0], -1)                            # NCHW flatten
    x = x @ pt["f1_w"].T + pt["f1_b"]
    return x @ pt["f2_w"].T + pt["f2_b"]


if __name__ == "__main__":
    key = jax.random.PRNGKey(0)
    pkey, xkey = jax.random.split(key)
    pt_params = init_params_torch_layout(pkey)
    params = prepare_params(pt_params)

    # HGL's Flatten(64*4*4) implies 3-channel 32x32 input.
    x = jax.random.normal(xkey, (2, 3, 32, 32), jnp.float32)

    out = jax.block_until_ready(hgl_forward(params, x))
    assert out.shape == (2, 10), out.shape

    ref = jax.block_until_ready(jax.jit(hgl_reference)(pt_params, x))
    max_err = float(jnp.max(jnp.abs(out - ref)))
    assert bool(jnp.allclose(out, ref, rtol=0.1, atol=0.3)), max_err

    print("KERNEL_OK")
</pallas_src>

<mosaic_0001>
module attributes {stable_mosaic.version = 11 : i64} {
  func.func @_conv_pool_kernel(%arg0: i32, %arg1: memref<512x75xbf16, #tpu.memory_space<vmem>>, %arg2: memref<512x75xbf16, #tpu.memory_space<vmem>>, %arg3: memref<512x75xbf16, #tpu.memory_space<vmem>>, %arg4: memref<512x75xbf16, #tpu.memory_space<vmem>>, %arg5: memref<75x32xbf16, #tpu.memory_space<vmem>>, %arg6: memref<1x32xf32, #tpu.memory_space<vmem>>, %arg7: memref<512x32xbf16, #tpu.memory_space<vmem>>) attributes {dimension_semantics = [#tpu.dimension_semantics<parallel>], iteration_bounds = array<i64: 1>, scalar_prefetch = 0 : i64, scratch_operands = 0 : i64, tpu.core_type = #tpu.core_type<tc>, window_params = [{transform_indices = @transform_0, window_bounds = array<i64: 512, 75>}, {transform_indices = @transform_1, window_bounds = array<i64: 512, 75>}, {transform_indices = @transform_2, window_bounds = array<i64: 512, 75>}, {transform_indices = @transform_3, window_bounds = array<i64: 512, 75>}, {pipeline_mode = #tpu.pipeline_mode<synchronous>, transform_indices = @transform_4, window_bounds = array<i64: 75, 32>}, {pipeline_mode = #tpu.pipeline_mode<synchronous>, transform_indices = @transform_5, window_bounds = array<i64: 1, 32>}, {transform_indices = @transform_6, window_bounds = array<i64: 512, 32>}]} {
    %c0 = arith.constant 0 : index
    %c0_0 = arith.constant 0 : index
    %0 = vector.load %arg5[%c0, %c0_0] : memref<75x32xbf16, #tpu.memory_space<vmem>>, vector<75x32xbf16>
    %c0_1 = arith.constant 0 : index
    %c0_2 = arith.constant 0 : index
    %1 = vector.load %arg1[%c0_1, %c0_2] : memref<512x75xbf16, #tpu.memory_space<vmem>>, vector<512x75xbf16>
    %cst = arith.constant dense<0.000000e+00> : vector<512x32xf32>
    %2 = tpu.matmul %1, %0, %cst {dimension_numbers = #tpu.dot_dimension_numbers<[1], [0], [0], [1], [0, 0, 1, 1], [], []>} : vector<512x75xbf16>, vector<75x32xbf16>, vector<512x32xf32> -> vector<512x32xf32>
    %c0_3 = arith.constant 0 : index
    %c0_4 = arith.constant 0 : index
    %3 = vector.load %arg2[%c0_3, %c0_4] : memref<512x75xbf16, #tpu.memory_space<vmem>>, vector<512x75xbf16>
    %cst_5 = arith.constant dense<0.000000e+00> : vector<512x32xf32>
    %4 = tpu.matmul %3, %0, %cst_5 {dimension_numbers = #tpu.dot_dimension_numbers<[1], [0], [0], [1], [0, 0, 1, 1], [], []>} : vector<512x75xbf16>, vector<75x32xbf16>, vector<512x32xf32> -> vector<512x32xf32>
    %5 = arith.maximumf %2, %4 : vector<512x32xf32>
    %c0_6 = arith.constant 0 : index
    %c0_7 = arith.constant 0 : index
    %6 = vector.load %arg3[%c0_6, %c0_7] : memref<512x75xbf16, #tpu.memory_space<vmem>>, vector<512x75xbf16>
    %cst_8 = arith.constant dense<0.000000e+00> : vector<512x32xf32>
    %7 = tpu.matmul %6, %0, %cst_8 {dimension_numbers = #tpu.dot_dimension_numbers<[1], [0], [0], [1], [0, 0, 1, 1], [], []>} : vector<512x75xbf16>, vector<75x32xbf16>, vector<512x32xf32> -> vector<512x32xf32>
    %c0_9 = arith.constant 0 : index
    %c0_10 = arith.constant 0 : index
    %8 = vector.load %arg4[%c0_9, %c0_10] : memref<512x75xbf16, #tpu.memory_space<vmem>>, vector<512x75xbf16>
    %cst_11 = arith.constant dense<0.000000e+00> : vector<512x32xf32>
    %9 = tpu.matmul %8, %0, %cst_11 {dimension_numbers = #tpu.dot_dimension_numbers<[1], [0], [0], [1], [0, 0, 1, 1], [], []>} : vector<512x75xbf16>, vector<75x32xbf16>, vector<512x32xf32> -> vector<512x32xf32>
    %10 = arith.maximumf %7, %9 : vector<512x32xf32>
    %11 = arith.maximumf %5, %10 : vector<512x32xf32>
    %c0_12 = arith.constant 0 : index
    %c0_13 = arith.constant 0 : index
    %12 = vector.load %arg6[%c0_12, %c0_13] : memref<1x32xf32, #tpu.memory_space<vmem>>, vector<1x32xf32>
    %13 = vector.broadcast %12 : vector<1x32xf32> to vector<512x32xf32>
    %14 = arith.addf %11, %13 : vector<512x32xf32>
    %15 = arith.truncf %14 : vector<512x32xf32> to vector<512x32xbf16>
    %c0_14 = arith.constant 0 : index
    %c0_15 = arith.constant 0 : index
    %16 = vector.load %arg7[%c0_14, %c0_15] : memref<512x32xbf16, #tpu.memory_space<vmem>>, vector<512x32xbf16>
    tpu.vector_store %arg7[%c0_14, %c0_15], %15 {strides = array<i32>} : memref<512x32xbf16, #tpu.memory_space<vmem>>, vector<512x32xbf16>,
    return
  }
  func.func @transform_0(%arg0: i32) -> (i32, i32) {
    %c0_i32 = arith.constant 0 : i32
    %c0_i32_0 = arith.constant 0 : i32
    return %arg0, %c0_i32 : i32, i32
  }
  func.func @transform_1(%arg0: i32) -> (i32, i32) {
    %c0_i32 = arith.constant 0 : i32
    %c0_i32_0 = arith.constant 0 : i32
    return %arg0, %c0_i32 : i32, i32
  }
  func.func @transform_2(%arg0: i32) -> (i32, i32) {
    %c0_i32 = arith.constant 0 : i32
    %c0_i32_0 = arith.constant 0 : i32
    return %arg0, %c0_i32 : i32, i32
  }
  func.func @transform_3(%arg0: i32) -> (i32, i32) {
    %c0_i32 = arith.constant 0 : i32
    %c0_i32_0 = arith.constant 0 : i32
    return %arg0, %c0_i32 : i32, i32
  }
  func.func @transform_4(%arg0: i32) -> (i32, i32) {
    %c0_i32 = arith.constant 0 : i32
    %c0_i32_0 = arith.constant 0 : i32
    %c0_i32_1 = arith.constant 0 : i32
    return %c0_i32, %c0_i32_0 : i32, i32
  }
  func.func @transform_5(%arg0: i32) -> (i32, i32) {
    %c0_i32 = arith.constant 0 : i32
    %c0_i32_0 = arith.constant 0 : i32
    %c0_i32_1 = arith.constant 0 : i32
    return %c0_i32, %c0_i32_0 : i32, i32
  }
  func.func @transform_6(%arg0: i32) -> (i32, i32) {
    %c0_i32 = arith.constant 0 : i32
    %c0_i32_0 = arith.constant 0 : i32
    return %arg0, %c0_i32 : i32, i32
  }
}

module attributes {stable_mosaic.version = 11 : i64} {
  func.func @_conv_pool_kernel(%arg0: i32, %arg1: memref<128x800xbf16, #tpu.memory_space<vmem>>, %arg2: memref<128x800xbf16, #tpu.memory_space<vmem>>, %arg3: memref<128x800xbf16, #tpu.memory_space<vmem>>, %arg4: memref<128x800xbf16, #tpu.memory_space<vmem>>, %arg5: memref<800x32xbf16, #tpu.memory_space<vmem>>, %arg6: memref<1x32xf32, #tpu.memory_space<vmem>>, %arg7: memref<128x32xbf16, #tpu.memory_space<vmem>>) attributes {dimension_semantics = [#tpu.dimension_semantics<parallel>], iteration_bounds = array<i64: 1>, scalar_prefetch = 0 : i64, scratch_operands = 0 : i64, tpu.core_type = #tpu.core_type<tc>, window_params = [{transform_indices = @transform_0, window_bounds = array<i64: 128, 800>}, {transform_indices = @transform_1, window_bounds = array<i64: 128, 800>}, {transform_indices = @transform_2, window_bounds = array<i64: 128, 800>}, {transform_indices = @transform_3, window_bounds = array<i64: 128, 800>}, {pipeline_mode = #tpu.pipeline_mode<synchronous>, transform_indices = @transform_4, window_bounds = array<i64: 800, 32>}, {pipeline_mode = #tpu.pipeline_mode<synchronous>, transform_indices = @transform_5, window_bounds = array<i64: 1, 32>}, {transform_indices = @transform_6, window_bounds = array<i64: 128, 32>}]} {
    %c0 = arith.constant 0 : index
    %c0_0 = arith.constant 0 : index
    %0 = vector.load %arg5[%c0, %c0_0] : memref<800x32xbf16, #tpu.memory_space<vmem>>, vector<800x32xbf16>
    %c0_1 = arith.constant 0 : index
    %c0_2 = arith.constant 0 : index
    %1 = vector.load %arg1[%c0_1, %c0_2] : memref<128x800xbf16, #tpu.memory_space<vmem>>, vector<128x800xbf16>
    %cst = arith.constant dense<0.000000e+00> : vector<128x32xf32>
    %2 = tpu.matmul %1, %0, %cst {dimension_numbers = #tpu.dot_dimension_numbers<[1], [0], [0], [1], [0, 0, 1, 1], [], []>} : vector<128x800xbf16>, vector<800x32xbf16>, vector<128x32xf32> -> vector<128x32xf32>
    %c0_3 = arith.constant 0 : index
    %c0_4 = arith.constant 0 : index
    %3 = vector.load %arg2[%c0_3, %c0_4] : memref<128x800xbf16, #tpu.memory_space<vmem>>, vector<128x800xbf16>
    %cst_5 = arith.constant dense<0.000000e+00> : vector<128x32xf32>
    %4 = tpu.matmul %3, %0, %cst_5 {dimension_numbers = #tpu.dot_dimension_numbers<[1], [0], [0], [1], [0, 0, 1, 1], [], []>} : vector<128x800xbf16>, vector<800x32xbf16>, vector<128x32xf32> -> vector<128x32xf32>
    %5 = arith.maximumf %2, %4 : vector<128x32xf32>
    %c0_6 = arith.constant 0 : index
    %c0_7 = arith.constant 0 : index
    %6 = vector.load %arg3[%c0_6, %c0_7] : memref<128x800xbf16, #tpu.memory_space<vmem>>, vector<128x800xbf16>
    %cst_8 = arith.constant dense<0.000000e+00> : vector<128x32xf32>
    %7 = tpu.matmul %6, %0, %cst_8 {dimension_numbers = #tpu.dot_dimension_numbers<[1], [0], [0], [1], [0, 0, 1, 1], [], []>} : vector<128x800xbf16>, vector<800x32xbf16>, vector<128x32xf32> -> vector<128x32xf32>
    %c0_9 = arith.constant 0 : index
    %c0_10 = arith.constant 0 : index
    %8 = vector.load %arg4[%c0_9, %c0_10] : memref<128x800xbf16, #tpu.memory_space<vmem>>, vector<128x800xbf16>
    %cst_11 = arith.constant dense<0.000000e+00> : vector<128x32xf32>
    %9 = tpu.matmul %8, %0, %cst_11 {dimension_numbers = #tpu.dot_dimension_numbers<[1], [0], [0], [1], [0, 0, 1, 1], [], []>} : vector<128x800xbf16>, vector<800x32xbf16>, vector<128x32xf32> -> vector<128x32xf32>
    %10 = arith.maximumf %7, %9 : vector<128x32xf32>
    %11 = arith.maximumf %5, %10 : vector<128x32xf32>
    %c0_12 = arith.constant 0 : index
    %c0_13 = arith.constant 0 : index
    %12 = vector.load %arg6[%c0_12, %c0_13] : memref<1x32xf32, #tpu.memory_space<vmem>>, vector<1x32xf32>
    %13 = vector.broadcast %12 : vector<1x32xf32> to vector<128x32xf32>
    %14 = arith.addf %11, %13 : vector<128x32xf32>
    %15 = arith.truncf %14 : vector<128x32xf32> to vector<128x32xbf16>
    %c0_14 = arith.constant 0 : index
    %c0_15 = arith.constant 0 : index
    %16 = vector.load %arg7[%c0_14, %c0_15] : memref<128x32xbf16, #tpu.memory_space<vmem>>, vector<128x32xbf16>
    tpu.vector_store %arg7[%c0_14, %c0_15], %15 {strides = array<i32>} : memref<128x32xbf16, #tpu.memory_space<vmem>>, vector<128x32xbf16>,
    return
  }
  func.func @transform_0(%arg0: i32) -> (i32, i32) {
    %c0_i32 = arith.constant 0 : i32
    %c0_i32_0 = arith.constant 0 : i32
    return %arg0, %c0_i32 : i32, i32
  }
  func.func @transform_1(%arg0: i32) -> (i32, i32) {
    %c0_i32 = arith.constant 0 : i32
    %c0_i32_0 = arith.constant 0 : i32
    return %arg0, %c0_i32 : i32, i32
  }
  func.func @transform_2(%arg0: i32) -> (i32, i32) {
    %c0_i32 = arith.constant 0 : i32
    %c0_i32_0 = arith.constant 0 : i32
    return %arg0, %c0_i32 : i32, i32
  }
  func.func @transform_3(%arg0: i32) -> (i32, i32) {
    %c0_i32 = arith.constant 0 : i32
    %c0_i32_0 = arith.constant 0 : i32
    return %arg0, %c0_i32 : i32, i32
  }
  func.func @transform_4(%arg0: i32) -> (i32, i32) {
    %c0_i32 = arith.constant 0 : i32
    %c0_i32_0 = arith.constant 0 : i32
    %c0_i32_1 = arith.constant 0 : i32
    return %c0_i32, %c0_i32_0 : i32, i32
  }
  func.func @transform_5(%arg0: i32) -> (i32, i32) {
    %c0_i32 = arith.constant 0 : i32
    %c0_i32_0 = arith.constant 0 : i32
    %c0_i32_1 = arith.constant 0 : i32
    return %c0_i32, %c0_i32_0 : i32, i32
  }
  func.func @transform_6(%arg0: i32) -> (i32, i32) {
    %c0_i32 = arith.constant 0 : i32
    %c0_i32_0 = arith.constant 0 : i32
    return %arg0, %c0_i32 : i32, i32
  }
}

module attributes {stable_mosaic.version = 11 : i64} {
  func.func @_conv_pool_kernel(%arg0: i32, %arg1: memref<32x800xbf16, #tpu.memory_space<vmem>>, %arg2: memref<32x800xbf16, #tpu.memory_space<vmem>>, %arg3: memref<32x800xbf16, #tpu.memory_space<vmem>>, %arg4: memref<32x800xbf16, #tpu.memory_space<vmem>>, %arg5: memref<800x64xbf16, #tpu.memory_space<vmem>>, %arg6: memref<1x64xf32, #tpu.memory_space<vmem>>, %arg7: memref<32x64xbf16, #tpu.memory_space<vmem>>) attributes {dimension_semantics = [#tpu.dimension_semantics<parallel>], iteration_bounds = array<i64: 1>, scalar_prefetch = 0 : i64, scratch_operands = 0 : i64, tpu.core_type = #tpu.core_type<tc>, window_params = [{transform_indices = @transform_0, window_bounds = array<i64: 32, 800>}, {transform_indices = @transform_1, window_bounds = array<i64: 32, 800>}, {transform_indices = @transform_2, window_bounds = array<i64: 32, 800>}, {transform_indices = @transform_3, window_bounds = array<i64: 32, 800>}, {pipeline_mode = #tpu.pipeline_mode<synchronous>, transform_indices = @transform_4, window_bounds = array<i64: 800, 64>}, {pipeline_mode = #tpu.pipeline_mode<synchronous>, transform_indices = @transform_5, window_bounds = array<i64: 1, 64>}, {transform_indices = @transform_6, window_bounds = array<i64: 32, 64>}]} {
    %c0 = arith.constant 0 : index
    %c0_0 = arith.constant 0 : index
    %0 = vector.load %arg5[%c0, %c0_0] : memref<800x64xbf16, #tpu.memory_space<vmem>>, vector<800x64xbf16>
    %c0_1 = arith.constant 0 : index
    %c0_2 = arith.constant 0 : index
    %1 = vector.load %arg1[%c0_1, %c0_2] : memref<32x800xbf16, #tpu.memory_space<vmem>>, vector<32x800xbf16>
    %cst = arith.constant dense<0.000000e+00> : vector<32x64xf32>
    %2 = tpu.matmul %1, %0, %cst {dimension_numbers = #tpu.dot_dimension_numbers<[1], [0], [0], [1], [0, 0, 1, 1], [], []>} : vector<32x800xbf16>, vector<800x64xbf16>, vector<32x64xf32> -> vector<32x64xf32>
    %c0_3 = arith.constant 0 : index
    %c0_4 = arith.constant 0 : index
    %3 = vector.load %arg2[%c0_3, %c0_4] : memref<32x800xbf16, #tpu.memory_space<vmem>>, vector<32x800xbf16>
    %cst_5 = arith.constant dense<0.000000e+00> : vector<32x64xf32>
    %4 = tpu.matmul %3, %0, %cst_5 {dimension_numbers = #tpu.dot_dimension_numbers<[1], [0], [0], [1], [0, 0, 1, 1], [], []>} : vector<32x800xbf16>, vector<800x64xbf16>, vector<32x64xf32> -> vector<32x64xf32>
    %5 = arith.maximumf %2, %4 : vector<32x64xf32>
    %c0_6 = arith.constant 0 : index
    %c0_7 = arith.constant 0 : index
    %6 = vector.load %arg3[%c0_6, %c0_7] : memref<32x800xbf16, #tpu.memory_space<vmem>>, vector<32x800xbf16>
    %cst_8 = arith.constant dense<0.000000e+00> : vector<32x64xf32>
    %7 = tpu.matmul %6, %0, %cst_8 {dimension_numbers = #tpu.dot_dimension_numbers<[1], [0], [0], [1], [0, 0, 1, 1], [], []>} : vector<32x800xbf16>, vector<800x64xbf16>, vector<32x64xf32> -> vector<32x64xf32>
    %c0_9 = arith.constant 0 : index
    %c0_10 = arith.constant 0 : index
    %8 = vector.load %arg4[%c0_9, %c0_10] : memref<32x800xbf16, #tpu.memory_space<vmem>>, vector<32x800xbf16>
    %cst_11 = arith.constant dense<0.000000e+00> : vector<32x64xf32>
    %9 = tpu.matmul %8, %0, %cst_11 {dimension_numbers = #tpu.dot_dimension_numbers<[1], [0], [0], [1], [0, 0, 1, 1], [], []>} : vector<32x800xbf16>, vector<800x64xbf16>, vector<32x64xf32> -> vector<32x64xf32>
    %10 = arith.maximumf %7, %9 : vector<32x64xf32>
    %11 = arith.maximumf %5, %10 : vector<32x64xf32>
    %c0_12 = arith.constant 0 : index
    %c0_13 = arith.constant 0 : index
    %12 = vector.load %arg6[%c0_12, %c0_13] : memref<1x64xf32, #tpu.memory_space<vmem>>, vector<1x64xf32>
    %13 = vector.broadcast %12 : vector<1x64xf32> to vector<32x64xf32>
    %14 = arith.addf %11, %13 : vector<32x64xf32>
    %15 = arith.truncf %14 : vector<32x64xf32> to vector<32x64xbf16>
    %c0_14 = arith.constant 0 : index
    %c0_15 = arith.constant 0 : index
    %16 = vector.load %arg7[%c0_14, %c0_15] : memref<32x64xbf16, #tpu.memory_space<vmem>>, vector<32x64xbf16>
    tpu.vector_store %arg7[%c0_14, %c0_15], %15 {strides = array<i32>} : memref<32x64xbf16, #tpu.memory_space<vmem>>, vector<32x64xbf16>,
    return
  }
  func.func @transform_0(%arg0: i32) -> (i32, i32) {
    %c0_i32 = arith.constant 0 : i32
    %c0_i32_0 = arith.constant 0 : i32
    return %arg0, %c0_i32 : i32, i32
  }
  func.func @transform_1(%arg0: i32) -> (i32, i32) {
    %c0_i32 = arith.constant 0 : i32
    %c0_i32_0 = arith.constant 0 : i32
    return %arg0, %c0_i32 : i32, i32
  }
  func.func @transform_2(%arg0: i32) -> (i32, i32) {
    %c0_i32 = arith.constant 0 : i32
    %c0_i32_0 = arith.constant 0 : i32
    return %arg0, %c0_i32 : i32, i32
  }
  func.func @transform_3(%arg0: i32) -> (i32, i32) {
    %c0_i32 = arith.constant 0 : i32
    %c0_i32_0 = arith.constant 0 : i32
    return %arg0, %c0_i32 : i32, i32
  }
  func.func @transform_4(%arg0: i32) -> (i32, i32) {
    %c0_i32 = arith.constant 0 : i32
    %c0_i32_0 = arith.constant 0 : i32
    %c0_i32_1 = arith.constant 0 : i32
    return %c0_i32, %c0_i32_0 : i32, i32
  }
  func.func @transform_5(%arg0: i32) -> (i32, i32) {
    %c0_i32 = arith.constant 0 : i32
    %c0_i32_0 = arith.constant 0 : i32
    %c0_i32_1 = arith.constant 0 : i32
    return %c0_i32, %c0_i32_0 : i32, i32
  }
  func.func @transform_6(%arg0: i32) -> (i32, i32) {
    %c0_i32 = arith.constant 0 : i32
    %c0_i32_0 = arith.constant 0 : i32
    return %arg0, %c0_i32 : i32, i32
  }
}

module attributes {stable_mosaic.version = 11 : i64} {
  func.func @_linear_kernel(%arg0: i32, %arg1: memref<2x1024xbf16, #tpu.memory_space<vmem>>, %arg2: memref<1024x10xbf16, #tpu.memory_space<vmem>>, %arg3: memref<1x10xf32, #tpu.memory_space<vmem>>, %arg4: memref<2x10xf32, #tpu.memory_space<vmem>>) attributes {dimension_semantics = [#tpu.dimension_semantics<parallel>], iteration_bounds = array<i64: 1>, scalar_prefetch = 0 : i64, scratch_operands = 0 : i64, tpu.core_type = #tpu.core_type<tc>, window_params = [{transform_indices = @transform_0, window_bounds = array<i64: 2, 1024>}, {pipeline_mode = #tpu.pipeline_mode<synchronous>, transform_indices = @transform_1, window_bounds = array<i64: 1024, 10>}, {pipeline_mode = #tpu.pipeline_mode<synchronous>, transform_indices = @transform_2, window_bounds = array<i64: 1, 10>}, {transform_indices = @transform_3, window_bounds = array<i64: 2, 10>}]} {
    %c0 = arith.constant 0 : index
    %c0_0 = arith.constant 0 : index
    %0 = vector.load %arg1[%c0, %c0_0] : memref<2x1024xbf16, #tpu.memory_space<vmem>>, vector<2x1024xbf16>
    %c0_1 = arith.constant 0 : index
    %c0_2 = arith.constant 0 : index
    %1 = vector.load %arg2[%c0_1, %c0_2] : memref<1024x10xbf16, #tpu.memory_space<vmem>>, vector<1024x10xbf16>
    %cst = arith.constant dense<0.000000e+00> : vector<2x10xf32>
    %2 = tpu.matmul %0, %1, %cst {dimension_numbers = #tpu.dot_dimension_numbers<[1], [0], [0], [1], [0, 0, 1, 1], [], []>} : vector<2x1024xbf16>, vector<1024x10xbf16>, vector<2x10xf32> -> vector<2x10xf32>
    %c0_3 = arith.constant 0 : index
    %c0_4 = arith.constant 0 : index
    %3 = vector.load %arg3[%c0_3, %c0_4] : memref<1x10xf32, #tpu.memory_space<vmem>>, vector<1x10xf32>
    %4 = vector.broadcast %3 : vector<1x10xf32> to vector<2x10xf32>
    %5 = arith.addf %2, %4 : vector<2x10xf32>
    %c0_5 = arith.constant 0 : index
    %c0_6 = arith.constant 0 : index
    %6 = vector.load %arg4[%c0_5, %c0_6] : memref<2x10xf32, #tpu.memory_space<vmem>>, vector<2x10xf32>
    tpu.vector_store %arg4[%c0_5, %c0_6], %5 {strides = array<i32>} : memref<2x10xf32, #tpu.memory_space<vmem>>, vector<2x10xf32>,
    return
  }
  func.func @transform_0(%arg0: i32) -> (i32, i32) {
    %c0_i32 = arith.constant 0 : i32
    %c0_i32_0 = arith.constant 0 : i32
    return %arg0, %c0_i32 : i32, i32
  }
  func.func @transform_1(%arg0: i32) -> (i32, i32) {
    %c0_i32 = arith.constant 0 : i32
    %c0_i32_0 = arith.constant 0 : i32
    %c0_i32_1 = arith.constant 0 : i32
    return %c0_i32, %c0_i32_0 : i32, i32
  }
  func.func @transform_2(%arg0: i32) -> (i32, i32) {
    %c0_i32 = arith.constant 0 : i32
    %c0_i32_0 = arith.constant 0 : i32
    %c0_i32_1 = arith.constant 0 : i32
    return %c0_i32, %c0_i32_0 : i32, i32
  }
  func.func @transform_3(%arg0: i32) -> (i32, i32) {
    %c0_i32 = arith.constant 0 : i32
    %c0_i32_0 = arith.constant 0 : i32
    return %arg0, %c0_i32 : i32, i32
  }
}

</mosaic_0001>

<llo_original>
// kernel: hgl_forward.4
$region0: #{hgl_forward.4}
  #allocation0 [shape = 'u32[]', space=smem, size = 0x4, offset = 0x4, fixed_abs, tag = 'smem constant byte address 0x4 - core index']
  #allocation1 [shape = 'u32[144,128]{1,0:T(1,128)}', space=vmem, size = 0x12000, scoped, tag = 'internal scratch']
  %s0 = inlined_call_operand.vmem [shape: bf16[512,75], index: 0, kind: input, shape index: {}]
  %s1 = inlined_call_operand.vmem [shape: bf16[512,75], index: 1, kind: input, shape index: {}]
  %s2 = inlined_call_operand.vmem [shape: bf16[512,75], index: 2, kind: input, shape index: {}]
  %s3 = inlined_call_operand.vmem [shape: bf16[512,75], index: 3, kind: input, shape index: {}]
  %s4 = inlined_call_operand.vmem [shape: bf16[75,32], index: 4, kind: input, shape index: {}]
  %s5 = inlined_call_operand.vmem [shape: f32[1,32], index: 5, kind: input, shape index: {}]
  %s6 = inlined_call_operand.vmem [shape: bf16[512,32], index: 6, kind: output, shape index: {}]
  %s7 = sld [smem:[#allocation0]]
  $region34: #{hgl_forward.4} parent=0
    _
  %s9 = ssub.s32 1, %s7
  %s10 = scalar_select 0, %s9, %s7
  // Predicated region
  $region2: #{hgl_forward.4} parent=0 // pred_check
    _
  $region3: #{hgl_forward.4} parent=0 // pred_check_branch
    %12 = sbr.rel (0) target = $region5
  $region4: #{hgl_forward.4} parent=0 // pred_region
    _
  $region5: #{hgl_forward.4} parent=0 // pred_fallthru
    _
  // Predicated region
  $region6: #{hgl_forward.4} parent=0 // pred_check
    _
  $region7: #{hgl_forward.4} parent=0 // pred_check_branch
    %14 = sbr.rel (0) target = $region9
  $region8: #{hgl_forward.4} parent=0 // pred_region
    _
  $region9: #{hgl_forward.4} parent=0 // pred_fallthru
    _
  // Predicated region
  $region10: #{hgl_forward.4} parent=0 // pred_check
    _
  $region11: #{hgl_forward.4} parent=0 // pred_check_branch
    %16 = sbr.rel (0) target = $region13
  $region12: #{hgl_forward.4} parent=0 // pred_region
    _
  $region13: #{hgl_forward.4} parent=0 // pred_fallthru
    _
  // Predicated region
  $region14: #{hgl_forward.4} parent=0 // pred_check
    _
  $region15: #{hgl_forward.4} parent=0 // pred_check_branch
    %18 = sbr.rel (0) target = $region17
  $region16: #{hgl_forward.4} parent=0 // pred_region
    _
  $region17: #{hgl_forward.4} parent=0 // pred_fallthru
    _
  // Predicated region
  $region18: #{hgl_forward.4} parent=0 // pred_check
    _
  $region19: #{hgl_forward.4} parent=0 // pred_check_branch
    %20 = sbr.rel (0) target = $region21
  $region20: #{hgl_forward.4} parent=0 // pred_region
    _
  $region21: #{hgl_forward.4} parent=0 // pred_fallthru
    _
  // Predicated region
  $region22: #{hgl_forward.4} parent=0 // pred_check
    _
  $region23: #{hgl_forward.4} parent=0 // pred_check_branch
    %22 = sbr.rel (0) target = $region25
  $region24: #{hgl_forward.4} parent=0 // pred_region
    _
  $region25: #{hgl_forward.4} parent=0 // pred_fallthru
    _
  %v24 = vld [vmem:[%s4] sm:$0xf]
  %v25 = vld [vmem:[%s4 + $0x4] sm:$0xf]
  %v26 = vld [vmem:[%s4 + $0x8] sm:$0xf]
  %v27 = vld [vmem:[%s4 + $0xc] sm:$0xf]
  %v28 = vld [vmem:[%s4 + $0x10] sm:$0xf]
  %v29 = vld [vmem:[%s4 + $0x14] sm:$0xf]
  %v30 = vld [vmem:[%s4 + $0x18] sm:$0xf]
  %v31 = vld [vmem:[%s4 + $0x1c] sm:$0xf]
  %v32 = vld [vmem:[%s4 + $0x20] sm:$0xf]
  %v33 = vld [vmem:[%s4 + $0x24] sm:$0x3]
  %v34 = vld [vmem:[%s0] sm:$0xf]
  %v35 = vld [vmem:[%s0 + $0x4] sm:$0xf]
  %v36 = vld [vmem:[%s0 + $0x8] sm:$0xf]
  %v37 = vld [vmem:[%s0 + $0xc] sm:$0xf]
  %v38 = vld [vmem:[%s0 + $0x10] sm:$0xf]
  %v39 = vld [vmem:[%s0 + $0x14] sm:$0xf]
  %v40 = vld [vmem:[%s0 + $0x18] sm:$0xf]
  %v41 = vld [vmem:[%s0 + $0x1c] sm:$0xf]
  %v42 = vld [vmem:[%s0 + $0x20] sm:$0xf]
  %v43 = vld [vmem:[%s0 + $0x24] sm:$0xf]
  %v44 = vld [vmem:[%s0 + $0x28] sm:$0xf]
  %v45 = vld [vmem:[%s0 + $0x2c] sm:$0xf]
  %v46 = vld [vmem:[%s0 + $0x30] sm:$0xf]
  %v47 = vld [vmem:[%s0 + $0x34] sm:$0xf]
  %v48 = vld [vmem:[%s0 + $0x38] sm:$0xf]
  %v49 = vld [vmem:[%s0 + $0x3c] sm:$0xf]
  %v50 = vld [vmem:[%s0 + $0x40] sm:$0xf]
  %v51 = vld [vmem:[%s0 + $0x44] sm:$0xf]
  %v52 = vld [vmem:[%s0 + $0x48] sm:$0xf]
  %v53 = vld [vmem:[%s0 + $0x4c] sm:$0xf]
  %v54 = vld [vmem:[%s0 + $0x50] sm:$0xf]
  %v55 = vld [vmem:[%s0 + $0x54] sm:$0xf]
  %v56 = vld [vmem:[%s0 + $0x58] sm:$0xf]
  %v57 = vld [vmem:[%s0 + $0x5c] sm:$0xf]
  %v58 = vld [vmem:[%s0 + $0x60] sm:$0xf]
  %v59 = vld [vmem:[%s0 + $0x64] sm:$0xf]
  %v60 = vld [vmem:[%s0 + $0x68] sm:$0xf]
  %v61 = vld [vmem:[%s0 + $0x6c] sm:$0xf]
  %v62 = vld [vmem:[%s0 + $0x70] sm:$0xf]
  %v63 = vld [vmem:[%s0 + $0x74] sm:$0xf]
  %v64 = vld [vmem:[%s0 + $0x78] sm:$0xf]
  %v65 = vld [vmem:[%s0 + $0x7c] sm:$0xf]
  %v66 = vld [vmem:[%s0 + $0x80] sm:$0xf]
  %v67 = vld [vmem:[%s0 + $0x84] sm:$0xf]
  %v68 = vld [vmem:[%s0 + $0x88] sm:$0xf]
  %v69 = vld [vmem:[%s0 + $0x8c] sm:$0xf]
  %v70 = vld [vmem:[%s0 + $0x90] sm:$0xf]
  %v71 = vld [vmem:[%s0 + $0x94] sm:$0xf]
  %v72 = vld [vmem:[%s0 + $0x98] sm:$0xf]
  %v73 = vld [vmem:[%s0 + $0x9c] sm:$0xf]
  %v74 = vld [vmem:[%s0 + $0xa0] sm:$0xf]
  %v75 = vld [vmem:[%s0 + $0xa4] sm:$0xf]
  %v76 = vld [vmem:[%s0 + $0xa8] sm:$0xf]
  %v77 = vld [vmem:[%s0 + $0xac] sm:$0xf]
  %v78 = vld [vmem:[%s0 + $0xb0] sm:$0xf]
  %v79 = vld [vmem:[%s0 + $0xb4] sm:$0xf]
  %v80 = vld [vmem:[%s0 + $0xb8] sm:$0xf]
  %v81 = vld [vmem:[%s0 + $0xbc] sm:$0xf]
  %v82 = vld [vmem:[%s0 + $0xc0] sm:$0xf]
  %v83 = vld [vmem:[%s0 + $0xc4] sm:$0xf]
  %v84 = vld [vmem:[%s0 + $0xc8] sm:$0xf]
  %v85 = vld [vmem:[%s0 + $0xcc] sm:$0xf]
  %v86 = vld [vmem:[%s0 + $0xd0] sm:$0xf]
  %v87 = vld [vmem:[%s0 + $0xd4] sm:$0xf]
  %v88 = vld [vmem:[%s0 + $0xd8] sm:$0xf]
  %v89 = vld [vmem:[%s0 + $0xdc] sm:$0xf]
  %v90 = vld [vmem:[%s0 + $0xe0] sm:$0xf]
  %v91 = vld [vmem:[%s0 + $0xe4] sm:$0xf]
  %v92 = vld [vmem:[%s0 + $0xe8] sm:$0xf]
  %v93 = vld [vmem:[%s0 + $0xec] sm:$0xf]
  %v94 = vld [vmem:[%s0 + $0xf0] sm:$0xf]
  %v95 = vld [vmem:[%s0 + $0xf4] sm:$0xf]
  %v96 = vld [vmem:[%s0 + $0xf8] sm:$0xf]
  %v97 = vld [vmem:[%s0 + $0xfc] sm:$0xf]
  %v162 = vunpack.c.l.b16 %v34
  %v163 = vunpack.c.l.b16 %v35
  %v164 = vunpack.c.l.b16 %v36
  %v165 = vunpack.c.l.b16 %v37
  %v166 = vunpack.c.l.b16 %v38
  %v167 = vunpack.c.l.b16 %v39
  %v168 = vunpack.c.l.b16 %v40
  %v169 = vunpack.c.l.b16 %v41
  %v170 = vunpack.c.l.b16 %v42
  %v171 = vunpack.c.l.b16 %v43
  %v172 = vunpack.c.l.b16 %v44
  %v173 = vunpack.c.l.b16 %v45
  %v174 = vunpack.c.l.b16 %v46
  %v175 = vunpack.c.l.b16 %v47
  %v176 = vunpack.c.l.b16 %v48
  %v177 = vunpack.c.l.b16 %v49
  %v178 = vunpack.c.l.b16 %v50
  %v179 = vunpack.c.l.b16 %v51
  %v180 = vunpack.c.l.b16 %v52
  %v181 = vunpack.c.l.b16 %v53
  %v182 = vunpack.c.l.b16 %v54
  %v183 = vunpack.c.l.b16 %v55
  %v184 = vunpack.c.l.b16 %v56
  %v185 = vunpack.c.l.b16 %v57
  %v186 = vunpack.c.l.b16 %v58
  %v187 = vunpack.c.l.b16 %v59
  %v188 = vunpack.c.l.b16 %v60
  %v189 = vunpack.c.l.b16 %v61
  %v190 = vunpack.c.l.b16 %v62
  %v191 = vunpack.c.l.b16 %v63
  %v192 = vunpack.c.l.b16 %v64
  %v193 = vunpack.c.l.b16 %v65
  %v194 = vunpack.c.l.b16 %v66
  %v195 = vunpack.c.l.b16 %v67
  %v196 = vunpack.c.l.b16 %v68
  %v197 = vunpack.c.l.b16 %v69
  %v198 = vunpack.c.l.b16 %v70
  %v199 = vunpack.c.l.b16 %v71
  %v200 = vunpack.c.l.b16 %v72
  %v201 = vunpack.c.l.b16 %v73
  %v202 = vunpack.c.l.b16 %v74
  %v203 = vunpack.c.l.b16 %v75
  %v204 = vunpack.c.l.b16 %v76
  %v205 = vunpack.c.l.b16 %v77
  %v206 = vunpack.c.l.b16 %v78
  %v207 = vunpack.c.l.b16 %v79
  %v208 = vunpack.c.l.b16 %v80
  %v209 = vunpack.c.l.b16 %v81
  %v210 = vunpack.c.l.b16 %v82
  %v211 = vunpack.c.l.b16 %v83
  %v212 = vunpack.c.l.b16 %v84
  %v213 = vunpack.c.l.b16 %v85
  %v214 = vunpack.c.l.b16 %v86
  %v215 = vunpack.c.l.b16 %v87
  %v216 = vunpack.c.l.b16 %v88
  %v217 = vunpack.c.l.b16 %v89
  %v218 = vunpack.c.l.b16 %v90
  %v219 = vunpack.c.l.b16 %v91
  %v220 = vunpack.c.l.b16 %v92
  %v221 = vunpack.c.l.b16 %v93
  %v222 = vunpack.c.l.b16 %v94
  %v223 = vunpack.c.l.b16 %v95
  %v224 = vunpack.c.l.b16 %v96
  %v225 = vunpack.c.l.b16 %v97
  %v226 = vpack.c.b16 %v163, %v162
  %v227 = vpack.c.b16 %v165, %v164
  %v228 = vpack.c.b16 %v167, %v166
  %v229 = vpack.c.b16 %v169, %v168
  %v230 = vpack.c.b16 %v171, %v170
  %v231 = vpack.c.b16 %v173, %v172
  %v232 = vpack.c.b16 %v175, %v174
  %v233 = vpack.c.b16 %v177, %v176
  %v234 = vpack.c.b16 %v179, %v178
  %v235 = vpack.c.b16 %v181, %v180
  %v236 = vpack.c.b16 %v183, %v182
  %v237 = vpack.c.b16 %v185, %v184
  %v238 = vpack.c.b16 %v187, %v186
  %v239 = vpack.c.b16 %v189, %v188
  %v240 = vpack.c.b16 %v191, %v190
  %v241 = vpack.c.b16 %v193, %v192
  %v242 = vpack.c.b16 %v195, %v194
  %v243 = vpack.c.b16 %v197, %v196
  %v244 = vpack.c.b16 %v199, %v198
  %v245 = vpack.c.b16 %v201, %v200
  %v246 = vpack.c.b16 %v203, %v202
  %v247 = vpack.c.b16 %v205, %v204
  %v248 = vpack.c.b16 %v207, %v206
  %v249 = vpack.c.b16 %v209, %v208
  %v250 = vpack.c.b16 %v211, %v210
  %v251 = vpack.c.b16 %v213, %v212
  %v252 = vpack.c.b16 %v215, %v214
  %v253 = vpack.c.b16 %v217, %v216
  %v254 = vpack.c.b16 %v219, %v218
  %v255 = vpack.c.b16 %v221, %v220
  %v256 = vpack.c.b16 %v223, %v222
  %v257 = vpack.c.b16 %v225, %v224
  %v268 = vunpack.c.l.b16 %v24
  %v269 = vunpack.c.l.b16 %v25
  %v270 = vunpack.c.l.b16 %v26
  %v271 = vunpack.c.l.b16 %v27
  %v272 = vunpack.c.l.b16 %v28
  %v273 = vunpack.c.l.b16 %v29
  %v274 = vunpack.c.l.b16 %v30
  %v275 = vunpack.c.l.b16 %v31
  %v276 = vunpack.c.l.b16 %v32
  %v277 = vunpack.c.l.b16 %v33
  %v278 = vpack.c.b16 %v269, %v268
  %v279 = vpack.c.b16 %v271, %v270
  %v280 = vpack.c.b16 %v273, %v272
  %v281 = vpack.c.b16 %v275, %v274
  %v282 = vpack.c.b16 %v277, %v276
  %vm287 = vcmask 613376
  %v289 = vsel %vm287, %v226, 0
  %v292 = vsel %vm287, %v227, 0
  %v295 = vsel %vm287, %v228, 0
  %v298 = vsel %vm287, %v229, 0
  %v301 = vsel %vm287, %v230, 0
  %v304 = vsel %vm287, %v231, 0
  %v307 = vsel %vm287, %v232, 0
  %v310 = vsel %vm287, %v233, 0
  %v313 = vsel %vm287, %v234, 0
  %v316 = vsel %vm287, %v235, 0
  %v319 = vsel %vm287, %v236, 0
  %v322 = vsel %vm287, %v237, 0
  %v325 = vsel %vm287, %v238, 0
  %v328 = vsel %vm287, %v239, 0
  %v331 = vsel %vm287, %v240, 0
  %v334 = vsel %vm287, %v241, 0
  %v337 = vsel %vm287, %v242, 0
  %v340 = vsel %vm287, %v243, 0
  %v343 = vsel %vm287, %v244, 0
  %v346 = vsel %vm287, %v245, 0
  %v349 = vsel %vm287, %v246, 0
  %v352 = vsel %vm287, %v247, 0
  %v355 = vsel %vm287, %v248, 0
  %v358 = vsel %vm287, %v249, 0
  %v361 = vsel %vm287, %v250, 0
  %v364 = vsel %vm287, %v251, 0
  %v367 = vsel %vm287, %v252, 0
  %v370 = vsel %vm287, %v253, 0
  %v373 = vsel %vm287, %v254, 0
  %v376 = vsel %vm287, %v255, 0
  %v379 = vsel %vm287, %v256, 0
  %v382 = vsel %vm287, %v257, 0
  %vm384 = vcmask 1044480
  %vm385 = vcmask 1045504
  %v386 = vsel %vm384, 4294967295, 65535
  %v387 = vsel %vm385, %v386, 0
  %v389 = vand.u32 %v282, %v387
  %391 = vmatprep.subr.bf16.mxu0 0
  %392 = vmatpush1.bf16.msra.mxu0 0
  %393 = vmatprep.subr.bf16.mxu0 0
  %394 = vmatpush1.bf16.msra.mxu0 0
  %395 = vmatprep.subr.bf16.mxu0 0
  %396 = vmatpush1.bf16.msra.mxu0 0
  %397 = vmatprep.subr.bf16.mxu0 0
  %398 = vmatpush1.bf16.msra.mxu0 %v389
  %399 = vmatprep.subr.bf16.mxu0 0
  %400 = vmatpush1.bf16.msra.mxu0 %v281
  %401 = vmatprep.subr.bf16.mxu0 0
  %402 = vmatpush1.bf16.msra.mxu0 %v280
  %403 = vmatprep.subr.bf16.mxu0 0
  %404 = vmatpush1.bf16.msra.mxu0 %v279
  %405 = vmatprep.subr.bf16.mxu0 0
  %406 = vmatpush1.bf16.msra.mxu0 %v278
  %407 = vmatprep.subr.bf16.mxu0 0
  %408 = vmatpush2.bf16.msra.mxu0 0
  %409 = vmatprep.subr.bf16.mxu0 0
  %410 = vmatpush2.bf16.msra.mxu0 0
  %411 = vmatprep.subr.bf16.mxu0 0
  %412 = vmatpush2.bf16.msra.mxu0 0
  %413 = vmatprep.subr.bf16.mxu0 0
  %414 = vmatpush2.bf16.msra.mxu0 0
  %415 = vmatprep.subr.bf16.mxu0 0
  %416 = vmatpush2.bf16.msra.mxu0 0
  %417 = vmatprep.subr.bf16.mxu0 0
  %418 = vmatpush2.bf16.msra.mxu0 0
  %419 = vmatprep.subr.bf16.mxu0 0
  %420 = vmatpush2.bf16.msra.mxu0 0
  %421 = vmatprep.subr.bf16.mxu0 0
  %422 = vmatpush2.bf16.msra.mxu0 0
  %423 = vmatprep.mubr.bf16.mxu0 0
  %424 = vmatmul.mubr.bf16.gmra.mxu0 %v289
  %v425 = vpop.f32.mrf.mxu0
  %v426 = vadd.f32 0.0, %v425
  %v427 = vpop.f32.mrf.mxu0
  %v428 = vpop.f32.mrf.mxu0
  %v429 = vadd.f32 0.0, %v428
  %v430 = vpop.f32.mrf.mxu0
  %431 = vmatprep.mubr.bf16.mxu0 0
  %432 = vmatmul.mubr.bf16.gmra.mxu0 %v292
  %v433 = vpop.f32.mrf.mxu0
  %v434 = vadd.f32 0.0, %v433
  %v435 = vpop.f32.mrf.mxu0
  %v436 = vpop.f32.mrf.mxu0
  %v437 = vadd.f32 0.0, %v436
  %v438 = vpop.f32.mrf.mxu0
  %439 = vmatprep.mubr.bf16.mxu0 0
  %440 = vmatmul.mubr.bf16.gmra.mxu0 %v295
  %v441 = vpop.f32.mrf.mxu0
  %v442 = vadd.f32 0.0, %v441
  %v443 = vpop.f32.mrf.mxu0
  %v444 = vpop.f32.mrf.mxu0
  %v445 = vadd.f32 0.0, %v444
  %v446 = vpop.f32.mrf.mxu0
  %447 = vmatprep.mubr.bf16.mxu0 0
  %448 = vmatmul.mubr.bf16.gmra.mxu0 %v298
  %v449 = vpop.f32.mrf.mxu0
  %v450 = vadd.f32 0.0, %v449
  %v451 = vpop.f32.mrf.mxu0
  %v452 = vpop.f32.mrf.mxu0
  %v453 = vadd.f32 0.0, %v452
  %v454 = vpop.f32.mrf.mxu0
  %455 = vmatprep.mubr.bf16.mxu0 0
  %456 = vmatmul.mubr.bf16.gmra.mxu0 %v301
  %v457 = vpop.f32.mrf.mxu0
  %v458 = vadd.f32 0.0, %v457
  %v459 = vpop.f32.mrf.mxu0
  %v460 = vpop.f32.mrf.mxu0
  %v461 = vadd.f32 0.0, %v460
  %v462 = vpop.f32.mrf.mxu0
  %463 = vmatprep.mubr.bf16.mxu0 0
  %464 = vmatmul.mubr.bf16.gmra.mxu0 %v304
  %v465 = vpop.f32.mrf.mxu0
  %v466 = vadd.f32 0.0, %v465
  %v467 = vpop.f32.mrf.mxu0
  %v468 = vpop.f32.mrf.mxu0
  %v469 = vadd.f32 0.0, %v468
  %v470 = vpop.f32.mrf.mxu0
  %471 = vmatprep.mubr.bf16.mxu0 0
  %472 = vmatmul.mubr.bf16.gmra.mxu0 %v307
  %v473 = vpop.f32.mrf.mxu0
  %v474 = vadd.f32 0.0, %v473
  %v475 = vpop.f32.mrf.mxu0
  %v476 = vpop.f32.mrf.mxu0
  %v477 = vadd.f32 0.0, %v476
  %v478 = vpop.f32.mrf.mxu0
  %479 = vmatprep.mubr.bf16.mxu0 0
  %480 = vmatmul.mubr.bf16.gmra.mxu0 %v310
  %v481 = vpop.f32.mrf.mxu0
  %v482 = vadd.f32 0.0, %v481
  %v483 = vpop.f32.mrf.mxu0
  %v484 = vpop.f32.mrf.mxu0
  %v485 = vadd.f32 0.0, %v484
  %v486 = vpop.f32.mrf.mxu0
  %487 = vmatprep.mubr.bf16.mxu0 0
  %488 = vmatmul.mubr.bf16.gmra.mxu0 %v313
  %v489 = vpop.f32.mrf.mxu0
  %v490 = vadd.f32 0.0, %v489
  %v491 = vpop.f32.mrf.mxu0
  %v492 = vpop.f32.mrf.mxu0
  %v493 = vadd.f32 0.0, %v492
  %v494 = vpop.f32.mrf.mxu0
  %495 = vmatprep.mubr.bf16.mxu0 0
  %496 = vmatmul.mubr.bf16.gmra.mxu0 %v316
  %v497 = vpop.f32.mrf.mxu0
  %v498 = vadd.f32 0.0, %v497
  %v499 = vpop.f32.mrf.mxu0
  %v500 = vpop.f32.mrf.mxu0
  %v501 = vadd.f32 0.0, %v500
  %v502 = vpop.f32.mrf.mxu0
  %503 = vmatprep.mubr.bf16.mxu0 0
  %504 = vmatmul.mubr.bf16.gmra.mxu0 %v319
  %v505 = vpop.f32.mrf.mxu0
  %v506 = vadd.f32 0.0, %v505
  %v507 = vpop.f32.mrf.mxu0
  %v508 = vpop.f32.mrf.mxu0
  %v509 = vadd.f32 0.0, %v508
  %v510 = vpop.f32.mrf.mxu0
  %511 = vmatprep.mubr.bf16.mxu0 0
  %512 = vmatmul.mubr.bf16.gmra.mxu0 %v322
  %v513 = vpop.f32.mrf.mxu0
  %v514 = vadd.f32 0.0, %v513
  %v515 = vpop.f32.mrf.mxu0
  %v516 = vpop.f32.mrf.mxu0
  %v517 = vadd.f32 0.0, %v516
  %v518 = vpop.f32.mrf.mxu0
  %519 = vmatprep.mubr.bf16.mxu0 0
  %520 = vmatmul.mubr.bf16.gmra.mxu0 %v325
  %v521 = vpop.f32.mrf.mxu0
  %v522 = vadd.f32 0.0, %v521
  %v523 = vpop.f32.mrf.mxu0
  %v524 = vpop.f32.mrf.mxu0
  %v525 = vadd.f32 0.0, %v524
  %v526 = vpop.f32.mrf.mxu0
  %527 = vmatprep.mubr.bf16.mxu0 0
  %528 = vmatmul.mubr.bf16.gmra.mxu0 %v328
  %v529 = vpop.f32.mrf.mxu0
  %v530 = vadd.f32 0.0, %v529
  %v531 = vpop.f32.mrf.mxu0
  %v532 = vpop.f32.mrf.mxu0
  %v533 = vadd.f32 0.0, %v532
  %v534 = vpop.f32.mrf.mxu0
  %535 = vmatprep.mubr.bf16.mxu0 0
  %536 = vmatmul.mubr.bf16.gmra.mxu0 %v331
  %v537 = vpop.f32.mrf.mxu0
  %v538 = vadd.f32 0.0, %v537
  %v539 = vpop.f32.mrf.mxu0
  %v540 = vpop.f32.mrf.mxu0
  %v541 = vadd.f32 0.0, %v540
  %v542 = vpop.f32.mrf.mxu0
  %543 = vmatprep.mubr.bf16.mxu0 0
  %544 = vmatmul.mubr.bf16.gmra.mxu0 %v334
  %v545 = vpop.f32.mrf.mxu0
  %v546 = vadd.f32 0.0, %v545
  %v547 = vpop.f32.mrf.mxu0
  %v548 = vpop.f32.mrf.mxu0
  %v549 = vadd.f32 0.0, %v548
  %v550 = vpop.f32.mrf.mxu0
  %551 = vmatprep.mubr.bf16.mxu0 0
  %552 = vmatmul.mubr.bf16.gmra.mxu0 %v337
  %v553 = vpop.f32.mrf.mxu0
  %v554 = vadd.f32 0.0, %v553
  %v555 = vpop.f32.mrf.mxu0
  %v556 = vpop.f32.mrf.mxu0
  %v557 = vadd.f32 0.0, %v556
  %v558 = vpop.f32.mrf.mxu0
  %559 = vmatprep.mubr.bf16.mxu0 0
  %560 = vmatmul.mubr.bf16.gmra.mxu0 %v340
  %v561 = vpop.f32.mrf.mxu0
  %v562 = vadd.f32 0.0, %v561
  %v563 = vpop.f32.mrf.mxu0
  %v564 = vpop.f32.mrf.mxu0
  %v565 = vadd.f32 0.0, %v564
  %v566 = vpop.f32.mrf.mxu0
  %567 = vmatprep.mubr.bf16.mxu0 0
  %568 = vmatmul.mubr.bf16.gmra.mxu0 %v343
  %v569 = vpop.f32.mrf.mxu0
  %v570 = vadd.f32 0.0, %v569
  %v571 = vpop.f32.mrf.mxu0
  %v572 = vpop.f32.mrf.mxu0
  %v573 = vadd.f32 0.0, %v572
  %v574 = vpop.f32.mrf.mxu0
  %575 = vmatprep.mubr.bf16.mxu0 0
  %576 = vmatmul.mubr.bf16.gmra.mxu0 %v346
  %v577 = vpop.f32.mrf.mxu0
  %v578 = vadd.f32 0.0, %v577
  %v579 = vpop.f32.mrf.mxu0
  %v580 = vpop.f32.mrf.mxu0
  %v581 = vadd.f32 0.0, %v580
  %v582 = vpop.f32.mrf.mxu0
  %583 = vmatprep.mubr.bf16.mxu0 0
  %584 = vmatmul.mubr.bf16.gmra.mxu0 %v349
  %v585 = vpop.f32.mrf.mxu0
  %v586 = vadd.f32 0.0, %v585
  %v587 = vpop.f32.mrf.mxu0
  %v588 = vpop.f32.mrf.mxu0
  %v589 = vadd.f32 0.0, %v588
  %v590 = vpop.f32.mrf.mxu0
  %591 = vmatprep.mubr.bf16.mxu0 0
  %592 = vmatmul.mubr.bf16.gmra.mxu0 %v352
  %v593 = vpop.f32.mrf.mxu0
  %v594 = vadd.f32 0.0, %v593
  %v595 = vpop.f32.mrf.mxu0
  %v596 = vpop.f32.mrf.mxu0
  %v597 = vadd.f32 0.0, %v596
  %v598 = vpop.f32.mrf.mxu0
  %599 = vmatprep.mubr.bf16.mxu0 0
  %600 = vmatmul.mubr.bf16.gmra.mxu0 %v355
  %v601 = vpop.f32.mrf.mxu0
  %v602 = vadd.f32 0.0, %v601
  %v603 = vpop.f32.mrf.mxu0
  %v604 = vpop.f32.mrf.mxu0
  %v605 = vadd.f32 0.0, %v604
  %v606 = vpop.f32.mrf.mxu0
  %607 = vmatprep.mubr.bf16.mxu0 0
  %608 = vmatmul.mubr.bf16.gmra.mxu0 %v358
  %v609 = vpop.f32.mrf.mxu0
  %v610 = vadd.f32 0.0, %v609
  %v611 = vpop.f32.mrf.mxu0
  %v612 = vpop.f32.mrf.mxu0
  %v613 = vadd.f32 0.0, %v612
  %v614 = vpop.f32.mrf.mxu0
  %615 = vmatprep.mubr.bf16.mxu0 0
  %616 = vmatmul.mubr.bf16.gmra.mxu0 %v361
  %v617 = vpop.f32.mrf.mxu0
  %v618 = vadd.f32 0.0, %v617
  %v619 = vpop.f32.mrf.mxu0
  %v620 = vpop.f32.mrf.mxu0
  %v621 = vadd.f32 0.0, %v620
  %v622 = vpop.f32.mrf.mxu0
  %623 = vmatprep.mubr.bf16.mxu0 0
  %624 = vmatmul.mubr.bf16.gmra.mxu0 %v364
  %v625 = vpop.f32.mrf.mxu0
  %v626 = vadd.f32 0.0, %v625
  %v627 = vpop.f32.mrf.mxu0
  %v628 = vpop.f32.mrf.mxu0
  %v629 = vadd.f32 0.0, %v628
  %v630 = vpop.f32.mrf.mxu0
  %631 = vmatprep.mubr.bf16.mxu0 0
  %632 = vmatmul.mubr.bf16.gmra.mxu0 %v367
  %v633 = vpop.f32.mrf.mxu0
  %v634 = vadd.f32 0.0, %v633
  %v635 = vpop.f32.mrf.mxu0
  %v636 = vpop.f32.mrf.mxu0
  %v637 = vadd.f32 0.0, %v636
  %v638 = vpop.f32.mrf.mxu0
  %639 = vmatprep.mubr.bf16.mxu0 0
  %640 = vmatmul.mubr.bf16.gmra.mxu0 %v370
  %v641 = vpop.f32.mrf.mxu0
  %v642 = vadd.f32 0.0, %v641
  %v643 = vpop.f32.mrf.mxu0
  %v644 = vpop.f32.mrf.mxu0
  %v645 = vadd.f32 0.0, %v644
  %v646 = vpop.f32.mrf.mxu0
  %647 = vmatprep.mubr.bf16.mxu0 0
  %648 = vmatmul.mubr.bf16.gmra.mxu0 %v373
  %v649 = vpop.f32.mrf.mxu0
  %v650 = vadd.f32 0.0, %v649
  %v651 = vpop.f32.mrf.mxu0
  %v652 = vpop.f32.mrf.mxu0
  %v653 = vadd.f32 0.0, %v652
  %v654 = vpop.f32.mrf.mxu0
  %655 = vmatprep.mubr.bf16.mxu0 0
  %656 = vmatmul.mubr.bf16.gmra.mxu0 %v376
  %v657 = vpop.f32.mrf.mxu0
  %v658 = vadd.f32 0.0, %v657
  %v659 = vpop.f32.mrf.mxu0
  %v660 = vpop.f32.mrf.mxu0
  %v661 = vadd.f32 0.0, %v660
  %v662 = vpop.f32.mrf.mxu0
  %663 = vmatprep.mubr.bf16.mxu0 0
  %664 = vmatmul.mubr.bf16.gmra.mxu0 %v379
  %v665 = vpop.f32.mrf.mxu0
  %v666 = vadd.f32 0.0, %v665
  %v667 = vpop.f32.mrf.mxu0
  %v668 = vpop.f32.mrf.mxu0
  %v669 = vadd.f32 0.0, %v668
  %v670 = vpop.f32.mrf.mxu0
  %671 = vmatprep.mubr.bf16.mxu0 0
  %672 = vmatmul.mubr.bf16.gmra.mxu0 %v382
  %v673 = vpop.f32.mrf.mxu0
  %v674 = vadd.f32 0.0, %v673
  %v675 = vpop.f32.mrf.mxu0
  %v676 = vpop.f32.mrf.mxu0
  %v677 = vadd.f32 0.0, %v676
  %v678 = vpop.f32.mrf.mxu0
  %679 = vdwg.mxu0
  %v680 = vld [vmem:[%s1] sm:$0xf]
  %v681 = vld [vmem:[%s1 + $0x4] sm:$0xf]
  %v682 = vld [vmem:[%s1 + $0x8] sm:$0xf]
  %v683 = vld [vmem:[%s1 + $0xc] sm:$0xf]
  %v684 = vld [vmem:[%s1 + $0x10] sm:$0xf]
  %v685 = vld [vmem:[%s1 + $0x14] sm:$0xf]
  %v686 = vld [vmem:[%s1 + $0x18] sm:$0xf]
  %v687 = vld [vmem:[%s1 + $0x1c] sm:$0xf]
  %v688 = vld [vmem:[%s1 + $0x20] sm:$0xf]
  %v689 = vld [vmem:[%s1 + $0x24] sm:$0xf]
  %v690 = vld [vmem:[%s1 + $0x28] sm:$0xf]
  %v691 = vld [vmem:[%s1 + $0x2c] sm:$0xf]
  %v692 = vld [vmem:[%s1 + $0x30] sm:$0xf]
  %v693 = vld [vmem:[%s1 + $0x34] sm:$0xf]
  %v694 = vld [vmem:[%s1 + $0x38] sm:$0xf]
  %v695 = vld [vmem:[%s1 + $0x3c] sm:$0xf]
  %v696 = vld [vmem:[%s1 + $0x40] sm:$0xf]
  %v697 = vld [vmem:[%s1 + $0x44] sm:$0xf]
  %v698 = vld [vmem:[%s1 + $0x48] sm:$0xf]
  %v699 = vld [vmem:[%s1 + $0x4c] sm:$0xf]
  %v700 = vld [vmem:[%s1 + $0x50] sm:$0xf]
  %v701 = vld [vmem:[%s1 + $0x54] sm:$0xf]
  %v702 = vld [vmem:[%s1 + $0x58] sm:$0xf]
  %v703 = vld [vmem:[%s1 + $0x5c] sm:$0xf]
  %v704 = vld [vmem:[%s1 + $0x60] sm:$0xf]
  %v705 = vld [vmem:[%s1 + $0x64] sm:$0xf]
  %v706 = vld [vmem:[%s1 + $0x68] sm:$0xf]
  %v707 = vld [vmem:[%s1 + $0x6c] sm:$0xf]
  %v708 = vld [vmem:[%s1 + $0x70] sm:$0xf]
  %v709 = vld [vmem:[%s1 + $0x74] sm:$0xf]
  %v710 = vld [vmem:[%s1 + $0x78] sm:$0xf]
  %v711 = vld [vmem:[%s1 + $0x7c] sm:$0xf]
  %v712 = vld [vmem:[%s1 + $0x80] sm:$0xf]
  %v713 = vld [vmem:[%s1 + $0x84] sm:$0xf]
  %v714 = vld [vmem:[%s1 + $0x88] sm:$0xf]
  %v715 = vld [vmem:[%s1 + $0x8c] sm:$0xf]
  %v716 = vld [vmem:[%s1 + $0x90] sm:$0xf]
  %v717 = vld [vmem:[%s1 + $0x94] sm:$0xf]
  %v718 = vld [vmem:[%s1 + $0x98] sm:$0xf]
  %v719 = vld [vmem:[%s1 + $0x9c] sm:$0xf]
  %v720 = vld [vmem:[%s1 + $0xa0] sm:$0xf]
  %v721 = vld [vmem:[%s1 + $0xa4] sm:$0xf]
  %v722 = vld [vmem:[%s1 + $0xa8] sm:$0xf]
  %v723 = vld [vmem:[%s1 + $0xac] sm:$0xf]
  %v724 = vld [vmem:[%s1 + $0xb0] sm:$0xf]
  %v725 = vld [vmem:[%s1 + $0xb4] sm:$0xf]
  %v726 = vld [vmem:[%s1 + $0xb8] sm:$0xf]
  %v727 = vld [vmem:[%s1 + $0xbc] sm:$0xf]
  %v728 = vld [vmem:[%s1 + $0xc0] sm:$0xf]
  %v729 = vld [vmem:[%s1 + $0xc4] sm:$0xf]
  %v730 = vld [vmem:[%s1 + $0xc8] sm:$0xf]
  %v731 = vld [vmem:[%s1 + $0xcc] sm:$0xf]
  %v732 = vld [vmem:[%s1 + $0xd0] sm:$0xf]
  %v733 = vld [vmem:[%s1 + $0xd4] sm:$0xf]
  %v734 = vld [vmem:[%s1 + $0xd8] sm:$0xf]
  %v735 = vld [vmem:[%s1 + $0xdc] sm:$0xf]
  %v736 = vld [vmem:[%s1 + $0xe0] sm:$0xf]
  %v737 = vld [vmem:[%s1 + $0xe4] sm:$0xf]
  %v738 = vld [vmem:[%s1 + $0xe8] sm:$0xf]
  %v739 = vld [vmem:[%s1 + $0xec] sm:$0xf]
  %v740 = vld [vmem:[%s1 + $0xf0] sm:$0xf]
  %v741 = vld [vmem:[%s1 + $0xf4] sm:$0xf]
  %v742 = vld [vmem:[%s1 + $0xf8] sm:$0xf]
  %v743 = vld [vmem:[%s1 + $0xfc] sm:$0xf]
  %v808 = vunpack.c.l.b16 %v680
  %v809 = vunpack.c.l.b16 %v681
  %v810 = vunpack.c.l.b16 %v682
  %v811 = vunpack.c.l.b16 %v683
  %v812 = vunpack.c.l.b16 %v684
  %v813 = vunpack.c.l.b16 %v685
  %v814 = vunpack.c.l.b16 %v686
  %v815 = vunpack.c.l.b16 %v687
  %v816 = vunpack.c.l.b16 %v688
  %v817 = vunpack.c.l.b16 %v689
  %v818 = vunpack.c.l.b16 %v690
  %v819 = vunpack.c.l.b16 %v691
  %v820 = vunpack.c.l.b16 %v692
  %v821 = vunpack.c.l.b16 %v693
  %v822 = vunpack.c.l.b16 %v694
  %v823 = vunpack.c.l.b16 %v695
  %v824 = vunpack.c.l.b16 %v696
  %v825 = vunpack.c.l.b16 %v697
  %v826 = vunpack.c.l.b16 %v698
  %v827 = vunpack.c.l.b16 %v699
  %v828 = vunpack.c.l.b16 %v700
  %v829 = vunpack.c.l.b16 %v701
  %v830 = vunpack.c.l.b16 %v702
  %v831 = vunpack.c.l.b16 %v703
  %v832 = vunpack.c.l.b16 %v704
  %v833 = vunpack.c.l.b16 %v705
  %v834 = vunpack.c.l.b16 %v706
  %v835 = vunpack.c.l.b16 %v707
  %v836 = vunpack.c.l.b16 %v708
  %v837 = vunpack.c.l.b16 %v709
  %v838 = vunpack.c.l.b16 %v710
  %v839 = vunpack.c.l.b16 %v711
  %v840 = vunpack.c.l.b16 %v712
  %v841 = vunpack.c.l.b16 %v713
  %v842 = vunpack.c.l.b16 %v714
  %v843 = vunpack.c.l.b16 %v715
  %v844 = vunpack.c.l.b16 %v716
  %v845 = vunpack.c.l.b16 %v717
  %v846 = vunpack.c.l.b16 %v718
  %v847 = vunpack.c.l.b16 %v719
  %v848 = vunpack.c.l.b16 %v720
  %v849 = vunpack.c.l.b16 %v721
  %v850 = vunpack.c.l.b16 %v722
  %v851 = vunpack.c.l.b16 %v723
  %v852 = vunpack.c.l.b16 %v724
  %v853 = vunpack.c.l.b16 %v725
  %v854 = vunpack.c.l.b16 %v726
  %v855 = vunpack.c.l.b16 %v727
  %v856 = vunpack.c.l.b16 %v728
  %v857 = vunpack.c.l.b16 %v729
  %v858 = vunpack.c.l.b16 %v730
  %v859 = vunpack.c.l.b16 %v731
  %v860 = vunpack.c.l.b16 %v732
  %v861 = vunpack.c.l.b16 %v733
  %v862 = vunpack.c.l.b16 %v734
  %v863 = vunpack.c.l.b16 %v735
  %v864 = vunpack.c.l.b16 %v736
  %v865 = vunpack.c.l.b16 %v737
  %v866 = vunpack.c.l.b16 %v738
  %v867 = vunpack.c.l.b16 %v739
  %v868 = vunpack.c.l.b16 %v740
  %v869 = vunpack.c.l.b16 %v741
  %v870 = vunpack.c.l.b16 %v742
  %v871 = vunpack.c.l.b16 %v743
  %v872 = vpack.c.b16 %v809, %v808
  %v873 = vpack.c.b16 %v811, %v810
  %v874 = vpack.c.b16 %v813, %v812
  %v875 = vpack.c.b16 %v815, %v814
  %v876 = vpack.c.b16 %v817, %v816
  %v877 = vpack.c.b16 %v819, %v818
  %v878 = vpack.c.b16 %v821, %v820
  %v879 = vpack.c.b16 %v823, %v822
  %v880 = vpack.c.b16 %v825, %v824
  %v881 = vpack.c.b16 %v827, %v826
  %v882 = vpack.c.b16 %v829, %v828
  %v883 = vpack.c.b16 %v831, %v830
  %v884 = vpack.c.b16 %v833, %v832
  %v885 = vpack.c.b16 %v835, %v834
  %v886 = vpack.c.b16 %v837, %v836
  %v887 = vpack.c.b16 %v839, %v838
  %v888 = vpack.c.b16 %v841, %v840
  %v889 = vpack.c.b16 %v843, %v842
  %v890 = vpack.c.b16 %v845, %v844
  %v891 = vpack.c.b16 %v847, %v846
  %v892 = vpack.c.b16 %v849, %v848
  %v893 = vpack.c.b16 %v851, %v850
  %v894 = vpack.c.b16 %v853, %v852
  %v895 = vpack.c.b16 %v855, %v854
  %v896 = vpack.c.b16 %v857, %v856
  %v897 = vpack.c.b16 %v859, %v858
  %v898 = vpack.c.b16 %v861, %v860
  %v899 = vpack.c.b16 %v863, %v862
  %v900 = vpack.c.b16 %v865, %v864
  %v901 = vpack.c.b16 %v867, %v866
  %v902 = vpack.c.b16 %v869, %v868
  %v903 = vpack.c.b16 %v871, %v870
  %v905 = vsel %vm287, %v872, 0
  %v908 = vsel %vm287, %v873, 0
  %v911 = vsel %vm287, %v874, 0
  %v914 = vsel %vm287, %v875, 0
  %v917 = vsel %vm287, %v876, 0
  %v920 = vsel %vm287, %v877, 0
  %v923 = vsel %vm287, %v878, 0
  %v926 = vsel %vm287, %v879, 0
  %v929 = vsel %vm287, %v880, 0
  %v932 = vsel %vm287, %v881, 0
  %v935 = vsel %vm287, %v882, 0
  %v938 = vsel %vm287, %v883, 0
  %v941 = vsel %vm287, %v884, 0
  %v944 = vsel %vm287, %v885, 0
  %v947 = vsel %vm287, %v886, 0
  %v950 = vsel %vm287, %v887, 0
  %v953 = vsel %vm287, %v888, 0
  %v956 = vsel %vm287, %v889, 0
  %v959 = vsel %vm287, %v890, 0
  %v962 = vsel %vm287, %v891, 0
  %v965 = vsel %vm287, %v892, 0
  %v968 = vsel %vm287, %v893, 0
  %v971 = vsel %vm287, %v894, 0
  %v974 = vsel %vm287, %v895, 0
  %v977 = vsel %vm287, %v896, 0
  %v980 = vsel %vm287, %v897, 0
  %v983 = vsel %vm287, %v898, 0
  %v986 = vsel %vm287, %v899, 0
  %v989 = vsel %vm287, %v900, 0
  %v992 = vsel %vm287, %v901, 0
  %v995 = vsel %vm287, %v902, 0
  %v998 = vsel %vm287, %v903, 0
  %1000 = vmatprep.subr.bf16.mxu0 0
  %1001 = vmatpush1.bf16.msra.mxu0 0
  %1002 = vmatprep.subr.bf16.mxu0 0
  %1003 = vmatpush1.bf16.msra.mxu0 0
  %1004 = vmatprep.subr.bf16.mxu0 0
  %1005 = vmatpush1.bf16.msra.mxu0 0
  %1006 = vmatprep.subr.bf16.mxu0 0
  %1007 = vmatpush1.bf16.msra.mxu0 %v389
  %1008 = vmatprep.subr.bf16.mxu0 0
  %1009 = vmatpush1.bf16.msra.mxu0 %v281
  %1010 = vmatprep.subr.bf16.mxu0 0
  %1011 = vmatpush1.bf16.msra.mxu0 %v280
  %1012 = vmatprep.subr.bf16.mxu0 0
  %1013 = vmatpush1.bf16.msra.mxu0 %v279
  %1014 = vmatprep.subr.bf16.mxu0 0
  %1015 = vmatpush1.bf16.msra.mxu0 %v278
  %1016 = vmatprep.subr.bf16.mxu0 0
  %1017 = vmatpush2.bf16.msra.mxu0 0
  %1018 = vmatprep.subr.bf16.mxu0 0
  %1019 = vmatpush2.bf16.msra.mxu0 0
  %1020 = vmatprep.subr.bf16.mxu0 0
  %1021 = vmatpush2.bf16.msra.mxu0 0
  %1022 = vmatprep.subr.bf16.mxu0 0
  %1023 = vmatpush2.bf16.msra.mxu0 0
  %1024 = vmatprep.subr.bf16.mxu0 0
  %1025 = vmatpush2.bf16.msra.mxu0 0
  %1026 = vmatprep.subr.bf16.mxu0 0
  %1027 = vmatpush2.bf16.msra.mxu0 0
  %1028 = vmatprep.subr.bf16.mxu0 0
  %1029 = vmatpush2.bf16.msra.mxu0 0
  %1030 = vmatprep.subr.bf16.mxu0 0
  %1031 = vmatpush2.bf16.msra.mxu0 0
  %1032 = vmatprep.mubr.bf16.mxu0 0
  %1033 = vmatmul.mubr.bf16.gmra.mxu0 %v905
  %v1034 = vpop.f32.mrf.mxu0
  %v1035 = vadd.f32 0.0, %v1034
  %v1036 = vpop.f32.mrf.mxu0
  %v1037 = vpop.f32.mrf.mxu0
  %v1038 = vadd.f32 0.0, %v1037
  %v1039 = vpop.f32.mrf.mxu0
  %1040 = vmatprep.mubr.bf16.mxu0 0
  %1041 = vmatmul.mubr.bf16.gmra.mxu0 %v908
  %v1042 = vpop.f32.mrf.mxu0
  %v1043 = vadd.f32 0.0, %v1042
  %v1044 = vpop.f32.mrf.mxu0
  %v1045 = vpop.f32.mrf.mxu0
  %v1046 = vadd.f32 0.0, %v1045
  %v1047 = vpop.f32.mrf.mxu0
  %1048 = vmatprep.mubr.bf16.mxu0 0
  %1049 = vmatmul.mubr.bf16.gmra.mxu0 %v911
  %v1050 = vpop.f32.mrf.mxu0
  %v1051 = vadd.f32 0.0, %v1050
  %v1052 = vpop.f32.mrf.mxu0
  %v1053 = vpop.f32.mrf.mxu0
  %v1054 = vadd.f32 0.0, %v1053
  %v1055 = vpop.f32.mrf.mxu0
  %1056 = vmatprep.mubr.bf16.mxu0 0
  %1057 = vmatmul.mubr.bf16.gmra.mxu0 %v914
  %v1058 = vpop.f32.mrf.mxu0
  %v1059 = vadd.f32 0.0, %v1058
  %v1060 = vpop.f32.mrf.mxu0
  %v1061 = vpop.f32.mrf.mxu0
  %v1062 = vadd.f32 0.0, %v1061
  %v1063 = vpop.f32.mrf.mxu0
  %1064 = vmatprep.mubr.bf16.mxu0 0
  %1065 = vmatmul.mubr.bf16.gmra.mxu0 %v917
  %v1066 = vpop.f32.mrf.mxu0
  %v1067 = vadd.f32 0.0, %v1066
  %v1068 = vpop.f32.mrf.mxu0
  %v1069 = vpop.f32.mrf.mxu0
  %v1070 = vadd.f32 0.0, %v1069
  %v1071 = vpop.f32.mrf.mxu0
  %1072 = vmatprep.mubr.bf16.mxu0 0
  %1073 = vmatmul.mubr.bf16.gmra.mxu0 %v920
  %v1074 = vpop.f32.mrf.mxu0
  %v1075 = vadd.f32 0.0, %v1074
  %v1076 = vpop.f32.mrf.mxu0
  %v1077 = vpop.f32.mrf.mxu0
  %v1078 = vadd.f32 0.0, %v1077
  %v1079 = vpop.f32.mrf.mxu0
  %1080 = vmatprep.mubr.bf16.mxu0 0
  %1081 = vmatmul.mubr.bf16.gmra.mxu0 %v923
  %v1082 = vpop.f32.mrf.mxu0
  %v1083 = vadd.f32 0.0, %v1082
  %v1084 = vpop.f32.mrf.mxu0
  %v1085 = vpop.f32.mrf.mxu0
  %v1086 = vadd.f32 0.0, %v1085
  %v1087 = vpop.f32.mrf.mxu0
  %1088 = vmatprep.mubr.bf16.mxu0 0
  %1089 = vmatmul.mubr.bf16.gmra.mxu0 %v926
  %v1090 = vpop.f32.mrf.mxu0
  %v1091 = vadd.f32 0.0, %v1090
  %v1092 = vpop.f32.mrf.mxu0
  %v1093 = vpop.f32.mrf.mxu0
  %v1094 = vadd.f32 0.0, %v1093
  %v1095 = vpop.f32.mrf.mxu0
  %1096 = vmatprep.mubr.bf16.mxu0 0
  %1097 = vmatmul.mubr.bf16.gmra.mxu0 %v929
  %v1098 = vpop.f32.mrf.mxu0
  %v1099 = vadd.f32 0.0, %v1098
  %v1100 = vpop.f32.mrf.mxu0
  %v1101 = vpop.f32.mrf.mxu0
  %v1102 = vadd.f32 0.0, %v1101
  %v1103 = vpop.f32.mrf.mxu0
  %1104 = vmatprep.mubr.bf16.mxu0 0
  %1105 = vmatmul.mubr.bf16.gmra.mxu0 %v932
  %v1106 = vpop.f32.mrf.mxu0
  %v1107 = vadd.f32 0.0, %v1106
  %v1108 = vpop.f32.mrf.mxu0
  %v1109 = vpop.f32.mrf.mxu0
  %v1110 = vadd.f32 0.0, %v1109
  %v1111 = vpop.f32.mrf.mxu0
  %1112 = vmatprep.mubr.bf16.mxu0 0
  %1113 = vmatmul.mubr.bf16.gmra.mxu0 %v935
  %v1114 = vpop.f32.mrf.mxu0
  %v1115 = vadd.f32 0.0, %v1114
  %v1116 = vpop.f32.mrf.mxu0
  %v1117 = vpop.f32.mrf.mxu0
  %v1118 = vadd.f32 0.0, %v1117
  %v1119 = vpop.f32.mrf.mxu0
  %1120 = vmatprep.mubr.bf16.mxu0 0
  %1121 = vmatmul.mubr.bf16.gmra.mxu0 %v938
  %v1122 = vpop.f32.mrf.mxu0
  %v1123 = vadd.f32 0.0, %v1122
  %v1124 = vpop.f32.mrf.mxu0
  %v1125 = vpop.f32.mrf.mxu0
  %v1126 = vadd.f32 0.0, %v1125
  %v1127 = vpop.f32.mrf.mxu0
  %1128 = vmatprep.mubr.bf16.mxu0 0
  %1129 = vmatmul.mubr.bf16.gmra.mxu0 %v941
  %v1130 = vpop.f32.mrf.mxu0
  %v1131 = vadd.f32 0.0, %v1130
  %v1132 = vpop.f32.mrf.mxu0
  %v1133 = vpop.f32.mrf.mxu0
  %v1134 = vadd.f32 0.0, %v1133
  %v1135 = vpop.f32.mrf.mxu0
  %1136 = vmatprep.mubr.bf16.mxu0 0
  %1137 = vmatmul.mubr.bf16.gmra.mxu0 %v944
  %v1138 = vpop.f32.mrf.mxu0
  %v1139 = vadd.f32 0.0, %v1138
  %v1140 = vpop.f32.mrf.mxu0
  %v1141 = vpop.f32.mrf.mxu0
  %v1142 = vadd.f32 0.0, %v1141
  %v1143 = vpop.f32.mrf.mxu0
  %1144 = vmatprep.mubr.bf16.mxu0 0
  %1145 = vmatmul.mubr.bf16.gmra.mxu0 %v947
  %v1146 = vpop.f32.mrf.mxu0
  %v1147 = vadd.f32 0.0, %v1146
  %v1148 = vpop.f32.mrf.mxu0
  %v1149 = vpop.f32.mrf.mxu0
  %v1150 = vadd.f32 0.0, %v1149
  %v1151 = vpop.f32.mrf.mxu0
  %1152 = vmatprep.mubr.bf16.mxu0 0
  %1153 = vmatmul.mubr.bf16.gmra.mxu0 %v950
  %v1154 = vpop.f32.mrf.mxu0
  %v1155 = vadd.f32 0.0, %v1154
  %v1156 = vpop.f32.mrf.mxu0
  %v1157 = vpop.f32.mrf.mxu0
  %v1158 = vadd.f32 0.0, %v1157
  %v1159 = vpop.f32.mrf.mxu0
  %1160 = vmatprep.mubr.bf16.mxu0 0
  %1161 = vmatmul.mubr.bf16.gmra.mxu0 %v953
  %v1162 = vpop.f32.mrf.mxu0
  %v1163 = vadd.f32 0.0, %v1162
  %v1164 = vpop.f32.mrf.mxu0
  %v1165 = vpop.f32.mrf.mxu0
  %v1166 = vadd.f32 0.0, %v1165
  %v1167 = vpop.f32.mrf.mxu0
  %1168 = vmatprep.mubr.bf16.mxu0 0
  %1169 = vmatmul.mubr.bf16.gmra.mxu0 %v956
  %v1170 = vpop.f32.mrf.mxu0
  %v1171 = vadd.f32 0.0, %v1170
  %v1172 = vpop.f32.mrf.mxu0
  %v1173 = vpop.f32.mrf.mxu0
  %v1174 = vadd.f32 0.0, %v1173
  %v1175 = vpop.f32.mrf.mxu0
  %1176 = vmatprep.mubr.bf16.mxu0 0
  %1177 = vmatmul.mubr.bf16.gmra.mxu0 %v959
  %v1178 = vpop.f32.mrf.mxu0
  %v1179 = vadd.f32 0.0, %v1178
  %v1180 = vpop.f32.mrf.mxu0
  %v1181 = vpop.f32.mrf.mxu0
  %v1182 = vadd.f32 0.0, %v1181
  %v1183 = vpop.f32.mrf.mxu0
  %1184 = vmatprep.mubr.bf16.mxu0 0
  %1185 = vmatmul.mubr.bf16.gmra.mxu0 %v962
  %v1186 = vpop.f32.mrf.mxu0
  %v1187 = vadd.f32 0.0, %v1186
  %v1188 = vpop.f32.mrf.mxu0
  %v1189 = vpop.f32.mrf.mxu0
  %v1190 = vadd.f32 0.0, %v1189
  %v1191 = vpop.f32.mrf.mxu0
  %1192 = vmatprep.mubr.bf16.mxu0 0
  %1193 = vmatmul.mubr.bf16.gmra.mxu0 %v965
  %v1194 = vpop.f32.mrf.mxu0
  %v1195 = vadd.f32 0.0, %v1194
  %v1196 = vpop.f32.mrf.mxu0
  %v1197 = vpop.f32.mrf.mxu0
  %v1198 = vadd.f32 0.0, %v1197
  %v1199 = vpop.f32.mrf.mxu0
  %1200 = vmatprep.mubr.bf16.mxu0 0
  %1201 = vmatmul.mubr.bf16.gmra.mxu0 %v968
  %v1202 = vpop.f32.mrf.mxu0
  %v1203 = vadd.f32 0.0, %v1202
  %v1204 = vpop.f32.mrf.mxu0
  %v1205 = vpop.f32.mrf.mxu0
  %v1206 = vadd.f32 0.0, %v1205
  %v1207 = vpop.f32.mrf.mxu0
  %1208 = vmatprep.mubr.bf16.mxu0 0
  %1209 = vmatmul.mubr.bf16.gmra.mxu0 %v971
  %v1210 = vpop.f32.mrf.mxu0
  %v1211 = vadd.f32 0.0, %v1210
  %v1212 = vpop.f32.mrf.mxu0
  %v1213 = vpop.f32.mrf.mxu0
  %v1214 = vadd.f32 0.0, %v1213
  %v1215 = vpop.f32.mrf.mxu0
  %1216 = vmatprep.mubr.bf16.mxu0 0
  %1217 = vmatmul.mubr.bf16.gmra.mxu0 %v974
  %v1218 = vpop.f32.mrf.mxu0
  %v1219 = vadd.f32 0.0, %v1218
  %v1220 = vpop.f32.mrf.mxu0
  %v1221 = vpop.f32.mrf.mxu0
  %v1222 = vadd.f32 0.0, %v1221
  %v1223 = vpop.f32.mrf.mxu0
  %1224 = vmatprep.mubr.bf16.mxu0 0
  %1225 = vmatmul.mubr.bf16.gmra.mxu0 %v977
  %v1226 = vpop.f32.mrf.mxu0
  %v1227 = vadd.f32 0.0, %v1226
  %v1228 = vpop.f32.mrf.mxu0
  %v1229 = vpop.f32.mrf.mxu0
  %v1230 = vadd.f32 0.0, %v1229
  %v1231 = vpop.f32.mrf.mxu0
  %1232 = vmatprep.mubr.bf16.mxu0 0
  %1233 = vmatmul.mubr.bf16.gmra.mxu0 %v980
  %v1234 = vpop.f32.mrf.mxu0
  %v1235 = vadd.f32 0.0, %v1234
  %v1236 = vpop.f32.mrf.mxu0
  %v1237 = vpop.f32.mrf.mxu0
  %v1238 = vadd.f32 0.0, %v1237
  %v1239 = vpop.f32.mrf.mxu0
  %1240 = vmatprep.mubr.bf16.mxu0 0
  %1241 = vmatmul.mubr.bf16.gmra.mxu0 %v983
  %v1242 = vpop.f32.mrf.mxu0
  %v1243 = vadd.f32 0.0, %v1242
  %v1244 = vpop.f32.mrf.mxu0
  %v1245 = vpop.f32.mrf.mxu0
  %v1246 = vadd.f32 0.0, %v1245
  %v1247 = vpop.f32.mrf.mxu0
  %1248 = vmatprep.mubr.bf16.mxu0 0
  %1249 = vmatmul.mubr.bf16.gmra.mxu0 %v986
  %v1250 = vpop.f32.mrf.mxu0
  %v1251 = vadd.f32 0.0, %v1250
  %v1252 = vpop.f32.mrf.mxu0
  %v1253 = vpop.f32.mrf.mxu0
  %v1254 = vadd.f32 0.0, %v1253
  %v1255 = vpop.f32.mrf.mxu0
  %1256 = vmatprep.mubr.bf16.mxu0 0
  %1257 = vmatmul.mubr.bf16.gmra.mxu0 %v989
  %v1258 = vpop.f32.mrf.mxu0
  %v1259 = vadd.f32 0.0, %v1258
  %v1260 = vpop.f32.mrf.mxu0
  %v1261 = vpop.f32.mrf.mxu0
  %v1262 = vadd.f32 0.0, %v1261
  %v1263 = vpop.f32.mrf.mxu0
  %1264 = vmatprep.mubr.bf16.mxu0 0
  %1265 = vmatmul.mubr.bf16.gmra.mxu0 %v992
  %v1266 = vpop.f32.mrf.mxu0
  %v1267 = vadd.f32 0.0, %v1266
  %v1268 = vpop.f32.mrf.mxu0
  %v1269 = vpop.f32.mrf.mxu0
  %v1270 = vadd.f32 0.0, %v1269
  %v1271 = vpop.f32.mrf.mxu0
  %1272 = vmatprep.mubr.bf16.mxu0 0
  %1273 = vmatmul.mubr.bf16.gmra.mxu0 %v995
  %v1274 = vpop.f32.mrf.mxu0
  %v1275 = vadd.f32 0.0, %v1274
  %v1276 = vpop.f32.mrf.mxu0
  %v1277 = vpop.f32.mrf.mxu0
  %v1278 = vadd.f32 0.0, %v1277
  %v1279 = vpop.f32.mrf.mxu0
  %1280 = vmatprep.mubr.bf16.mxu0 0
  %1281 = vmatmul.mubr.bf16.gmra.mxu0 %v998
  %v1282 = vpop.f32.mrf.mxu0
  %v1283 = vadd.f32 0.0, %v1282
  %v1284 = vpop.f32.mrf.mxu0
  %v1285 = vpop.f32.mrf.mxu0
  %v1286 = vadd.f32 0.0, %v1285
  %v1287 = vpop.f32.mrf.mxu0
  %1288 = vdwg.mxu0
  %v1289 = vmax.f32 %v426, %v1035
  %v1290 = vmax.f32 %v429, %v1038
  %v1291 = vmax.f32 %v434, %v1043
  %v1292 = vmax.f32 %v437, %v1046
  %v1293 = vmax.f32 %v442, %v1051
  %v1294 = vmax.f32 %v445, %v1054
  %v1295 = vmax.f32 %v450, %v1059
  %v1296 = vmax.f32 %v453, %v1062
  %v1297 = vmax.f32 %v458, %v1067
  %v1298 = vmax.f32 %v461, %v1070
  %v1299 = vmax.f32 %v466, %v1075
  %v1300 = vmax.f32 %v469, %v1078
  %v1301 = vmax.f32 %v474, %v1083
  %v1302 = vmax.f32 %v477, %v1086
  %v1303 = vmax.f32 %v482, %v1091
  %v1304 = vmax.f32 %v485, %v1094
  %v1305 = vmax.f32 %v490, %v1099
  %v1306 = vmax.f32 %v493, %v1102
  %v1307 = vmax.f32 %v498, %v1107
  %v1308 = vmax.f32 %v501, %v1110
  %v1309 = vmax.f32 %v506, %v1115
  %v1310 = vmax.f32 %v509, %v1118
  %v1311 = vmax.f32 %v514, %v1123
  %v1312 = vmax.f32 %v517, %v1126
  %v1313 = vmax.f32 %v522, %v1131
  %v1314 = vmax.f32 %v525, %v1134
  %v1315 = vmax.f32 %v530, %v1139
  %v1316 = vmax.f32 %v533, %v1142
  %v1317 = vmax.f32 %v538, %v1147
  %v1318 = vmax.f32 %v541, %v1150
  %v1319 = vmax.f32 %v546, %v1155
  %v1320 = vmax.f32 %v549, %v1158
  %v1321 = vmax.f32 %v554, %v1163
  %v1322 = vmax.f32 %v557, %v1166
  %v1323 = vmax.f32 %v562, %v1171
  %v1324 = vmax.f32 %v565, %v1174
  %v1325 = vmax.f32 %v570, %v1179
  %v1326 = vmax.f32 %v573, %v1182
  %v1327 = vmax.f32 %v578, %v1187
  %v1328 = vmax.f32 %v581, %v1190
  %v1329 = vmax.f32 %v586, %v1195
  %v1330 = vmax.f32 %v589, %v1198
  %v1331 = vmax.f32 %v594, %v1203
  %v1332 = vmax.f32 %v597, %v1206
  %v1333 = vmax.f32 %v602, %v1211
  %v1334 = vmax.f32 %v605, %v1214
  %v1335 = vmax.f32 %v610, %v1219
  %v1336 = vmax.f32 %v613, %v1222
  %v1337 = vmax.f32 %v618, %v1227
  %v1338 = vmax.f32 %v621, %v1230
  %v1339 = vmax.f32 %v626, %v1235
  %v1340 = vmax.f32 %v629, %v1238
  %v1341 = vmax.f32 %v634, %v1243
  %v1342 = vmax.f32 %v637, %v1246
  %v1343 = vmax.f32 %v642, %v1251
  %v1344 = vmax.f32 %v645, %v1254
  %v1345 = vmax.f32 %v650, %v1259
  %v1346 = vmax.f32 %v653, %v1262
  %v1347 = vmax.f32 %v658, %v1267
  %v1348 = vmax.f32 %v661, %v1270
  %v1349 = vmax.f32 %v666, %v1275
  %v1350 = vmax.f32 %v669, %v1278
  %v1351 = vmax.f32 %v674, %v1283
  %v1352 = vmax.f32 %v677, %v1286
  %v1353 = vld [vmem:[%s2] sm:$0xf]
  %v1354 = vld [vmem:[%s2 + $0x4] sm:$0xf]
  %v1355 = vld [vmem:[%s2 + $0x8] sm:$0xf]
  %v1356 = vld [vmem:[%s2 + $0xc] sm:$0xf]
  %v1357 = vld [vmem:[%s2 + $0x10] sm:$0xf]
  %v1358 = vld [vmem:[%s2 + $0x14] sm:$0xf]
  %v1359 = vld [vmem:[%s2 + $0x18] sm:$0xf]
  %v1360 = vld [vmem:[%s2 + $0x1c] sm:$0xf]
  %v1361 = vld [vmem:[%s2 + $0x20] sm:$0xf]
  %v1362 = vld [vmem:[%s2 + $0x24] sm:$0xf]
  %v1363 = vld [vmem:[%s2 + $0x28] sm:$0xf]
  %v1364 = vld [vmem:[%s2 + $0x2c] sm:$0xf]
  %v1365 = vld [vmem:[%s2 + $0x30] sm:$0xf]
  %v1366 = vld [vmem:[%s2 + $0x34] sm:$0xf]
  %v1367 = vld [vmem:[%s2 + $0x38] sm:$0xf]
  %v1368 = vld [vmem:[%s2 + $0x3c] sm:$0xf]
  %v1369 = vld [vmem:[%s2 + $0x40] sm:$0xf]
  %v1370 = vld [vmem:[%s2 + $0x44] sm:$0xf]
  %v1371 = vld [vmem:[%s2 + $0x48] sm:$0xf]
  %v1372 = vld [vmem:[%s2 + $0x4c] sm:$0xf]
  %v1373 = vld [vmem:[%s2 + $0x50] sm:$0xf]
  %v1374 = vld [vmem:[%s2 + $0x54] sm:$0xf]
  %v1375 = vld [vmem:[%s2 + $0x58] sm:$0xf]
  %v1376 = vld [vmem:[%s2 + $0x5c] sm:$0xf]
  %v1377 = vld [vmem:[%s2 + $0x60] sm:$0xf]
  %v1378 = vld [vmem:[%s2 + $0x64] sm:$0xf]
  %v1379 = vld [vmem:[%s2 + $0x68] sm:$0xf]
  %v1380 = vld [vmem:[%s2 + $0x6c] sm:$0xf]
  %v1381 = vld [vmem:[%s2 + $0x70] sm:$0xf]
  %v1382 = vld [vmem:[%s2 + $0x74] sm:$0xf]
  %v1383 = vld [vmem:[%s2 + $0x78] sm:$0xf]
  %v1384 = vld [vmem:[%s2 + $0x7c] sm:$0xf]
  %v1385 = vld [vmem:[%s2 + $0x80] sm:$0xf]
  %v1386 = vld [vmem:[%s2 + $0x84] sm:$0xf]
  %v1387 = vld [vmem:[%s2 + $0x88] sm:$0xf]
  %v1388 = vld [vmem:[%s2 + $0x8c] sm:$0xf]
  %v1389 = vld [vmem:[%s2 + $0x90] sm:$0xf]
  %v1390 = vld [vmem:[%s2 + $0x94] sm:$0xf]
  %v1391 = vld [vmem:[%s2 + $0x98] sm:$0xf]
  %v1392 = vld [vmem:[%s2 + $0x9c] sm:$0xf]
  %v1393 = vld [vmem:[%s2 + $0xa0] sm:$0xf]
  %v1394 = vld [vmem:[%s2 + $0xa4] sm:$0xf]
  %v1395 = vld [vmem:[%s2 + $0xa8] sm:$0xf]
  %v1396 = vld [vmem:[%s2 + $0xac] sm:$0xf]
  %v1397 = vld [vmem:[%s2 + $0xb0] sm:$0xf]
  %v1398 = vld [vmem:[%s2 + $0xb4] sm:$0xf]
  %v1399 = vld [vmem:[%s2 + $0xb8] sm:$0xf]
  %v1400 = vld [vmem:[%s2 + $0xbc] sm:$0xf]
  %v1401 = vld [vmem:[%s2 + $0xc0] sm:$0xf]
  %v1402 = vld [vmem:[%s2 + $0xc4] sm:$0xf]
  %v1403 = vld [vmem:[%s2 + $0xc8] sm:$0xf]
  %v1404 = vld [vmem:[%s2 + $0xcc] sm:$0xf]
  %v1405 = vld [vmem:[%s2 + $0xd0] sm:$0xf]
  %v1406 = vld [vmem:[%s2 + $0xd4] sm:$0xf]
  %v1407 = vld [vmem:[%s2 + $0xd8] sm:$0xf]
  %v1408 = vld [vmem:[%s2 + $0xdc] sm:$0xf]
  %v1409 = vld [vmem:[%s2 + $0xe0] sm:$0xf]
  %v1410 = vld [vmem:[%s2 + $0xe4] sm:$0xf]
  %v1411 = vld [vmem:[%s2 + $0xe8] sm:$0xf]
  %v1412 = vld [vmem:[%s2 + $0xec] sm:$0xf]
  %v1413 = vld [vmem:[%s2 + $0xf0] sm:$0xf]
  %v1414 = vld [vmem:[%s2 + $0xf4] sm:$0xf]
  %v1415 = vld [vmem:[%s2 + $0xf8] sm:$0xf]
  %v1416 = vld [vmem:[%s2 + $0xfc] sm:$0xf]
  %v1481 = vunpack.c.l.b16 %v1353
  %v1482 = vunpack.c.l.b16 %v1354
  %v1483 = vunpack.c.l.b16 %v1355
  %v1484 = vunpack.c.l.b16 %v1356
  %v1485 = vunpack.c.l.b16 %v1357
  %v1486 = vunpack.c.l.b16 %v1358
  %v1487 = vunpack.c.l.b16 %v1359
  %v1488 = vunpack.c.l.b16 %v1360
  %v1489 = vunpack.c.l.b16 %v1361
  %v1490 = vunpack.c.l.b16 %v1362
  %v1491 = vunpack.c.l.b16 %v1363
  %v1492 = vunpack.c.l.b16 %v1364
  %v1493 = vunpack.c.l.b16 %v1365
  %v1494 = vunpack.c.l.b16 %v1366
  %v1495 = vunpack.c.l.b16 %v1367
  %v1496 = vunpack.c.l.b16 %v1368
  %v1497 = vunpack.c.l.b16 %v1369
  %v1498 = vunpack.c.l.b16 %v1370
  %v1499 = vunpack.c.l.b16 %v1371
  %v1500 = vunpack.c.l.b16 %v1372
  %v1501 = vunpack.c.l.b16 %v1373
  %v1502 = vunpack.c.l.b16 %v1374
  %v1503 = vunpack.c.l.b16 %v1375
  %v1504 = vunpack.c.l.b16 %v1376
  %v1505 = vunpack.c.l.b16 %v1377
  %v1506 = vunpack.c.l.b16 %v1378
  %v1507 = vunpack.c.l.b16 %v1379
  %v1508 = vunpack.c.l.b16 %v1380
  %v1509 = vunpack.c.l.b16 %v1381
  %v1510 = vunpack.c.l.b16 %v1382
  %v1511 = vunpack.c.l.b16 %v1383
  %v1512 = vunpack.c.l.b16 %v1384
  %v1513 = vunpack.c.l.b16 %v1385
  %v1514 = vunpack.c.l.b16 %v1386
  %v1515 = vunpack.c.l.b16 %v1387
  %v1516 = vunpack.c.l.b16 %v1388
  %v1517 = vunpack.c.l.b16 %v1389
  %v1518 = vunpack.c.l.b16 %v1390
  %v1519 = vunpack.c.l.b16 %v1391
  %v1520 = vunpack.c.l.b16 %v1392
  %v1521 = vunpack.c.l.b16 %v1393
  %v1522 = vunpack.c.l.b16 %v1394
  %v1523 = vunpack.c.l.b16 %v1395
  %v1524 = vunpack.c.l.b16 %v1396
  %v1525 = vunpack.c.l.b16 %v1397
  %v1526 = vunpack.c.l.b16 %v1398
  %v1527 = vunpack.c.l.b16 %v1399
  %v1528 = vunpack.c.l.b16 %v1400
  %v1529 = vunpack.c.l.b16 %v1401
  %v1530 = vunpack.c.l.b16 %v1402
  %v1531 = vunpack.c.l.b16 %v1403
  %v1532 = vunpack.c.l.b16 %v1404
  %v1533 = vunpack.c.l.b16 %v1405
  %v1534 = vunpack.c.l.b16 %v1406
  %v1535 = vunpack.c.l.b16 %v1407
  %v1536 = vunpack.c.l.b16 %v1408
  %v1537 = vunpack.c.l.b16 %v1409
  %v1538 = vunpack.c.l.b16 %v1410
  %v1539 = vunpack.c.l.b16 %v1411
  %v1540 = vunpack.c.l.b16 %v1412
  %v1541 = vunpack.c.l.b16 %v1413
  %v1542 = vunpack.c.l.b16 %v1414
  %v1543 = vunpack.c.l.b16 %v1415
  %v1544 = vunpack.c.l.b16 %v1416
  %v1545 = vpack.c.b16 %v1482, %v1481
  %v1546 = vpack.c.b16 %v1484, %v1483
  %v1547 = vpack.c.b16 %v1486, %v1485
  %v1548 = vpack.c.b16 %v1488, %v1487
  %v1549 = vpack.c.b16 %v1490, %v1489
  %v1550 = vpack.c.b16 %v1492, %v1491
  %v1551 = vpack.c.b16 %v1494, %v1493
  %v1552 = vpack.c.b16 %v1496, %v1495
  %v1553 = vpack.c.b16 %v1498, %v1497
  %v1554 = vpack.c.b16 %v1500, %v1499
  %v1555 = vpack.c.b16 %v1502, %v1501
  %v1556 = vpack.c.b16 %v1504, %v1503
  %v1557 = vpack.c.b16 %v1506, %v1505
  %v1558 = vpack.c.b16 %v1508, %v1507
  %v1559 = vpack.c.b16 %v1510, %v1509
  %v1560 = vpack.c.b16 %v1512, %v1511
  %v1561 = vpack.c.b16 %v1514, %v1513
  %v1562 = vpack.c.b16 %v1516, %v1515
  %v1563 = vpack.c.b16 %v1518, %v1517
  %v1564 = vpack.c.b16 %v1520, %v1519
  %v1565 = vpack.c.b16 %v1522, %v1521
  %v1566 = vpack.c.b16 %v1524, %v1523
  %v1567 = vpack.c.b16 %v1526, %v1525
  %v1568 = vpack.c.b16 %v1528, %v1527
  %v1569 = vpack.c.b16 %v1530, %v1529
  %v1570 = vpack.c.b16 %v1532, %v1531
  %v1571 = vpack.c.b16 %v1534, %v1533
  %v1572 = vpack.c.b16 %v1536, %v1535
  %v1573 = vpack.c.b16 %v1538, %v1537
  %v1574 = vpack.c.b16 %v1540, %v1539
  %v1575 = vpack.c.b16 %v1542, %v1541
  %v1576 = vpack.c.b16 %v1544, %v1543
  %v1578 = vsel %vm287, %v1545, 0
  %v1581 = vsel %vm287, %v1546, 0
  %v1584 = vsel %vm287, %v1547, 0
  %v1587 = vsel %vm287, %v1548, 0
  %v1590 = vsel %vm287, %v1549, 0
  %v1593 = vsel %vm287, %v1550, 0
  %v1596 = vsel %vm287, %v1551, 0
  %v1599 = vsel %vm287, %v1552, 0
  %v1602 = vsel %vm287, %v1553, 0
  %v1605 = vsel %vm287, %v1554, 0
  %v1608 = vsel %vm287, %v1555, 0
  %v1611 = vsel %vm287, %v1556, 0
  %v1614 = vsel %vm287, %v1557, 0
  %v1617 = vsel %vm287, %v1558, 0
  %v1620 = vsel %vm287, %v1559, 0
  %v1623 = vsel %vm287, %v1560, 0
  %v1626 = vsel %vm287, %v1561, 0
  %v1629 = vsel %vm287, %v1562, 0
  %v1632 = vsel %vm287, %v1563, 0
  %v1635 = vsel %vm287, %v1564, 0
  %v1638 = vsel %vm287, %v1565, 0
  %v1641 = vsel %vm287, %v1566, 0
  %v1644 = vsel %vm287, %v1567, 0
  %v1647 = vsel %vm287, %v1568, 0
  %v1650 = vsel %vm287, %v1569, 0
  %v1653 = vsel %vm287, %v1570, 0
  %v1656 = vsel %vm287, %v1571, 0
  %v1659 = vsel %vm287, %v1572, 0
  %v1662 = vsel %vm287, %v1573, 0
  %v1665 = vsel %vm287, %v1574, 0
  %v1668 = vsel %vm287, %v1575, 0
  %v1671 = vsel %vm287, %v1576, 0
  %1673 = vmatprep.subr.bf16.mxu0 0
  %1674 = vmatpush1.bf16.msra.mxu0 0
  %1675 = vmatprep.subr.bf16.mxu0 0
  %1676 = vmatpush1.bf16.msra.mxu0 0
  %1677 = vmatprep.subr.bf16.mxu0 0
  %1678 = vmatpush1.bf16.msra.mxu0 0
  %1679 = vmatprep.subr.bf16.mxu0 0
  %1680 = vmatpush1.bf16.msra.mxu0 %v389
  %1681 = vmatprep.subr.bf16.mxu0 0
  %1682 = vmatpush1.bf16.msra.mxu0 %v281
  %1683 = vmatprep.subr.bf16.mxu0 0
  %1684 = vmatpush1.bf16.msra.mxu0 %v280
  %1685 = vmatprep.subr.bf16.mxu0 0
  %1686 = vmatpush1.bf16.msra.mxu0 %v279
  %1687 = vmatprep.subr.bf16.mxu0 0
  %1688 = vmatpush1.bf16.msra.mxu0 %v278
  %1689 = vmatprep.subr.bf16.mxu0 0
  %1690 = vmatpush2.bf16.msra.mxu0 0
  %1691 = vmatprep.subr.bf16.mxu0 0
  %1692 = vmatpush2.bf16.msra.mxu0 0
  %1693 = vmatprep.subr.bf16.mxu0 0
  %1694 = vmatpush2.bf16.msra.mxu0 0
  %1695 = vmatprep.subr.bf16.mxu0 0
  %1696 = vmatpush2.bf16.msra.mxu0 0
  %1697 = vmatprep.subr.bf16.mxu0 0
  %1698 = vmatpush2.bf16.msra.mxu0 0
  %1699 = vmatprep.subr.bf16.mxu0 0
  %1700 = vmatpush2.bf16.msra.mxu0 0
  %1701 = vmatprep.subr.bf16.mxu0 0
  %1702 = vmatpush2.bf16.msra.mxu0 0
  %1703 = vmatprep.subr.bf16.mxu0 0
  %1704 = vmatpush2.bf16.msra.mxu0 0
  %1705 = vmatprep.mubr.bf16.mxu0 0
  %1706 = vmatmul.mubr.bf16.gmra.mxu0 %v1578
  %v1707 = vpop.f32.mrf.mxu0
  %v1708 = vadd.f32 0.0, %v1707
  %v1709 = vpop.f32.mrf.mxu0
  %v1710 = vpop.f32.mrf.mxu0
  %v1711 = vadd.f32 0.0, %v1710
  %v1712 = vpop.f32.mrf.mxu0
  %1713 = vmatprep.mubr.bf16.mxu0 0
  %1714 = vmatmul.mubr.bf16.gmra.mxu0 %v1581
  %v1715 = vpop.f32.mrf.mxu0
  %v1716 = vadd.f32 0.0, %v1715
  %v1717 = vpop.f32.mrf.mxu0
  %v1718 = vpop.f32.mrf.mxu0
  %v1719 = vadd.f32 0.0, %v1718
  %v1720 = vpop.f32.mrf.mxu0
  %1721 = vmatprep.mubr.bf16.mxu0 0
  %1722 = vmatmul.mubr.bf16.gmra.mxu0 %v1584
  %v1723 = vpop.f32.mrf.mxu0
  %v1724 = vadd.f32 0.0, %v1723
  %v1725 = vpop.f32.mrf.mxu0
  %v1726 = vpop.f32.mrf.mxu0
  %v1727 = vadd.f32 0.0, %v1726
  %v1728 = vpop.f32.mrf.mxu0
  %1729 = vmatprep.mubr.bf16.mxu0 0
  %1730 = vmatmul.mubr.bf16.gmra.mxu0 %v1587
  %v1731 = vpop.f32.mrf.mxu0
  %v1732 = vadd.f32 0.0, %v1731
  %v1733 = vpop.f32.mrf.mxu0
  %v1734 = vpop.f32.mrf.mxu0
  %v1735 = vadd.f32 0.0, %v1734
  %v1736 = vpop.f32.mrf.mxu0
  %1737 = vmatprep.mubr.bf16.mxu0 0
  %1738 = vmatmul.mubr.bf16.gmra.mxu0 %v1590
  %v1739 = vpop.f32.mrf.mxu0
  %v1740 = vadd.f32 0.0, %v1739
  %v1741 = vpop.f32.mrf.mxu0
  %v1742 = vpop.f32.mrf.mxu0
  %v1743 = vadd.f32 0.0, %v1742
  %v1744 = vpop.f32.mrf.mxu0
  %1745 = vmatprep.mubr.bf16.mxu0 0
  %1746 = vmatmul.mubr.bf16.gmra.mxu0 %v1593
  %v1747 = vpop.f32.mrf.mxu0
  %v1748 = vadd.f32 0.0, %v1747
  %v1749 = vpop.f32.mrf.mxu0
  %v1750 = vpop.f32.mrf.mxu0
  %v1751 = vadd.f32 0.0, %v1750
  %v1752 = vpop.f32.mrf.mxu0
  %1753 = vmatprep.mubr.bf16.mxu0 0
  %1754 = vmatmul.mubr.bf16.gmra.mxu0 %v1596
  %v1755 = vpop.f32.mrf.mxu0
  %v1756 = vadd.f32 0.0, %v1755
  %v1757 = vpop.f32.mrf.mxu0
  %v1758 = vpop.f32.mrf.mxu0
  %v1759 = vadd.f32 0.0, %v1758
  %v1760 = vpop.f32.mrf.mxu0
  %1761 = vmatprep.mubr.bf16.mxu0 0
  %1762 = vmatmul.mubr.bf16.gmra.mxu0 %v1599
  %v1763 = vpop.f32.mrf.mxu0
  %v1764 = vadd.f32 0.0, %v1763
  %v1765 = vpop.f32.mrf.mxu0
  %v1766 = vpop.f32.mrf.mxu0
  %v1767 = vadd.f32 0.0, %v1766
  %v1768 = vpop.f32.mrf.mxu0
  %1769 = vmatprep.mubr.bf16.mxu0 0
  %1770 = vmatmul.mubr.bf16.gmra.mxu0 %v1602
  %v1771 = vpop.f32.mrf.mxu0
  %v1772 = vadd.f32 0.0, %v1771
  %v1773 = vpop.f32.mrf.mxu0
  %v1774 = vpop.f32.mrf.mxu0
  %v1775 = vadd.f32 0.0, %v1774
  %v1776 = vpop.f32.mrf.mxu0
  %1777 = vmatprep.mubr.bf16.mxu0 0
  %1778 = vmatmul.mubr.bf16.gmra.mxu0 %v1605
  %v1779 = vpop.f32.mrf.mxu0
  %v1780 = vadd.f32 0.0, %v1779
  %v1781 = vpop.f32.mrf.mxu0
  %v1782 = vpop.f32.mrf.mxu0
  %v1783 = vadd.f32 0.0, %v1782
  %v1784 = vpop.f32.mrf.mxu0
  %1785 = vmatprep.mubr.bf16.mxu0 0
  %1786 = vmatmul.mubr.bf16.gmra.mxu0 %v1608
  %v1787 = vpop.f32.mrf.mxu0
  %v1788 = vadd.f32 0.0, %v1787
  %v1789 = vpop.f32.mrf.mxu0
  %v1790 = vpop.f32.mrf.mxu0
  %v1791 = vadd.f32 0.0, %v1790
  %v1792 = vpop.f32.mrf.mxu0
  %1793 = vmatprep.mubr.bf16.mxu0 0
  %1794 = vmatmul.mubr.bf16.gmra.mxu0 %v1611
  %v1795 = vpop.f32.mrf.mxu0
  %v1796 = vadd.f32 0.0, %v1795
  %v1797 = vpop.f32.mrf.mxu0
  %v1798 = vpop.f32.mrf.mxu0
  %v1799 = vadd.f32 0.0, %v1798
  %v1800 = vpop.f32.mrf.mxu0
  %1801 = vmatprep.mubr.bf16.mxu0 0
  %1802 = vmatmul.mubr.bf16.gmra.mxu0 %v1614
  %v1803 = vpop.f32.mrf.mxu0
  %v1804 = vadd.f32 0.0, %v1803
  %v1805 = vpop.f32.mrf.mxu0
  %v1806 = vpop.f32.mrf.mxu0
  %v1807 = vadd.f32 0.0, %v1806
  %v1808 = vpop.f32.mrf.mxu0
  %1809 = vmatprep.mubr.bf16.mxu0 0
  %1810 = vmatmul.mubr.bf16.gmra.mxu0 %v1617
  %v1811 = vpop.f32.mrf.mxu0
  %v1812 = vadd.f32 0.0, %v1811
  %v1813 = vpop.f32.mrf.mxu0
  %v1814 = vpop.f32.mrf.mxu0
  %v1815 = vadd.f32 0.0, %v1814
  %v1816 = vpop.f32.mrf.mxu0
  %1817 = vmatprep.mubr.bf16.mxu0 0
  %1818 = vmatmul.mubr.bf16.gmra.mxu0 %v1620
  %v1819 = vpop.f32.mrf.mxu0
  %v1820 = vadd.f32 0.0, %v1819
  %v1821 = vpop.f32.mrf.mxu0
  %v1822 = vpop.f32.mrf.mxu0
  %v1823 = vadd.f32 0.0, %v1822
  %v1824 = vpop.f32.mrf.mxu0
  %1825 = vmatprep.mubr.bf16.mxu0 0
  %1826 = vmatmul.mubr.bf16.gmra.mxu0 %v1623
  %v1827 = vpop.f32.mrf.mxu0
  %v1828 = vadd.f32 0.0, %v1827
  %v1829 = vpop.f32.mrf.mxu0
  %v1830 = vpop.f32.mrf.mxu0
  %v1831 = vadd.f32 0.0, %v1830
  %v1832 = vpop.f32.mrf.mxu0
  %1833 = vmatprep.mubr.bf16.mxu0 0
  %1834 = vmatmul.mubr.bf16.gmra.mxu0 %v1626
  %v1835 = vpop.f32.mrf.mxu0
  %v1836 = vadd.f32 0.0, %v1835
  %v1837 = vpop.f32.mrf.mxu0
  %v1838 = vpop.f32.mrf.mxu0
  %v1839 = vadd.f32 0.0, %v1838
  %v1840 = vpop.f32.mrf.mxu0
  %1841 = vmatprep.mubr.bf16.mxu0 0
  %1842 = vmatmul.mubr.bf16.gmra.mxu0 %v1629
  %v1843 = vpop.f32.mrf.mxu0
  %v1844 = vadd.f32 0.0, %v1843
  %v1845 = vpop.f32.mrf.mxu0
  %v1846 = vpop.f32.mrf.mxu0
  %v1847 = vadd.f32 0.0, %v1846
  %v1848 = vpop.f32.mrf.mxu0
  %1849 = vmatprep.mubr.bf16.mxu0 0
  %1850 = vmatmul.mubr.bf16.gmra.mxu0 %v1632
  %v1851 = vpop.f32.mrf.mxu0
  %v1852 = vadd.f32 0.0, %v1851
  %v1853 = vpop.f32.mrf.mxu0
  %v1854 = vpop.f32.mrf.mxu0
  %v1855 = vadd.f32 0.0, %v1854
  %v1856 = vpop.f32.mrf.mxu0
  %1857 = vmatprep.mubr.bf16.mxu0 0
  %1858 = vmatmul.mubr.bf16.gmra.mxu0 %v1635
  %v1859 = vpop.f32.mrf.mxu0
  %v1860 = vadd.f32 0.0, %v1859
  %v1861 = vpop.f32.mrf.mxu0
  %v1862 = vpop.f32.mrf.mxu0
  %v1863 = vadd.f32 0.0, %v1862
  %v1864 = vpop.f32.mrf.mxu0
  %1865 = vmatprep.mubr.bf16.mxu0 0
  %1866 = vmatmul.mubr.bf16.gmra.mxu0 %v1638
  %v1867 = vpop.f32.mrf.mxu0
  %v1868 = vadd.f32 0.0, %v1867
  %v1869 = vpop.f32.mrf.mxu0
  %v1870 = vpop.f32.mrf.mxu0
  %v1871 = vadd.f32 0.0, %v1870
  %v1872 = vpop.f32.mrf.mxu0
  %1873 = vmatprep.mubr.bf16.mxu0 0
  %1874 = vmatmul.mubr.bf16.gmra.mxu0 %v1641
  %v1875 = vpop.f32.mrf.mxu0
  %v1876 = vadd.f32 0.0, %v1875
  %v1877 = vpop.f32.mrf.mxu0
  %v1878 = vpop.f32.mrf.mxu0
  %v1879 = vadd.f32 0.0, %v1878
  %v1880 = vpop.f32.mrf.mxu0
  %1881 = vmatprep.mubr.bf16.mxu0 0
  %1882 = vmatmul.mubr.bf16.gmra.mxu0 %v1644
  %v1883 = vpop.f32.mrf.mxu0
  %v1884 = vadd.f32 0.0, %v1883
  %v1885 = vpop.f32.mrf.mxu0
  %v1886 = vpop.f32.mrf.mxu0
  %v1887 = vadd.f32 0.0, %v1886
  %v1888 = vpop.f32.mrf.mxu0
  %1889 = vmatprep.mubr.bf16.mxu0 0
  %1890 = vmatmul.mubr.bf16.gmra.mxu0 %v1647
  %v1891 = vpop.f32.mrf.mxu0
  %v1892 = vadd.f32 0.0, %v1891
  %v1893 = vpop.f32.mrf.mxu0
  %v1894 = vpop.f32.mrf.mxu0
  %v1895 = vadd.f32 0.0, %v1894
  %v1896 = vpop.f32.mrf.mxu0
  %1897 = vmatprep.mubr.bf16.mxu0 0
  %1898 = vmatmul.mubr.bf16.gmra.mxu0 %v1650
  %v1899 = vpop.f32.mrf.mxu0
  %v1900 = vadd.f32 0.0, %v1899
  %v1901 = vpop.f32.mrf.mxu0
  %v1902 = vpop.f32.mrf.mxu0
  %v1903 = vadd.f32 0.0, %v1902
  %v1904 = vpop.f32.mrf.mxu0
  %1905 = vmatprep.mubr.bf16.mxu0 0
  %1906 = vmatmul.mubr.bf16.gmra.mxu0 %v1653
  %v1907 = vpop.f32.mrf.mxu0
  %v1908 = vadd.f32 0.0, %v1907
  %v1909 = vpop.f32.mrf.mxu0
  %v1910 = vpop.f32.mrf.mxu0
  %v1911 = vadd.f32 0.0, %v1910
  %v1912 = vpop.f32.mrf.mxu0
  %1913 = vmatprep.mubr.bf16.mxu0 0
  %1914 = vmatmul.mubr.bf16.gmra.mxu0 %v1656
  %v1915 = vpop.f32.mrf.mxu0
  %v1916 = vadd.f32 0.0, %v1915
  %v1917 = vpop.f32.mrf.mxu0
  %v1918 = vpop.f32.mrf.mxu0
  %v1919 = vadd.f32 0.0, %v1918
  %v1920 = vpop.f32.mrf.mxu0
  %1921 = vmatprep.mubr.bf16.mxu0 0
  %1922 = vmatmul.mubr.bf16.gmra.mxu0 %v1659
  %v1923 = vpop.f32.mrf.mxu0
  %v1924 = vadd.f32 0.0, %v1923
  %v1925 = vpop.f32.mrf.mxu0
  %v1926 = vpop.f32.mrf.mxu0
  %v1927 = vadd.f32 0.0, %v1926
  %v1928 = vpop.f32.mrf.mxu0
  %1929 = vmatprep.mubr.bf16.mxu0 0
  %1930 = vmatmul.mubr.bf16.gmra.mxu0 %v1662
  %v1931 = vpop.f32.mrf.mxu0
  %v1932 = vadd.f32 0.0, %v1931
  %v1933 = vpop.f32.mrf.mxu0
  %v1934 = vpop.f32.mrf.mxu0
  %v1935 = vadd.f32 0.0, %v1934
  %v1936 = vpop.f32.mrf.mxu0
  %1937 = vmatprep.mubr.bf16.mxu0 0
  %1938 = vmatmul.mubr.bf16.gmra.mxu0 %v1665
  %v1939 = vpop.f32.mrf.mxu0
  %v1940 = vadd.f32 0.0, %v1939
  %v1941 = vpop.f32.mrf.mxu0
  %v1942 = vpop.f32.mrf.mxu0
  %v1943 = vadd.f32 0.0, %v1942
  %v1944 = vpop.f32.mrf.mxu0
  %1945 = vmatprep.mubr.bf16.mxu0 0
  %1946 = vmatmul.mubr.bf16.gmra.mxu0 %v1668
  %v1947 = vpop.f32.mrf.mxu0
  %v1948 = vadd.f32 0.0, %v1947
  %v1949 = vpop.f32.mrf.mxu0
  %v1950 = vpop.f32.mrf.mxu0
  %v1951 = vadd.f32 0.0, %v1950
  %v1952 = vpop.f32.mrf.mxu0
  %1953 = vmatprep.mubr.bf16.mxu0 0
  %1954 = vmatmul.mubr.bf16.gmra.mxu0 %v1671
  %v1955 = vpop.f32.mrf.mxu0
  %v1956 = vadd.f32 0.0, %v1955
  %v1957 = vpop.f32.mrf.mxu0
  %v1958 = vpop.f32.mrf.mxu0
  %v1959 = vadd.f32 0.0, %v1958
  %v1960 = vpop.f32.mrf.mxu0
  %1961 = vdwg.mxu0
  %v1962 = vld [vmem:[%s3] sm:$0xf]
  %v1963 = vld [vmem:[%s3 + $0x4] sm:$0xf]
  %v1964 = vld [vmem:[%s3 + $0x8] sm:$0xf]
  %v1965 = vld [vmem:[%s3 + $0xc] sm:$0xf]
  %v1966 = vld [vmem:[%s3 + $0x10] sm:$0xf]
  %v1967 = vld [vmem:[%s3 + $0x14] sm:$0xf]
  %v1968 = vld [vmem:[%s3 + $0x18] sm:$0xf]
  %v1969 = vld [vmem:[%s3 + $0x1c] sm:$0xf]
  %v1970 = vld [vmem:[%s3 + $0x20] sm:$0xf]
  %v1971 = vld [vmem:[%s3 + $0x24] sm:$0xf]
  %v1972 = vld [vmem:[%s3 + $0x28] sm:$0xf]
  %v1973 = vld [vmem:[%s3 + $0x2c] sm:$0xf]
  %v1974 = vld [vmem:[%s3 + $0x30] sm:$0xf]
  %v1975 = vld [vmem:[%s3 + $0x34] sm:$0xf]
  %v1976 = vld [vmem:[%s3 + $0x38] sm:$0xf]
  %v1977 = vld [vmem:[%s3 + $0x3c] sm:$0xf]
  %v1978 = vld [vmem:[%s3 + $0x40] sm:$0xf]
  %v1979 = vld [vmem:[%s3 + $0x44] sm:$0xf]
  %v1980 = vld [vmem:[%s3 + $0x48] sm:$0xf]
  %v1981 = vld [vmem:[%s3 + $0x4c] sm:$0xf]
  %v1982 = vld [vmem:[%s3 + $0x50] sm:$0xf]
  %v1983 = vld [vmem:[%s3 + $0x54] sm:$0xf]
  %v1984 = vld [vmem:[%s3 + $0x58] sm:$0xf]
  %v1985 = vld [vmem:[%s3 + $0x5c] sm:$0xf]
  %v1986 = vld [vmem:[%s3 + $0x60] sm:$0xf]
  %v1987 = vld [vmem:[%s3 + $0x64] sm:$0xf]
  %v1988 = vld [vmem:[%s3 + $0x68] sm:$0xf]
  %v1989 = vld [vmem:[%s3 + $0x6c] sm:$0xf]
  %v1990 = vld [vmem:[%s3 + $0x70] sm:$0xf]
  %v1991 = vld [vmem:[%s3 + $0x74] sm:$0xf]
  %v1992 = vld [vmem:[%s3 + $0x78] sm:$0xf]
  %v1993 = vld [vmem:[%s3 + $0x7c] sm:$0xf]
  %v1994 = vld [vmem:[%s3 + $0x80] sm:$0xf]
  %v1995 = vld [vmem:[%s3 + $0x84] sm:$0xf]
  %v1996 = vld [vmem:[%s3 + $0x88] sm:$0xf]
  %v1997 = vld [vmem:[%s3 + $0x8c] sm:$0xf]
  %v1998 = vld [vmem:[%s3 + $0x90] sm:$0xf]
  %v1999 = vld [vmem:[%s3 + $0x94] sm:$0xf]
  %v2000 = vld [vmem:[%s3 + $0x98] sm:$0xf]
  %v2001 = vld [vmem:[%s3 + $0x9c] sm:$0xf]
  %v2002 = vld [vmem:[%s3 + $0xa0] sm:$0xf]
  %v2003 = vld [vmem:[%s3 + $0xa4] sm:$0xf]
  %v2004 = vld [vmem:[%s3 + $0xa8] sm:$0xf]
  %v2005 = vld [vmem:[%s3 + $0xac] sm:$0xf]
  %v2006 = vld [vmem:[%s3 + $0xb0] sm:$0xf]
  %v2007 = vld [vmem:[%s3 + $0xb4] sm:$0xf]
  %v2008 = vld [vmem:[%s3 + $0xb8] sm:$0xf]
  %v2009 = vld [vmem:[%s3 + $0xbc] sm:$0xf]
  %v2010 = vld [vmem:[%s3 + $0xc0] sm:$0xf]
  %v2011 = vld [vmem:[%s3 + $0xc4] sm:$0xf]
  %v2012 = vld [vmem:[%s3 + $0xc8] sm:$0xf]
  %v2013 = vld [vmem:[%s3 + $0xcc] sm:$0xf]
  %v2014 = vld [vmem:[%s3 + $0xd0] sm:$0xf]
  %v2015 = vld [vmem:[%s3 + $0xd4] sm:$0xf]
  %v2016 = vld [vmem:[%s3 + $0xd8] sm:$0xf]
  %v2017 = vld [vmem:[%s3 + $0xdc] sm:$0xf]
  %v2018 = vld [vmem:[%s3 + $0xe0] sm:$0xf]
  %v2019 = vld [vmem:[%s3 + $0xe4] sm:$0xf]
  %v2020 = vld [vmem:[%s3 + $0xe8] sm:$0xf]
  %v2021 = vld [vmem:[%s3 + $0xec] sm:$0xf]
  %v2022 = vld [vmem:[%s3 + $0xf0] sm:$0xf]
  %v2023 = vld [vmem:[%s3 + $0xf4] sm:$0xf]
  %v2024 = vld [vmem:[%s3 + $0xf8] sm:$0xf]
  %v2025 = vld [vmem:[%s3 + $0xfc] sm:$0xf]
  %v2090 = vunpack.c.l.b16 %v1962
  %v2091 = vunpack.c.l.b16 %v1963
  %v2092 = vunpack.c.l.b16 %v1964
  %v2093 = vunpack.c.l.b16 %v1965
  %v2094 = vunpack.c.l.b16 %v1966
  %v2095 = vunpack.c.l.b16 %v1967
  %v2096 = vunpack.c.l.b16 %v1968
  %v2097 = vunpack.c.l.b16 %v1969
  %v2098 = vunpack.c.l.b16 %v1970
  %v2099 = vunpack.c.l.b16 %v1971
  %v2100 = vunpack.c.l.b16 %v1972
  %v2101 = vunpack.c.l.b16 %v1973
  %v2102 = vunpack.c.l.b16 %v1974
  %v2103 = vunpack.c.l.b16 %v1975
  %v2104 = vunpack.c.l.b16 %v1976
  %v2105 = vunpack.c.l.b16 %v1977
  %v2106 = vunpack.c.l.b16 %v1978
  %v2107 = vunpack.c.l.b16 %v1979
  %v2108 = vunpack.c.l.b16 %v1980
  %v2109 = vunpack.c.l.b16 %v1981
  %v2110 = vunpack.c.l.b16 %v1982
  %v2111 = vunpack.c.l.b16 %v1983
  %v2112 = vunpack.c.l.b16 %v1984
  %v2113 = vunpack.c.l.b16 %v1985
  %v2114 = vunpack.c.l.b16 %v1986
  %v2115 = vunpack.c.l.b16 %v1987
  %v2116 = vunpack.c.l.b16 %v1988
  %v2117 = vunpack.c.l.b16 %v1989
  %v2118 = vunpack.c.l.b16 %v1990
  %v2119 = vunpack.c.l.b16 %v1991
  %v2120 = vunpack.c.l.b16 %v1992
  %v2121 = vunpack.c.l.b16 %v1993
  %v2122 = vunpack.c.l.b16 %v1994
  %v2123 = vunpack.c.l.b16 %v1995
  %v2124 = vunpack.c.l.b16 %v1996
  %v2125 = vunpack.c.l.b16 %v1997
  %v2126 = vunpack.c.l.b16 %v1998
  %v2127 = vunpack.c.l.b16 %v1999
  %v2128 = vunpack.c.l.b16 %v2000
  %v2129 = vunpack.c.l.b16 %v2001
  %v2130 = vunpack.c.l.b16 %v2002
  %v2131 = vunpack.c.l.b16 %v2003
  %v2132 = vunpack.c.l.b16 %v2004
  %v2133 = vunpack.c.l.b16 %v2005
  %v2134 = vunpack.c.l.b16 %v2006
  %v2135 = vunpack.c.l.b16 %v2007
  %v2136 = vunpack.c.l.b16 %v2008
  %v2137 = vunpack.c.l.b16 %v2009
  %v2138 = vunpack.c.l.b16 %v2010
  %v2139 = vunpack.c.l.b16 %v2011
  %v2140 = vunpack.c.l.b16 %v2012
  %v2141 = vunpack.c.l.b16 %v2013
  %v2142 = vunpack.c.l.b16 %v2014
  %v2143 = vunpack.c.l.b16 %v2015
  %v2144 = vunpack.c.l.b16 %v2016
  %v2145 = vunpack.c.l.b16 %v2017
  %v2146 = vunpack.c.l.b16 %v2018
  %v2147 = vunpack.c.l.b16 %v2019
  %v2148 = vunpack.c.l.b16 %v2020
  %v2149 = vunpack.c.l.b16 %v2021
  %v2150 = vunpack.c.l.b16 %v2022
  %v2151 = vunpack.c.l.b16 %v2023
  %v2152 = vunpack.c.l.b16 %v2024
  %v2153 = vunpack.c.l.b16 %v2025
  %v2154 = vpack.c.b16 %v2091, %v2090
  %v2155 = vpack.c.b16 %v2093, %v2092
  %v2156 = vpack.c.b16 %v2095, %v2094
  %v2157 = vpack.c.b16 %v2097, %v2096
  %v2158 = vpack.c.b16 %v2099, %v2098
  %v2159 = vpack.c.b16 %v2101, %v2100
  %v2160 = vpack.c.b16 %v2103, %v2102
  %v2161 = vpack.c.b16 %v2105, %v2104
  %v2162 = vpack.c.b16 %v2107, %v2106
  %v2163 = vpack.c.b16 %v2109, %v2108
  %v2164 = vpack.c.b16 %v2111, %v2110
  %v2165 = vpack.c.b16 %v2113, %v2112
  %v2166 = vpack.c.b16 %v2115, %v2114
  %v2167 = vpack.c.b16 %v2117, %v2116
  %v2168 = vpack.c.b16 %v2119, %v2118
  %v2169 = vpack.c.b16 %v2121, %v2120
  %v2170 = vpack.c.b16 %v2123, %v2122
  %v2171 = vpack.c.b16 %v2125, %v2124
  %v2172 = vpack.c.b16 %v2127, %v2126
  %v2173 = vpack.c.b16 %v2129, %v2128
  %v2174 = vpack.c.b16 %v2131, %v2130
  %v2175 = vpack.c.b16 %v2133, %v2132
  %v2176 = vpack.c.b16 %v2135, %v2134
  %v2177 = vpack.c.b16 %v2137, %v2136
  %v2178 = vpack.c.b16 %v2139, %v2138
  %v2179 = vpack.c.b16 %v2141, %v2140
  %v2180 = vpack.c.b16 %v2143, %v2142
  %v2181 = vpack.c.b16 %v2145, %v2144
  %v2182 = vpack.c.b16 %v2147, %v2146
  %v2183 = vpack.c.b16 %v2149, %v2148
  %v2184 = vpack.c.b16 %v2151, %v2150
  %v2185 = vpack.c.b16 %v2153, %v2152
  %v2187 = vsel %vm287, %v2154, 0
  %v2190 = vsel %vm287, %v2155, 0
  %v2193 = vsel %vm287, %v2156, 0
  %v2196 = vsel %vm287, %v2157, 0
  %v2199 = vsel %vm287, %v2158, 0
  %v2202 = vsel %vm287, %v2159, 0
  %v2205 = vsel %vm287, %v2160, 0
  %v2208 = vsel %vm287, %v2161, 0
  %v2211 = vsel %vm287, %v2162, 0
  %v2214 = vsel %vm287, %v2163, 0
  %v2217 = vsel %vm287, %v2164, 0
  %v2220 = vsel %vm287, %v2165, 0
  %v2223 = vsel %vm287, %v2166, 0
  %v2226 = vsel %vm287, %v2167, 0
  %v2229 = vsel %vm287, %v2168, 0
  %v2232 = vsel %vm287, %v2169, 0
  %v2235 = vsel %vm287, %v2170, 0
  %v2238 = vsel %vm287, %v2171, 0
  %v2241 = vsel %vm287, %v2172, 0
  %v2244 = vsel %vm287, %v2173, 0
  %v2247 = vsel %vm287, %v2174, 0
  %v2250 = vsel %vm287, %v2175, 0
  %v2253 = vsel %vm287, %v2176, 0
  %v2256 = vsel %vm287, %v2177, 0
  %v2259 = vsel %vm287, %v2178, 0
  %v2262 = vsel %vm287, %v2179, 0
  %v2265 = vsel %vm287, %v2180, 0
  %v2268 = vsel %vm287, %v2181, 0
  %v2271 = vsel %vm287, %v2182, 0
  %v2274 = vsel %vm287, %v2183, 0
  %v2277 = vsel %vm287, %v2184, 0
  %v2280 = vsel %vm287, %v2185, 0
  %2282 = vmatprep.subr.bf16.mxu0 0
  %2283 = vmatpush1.bf16.msra.mxu0 0
  %2284 = vmatprep.subr.bf16.mxu0 0
  %2285 = vmatpush1.bf16.msra.mxu0 0
  %2286 = vmatprep.subr.bf16.mxu0 0
  %2287 = vmatpush1.bf16.msra.mxu0 0
  %2288 = vmatprep.subr.bf16.mxu0 0
  %2289 = vmatpush1.bf16.msra.mxu0 %v389
  %2290 = vmatprep.subr.bf16.mxu0 0
  %2291 = vmatpush1.bf16.msra.mxu0 %v281
  %2292 = vmatprep.subr.bf16.mxu0 0
  %2293 = vmatpush1.bf16.msra.mxu0 %v280
  %2294 = vmatprep.subr.bf16.mxu0 0
  %2295 = vmatpush1.bf16.msra.mxu0 %v279
  %2296 = vmatprep.subr.bf16.mxu0 0
  %2297 = vmatpush1.bf16.msra.mxu0 %v278
  %2298 = vmatprep.subr.bf16.mxu0 0
  %2299 = vmatpush2.bf16.msra.mxu0 0
  %2300 = vmatprep.subr.bf16.mxu0 0
  %2301 = vmatpush2.bf16.msra.mxu0 0
  %2302 = vmatprep.subr.bf16.mxu0 0
  %2303 = vmatpush2.bf16.msra.mxu0 0
  %2304 = vmatprep.subr.bf16.mxu0 0
  %2305 = vmatpush2.bf16.msra.mxu0 0
  %2306 = vmatprep.subr.bf16.mxu0 0
  %2307 = vmatpush2.bf16.msra.mxu0 0
  %2308 = vmatprep.subr.bf16.mxu0 0
  %2309 = vmatpush2.bf16.msra.mxu0 0
  %2310 = vmatprep.subr.bf16.mxu0 0
  %2311 = vmatpush2.bf16.msra.mxu0 0
  %2312 = vmatprep.subr.bf16.mxu0 0
  %2313 = vmatpush2.bf16.msra.mxu0 0
  %2314 = vmatprep.mubr.bf16.mxu0 0
  %2315 = vmatmul.mubr.bf16.gmra.mxu0 %v2187
  %v2316 = vpop.f32.mrf.mxu0
  %v2317 = vadd.f32 0.0, %v2316
  %v2318 = vpop.f32.mrf.mxu0
  %v2319 = vpop.f32.mrf.mxu0
  %v2320 = vadd.f32 0.0, %v2319
  %v2321 = vpop.f32.mrf.mxu0
  %2322 = vmatprep.mubr.bf16.mxu0 0
  %2323 = vmatmul.mubr.bf16.gmra.mxu0 %v2190
  %v2324 = vpop.f32.mrf.mxu0
  %v2325 = vadd.f32 0.0, %v2324
  %v2326 = vpop.f32.mrf.mxu0
  %v2327 = vpop.f32.mrf.mxu0
  %v2328 = vadd.f32 0.0, %v2327
  %v2329 = vpop.f32.mrf.mxu0
  %2330 = vmatprep.mubr.bf16.mxu0 0
  %2331 = vmatmul.mubr.bf16.gmra.mxu0 %v2193
  %v2332 = vpop.f32.mrf.mxu0
  %v2333 = vadd.f32 0.0, %v2332
  %v2334 = vpop.f32.mrf.mxu0
  %v2335 = vpop.f32.mrf.mxu0
  %v2336 = vadd.f32 0.0, %v2335
  %v2337 = vpop.f32.mrf.mxu0
  %2338 = vmatprep.mubr.bf16.mxu0 0
  %2339 = vmatmul.mubr.bf16.gmra.mxu0 %v2196
  %v2340 = vpop.f32.mrf.mxu0
  %v2341 = vadd.f32 0.0, %v2340
  %v2342 = vpop.f32.mrf.mxu0
  %v2343 = vpop.f32.mrf.mxu0
  %v2344 = vadd.f32 0.0, %v2343
  %v2345 = vpop.f32.mrf.mxu0
  %2346 = vmatprep.mubr.bf16.mxu0 0
  %2347 = vmatmul.mubr.bf16.gmra.mxu0 %v2199
  %v2348 = vpop.f32.mrf.mxu0
  %v2349 = vadd.f32 0.0, %v2348
  %v2350 = vpop.f32.mrf.mxu0
  %v2351 = vpop.f32.mrf.mxu0
  %v2352 = vadd.f32 0.0, %v2351
  %v2353 = vpop.f32.mrf.mxu0
  %2354 = vmatprep.mubr.bf16.mxu0 0
  %2355 = vmatmul.mubr.bf16.gmra.mxu0 %v2202
  %v2356 = vpop.f32.mrf.mxu0
  %v2357 = vadd.f32 0.0, %v2356
  %v2358 = vpop.f32.mrf.mxu0
  %v2359 = vpop.f32.mrf.mxu0
  %v2360 = vadd.f32 0.0, %v2359
  %v2361 = vpop.f32.mrf.mxu0
  %2362 = vmatprep.mubr.bf16.mxu0 0
  %2363 = vmatmul.mubr.bf16.gmra.mxu0 %v2205
  %v2364 = vpop.f32.mrf.mxu0
  %v2365 = vadd.f32 0.0, %v2364
  %v2366 = vpop.f32.mrf.mxu0
  %v2367 = vpop.f32.mrf.mxu0
  %v2368 = vadd.f32 0.0, %v2367
  %v2369 = vpop.f32.mrf.mxu0
  %2370 = vmatprep.mubr.bf16.mxu0 0
  %2371 = vmatmul.mubr.bf16.gmra.mxu0 %v2208
  %v2372 = vpop.f32.mrf.mxu0
  %v2373 = vadd.f32 0.0, %v2372
  %v2374 = vpop.f32.mrf.mxu0
  %v2375 = vpop.f32.mrf.mxu0
  %v2376 = vadd.f32 0.0, %v2375
  %v2377 = vpop.f32.mrf.mxu0
  %2378 = vmatprep.mubr.bf16.mxu0 0
  %2379 = vmatmul.mubr.bf16.gmra.mxu0 %v2211
  %v2380 = vpop.f32.mrf.mxu0
  %v2381 = vadd.f32 0.0, %v2380
  %v2382 = vpop.f32.mrf.mxu0
  %v2383 = vpop.f32.mrf.mxu0
  %v2384 = vadd.f32 0.0, %v2383
  %v2385 = vpop.f32.mrf.mxu0
  %2386 = vmatprep.mubr.bf16.mxu0 0
  %2387 = vmatmul.mubr.bf16.gmra.mxu0 %v2214
  %v2388 = vpop.f32.mrf.mxu0
  %v2389 = vadd.f32 0.0, %v2388
  %v2390 = vpop.f32.mrf.mxu0
  %v2391 = vpop.f32.mrf.mxu0
  %v2392 = vadd.f32 0.0, %v2391
  %v2393 = vpop.f32.mrf.mxu0
  %2394 = vmatprep.mubr.bf16.mxu0 0
  %2395 = vmatmul.mubr.bf16.gmra.mxu0 %v2217
  %v2396 = vpop.f32.mrf.mxu0
  %v2397 = vadd.f32 0.0, %v2396
  %v2398 = vpop.f32.mrf.mxu0
  %v2399 = vpop.f32.mrf.mxu0
  %v2400 = vadd.f32 0.0, %v2399
  %v2401 = vpop.f32.mrf.mxu0
  %2402 = vmatprep.mubr.bf16.mxu0 0
  %2403 = vmatmul.mubr.bf16.gmra.mxu0 %v2220
  %v2404 = vpop.f32.mrf.mxu0
  %v2405 = vadd.f32 0.0, %v2404
  %v2406 = vpop.f32.mrf.mxu0
  %v2407 = vpop.f32.mrf.mxu0
  %v2408 = vadd.f32 0.0, %v2407
  %v2409 = vpop.f32.mrf.mxu0
  %2410 = vmatprep.mubr.bf16.mxu0 0
  %2411 = vmatmul.mubr.bf16.gmra.mxu0 %v2223
  %v2412 = vpop.f32.mrf.mxu0
  %v2413 = vadd.f32 0.0, %v2412
  %v2414 = vpop.f32.mrf.mxu0
  %v2415 = vpop.f32.mrf.mxu0
  %v2416 = vadd.f32 0.0, %v2415
  %v2417 = vpop.f32.mrf.mxu0
  %2418 = vmatprep.mubr.bf16.mxu0 0
  %2419 = vmatmul.mubr.bf16.gmra.mxu0 %v2226
  %v2420 = vpop.f32.mrf.mxu0
  %v2421 = vadd.f32 0.0, %v2420
  %v2422 = vpop.f32.mrf.mxu0
  %v2423 = vpop.f32.mrf.mxu0
  %v2424 = vadd.f32 0.0, %v2423
  %v2425 = vpop.f32.mrf.mxu0
  %2426 = vmatprep.mubr.bf16.mxu0 0
  %2427 = vmatmul.mubr.bf16.gmra.mxu0 %v2229
  %v2428 = vpop.f32.mrf.mxu0
  %v2429 = vadd.f32 0.0, %v2428
  %v2430 = vpop.f32.mrf.mxu0
  %v2431 = vpop.f32.mrf.mxu0
  %v2432 = vadd.f32 0.0, %v2431
  %v2433 = vpop.f32.mrf.mxu0
  %2434 = vmatprep.mubr.bf16.mxu0 0
  %2435 = vmatmul.mubr.bf16.gmra.mxu0 %v2232
  %v2436 = vpop.f32.mrf.mxu0
  %v2437 = vadd.f32 0.0, %v2436
  %v2438 = vpop.f32.mrf.mxu0
  %v2439 = vpop.f32.mrf.mxu0
  %v2440 = vadd.f32 0.0, %v2439
  %v2441 = vpop.f32.mrf.mxu0
  %2442 = vmatprep.mubr.bf16.mxu0 0
  %2443 = vmatmul.mubr.bf16.gmra.mxu0 %v2235
  %v2444 = vpop.f32.mrf.mxu0
  %v2445 = vadd.f32 0.0, %v2444
  %v2446 = vpop.f32.mrf.mxu0
  %v2447 = vpop.f32.mrf.mxu0
  %v2448 = vadd.f32 0.0, %v2447
  %v2449 = vpop.f32.mrf.mxu0
  %2450 = vmatprep.mubr.bf16.mxu0 0
  %2451 = vmatmul.mubr.bf16.gmra.mxu0 %v2238
  %v2452 = vpop.f32.mrf.mxu0
  %v2453 = vadd.f32 0.0, %v2452
  %v2454 = vpop.f32.mrf.mxu0
  %v2455 = vpop.f32.mrf.mxu0
  %v2456 = vadd.f32 0.0, %v2455
  %v2457 = vpop.f32.mrf.mxu0
  %2458 = vmatprep.mubr.bf16.mxu0 0
  %2459 = vmatmul.mubr.bf16.gmra.mxu0 %v2241
  %v2460 = vpop.f32.mrf.mxu0
  %v2461 = vadd.f32 0.0, %v2460
  %v2462 = vpop.f32.mrf.mxu0
  %v2463 = vpop.f32.mrf.mxu0
  %v2464 = vadd.f32 0.0, %v2463
  %v2465 = vpop.f32.mrf.mxu0
  %2466 = vmatprep.mubr.bf16.mxu0 0
  %2467 = vmatmul.mubr.bf16.gmra.mxu0 %v2244
  %v2468 = vpop.f32.mrf.mxu0
  %v2469 = vadd.f32 0.0, %v2468
  %v2470 = vpop.f32.mrf.mxu0
  %v2471 = vpop.f32.mrf.mxu0
  %v2472 = vadd.f32 0.0, %v2471
  %v2473 = vpop.f32.mrf.mxu0
  %2474 = vmatprep.mubr.bf16.mxu0 0
  %2475 = vmatmul.mubr.bf16.gmra.mxu0 %v2247
  %v2476 = vpop.f32.mrf.mxu0
  %v2477 = vadd.f32 0.0, %v2476
  %v2478 = vpop.f32.mrf.mxu0
  %v2479 = vpop.f32.mrf.mxu0
  %v2480 = vadd.f32 0.0, %v2479
  %v2481 = vpop.f32.mrf.mxu0
  %2482 = vmatprep.mubr.bf16.mxu0 0
  %2483 = vmatmul.mubr.bf16.gmra.mxu0 %v2250
  %v2484 = vpop.f32.mrf.mxu0
  %v2485 = vadd.f32 0.0, %v2484
  %v2486 = vpop.f32.mrf.mxu0
  %v2487 = vpop.f32.mrf.mxu0
  %v2488 = vadd.f32 0.0, %v2487
  %v2489 = vpop.f32.mrf.mxu0
  %2490 = vmatprep.mubr.bf16.mxu0 0
  %2491 = vmatmul.mubr.bf16.gmra.mxu0 %v2253
  %v2492 = vpop.f32.mrf.mxu0
  %v2493 = vadd.f32 0.0, %v2492
  %v2494 = vpop.f32.mrf.mxu0
  %v2495 = vpop.f32.mrf.mxu0
  %v2496 = vadd.f32 0.0, %v2495
  %v2497 = vpop.f32.mrf.mxu0
  %2498 = vmatprep.mubr.bf16.mxu0 0
  %2499 = vmatmul.mubr.bf16.gmra.mxu0 %v2256
  %v2500 = vpop.f32.mrf.mxu0
  %v2501 = vadd.f32 0.0, %v2500
  %v2502 = vpop.f32.mrf.mxu0
  %v2503 = vpop.f32.mrf.mxu0
  %v2504 = vadd.f32 0.0, %v2503
  %v2505 = vpop.f32.mrf.mxu0
  %2506 = vmatprep.mubr.bf16.mxu0 0
  %2507 = vmatmul.mubr.bf16.gmra.mxu0 %v2259
  %v2508 = vpop.f32.mrf.mxu0
  %v2509 = vadd.f32 0.0, %v2508
  %v2510 = vpop.f32.mrf.mxu0
  %v2511 = vpop.f32.mrf.mxu0
  %v2512 = vadd.f32 0.0, %v2511
  %v2513 = vpop.f32.mrf.mxu0
  %2514 = vmatprep.mubr.bf16.mxu0 0
  %2515 = vmatmul.mubr.bf16.gmra.mxu0 %v2262
  %v2516 = vpop.f32.mrf.mxu0
  %v2517 = vadd.f32 0.0, %v2516
  %v2518 = vpop.f32.mrf.mxu0
  %v2519 = vpop.f32.mrf.mxu0
  %v2520 = vadd.f32 0.0, %v2519
  %v2521 = vpop.f32.mrf.mxu0
  %2522 = vmatprep.mubr.bf16.mxu0 0
  %2523 = vmatmul.mubr.bf16.gmra.mxu0 %v2265
  %v2524 = vpop.f32.mrf.mxu0
  %v2525 = vadd.f32 0.0, %v2524
  %v2526 = vpop.f32.mrf.mxu0
  %v2527 = vpop.f32.mrf.mxu0
  %v2528 = vadd.f32 0.0, %v2527
  %v2529 = vpop.f32.mrf.mxu0
  %2530 = vmatprep.mubr.bf16.mxu0 0
  %2531 = vmatmul.mubr.bf16.gmra.mxu0 %v2268
  %v2532 = vpop.f32.mrf.mxu0
  %v2533 = vadd.f32 0.0, %v2532
  %v2534 = vpop.f32.mrf.mxu0
  %v2535 = vpop.f32.mrf.mxu0
  %v2536 = vadd.f32 0.0, %v2535
  %v2537 = vpop.f32.mrf.mxu0
  %2538 = vmatprep.mubr.bf16.mxu0 0
  %2539 = vmatmul.mubr.bf16.gmra.mxu0 %v2271
  %v2540 = vpop.f32.mrf.mxu0
  %v2541 = vadd.f32 0.0, %v2540
  %v2542 = vpop.f32.mrf.mxu0
  %v2543 = vpop.f32.mrf.mxu0
  %v2544 = vadd.f32 0.0, %v2543
  %v2545 = vpop.f32.mrf.mxu0
  %2546 = vmatprep.mubr.bf16.mxu0 0
  %2547 = vmatmul.mubr.bf16.gmra.mxu0 %v2274
  %v2548 = vpop.f32.mrf.mxu0
  %v2549 = vadd.f32 0.0, %v2548
  %v2550 = vpop.f32.mrf.mxu0
  %v2551 = vpop.f32.mrf.mxu0
  %v2552 = vadd.f32 0.0, %v2551
  %v2553 = vpop.f32.mrf.mxu0
  %2554 = vmatprep.mubr.bf16.mxu0 0
  %2555 = vmatmul.mubr.bf16.gmra.mxu0 %v2277
  %v2556 = vpop.f32.mrf.mxu0
  %v2557 = vadd.f32 0.0, %v2556
  %v2558 = vpop.f32.mrf.mxu0
  %v2559 = vpop.f32.mrf.mxu0
  %v2560 = vadd.f32 0.0, %v2559
  %v2561 = vpop.f32.mrf.mxu0
  %2562 = vmatprep.mubr.bf16.mxu0 0
  %2563 = vmatmul.mubr.bf16.gmra.mxu0 %v2280
  %v2564 = vpop.f32.mrf.mxu0
  %v2565 = vadd.f32 0.0, %v2564
  %v2566 = vpop.f32.mrf.mxu0
  %v2567 = vpop.f32.mrf.mxu0
  %v2568 = vadd.f32 0.0, %v2567
  %v2569 = vpop.f32.mrf.mxu0
  %2570 = vdwg.mxu0
  %v2571 = vmax.f32 %v1708, %v2317
  %v2572 = vmax.f32 %v1711, %v2320
  %v2573 = vmax.f32 %v1716, %v2325
  %v2574 = vmax.f32 %v1719, %v2328
  %v2575 = vmax.f32 %v1724, %v2333
  %v2576 = vmax.f32 %v1727, %v2336
  %v2577 = vmax.f32 %v1732, %v2341
  %v2578 = vmax.f32 %v1735, %v2344
  %v2579 = vmax.f32 %v1740, %v2349
  %v2580 = vmax.f32 %v1743, %v2352
  %v2581 = vmax.f32 %v1748, %v2357
  %v2582 = vmax.f32 %v1751, %v2360
  %v2583 = vmax.f32 %v1756, %v2365
  %v2584 = vmax.f32 %v1759, %v2368
  %v2585 = vmax.f32 %v1764, %v2373
  %v2586 = vmax.f32 %v1767, %v2376
  %v2587 = vmax.f32 %v1772, %v2381
  %v2588 = vmax.f32 %v1775, %v2384
  %v2589 = vmax.f32 %v1780, %v2389
  %v2590 = vmax.f32 %v1783, %v2392
  %v2591 = vmax.f32 %v1788, %v2397
  %v2592 = vmax.f32 %v1791, %v2400
  %v2593 = vmax.f32 %v1796, %v2405
  %v2594 = vmax.f32 %v1799, %v2408
  %v2595 = vmax.f32 %v1804, %v2413
  %v2596 = vmax.f32 %v1807, %v2416
  %v2597 = vmax.f32 %v1812, %v2421
  %v2598 = vmax.f32 %v1815, %v2424
  %v2599 = vmax.f32 %v1820, %v2429
  %v2600 = vmax.f32 %v1823, %v2432
  %v2601 = vmax.f32 %v1828, %v2437
  %v2602 = vmax.f32 %v1831, %v2440
  %v2603 = vmax.f32 %v1836, %v2445
  %v2604 = vmax.f32 %v1839, %v2448
  %v2605 = vmax.f32 %v1844, %v2453
  %v2606 = vmax.f32 %v1847, %v2456
  %v2607 = vmax.f32 %v1852, %v2461
  %v2608 = vmax.f32 %v1855, %v2464
  %v2609 = vmax.f32 %v1860, %v2469
  %v2610 = vmax.f32 %v1863, %v2472
  %v2611 = vmax.f32 %v1868, %v2477
  %v2612 = vmax.f32 %v1871, %v2480
  %v2613 = vmax.f32 %v1876, %v2485
  %v2614 = vmax.f32 %v1879, %v2488
  %v2615 = vmax.f32 %v1884, %v2493
  %v2616 = vmax.f32 %v1887, %v2496
  %v2617 = vmax.f32 %v1892, %v2501
  %v2618 = vmax.f32 %v1895, %v2504
  %v2619 = vmax.f32 %v1900, %v2509
  %v2620 = vmax.f32 %v1903, %v2512
  %v2621 = vmax.f32 %v1908, %v2517
  %v2622 = vmax.f32 %v1911, %v2520
  %v2623 = vmax.f32 %v1916, %v2525
  %v2624 = vmax.f32 %v1919, %v2528
  %v2625 = vmax.f32 %v1924, %v2533
  %v2626 = vmax.f32 %v1927, %v2536
  %v2627 = vmax.f32 %v1932, %v2541
  %v2628 = vmax.f32 %v1935, %v2544
  %v2629 = vmax.f32 %v1940, %v2549
  %v2630 = vmax.f32 %v1943, %v2552
  %v2631 = vmax.f32 %v1948, %v2557
  %v2632 = vmax.f32 %v1951, %v2560
  %v2633 = vmax.f32 %v1956, %v2565
  %v2634 = vmax.f32 %v1959, %v2568
  %v2635 = vmax.f32 %v1289, %v2571
  %v2636 = vmax.f32 %v1290, %v2572
  %v2637 = vmax.f32 %v1291, %v2573
  %v2638 = vmax.f32 %v1292, %v2574
  %v2639 = vmax.f32 %v1293, %v2575
  %v2640 = vmax.f32 %v1294, %v2576
  %v2641 = vmax.f32 %v1295, %v2577
  %v2642 = vmax.f32 %v1296, %v2578
  %v2643 = vmax.f32 %v1297, %v2579
  %v2644 = vmax.f32 %v1298, %v2580
  %v2645 = vmax.f32 %v1299, %v2581
  %v2646 = vmax.f32 %v1300, %v2582
  %v2647 = vmax.f32 %v1301, %v2583
  %v2648 = vmax.f32 %v1302, %v2584
  %v2649 = vmax.f32 %v1303, %v2585
  %v2650 = vmax.f32 %v1304, %v2586
  %v2651 = vmax.f32 %v1305, %v2587
  %v2652 = vmax.f32 %v1306, %v2588
  %v2653 = vmax.f32 %v1307, %v2589
  %v2654 = vmax.f32 %v1308, %v2590
  %v2655 = vmax.f32 %v1309, %v2591
  %v2656 = vmax.f32 %v1310, %v2592
  %v2657 = vmax.f32 %v1311, %v2593
  %v2658 = vmax.f32 %v1312, %v2594
  %v2659 = vmax.f32 %v1313, %v2595
  %v2660 = vmax.f32 %v1314, %v2596
  %v2661 = vmax.f32 %v1315, %v2597
  %v2662 = vmax.f32 %v1316, %v2598
  %v2663 = vmax.f32 %v1317, %v2599
  %v2664 = vmax.f32 %v1318, %v2600
  %v2665 = vmax.f32 %v1319, %v2601
  %v2666 = vmax.f32 %v1320, %v2602
  %v2667 = vmax.f32 %v1321, %v2603
  %v2668 = vmax.f32 %v1322, %v2604
  %v2669 = vmax.f32 %v1323, %v2605
  %v2670 = vmax.f32 %v1324, %v2606
  %v2671 = vmax.f32 %v1325, %v2607
  %v2672 = vmax.f32 %v1326, %v2608
  %v2673 = vmax.f32 %v1327, %v2609
  %v2674 = vmax.f32 %v1328, %v2610
  %v2675 = vmax.f32 %v1329, %v2611
  %v2676 = vmax.f32 %v1330, %v2612
  %v2677 = vmax.f32 %v1331, %v2613
  %v2678 = vmax.f32 %v1332, %v2614
  %v2679 = vmax.f32 %v1333, %v2615
  %v2680 = vmax.f32 %v1334, %v2616
  %v2681 = vmax.f32 %v1335, %v2617
  %v2682 = vmax.f32 %v1336, %v2618
  %v2683 = vmax.f32 %v1337, %v2619
  %v2684 = vmax.f32 %v1338, %v2620
  %v2685 = vmax.f32 %v1339, %v2621
  %v2686 = vmax.f32 %v1340, %v2622
  %v2687 = vmax.f32 %v1341, %v2623
  %v2688 = vmax.f32 %v1342, %v2624
  %v2689 = vmax.f32 %v1343, %v2625
  %v2690 = vmax.f32 %v1344, %v2626
  %v2691 = vmax.f32 %v1345, %v2627
  %v2692 = vmax.f32 %v1346, %v2628
  %v2693 = vmax.f32 %v1347, %v2629
  %v2694 = vmax.f32 %v1348, %v2630
  %v2695 = vmax.f32 %v1349, %v2631
  %v2696 = vmax.f32 %v1350, %v2632
  %v2697 = vmax.f32 %v1351, %v2633
  %v2698 = vmax.f32 %v1352, %v2634
  %v2699 = vld [vmem:[%s5] sm:$0x1]
  %v2701 = vlaneseq
  %v2702 = vshrl.u32 %v2701, 7
  %v2703 = vsub.s32 0, %v2702
  %v2704 = vrot.slane %v2699, %v2703
  %v2706 = vadd.f32 %v2635, %v2704
  %v2707 = vadd.f32 %v2636, %v2704
  %v2708 = vadd.f32 %v2637, %v2704
  %v2709 = vadd.f32 %v2638, %v2704
  %v2710 = vadd.f32 %v2639, %v2704
  %v2711 = vadd.f32 %v2640, %v2704
  %v2712 = vadd.f32 %v2641, %v2704
  %v2713 = vadd.f32 %v2642, %v2704
  %v2714 = vadd.f32 %v2643, %v2704
  %v2715 = vadd.f32 %v2644, %v2704
  %v2716 = vadd.f32 %v2645, %v2704
  %v2717 = vadd.f32 %v2646, %v2704
  %v2718 = vadd.f32 %v2647, %v2704
  %v2719 = vadd.f32 %v2648, %v2704
  %v2720 = vadd.f32 %v2649, %v2704
  %v2721 = vadd.f32 %v2650, %v2704
  %v2722 = vadd.f32 %v2651, %v2704
  %v2723 = vadd.f32 %v2652, %v2704
  %v2724 = vadd.f32 %v2653, %v2704
  %v2725 = vadd.f32 %v2654, %v2704
  %v2726 = vadd.f32 %v2655, %v2704
  %v2727 = vadd.f32 %v2656, %v2704
  %v2728 = vadd.f32 %v2657, %v2704
  %v2729 = vadd.f32 %v2658, %v2704
  %v2730 = vadd.f32 %v2659, %v2704
  %v2731 = vadd.f32 %v2660, %v2704
  %v2732 = vadd.f32 %v2661, %v2704
  %v2733 = vadd.f32 %v2662, %v2704
  %v2734 = vadd.f32 %v2663, %v2704
  %v2735 = vadd.f32 %v2664, %v2704
  %v2736 = vadd.f32 %v2665, %v2704
  %v2737 = vadd.f32 %v2666, %v2704
  %v2738 = vadd.f32 %v2667, %v2704
  %v2739 = vadd.f32 %v2668, %v2704
  %v2740 = vadd.f32 %v2669, %v2704
  %v2741 = vadd.f32 %v2670, %v2704
  %v2742 = vadd.f32 %v2671, %v2704
  %v2743 = vadd.f32 %v2672, %v2704
  %v2744 = vadd.f32 %v2673, %v2704
  %v2745 = vadd.f32 %v2674, %v2704
  %v2746 = vadd.f32 %v2675, %v2704
  %v2747 = vadd.f32 %v2676, %v2704
  %v2748 = vadd.f32 %v2677, %v2704
  %v2749 = vadd.f32 %v2678, %v2704
  %v2750 = vadd.f32 %v2679, %v2704
  %v2751 = vadd.f32 %v2680, %v2704
  %v2752 = vadd.f32 %v2681, %v2704
  %v2753 = vadd.f32 %v2682, %v2704
  %v2754 = vadd.f32 %v2683, %v2704
  %v2755 = vadd.f32 %v2684, %v2704
  %v2756 = vadd.f32 %v2685, %v2704
  %v2757 = vadd.f32 %v2686, %v2704
  %v2758 = vadd.f32 %v2687, %v2704
  %v2759 = vadd.f32 %v2688, %v2704
  %v2760 = vadd.f32 %v2689, %v2704
  %v2761 = vadd.f32 %v2690, %v2704
  %v2762 = vadd.f32 %v2691, %v2704
  %v2763 = vadd.f32 %v2692, %v2704
  %v2764 = vadd.f32 %v2693, %v2704
  %v2765 = vadd.f32 %v2694, %v2704
  %v2766 = vadd.f32 %v2695, %v2704
  %v2767 = vadd.f32 %v2696, %v2704
  %v2768 = vadd.f32 %v2697, %v2704
  %v2769 = vadd.f32 %v2698, %v2704
  %v2770 = vpack.c.bf16 %v2707, %v2706
  %v2771 = vpack.c.bf16 %v2709, %v2708
  %v2772 = vpack.c.bf16 %v2711, %v2710
  %v2773 = vpack.c.bf16 %v2713, %v2712
  %v2774 = vpack.c.bf16 %v2715, %v2714
  %v2775 = vpack.c.bf16 %v2717, %v2716
  %v2776 = vpack.c.bf16 %v2719, %v2718
  %v2777 = vpack.c.bf16 %v2721, %v2720
  %v2778 = vpack.c.bf16 %v2723, %v2722
  %v2779 = vpack.c.bf16 %v2725, %v2724
  %v2780 = vpack.c.bf16 %v2727, %v2726
  %v2781 = vpack.c.bf16 %v2729, %v2728
  %v2782 = vpack.c.bf16 %v2731, %v2730
  %v2783 = vpack.c.bf16 %v2733, %v2732
  %v2784 = vpack.c.bf16 %v2735, %v2734
  %v2785 = vpack.c.bf16 %v2737, %v2736
  %v2786 = vpack.c.bf16 %v2739, %v2738
  %v2787 = vpack.c.bf16 %v2741, %v2740
  %v2788 = vpack.c.bf16 %v2743, %v2742
  %v2789 = vpack.c.bf16 %v2745, %v2744
  %v2790 = vpack.c.bf16 %v2747, %v2746
  %v2791 = vpack.c.bf16 %v2749, %v2748
  %v2792 = vpack.c.bf16 %v2751, %v2750
  %v2793 = vpack.c.bf16 %v2753, %v2752
  %v2794 = vpack.c.bf16 %v2755, %v2754
  %v2795 = vpack.c.bf16 %v2757, %v2756
  %v2796 = vpack.c.bf16 %v2759, %v2758
  %v2797 = vpack.c.bf16 %v2761, %v2760
  %v2798 = vpack.c.bf16 %v2763, %v2762
  %v2799 = vpack.c.bf16 %v2765, %v2764
  %v2800 = vpack.c.bf16 %v2767, %v2766
  %v2801 = vpack.c.bf16 %v2769, %v2768
  %v2834 = vunpack.c.l.b16 %v2770
  %v2835 = vunpack.c.h.b16 %v2770
  %v2836 = vunpack.c.l.b16 %v2771
  %v2837 = vunpack.c.h.b16 %v2771
  %v2838 = vunpack.c.l.b16 %v2772
  %v2839 = vunpack.c.h.b16 %v2772
  %v2840 = vunpack.c.l.b16 %v2773
  %v2841 = vunpack.c.h.b16 %v2773
  %v2842 = vunpack.c.l.b16 %v2774
  %v2843 = vunpack.c.h.b16 %v2774
  %v2844 = vunpack.c.l.b16 %v2775
  %v2845 = vunpack.c.h.b16 %v2775
  %v2846 = vunpack.c.l.b16 %v2776
  %v2847 = vunpack.c.h.b16 %v2776
  %v2848 = vunpack.c.l.b16 %v2777
  %v2849 = vunpack.c.h.b16 %v2777
  %v2850 = vunpack.c.l.b16 %v2778
  %v2851 = vunpack.c.h.b16 %v2778
  %v2852 = vunpack.c.l.b16 %v2779
  %v2853 = vunpack.c.h.b16 %v2779
  %v2854 = vunpack.c.l.b16 %v2780
  %v2855 = vunpack.c.h.b16 %v2780
  %v2856 = vunpack.c.l.b16 %v2781
  %v2857 = vunpack.c.h.b16 %v2781
  %v2858 = vunpack.c.l.b16 %v2782
  %v2859 = vunpack.c.h.b16 %v2782
  %v2860 = vunpack.c.l.b16 %v2783
  %v2861 = vunpack.c.h.b16 %v2783
  %v2862 = vunpack.c.l.b16 %v2784
  %v2863 = vunpack.c.h.b16 %v2784
  %v2864 = vunpack.c.l.b16 %v2785
  %v2865 = vunpack.c.h.b16 %v2785
  %v2866 = vunpack.c.l.b16 %v2786
  %v2867 = vunpack.c.h.b16 %v2786
  %v2868 = vunpack.c.l.b16 %v2787
  %v2869 = vunpack.c.h.b16 %v2787
  %v2870 = vunpack.c.l.b16 %v2788
  %v2871 = vunpack.c.h.b16 %v2788
  %v2872 = vunpack.c.l.b16 %v2789
  %v2873 = vunpack.c.h.b16 %v2789
  %v2874 = vunpack.c.l.b16 %v2790
  %v2875 = vunpack.c.h.b16 %v2790
  %v2876 = vunpack.c.l.b16 %v2791
  %v2877 = vunpack.c.h.b16 %v2791
  %v2878 = vunpack.c.l.b16 %v2792
  %v2879 = vunpack.c.h.b16 %v2792
  %v2880 = vunpack.c.l.b16 %v2793
  %v2881 = vunpack.c.h.b16 %v2793
  %v2882 = vunpack.c.l.b16 %v2794
  %v2883 = vunpack.c.h.b16 %v2794
  %v2884 = vunpack.c.l.b16 %v2795
  %v2885 = vunpack.c.h.b16 %v2795
  %v2886 = vunpack.c.l.b16 %v2796
  %v2887 = vunpack.c.h.b16 %v2796
  %v2888 = vunpack.c.l.b16 %v2797
  %v2889 = vunpack.c.h.b16 %v2797
  %v2890 = vunpack.c.l.b16 %v2798
  %v2891 = vunpack.c.h.b16 %v2798
  %v2892 = vunpack.c.l.b16 %v2799
  %v2893 = vunpack.c.h.b16 %v2799
  %v2894 = vunpack.c.l.b16 %v2800
  %v2895 = vunpack.c.h.b16 %v2800
  %v2896 = vunpack.c.l.b16 %v2801
  %v2897 = vunpack.c.h.b16 %v2801
  %v2898 = vpack.c.b16 %v2834, %v2834
  %v2899 = vpack.c.b16 %v2835, %v2835
  %v2900 = vpack.c.b16 %v2836, %v2836
  %v2901 = vpack.c.b16 %v2837, %v2837
  %v2902 = vpack.c.b16 %v2838, %v2838
  %v2903 = vpack.c.b16 %v2839, %v2839
  %v2904 = vpack.c.b16 %v2840, %v2840
  %v2905 = vpack.c.b16 %v2841, %v2841
  %v2906 = vpack.c.b16 %v2842, %v2842
  %v2907 = vpack.c.b16 %v2843, %v2843
  %v2908 = vpack.c.b16 %v2844, %v2844
  %v2909 = vpack.c.b16 %v2845, %v2845
  %v2910 = vpack.c.b16 %v2846, %v2846
  %v2911 = vpack.c.b16 %v2847, %v2847
  %v2912 = vpack.c.b16 %v2848, %v2848
  %v2913 = vpack.c.b16 %v2849, %v2849
  %v2914 = vpack.c.b16 %v2850, %v2850
  %v2915 = vpack.c.b16 %v2851, %v2851
  %v2916 = vpack.c.b16 %v2852, %v2852
  %v2917 = vpack.c.b16 %v2853, %v2853
  %v2918 = vpack.c.b16 %v2854, %v2854
  %v2919 = vpack.c.b16 %v2855, %v2855
  %v2920 = vpack.c.b16 %v2856, %v2856
  %v2921 = vpack.c.b16 %v2857, %v2857
  %v2922 = vpack.c.b16 %v2858, %v2858
  %v2923 = vpack.c.b16 %v2859, %v2859
  %v2924 = vpack.c.b16 %v2860, %v2860
  %v2925 = vpack.c.b16 %v2861, %v2861
  %v2926 = vpack.c.b16 %v2862, %v2862
  %v2927 = vpack.c.b16 %v2863, %v2863
  %v2928 = vpack.c.b16 %v2864, %v2864
  %v2929 = vpack.c.b16 %v2865, %v2865
  %v2930 = vpack.c.b16 %v2866, %v2866
  %v2931 = vpack.c.b16 %v2867, %v2867
  %v2932 = vpack.c.b16 %v2868, %v2868
  %v2933 = vpack.c.b16 %v2869, %v2869
  %v2934 = vpack.c.b16 %v2870, %v2870
  %v2935 = vpack.c.b16 %v2871, %v2871
  %v2936 = vpack.c.b16 %v2872, %v2872
  %v2937 = vpack.c.b16 %v2873, %v2873
  %v2938 = vpack.c.b16 %v2874, %v2874
  %v2939 = vpack.c.b16 %v2875, %v2875
  %v2940 = vpack.c.b16 %v2876, %v2876
  %v2941 = vpack.c.b16 %v2877, %v2877
  %v2942 = vpack.c.b16 %v2878, %v2878
  %v2943 = vpack.c.b16 %v2879, %v2879
  %v2944 = vpack.c.b16 %v2880, %v2880
  %v2945 = vpack.c.b16 %v2881, %v2881
  %v2946 = vpack.c.b16 %v2882, %v2882
  %v2947 = vpack.c.b16 %v2883, %v2883
  %v2948 = vpack.c.b16 %v2884, %v2884
  %v2949 = vpack.c.b16 %v2885, %v2885
  %v2950 = vpack.c.b16 %v2886, %v2886
  %v2951 = vpack.c.b16 %v2887, %v2887
  %v2952 = vpack.c.b16 %v2888, %v2888
  %v2953 = vpack.c.b16 %v2889, %v2889
  %v2954 = vpack.c.b16 %v2890, %v2890
  %v2955 = vpack.c.b16 %v2891, %v2891
  %v2956 = vpack.c.b16 %v2892, %v2892
  %v2957 = vpack.c.b16 %v2893, %v2893
  %v2958 = vpack.c.b16 %v2894, %v2894
  %v2959 = vpack.c.b16 %v2895, %v2895
  %v2960 = vpack.c.b16 %v2896, %v2896
  %v2961 = vpack.c.b16 %v2897, %v2897
  %vm3026 = vcmask 257024
  %3027 = vst.msk [vmem:[%s6] sm:$0xf] %vm3026, %v2898
  %3028 = vst.msk [vmem:[%s6 + $0x4] sm:$0xf] %vm3026, %v2899
  %3029 = vst.msk [vmem:[%s6 + $0x8] sm:$0xf] %vm3026, %v2900
  %3030 = vst.msk [vmem:[%s6 + $0xc] sm:$0xf] %vm3026, %v2901
  %3031 = vst.msk [vmem:[%s6 + $0x10] sm:$0xf] %vm3026, %v2902
  %3032 = vst.msk [vmem:[%s6 + $0x14] sm:$0xf] %vm3026, %v2903
  %3033 = vst.msk [vmem:[%s6 + $0x18] sm:$0xf] %vm3026, %v2904
  %3034 = vst.msk [vmem:[%s6 + $0x1c] sm:$0xf] %vm3026, %v2905
  %3035 = vst.msk [vmem:[%s6 + $0x20] sm:$0xf] %vm3026, %v2906
  %3036 = vst.msk [vmem:[%s6 + $0x24] sm:$0xf] %vm3026, %v2907
  %3037 = vst.msk [vmem:[%s6 + $0x28] sm:$0xf] %vm3026, %v2908
  %3038 = vst.msk [vmem:[%s6 + $0x2c] sm:$0xf] %vm3026, %v2909
  %3039 = vst.msk [vmem:[%s6 + $0x30] sm:$0xf] %vm3026, %v2910
  %3040 = vst.msk [vmem:[%s6 + $0x34] sm:$0xf] %vm3026, %v2911
  %3041 = vst.msk [vmem:[%s6 + $0x38] sm:$0xf] %vm3026, %v2912
  %3042 = vst.msk [vmem:[%s6 + $0x3c] sm:$0xf] %vm3026, %v2913
  %3043 = vst.msk [vmem:[%s6 + $0x40] sm:$0xf] %vm3026, %v2914
  %3044 = vst.msk [vmem:[%s6 + $0x44] sm:$0xf] %vm3026, %v2915
  %3045 = vst.msk [vmem:[%s6 + $0x48] sm:$0xf] %vm3026, %v2916
  %3046 = vst.msk [vmem:[%s6 + $0x4c] sm:$0xf] %vm3026, %v2917
  %3047 = vst.msk [vmem:[%s6 + $0x50] sm:$0xf] %vm3026, %v2918
  %3048 = vst.msk [vmem:[%s6 + $0x54] sm:$0xf] %vm3026, %v2919
  %3049 = vst.msk [vmem:[%s6 + $0x58] sm:$0xf] %vm3026, %v2920
  %3050 = vst.msk [vmem:[%s6 + $0x5c] sm:$0xf] %vm3026, %v2921
  %3051 = vst.msk [vmem:[%s6 + $0x60] sm:$0xf] %vm3026, %v2922
  %3052 = vst.msk [vmem:[%s6 + $0x64] sm:$0xf] %vm3026, %v2923
  %3053 = vst.msk [vmem:[%s6 + $0x68] sm:$0xf] %vm3026, %v2924
  %3054 = vst.msk [vmem:[%s6 + $0x6c] sm:$0xf] %vm3026, %v2925
  %3055 = vst.msk [vmem:[%s6 + $0x70] sm:$0xf] %vm3026, %v2926
  %3056 = vst.msk [vmem:[%s6 + $0x74] sm:$0xf] %vm3026, %v2927
  %3057 = vst.msk [vmem:[%s6 + $0x78] sm:$0xf] %vm3026, %v2928
  %3058 = vst.msk [vmem:[%s6 + $0x7c] sm:$0xf] %vm3026, %v2929
  %3059 = vst.msk [vmem:[%s6 + $0x80] sm:$0xf] %vm3026, %v2930
  %3060 = vst.msk [vmem:[%s6 + $0x84] sm:$0xf] %vm3026, %v2931
  %3061 = vst.msk [vmem:[%s6 + $0x88] sm:$0xf] %vm3026, %v2932
  %3062 = vst.msk [vmem:[%s6 + $0x8c] sm:$0xf] %vm3026, %v2933
  %3063 = vst.msk [vmem:[%s6 + $0x90] sm:$0xf] %vm3026, %v2934
  %3064 = vst.msk [vmem:[%s6 + $0x94] sm:$0xf] %vm3026, %v2935
  %3065 = vst.msk [vmem:[%s6 + $0x98] sm:$0xf] %vm3026, %v2936
  %3066 = vst.msk [vmem:[%s6 + $0x9c] sm:$0xf] %vm3026, %v2937
  %3067 = vst.msk [vmem:[%s6 + $0xa0] sm:$0xf] %vm3026, %v2938
  %3068 = vst.msk [vmem:[%s6 + $0xa4] sm:$0xf] %vm3026, %v2939
  %3069 = vst.msk [vmem:[%s6 + $0xa8] sm:$0xf] %vm3026, %v2940
  %3070 = vst.msk [vmem:[%s6 + $0xac] sm:$0xf] %vm3026, %v2941
  %3071 = vst.msk [vmem:[%s6 + $0xb0] sm:$0xf] %vm3026, %v2942
  %3072 = vst.msk [vmem:[%s6 + $0xb4] sm:$0xf] %vm3026, %v2943
  %3073 = vst.msk [vmem:[%s6 + $0xb8] sm:$0xf] %vm3026, %v2944
  %3074 = vst.msk [vmem:[%s6 + $0xbc] sm:$0xf] %vm3026, %v2945
  %3075 = vst.msk [vmem:[%s6 + $0xc0] sm:$0xf] %vm3026, %v2946
  %3076 = vst.msk [vmem:[%s6 + $0xc4] sm:$0xf] %vm3026, %v2947
  %3077 = vst.msk [vmem:[%s6 + $0xc8] sm:$0xf] %vm3026, %v2948
  %3078 = vst.msk [vmem:[%s6 + $0xcc] sm:$0xf] %vm3026, %v2949
  %3079 = vst.msk [vmem:[%s6 + $0xd0] sm:$0xf] %vm3026, %v2950
  %3080 = vst.msk [vmem:[%s6 + $0xd4] sm:$0xf] %vm3026, %v2951
  %3081 = vst.msk [vmem:[%s6 + $0xd8] sm:$0xf] %vm3026, %v2952
  %3082 = vst.msk [vmem:[%s6 + $0xdc] sm:$0xf] %vm3026, %v2953
  %3083 = vst.msk [vmem:[%s6 + $0xe0] sm:$0xf] %vm3026, %v2954
  %3084 = vst.msk [vmem:[%s6 + $0xe4] sm:$0xf] %vm3026, %v2955
  %3085 = vst.msk [vmem:[%s6 + $0xe8] sm:$0xf] %vm3026, %v2956
  %3086 = vst.msk [vmem:[%s6 + $0xec] sm:$0xf] %vm3026, %v2957
  %3087 = vst.msk [vmem:[%s6 + $0xf0] sm:$0xf] %vm3026, %v2958
  %3088 = vst.msk [vmem:[%s6 + $0xf4] sm:$0xf] %vm3026, %v2959
  %3089 = vst.msk [vmem:[%s6 + $0xf8] sm:$0xf] %vm3026, %v2960
  %3090 = vst.msk [vmem:[%s6 + $0xfc] sm:$0xf] %vm3026, %v2961
  // Predicated region
  $region26: #{hgl_forward.4} parent=0 // pred_check
    _
  $region27: #{hgl_forward.4} parent=0 // pred_check_branch
    %3092 = sbr.rel (0) target = $region29
  $region28: #{hgl_forward.4} parent=0 // pred_region
    _
  $region29: #{hgl_forward.4} parent=0 // pred_fallthru
    _
  // Predicated region
  $region30: #{hgl_forward.4} parent=0 // pred_check
    _
  $region31: #{hgl_forward.4} parent=0 // pred_check_branch
    %3094 = sbr.rel (0) target = $region33
  $region32: #{hgl_forward.4} parent=0 // pred_region
    _
  $region33: #{hgl_forward.4} parent=0 // pred_fallthru
    _

// kernel: hgl_forward.5
$region0: #{hgl_forward.5}
  #allocation0 [shape = 'u32[]', space=smem, size = 0x4, offset = 0x4, fixed_abs, tag = 'smem constant byte address 0x4 - core index']
  #allocation1 [shape = 'u32[144,128]{1,0:T(1,128)}', space=vmem, size = 0x12000, scoped, tag = 'internal scratch']
  %s0 = inlined_call_operand.vmem [shape: bf16[128,800], index: 0, kind: input, shape index: {}]
  %s1 = inlined_call_operand.vmem [shape: bf16[128,800], index: 1, kind: input, shape index: {}]
  %s2 = inlined_call_operand.vmem [shape: bf16[128,800], index: 2, kind: input, shape index: {}]
  %s3 = inlined_call_operand.vmem [shape: bf16[128,800], index: 3, kind: input, shape index: {}]
  %s4 = inlined_call_operand.vmem [shape: bf16[800,32], index: 4, kind: input, shape index: {}]
  %s5 = inlined_call_operand.vmem [shape: f32[1,32], index: 5, kind: input, shape index: {}]
  %s6 = inlined_call_operand.vmem [shape: bf16[128,32], index: 6, kind: output, shape index: {}]
  %s7 = sld [smem:[#allocation0]]
  $region34: #{hgl_forward.5} parent=0
    _
  %s9 = ssub.s32 1, %s7
  %s10 = scalar_select 0, %s9, %s7
  // Predicated region
  $region2: #{hgl_forward.5} parent=0 // pred_check
    _
  $region3: #{hgl_forward.5} parent=0 // pred_check_branch
    %12 = sbr.rel (0) target = $region5
  $region4: #{hgl_forward.5} parent=0 // pred_region
    _
  $region5: #{hgl_forward.5} parent=0 // pred_fallthru
    _
  // Predicated region
  $region6: #{hgl_forward.5} parent=0 // pred_check
    _
  $region7: #{hgl_forward.5} parent=0 // pred_check_branch
    %14 = sbr.rel (0) target = $region9
  $region8: #{hgl_forward.5} parent=0 // pred_region
    _
  $region9: #{hgl_forward.5} parent=0 // pred_fallthru
    _
  // Predicated region
  $region10: #{hgl_forward.5} parent=0 // pred_check
    _
  $region11: #{hgl_forward.5} parent=0 // pred_check_branch
    %16 = sbr.rel (0) target = $region13
  $region12: #{hgl_forward.5} parent=0 // pred_region
    _
  $region13: #{hgl_forward.5} parent=0 // pred_fallthru
    _
  // Predicated region
  $region14: #{hgl_forward.5} parent=0 // pred_check
    _
  $region15: #{hgl_forward.5} parent=0 // pred_check_branch
    %18 = sbr.rel (0) target = $region17
  $region16: #{hgl_forward.5} parent=0 // pred_region
    _
  $region17: #{hgl_forward.5} parent=0 // pred_fallthru
    _
  // Predicated region
  $region18: #{hgl_forward.5} parent=0 // pred_check
    _
  $region19: #{hgl_forward.5} parent=0 // pred_check_branch
    %20 = sbr.rel (0) target = $region21
  $region20: #{hgl_forward.5} parent=0 // pred_region
    _
  $region21: #{hgl_forward.5} parent=0 // pred_fallthru
    _
  // Predicated region
  $region22: #{hgl_forward.5} parent=0 // pred_check
    _
  $region23: #{hgl_forward.5} parent=0 // pred_check_branch
    %22 = sbr.rel (0) target = $region25
  $region24: #{hgl_forward.5} parent=0 // pred_region
    _
  $region25: #{hgl_forward.5} parent=0 // pred_fallthru
    _
  %v24 = vld [vmem:[%s4] sm:$0xf]
  %v25 = vld [vmem:[%s4 + $0x4] sm:$0xf]
  %v26 = vld [vmem:[%s4 + $0x8] sm:$0xf]
  %v27 = vld [vmem:[%s4 + $0xc] sm:$0xf]
  %v28 = vld [vmem:[%s4 + $0x10] sm:$0xf]
  %v29 = vld [vmem:[%s4 + $0x14] sm:$0xf]
  %v30 = vld [vmem:[%s4 + $0x18] sm:$0xf]
  %v31 = vld [vmem:[%s4 + $0x1c] sm:$0xf]
  %v32 = vld [vmem:[%s4 + $0x20] sm:$0xf]
  %v33 = vld [vmem:[%s4 + $0x24] sm:$0xf]
  %v34 = vld [vmem:[%s4 + $0x28] sm:$0xf]
  %v35 = vld [vmem:[%s4 + $0x2c] sm:$0xf]
  %v36 = vld [vmem:[%s4 + $0x30] sm:$0xf]
  %v37 = vld [vmem:[%s4 + $0x34] sm:$0xf]
  %v38 = vld [vmem:[%s4 + $0x38] sm:$0xf]
  %v39 = vld [vmem:[%s4 + $0x3c] sm:$0xf]
  %v40 = vld [vmem:[%s4 + $0x40] sm:$0xf]
  %v41 = vld [vmem:[%s4 + $0x44] sm:$0xf]
  %v42 = vld [vmem:[%s4 + $0x48] sm:$0xf]
  %v43 = vld [vmem:[%s4 + $0x4c] sm:$0xf]
  %v44 = vld [vmem:[%s4 + $0x50] sm:$0xf]
  %v45 = vld [vmem:[%s4 + $0x54] sm:$0xf]
  %v46 = vld [vmem:[%s4 + $0x58] sm:$0xf]
  %v47 = vld [vmem:[%s4 + $0x5c] sm:$0xf]
  %v48 = vld [vmem:[%s4 + $0x60] sm:$0xf]
  %v49 = vld [vmem:[%s4 + $0x64] sm:$0xf]
  %v50 = vld [vmem:[%s4 + $0x68] sm:$0xf]
  %v51 = vld [vmem:[%s4 + $0x6c] sm:$0xf]
  %v52 = vld [vmem:[%s4 + $0x70] sm:$0xf]
  %v53 = vld [vmem:[%s4 + $0x74] sm:$0xf]
  %v54 = vld [vmem:[%s4 + $0x78] sm:$0xf]
  %v55 = vld [vmem:[%s4 + $0x7c] sm:$0xf]
  %v56 = vld [vmem:[%s4 + $0x80] sm:$0xf]
  %v57 = vld [vmem:[%s4 + $0x84] sm:$0xf]
  %v58 = vld [vmem:[%s4 + $0x88] sm:$0xf]
  %v59 = vld [vmem:[%s4 + $0x8c] sm:$0xf]
  %v60 = vld [vmem:[%s4 + $0x90] sm:$0xf]
  %v61 = vld [vmem:[%s4 + $0x94] sm:$0xf]
  %v62 = vld [vmem:[%s4 + $0x98] sm:$0xf]
  %v63 = vld [vmem:[%s4 + $0x9c] sm:$0xf]
  %v64 = vld [vmem:[%s4 + $0xa0] sm:$0xf]
  %v65 = vld [vmem:[%s4 + $0xa4] sm:$0xf]
  %v66 = vld [vmem:[%s4 + $0xa8] sm:$0xf]
  %v67 = vld [vmem:[%s4 + $0xac] sm:$0xf]
  %v68 = vld [vmem:[%s4 + $0xb0] sm:$0xf]
  %v69 = vld [vmem:[%s4 + $0xb4] sm:$0xf]
  %v70 = vld [vmem:[%s4 + $0xb8] sm:$0xf]
  %v71 = vld [vmem:[%s4 + $0xbc] sm:$0xf]
  %v72 = vld [vmem:[%s4 + $0xc0] sm:$0xf]
  %v73 = vld [vmem:[%s4 + $0xc4] sm:$0xf]
  %v74 = vld [vmem:[%s4 + $0xc8] sm:$0xf]
  %v75 = vld [vmem:[%s4 + $0xcc] sm:$0xf]
  %v76 = vld [vmem:[%s4 + $0xd0] sm:$0xf]
  %v77 = vld [vmem:[%s4 + $0xd4] sm:$0xf]
  %v78 = vld [vmem:[%s4 + $0xd8] sm:$0xf]
  %v79 = vld [vmem:[%s4 + $0xdc] sm:$0xf]
  %v80 = vld [vmem:[%s4 + $0xe0] sm:$0xf]
  %v81 = vld [vmem:[%s4 + $0xe4] sm:$0xf]
  %v82 = vld [vmem:[%s4 + $0xe8] sm:$0xf]
  %v83 = vld [vmem:[%s4 + $0xec] sm:$0xf]
  %v84 = vld [vmem:[%s4 + $0xf0] sm:$0xf]
  %v85 = vld [vmem:[%s4 + $0xf4] sm:$0xf]
  %v86 = vld [vmem:[%s4 + $0xf8] sm:$0xf]
  %v87 = vld [vmem:[%s4 + $0xfc] sm:$0xf]
  %v88 = vld [vmem:[%s4 + $0x100] sm:$0xf]
  %v89 = vld [vmem:[%s4 + $0x104] sm:$0xf]
  %v90 = vld [vmem:[%s4 + $0x108] sm:$0xf]
  %v91 = vld [vmem:[%s4 + $0x10c] sm:$0xf]
  %v92 = vld [vmem:[%s4 + $0x110] sm:$0xf]
  %v93 = vld [vmem:[%s4 + $0x114] sm:$0xf]
  %v94 = vld [vmem:[%s4 + $0x118] sm:$0xf]
  %v95 = vld [vmem:[%s4 + $0x11c] sm:$0xf]
  %v96 = vld [vmem:[%s4 + $0x120] sm:$0xf]
  %v97 = vld [vmem:[%s4 + $0x124] sm:$0xf]
  %v98 = vld [vmem:[%s4 + $0x128] sm:$0xf]
  %v99 = vld [vmem:[%s4 + $0x12c] sm:$0xf]
  %v100 = vld [vmem:[%s4 + $0x130] sm:$0xf]
  %v101 = vld [vmem:[%s4 + $0x134] sm:$0xf]
  %v102 = vld [vmem:[%s4 + $0x138] sm:$0xf]
  %v103 = vld [vmem:[%s4 + $0x13c] sm:$0xf]
  %v104 = vld [vmem:[%s4 + $0x140] sm:$0xf]
  %v105 = vld [vmem:[%s4 + $0x144] sm:$0xf]
  %v106 = vld [vmem:[%s4 + $0x148] sm:$0xf]
  %v107 = vld [vmem:[%s4 + $0x14c] sm:$0xf]
  %v108 = vld [vmem:[%s4 + $0x150] sm:$0xf]
  %v109 = vld [vmem:[%s4 + $0x154] sm:$0xf]
  %v110 = vld [vmem:[%s4 + $0x158] sm:$0xf]
  %v111 = vld [vmem:[%s4 + $0x15c] sm:$0xf]
  %v112 = vld [vmem:[%s4 + $0x160] sm:$0xf]
  %v113 = vld [vmem:[%s4 + $0x164] sm:$0xf]
  %v114 = vld [vmem:[%s4 + $0x168] sm:$0xf]
  %v115 = vld [vmem:[%s4 + $0x16c] sm:$0xf]
  %v116 = vld [vmem:[%s4 + $0x170] sm:$0xf]
  %v117 = vld [vmem:[%s4 + $0x174] sm:$0xf]
  %v118 = vld [vmem:[%s4 + $0x178] sm:$0xf]
  %v119 = vld [vmem:[%s4 + $0x17c] sm:$0xf]
  %v120 = vld [vmem:[%s4 + $0x180] sm:$0xf]
  %v121 = vld [vmem:[%s4 + $0x184] sm:$0xf]
  %v122 = vld [vmem:[%s4 + $0x188] sm:$0xf]
  %v123 = vld [vmem:[%s4 + $0x18c] sm:$0xf]
  %v124 = vld [vmem:[%s0] sm:$0xff]
  %v125 = vld [vmem:[%s0 + $0x8] sm:$0xff]
  %v126 = vld [vmem:[%s0 + $0x10] sm:$0xff]
  %v127 = vld [vmem:[%s0 + $0x18] sm:$0xf]
  %v128 = vld [vmem:[%s0 + $0x1c] sm:$0xff]
  %v129 = vld [vmem:[%s0 + $0x24] sm:$0xff]
  %v130 = vld [vmem:[%s0 + $0x2c] sm:$0xff]
  %v131 = vld [vmem:[%s0 + $0x34] sm:$0xf]
  %v132 = vld [vmem:[%s0 + $0x38] sm:$0xff]
  %v133 = vld [vmem:[%s0 + $0x40] sm:$0xff]
  %v134 = vld [vmem:[%s0 + $0x48] sm:$0xff]
  %v135 = vld [vmem:[%s0 + $0x50] sm:$0xf]
  %v136 = vld [vmem:[%s0 + $0x54] sm:$0xff]
  %v137 = vld [vmem:[%s0 + $0x5c] sm:$0xff]
  %v138 = vld [vmem:[%s0 + $0x64] sm:$0xff]
  %v139 = vld [vmem:[%s0 + $0x6c] sm:$0xf]
  %v140 = vld [vmem:[%s0 + $0x70] sm:$0xff]
  %v141 = vld [vmem:[%s0 + $0x78] sm:$0xff]
  %v142 = vld [vmem:[%s0 + $0x80] sm:$0xff]
  %v143 = vld [vmem:[%s0 + $0x88] sm:$0xf]
  %v144 = vld [vmem:[%s0 + $0x8c] sm:$0xff]
  %v145 = vld [vmem:[%s0 + $0x94] sm:$0xff]
  %v146 = vld [vmem:[%s0 + $0x9c] sm:$0xff]
  %v147 = vld [vmem:[%s0 + $0xa4] sm:$0xf]
  %v148 = vld [vmem:[%s0 + $0xa8] sm:$0xff]
  %v149 = vld [vmem:[%s0 + $0xb0] sm:$0xff]
  %v150 = vld [vmem:[%s0 + $0xb8] sm:$0xff]
  %v151 = vld [vmem:[%s0 + $0xc0] sm:$0xf]
  %v152 = vld [vmem:[%s0 + $0xc4] sm:$0xff]
  %v153 = vld [vmem:[%s0 + $0xcc] sm:$0xff]
  %v154 = vld [vmem:[%s0 + $0xd4] sm:$0xff]
  %v155 = vld [vmem:[%s0 + $0xdc] sm:$0xf]
  %v156 = vld [vmem:[%s0 + $0xe0] sm:$0xff]
  %v157 = vld [vmem:[%s0 + $0xe8] sm:$0xff]
  %v158 = vld [vmem:[%s0 + $0xf0] sm:$0xff]
  %v159 = vld [vmem:[%s0 + $0xf8] sm:$0xf]
  %v160 = vld [vmem:[%s0 + $0xfc] sm:$0xff]
  %v161 = vld [vmem:[%s0 + $0x104] sm:$0xff]
  %v162 = vld [vmem:[%s0 + $0x10c] sm:$0xff]
  %v163 = vld [vmem:[%s0 + $0x114] sm:$0xf]
  %v164 = vld [vmem:[%s0 + $0x118] sm:$0xff]
  %v165 = vld [vmem:[%s0 + $0x120] sm:$0xff]
  %v166 = vld [vmem:[%s0 + $0x128] sm:$0xff]
  %v167 = vld [vmem:[%s0 + $0x130] sm:$0xf]
  %v168 = vld [vmem:[%s0 + $0x134] sm:$0xff]
  %v169 = vld [vmem:[%s0 + $0x13c] sm:$0xff]
  %v170 = vld [vmem:[%s0 + $0x144] sm:$0xff]
  %v171 = vld [vmem:[%s0 + $0x14c] sm:$0xf]
  %v172 = vld [vmem:[%s0 + $0x150] sm:$0xff]
  %v173 = vld [vmem:[%s0 + $0x158] sm:$0xff]
  %v174 = vld [vmem:[%s0 + $0x160] sm:$0xff]
  %v175 = vld [vmem:[%s0 + $0x168] sm:$0xf]
  %v176 = vld [vmem:[%s0 + $0x16c] sm:$0xff]
  %v177 = vld [vmem:[%s0 + $0x174] sm:$0xff]
  %v178 = vld [vmem:[%s0 + $0x17c] sm:$0xff]
  %v179 = vld [vmem:[%s0 + $0x184] sm:$0xf]
  %v180 = vld [vmem:[%s0 + $0x188] sm:$0xff]
  %v181 = vld [vmem:[%s0 + $0x190] sm:$0xff]
  %v182 = vld [vmem:[%s0 + $0x198] sm:$0xff]
  %v183 = vld [vmem:[%s0 + $0x1a0] sm:$0xf]
  %v184 = vld [vmem:[%s0 + $0x1a4] sm:$0xff]
  %v185 = vld [vmem:[%s0 + $0x1ac] sm:$0xff]
  %v186 = vld [vmem:[%s0 + $0x1b4] sm:$0xff]
  %v187 = vld [vmem:[%s0 + $0x1bc] sm:$0xf]
  %v252 = vunpack.c.l.b16 %v124
  %v253 = vunpack.c.h.b16 %v124
  %v254 = vunpack.c.l.b16 %v125
  %v255 = vunpack.c.h.b16 %v125
  %v256 = vunpack.c.l.b16 %v126
  %v257 = vunpack.c.h.b16 %v126
  %v258 = vunpack.c.l.b16 %v127
  %v259 = vunpack.c.l.b16 %v128
  %v260 = vunpack.c.h.b16 %v128
  %v261 = vunpack.c.l.b16 %v129
  %v262 = vunpack.c.h.b16 %v129
  %v263 = vunpack.c.l.b16 %v130
  %v264 = vunpack.c.h.b16 %v130
  %v265 = vunpack.c.l.b16 %v131
  %v266 = vunpack.c.l.b16 %v132
  %v267 = vunpack.c.h.b16 %v132
  %v268 = vunpack.c.l.b16 %v133
  %v269 = vunpack.c.h.b16 %v133
  %v270 = vunpack.c.l.b16 %v134
  %v271 = vunpack.c.h.b16 %v134
  %v272 = vunpack.c.l.b16 %v135
  %v273 = vunpack.c.l.b16 %v136
  %v274 = vunpack.c.h.b16 %v136
  %v275 = vunpack.c.l.b16 %v137
  %v276 = vunpack.c.h.b16 %v137
  %v277 = vunpack.c.l.b16 %v138
  %v278 = vunpack.c.h.b16 %v138
  %v279 = vunpack.c.l.b16 %v139
  %v280 = vunpack.c.l.b16 %v140
  %v281 = vunpack.c.h.b16 %v140
  %v282 = vunpack.c.l.b16 %v141
  %v283 = vunpack.c.h.b16 %v141
  %v284 = vunpack.c.l.b16 %v142
  %v285 = vunpack.c.h.b16 %v142
  %v286 = vunpack.c.l.b16 %v143
  %v287 = vunpack.c.l.b16 %v144
  %v288 = vunpack.c.h.b16 %v144
  %v289 = vunpack.c.l.b16 %v145
  %v290 = vunpack.c.h.b16 %v145
  %v291 = vunpack.c.l.b16 %v146
  %v292 = vunpack.c.h.b16 %v146
  %v293 = vunpack.c.l.b16 %v147
  %v294 = vunpack.c.l.b16 %v148
  %v295 = vunpack.c.h.b16 %v148
  %v296 = vunpack.c.l.b16 %v149
  %v297 = vunpack.c.h.b16 %v149
  %v298 = vunpack.c.l.b16 %v150
  %v299 = vunpack.c.h.b16 %v150
  %v300 = vunpack.c.l.b16 %v151
  %v301 = vunpack.c.l.b16 %v152
  %v302 = vunpack.c.h.b16 %v152
  %v303 = vunpack.c.l.b16 %v153
  %v304 = vunpack.c.h.b16 %v153
  %v305 = vunpack.c.l.b16 %v154
  %v306 = vunpack.c.h.b16 %v154
  %v307 = vunpack.c.l.b16 %v155
  %v308 = vunpack.c.l.b16 %v156
  %v309 = vunpack.c.h.b16 %v156
  %v310 = vunpack.c.l.b16 %v157
  %v311 = vunpack.c.h.b16 %v157
  %v312 = vunpack.c.l.b16 %v158
  %v313 = vunpack.c.h.b16 %v158
  %v314 = vunpack.c.l.b16 %v159
  %v315 = vunpack.c.l.b16 %v160
  %v316 = vunpack.c.h.b16 %v160
  %v317 = vunpack.c.l.b16 %v161
  %v318 = vunpack.c.h.b16 %v161
  %v319 = vunpack.c.l.b16 %v162
  %v320 = vunpack.c.h.b16 %v162
  %v321 = vunpack.c.l.b16 %v163
  %v322 = vunpack.c.l.b16 %v164
  %v323 = vunpack.c.h.b16 %v164
  %v324 = vunpack.c.l.b16 %v165
  %v325 = vunpack.c.h.b16 %v165
  %v326 = vunpack.c.l.b16 %v166
  %v327 = vunpack.c.h.b16 %v166
  %v328 = vunpack.c.l.b16 %v167
  %v329 = vunpack.c.l.b16 %v168
  %v330 = vunpack.c.h.b16 %v168
  %v331 = vunpack.c.l.b16 %v169
  %v332 = vunpack.c.h.b16 %v169
  %v333 = vunpack.c.l.b16 %v170
  %v334 = vunpack.c.h.b16 %v170
  %v335 = vunpack.c.l.b16 %v171
  %v336 = vunpack.c.l.b16 %v172
  %v337 = vunpack.c.h.b16 %v172
  %v338 = vunpack.c.l.b16 %v173
  %v339 = vunpack.c.h.b16 %v173
  %v340 = vunpack.c.l.b16 %v174
  %v341 = vunpack.c.h.b16 %v174
  %v342 = vunpack.c.l.b16 %v175
  %v343 = vunpack.c.l.b16 %v176
  %v344 = vunpack.c.h.b16 %v176
  %v345 = vunpack.c.l.b16 %v177
  %v346 = vunpack.c.h.b16 %v177
  %v347 = vunpack.c.l.b16 %v178
  %v348 = vunpack.c.h.b16 %v178
  %v349 = vunpack.c.l.b16 %v179
  %v350 = vunpack.c.l.b16 %v180
  %v351 = vunpack.c.h.b16 %v180
  %v352 = vunpack.c.l.b16 %v181
  %v353 = vunpack.c.h.b16 %v181
  %v354 = vunpack.c.l.b16 %v182
  %v355 = vunpack.c.h.b16 %v182
  %v356 = vunpack.c.l.b16 %v183
  %v357 = vunpack.c.l.b16 %v184
  %v358 = vunpack.c.h.b16 %v184
  %v359 = vunpack.c.l.b16 %v185
  %v360 = vunpack.c.h.b16 %v185
  %v361 = vunpack.c.l.b16 %v186
  %v362 = vunpack.c.h.b16 %v186
  %v363 = vunpack.c.l.b16 %v187
  %v364 = vpack.c.b16 %v259, %v252
  %v365 = vpack.c.b16 %v260, %v253
  %v366 = vpack.c.b16 %v261, %v254
  %v367 = vpack.c.b16 %v262, %v255
  %v368 = vpack.c.b16 %v263, %v256
  %v369 = vpack.c.b16 %v264, %v257
  %v370 = vpack.c.b16 %v265, %v258
  %v371 = vpack.c.b16 %v273, %v266
  %v372 = vpack.c.b16 %v274, %v267
  %v373 = vpack.c.b16 %v275, %v268
  %v374 = vpack.c.b16 %v276, %v269
  %v375 = vpack.c.b16 %v277, %v270
  %v376 = vpack.c.b16 %v278, %v271
  %v377 = vpack.c.b16 %v279, %v272
  %v378 = vpack.c.b16 %v287, %v280
  %v379 = vpack.c.b16 %v288, %v281
  %v380 = vpack.c.b16 %v289, %v282
  %v381 = vpack.c.b16 %v290, %v283
  %v382 = vpack.c.b16 %v291, %v284
  %v383 = vpack.c.b16 %v292, %v285
  %v384 = vpack.c.b16 %v293, %v286
  %v385 = vpack.c.b16 %v301, %v294
  %v386 = vpack.c.b16 %v302, %v295
  %v387 = vpack.c.b16 %v303, %v296
  %v388 = vpack.c.b16 %v304, %v297
  %v389 = vpack.c.b16 %v305, %v298
  %v390 = vpack.c.b16 %v306, %v299
  %v391 = vpack.c.b16 %v307, %v300
  %v392 = vpack.c.b16 %v315, %v308
  %v393 = vpack.c.b16 %v316, %v309
  %v394 = vpack.c.b16 %v317, %v310
  %v395 = vpack.c.b16 %v318, %v311
  %v396 = vpack.c.b16 %v319, %v312
  %v397 = vpack.c.b16 %v320, %v313
  %v398 = vpack.c.b16 %v321, %v314
  %v399 = vpack.c.b16 %v329, %v322
  %v400 = vpack.c.b16 %v330, %v323
  %v401 = vpack.c.b16 %v331, %v324
  %v402 = vpack.c.b16 %v332, %v325
  %v403 = vpack.c.b16 %v333, %v326
  %v404 = vpack.c.b16 %v334, %v327
  %v405 = vpack.c.b16 %v335, %v328
  %v406 = vpack.c.b16 %v343, %v336
  %v407 = vpack.c.b16 %v344, %v337
  %v408 = vpack.c.b16 %v345, %v338
  %v409 = vpack.c.b16 %v346, %v339
  %v410 = vpack.c.b16 %v347, %v340
  %v411 = vpack.c.b16 %v348, %v341
  %v412 = vpack.c.b16 %v349, %v342
  %v413 = vpack.c.b16 %v357, %v350
  %v414 = vpack.c.b16 %v358, %v351
  %v415 = vpack.c.b16 %v359, %v352
  %v416 = vpack.c.b16 %v360, %v353
  %v417 = vpack.c.b16 %v361, %v354
  %v418 = vpack.c.b16 %v362, %v355
  %v419 = vpack.c.b16 %v363, %v356
  %v568 = vunpack.c.l.b16 %v24
  %v569 = vunpack.c.l.b16 %v25
  %v570 = vunpack.c.l.b16 %v26
  %v571 = vunpack.c.l.b16 %v27
  %v572 = vunpack.c.l.b16 %v28
  %v573 = vunpack.c.l.b16 %v29
  %v574 = vunpack.c.l.b16 %v30
  %v575 = vunpack.c.l.b16 %v31
  %v576 = vunpack.c.l.b16 %v32
  %v577 = vunpack.c.l.b16 %v33
  %v578 = vunpack.c.l.b16 %v34
  %v579 = vunpack.c.l.b16 %v35
  %v580 = vunpack.c.l.b16 %v36
  %v581 = vunpack.c.l.b16 %v37
  %v582 = vunpack.c.l.b16 %v38
  %v583 = vunpack.c.l.b16 %v39
  %v584 = vunpack.c.l.b16 %v40
  %v585 = vunpack.c.l.b16 %v41
  %v586 = vunpack.c.l.b16 %v42
  %v587 = vunpack.c.l.b16 %v43
  %v588 = vunpack.c.l.b16 %v44
  %v589 = vunpack.c.l.b16 %v45
  %v590 = vunpack.c.l.b16 %v46
  %v591 = vunpack.c.l.b16 %v47
  %v592 = vunpack.c.l.b16 %v48
  %v593 = vunpack.c.l.b16 %v49
  %v594 = vunpack.c.l.b16 %v50
  %v595 = vunpack.c.l.b16 %v51
  %v596 = vunpack.c.l.b16 %v52
  %v597 = vunpack.c.l.b16 %v53
  %v598 = vunpack.c.l.b16 %v54
  %v599 = vunpack.c.l.b16 %v55
  %v600 = vunpack.c.l.b16 %v56
  %v601 = vunpack.c.l.b16 %v57
  %v602 = vunpack.c.l.b16 %v58
  %v603 = vunpack.c.l.b16 %v59
  %v604 = vunpack.c.l.b16 %v60
  %v605 = vunpack.c.l.b16 %v61
  %v606 = vunpack.c.l.b16 %v62
  %v607 = vunpack.c.l.b16 %v63
  %v608 = vunpack.c.l.b16 %v64
  %v609 = vunpack.c.l.b16 %v65
  %v610 = vunpack.c.l.b16 %v66
  %v611 = vunpack.c.l.b16 %v67
  %v612 = vunpack.c.l.b16 %v68
  %v613 = vunpack.c.l.b16 %v69
  %v614 = vunpack.c.l.b16 %v70
  %v615 = vunpack.c.l.b16 %v71
  %v616 = vunpack.c.l.b16 %v72
  %v617 = vunpack.c.l.b16 %v73
  %v618 = vunpack.c.l.b16 %v74
  %v619 = vunpack.c.l.b16 %v75
  %v620 = vunpack.c.l.b16 %v76
  %v621 = vunpack.c.l.b16 %v77
  %v622 = vunpack.c.l.b16 %v78
  %v623 = vunpack.c.l.b16 %v79
  %v624 = vunpack.c.l.b16 %v80
  %v625 = vunpack.c.l.b16 %v81
  %v626 = vunpack.c.l.b16 %v82
  %v627 = vunpack.c.l.b16 %v83
  %v628 = vunpack.c.l.b16 %v84
  %v629 = vunpack.c.l.b16 %v85
  %v630 = vunpack.c.l.b16 %v86
  %v631 = vunpack.c.l.b16 %v87
  %v632 = vunpack.c.l.b16 %v88
  %v633 = vunpack.c.l.b16 %v89
  %v634 = vunpack.c.l.b16 %v90
  %v635 = vunpack.c.l.b16 %v91
  %v636 = vunpack.c.l.b16 %v92
  %v637 = vunpack.c.l.b16 %v93
  %v638 = vunpack.c.l.b16 %v94
  %v639 = vunpack.c.l.b16 %v95
  %v640 = vunpack.c.l.b16 %v96
  %v641 = vunpack.c.l.b16 %v97
  %v642 = vunpack.c.l.b16 %v98
  %v643 = vunpack.c.l.b16 %v99
  %v644 = vunpack.c.l.b16 %v100
  %v645 = vunpack.c.l.b16 %v101
  %v646 = vunpack.c.l.b16 %v102
  %v647 = vunpack.c.l.b16 %v103
  %v648 = vunpack.c.l.b16 %v104
  %v649 = vunpack.c.l.b16 %v105
  %v650 = vunpack.c.l.b16 %v106
  %v651 = vunpack.c.l.b16 %v107
  %v652 = vunpack.c.l.b16 %v108
  %v653 = vunpack.c.l.b16 %v109
  %v654 = vunpack.c.l.b16 %v110
  %v655 = vunpack.c.l.b16 %v111
  %v656 = vunpack.c.l.b16 %v112
  %v657 = vunpack.c.l.b16 %v113
  %v658 = vunpack.c.l.b16 %v114
  %v659 = vunpack.c.l.b16 %v115
  %v660 = vunpack.c.l.b16 %v116
  %v661 = vunpack.c.l.b16 %v117
  %v662 = vunpack.c.l.b16 %v118
  %v663 = vunpack.c.l.b16 %v119
  %v664 = vunpack.c.l.b16 %v120
  %v665 = vunpack.c.l.b16 %v121
  %v666 = vunpack.c.l.b16 %v122
  %v667 = vunpack.c.l.b16 %v123
  %v668 = vpack.c.b16 %v569, %v568
  %v669 = vpack.c.b16 %v571, %v570
  %v670 = vpack.c.b16 %v573, %v572
  %v671 = vpack.c.b16 %v575, %v574
  %v672 = vpack.c.b16 %v577, %v576
  %v673 = vpack.c.b16 %v579, %v578
  %v674 = vpack.c.b16 %v581, %v580
  %v675 = vpack.c.b16 %v583, %v582
  %v676 = vpack.c.b16 %v585, %v584
  %v677 = vpack.c.b16 %v587, %v586
  %v678 = vpack.c.b16 %v589, %v588
  %v679 = vpack.c.b16 %v591, %v590
  %v680 = vpack.c.b16 %v593, %v592
  %v681 = vpack.c.b16 %v595, %v594
  %v682 = vpack.c.b16 %v597, %v596
  %v683 = vpack.c.b16 %v599, %v598
  %v684 = vpack.c.b16 %v601, %v600
  %v685 = vpack.c.b16 %v603, %v602
  %v686 = vpack.c.b16 %v605, %v604
  %v687 = vpack.c.b16 %v607, %v606
  %v688 = vpack.c.b16 %v609, %v608
  %v689 = vpack.c.b16 %v611, %v610
  %v690 = vpack.c.b16 %v613, %v612
  %v691 = vpack.c.b16 %v615, %v614
  %v692 = vpack.c.b16 %v617, %v616
  %v693 = vpack.c.b16 %v619, %v618
  %v694 = vpack.c.b16 %v621, %v620
  %v695 = vpack.c.b16 %v623, %v622
  %v696 = vpack.c.b16 %v625, %v624
  %v697 = vpack.c.b16 %v627, %v626
  %v698 = vpack.c.b16 %v629, %v628
  %v699 = vpack.c.b16 %v631, %v630
  %v700 = vpack.c.b16 %v633, %v632
  %v701 = vpack.c.b16 %v635, %v634
  %v702 = vpack.c.b16 %v637, %v636
  %v703 = vpack.c.b16 %v639, %v638
  %v704 = vpack.c.b16 %v641, %v640
  %v705 = vpack.c.b16 %v643, %v642
  %v706 = vpack.c.b16 %v645, %v644
  %v707 = vpack.c.b16 %v647, %v646
  %v708 = vpack.c.b16 %v649, %v648
  %v709 = vpack.c.b16 %v651, %v650
  %v710 = vpack.c.b16 %v653, %v652
  %v711 = vpack.c.b16 %v655, %v654
  %v712 = vpack.c.b16 %v657, %v656
  %v713 = vpack.c.b16 %v659, %v658
  %v714 = vpack.c.b16 %v661, %v660
  %v715 = vpack.c.b16 %v663, %v662
  %v716 = vpack.c.b16 %v665, %v664
  %v717 = vpack.c.b16 %v667, %v666
  %vm768 = vcmask 261120
  %v770 = vsel %vm768, %v370, 0
  %v773 = vsel %vm768, %v377, 0
  %v776 = vsel %vm768, %v384, 0
  %v779 = vsel %vm768, %v391, 0
  %v782 = vsel %vm768, %v398, 0
  %v785 = vsel %vm768, %v405, 0
  %v788 = vsel %vm768, %v412, 0
  %v791 = vsel %vm768, %v419, 0
  %793 = vmatprep.subr.bf16.mxu0 0
  %794 = vmatpush1.bf16.msra.mxu0 %v675
  %795 = vmatprep.subr.bf16.mxu0 0
  %796 = vmatpush1.bf16.msra.mxu0 %v674
  %797 = vmatprep.subr.bf16.mxu0 0
  %798 = vmatpush1.bf16.msra.mxu0 %v673
  %799 = vmatprep.subr.bf16.mxu0 0
  %800 = vmatpush1.bf16.msra.mxu0 %v672
  %801 = vmatprep.subr.bf16.mxu0 0
  %802 = vmatpush1.bf16.msra.mxu0 %v671
  %803 = vmatprep.subr.bf16.mxu0 0
  %804 = vmatpush1.bf16.msra.mxu0 %v670
  %805 = vmatprep.subr.bf16.mxu0 0
  %806 = vmatpush1.bf16.msra.mxu0 %v669
  %807 = vmatprep.subr.bf16.mxu0 0
  %808 = vmatpush1.bf16.msra.mxu0 %v668
  %809 = vmatprep.subr.bf16.mxu0 0
  %810 = vmatpush2.bf16.msra.mxu0 %v683
  %811 = vmatprep.subr.bf16.mxu0 0
  %812 = vmatpush2.bf16.msra.mxu0 %v682
  %813 = vmatprep.subr.bf16.mxu0 0
  %814 = vmatpush2.bf16.msra.mxu0 %v681
  %815 = vmatprep.subr.bf16.mxu0 0
  %816 = vmatpush2.bf16.msra.mxu0 %v680
  %817 = vmatprep.subr.bf16.mxu0 0
  %818 = vmatpush2.bf16.msra.mxu0 %v679
  %819 = vmatprep.subr.bf16.mxu0 0
  %820 = vmatpush2.bf16.msra.mxu0 %v678
  %821 = vmatprep.subr.bf16.mxu0 0
  %822 = vmatpush2.bf16.msra.mxu0 %v677
  %823 = vmatprep.subr.bf16.mxu0 0
  %824 = vmatpush2.bf16.msra.mxu0 %v676
  %825 = vmatprep.mubr.bf16.mxu0 %v365
  %826 = vmatmul.mubr.bf16.gmra.mxu0 %v364
  %v827 = vpop.f32.mrf.mxu0
  %v828 = vadd.f32 0.0, %v827
  %v829 = vpop.f32.mrf.mxu0
  %v830 = vpop.f32.mrf.mxu0
  %v831 = vadd.f32 0.0, %v830
  %v832 = vpop.f32.mrf.mxu0
  %833 = vmatprep.mubr.bf16.mxu0 %v372
  %834 = vmatmul.mubr.bf16.gmra.mxu0 %v371
  %v835 = vpop.f32.mrf.mxu0
  %v836 = vadd.f32 0.0, %v835
  %v837 = vpop.f32.mrf.mxu0
  %v838 = vpop.f32.mrf.mxu0
  %v839 = vadd.f32 0.0, %v838
  %v840 = vpop.f32.mrf.mxu0
  %841 = vmatprep.mubr.bf16.mxu0 %v379
  %842 = vmatmul.mubr.bf16.gmra.mxu0 %v378
  %v843 = vpop.f32.mrf.mxu0
  %v844 = vadd.f32 0.0, %v843
  %v845 = vpop.f32.mrf.mxu0
  %v846 = vpop.f32.mrf.mxu0
  %v847 = vadd.f32 0.0, %v846
  %v848 = vpop.f32.mrf.mxu0
  %849 = vmatprep.mubr.bf16.mxu0 %v386
  %850 = vmatmul.mubr.bf16.gmra.mxu0 %v385
  %v851 = vpop.f32.mrf.mxu0
  %v852 = vadd.f32 0.0, %v851
  %v853 = vpop.f32.mrf.mxu0
  %v854 = vpop.f32.mrf.mxu0
  %v855 = vadd.f32 0.0, %v854
  %v856 = vpop.f32.mrf.mxu0
  %857 = vmatprep.mubr.bf16.mxu0 %v393
  %858 = vmatmul.mubr.bf16.gmra.mxu0 %v392
  %v859 = vpop.f32.mrf.mxu0
  %v860 = vadd.f32 0.0, %v859
  %v861 = vpop.f32.mrf.mxu0
  %v862 = vpop.f32.mrf.mxu0
  %v863 = vadd.f32 0.0, %v862
  %v864 = vpop.f32.mrf.mxu0
  %865 = vmatprep.mubr.bf16.mxu0 %v400
  %866 = vmatmul.mubr.bf16.gmra.mxu0 %v399
  %v867 = vpop.f32.mrf.mxu0
  %v868 = vadd.f32 0.0, %v867
  %v869 = vpop.f32.mrf.mxu0
  %v870 = vpop.f32.mrf.mxu0
  %v871 = vadd.f32 0.0, %v870
  %v872 = vpop.f32.mrf.mxu0
  %873 = vmatprep.mubr.bf16.mxu0 %v407
  %874 = vmatmul.mubr.bf16.gmra.mxu0 %v406
  %v875 = vpop.f32.mrf.mxu0
  %v876 = vadd.f32 0.0, %v875
  %v877 = vpop.f32.mrf.mxu0
  %v878 = vpop.f32.mrf.mxu0
  %v879 = vadd.f32 0.0, %v878
  %v880 = vpop.f32.mrf.mxu0
  %881 = vmatprep.mubr.bf16.mxu0 %v414
  %882 = vmatmul.mubr.bf16.gmra.mxu0 %v413
  %v883 = vpop.f32.mrf.mxu0
  %v884 = vadd.f32 0.0, %v883
  %v885 = vpop.f32.mrf.mxu0
  %v886 = vpop.f32.mrf.mxu0
  %v887 = vadd.f32 0.0, %v886
  %v888 = vpop.f32.mrf.mxu0
  %889 = vdwg.mxu0
  %890 = vmatprep.subr.bf16.mxu0 0
  %891 = vmatpush1.bf16.msra.mxu0 %v691
  %892 = vmatprep.subr.bf16.mxu0 0
  %893 = vmatpush1.bf16.msra.mxu0 %v690
  %894 = vmatprep.subr.bf16.mxu0 0
  %895 = vmatpush1.bf16.msra.mxu0 %v689
  %896 = vmatprep.subr.bf16.mxu0 0
  %897 = vmatpush1.bf16.msra.mxu0 %v688
  %898 = vmatprep.subr.bf16.mxu0 0
  %899 = vmatpush1.bf16.msra.mxu0 %v687
  %900 = vmatprep.subr.bf16.mxu0 0
  %901 = vmatpush1.bf16.msra.mxu0 %v686
  %902 = vmatprep.subr.bf16.mxu0 0
  %903 = vmatpush1.bf16.msra.mxu0 %v685
  %904 = vmatprep.subr.bf16.mxu0 0
  %905 = vmatpush1.bf16.msra.mxu0 %v684
  %906 = vmatprep.subr.bf16.mxu0 0
  %907 = vmatpush2.bf16.msra.mxu0 %v699
  %908 = vmatprep.subr.bf16.mxu0 0
  %909 = vmatpush2.bf16.msra.mxu0 %v698
  %910 = vmatprep.subr.bf16.mxu0 0
  %911 = vmatpush2.bf16.msra.mxu0 %v697
  %912 = vmatprep.subr.bf16.mxu0 0
  %913 = vmatpush2.bf16.msra.mxu0 %v696
  %914 = vmatprep.subr.bf16.mxu0 0
  %915 = vmatpush2.bf16.msra.mxu0 %v695
  %916 = vmatprep.subr.bf16.mxu0 0
  %917 = vmatpush2.bf16.msra.mxu0 %v694
  %918 = vmatprep.subr.bf16.mxu0 0
  %919 = vmatpush2.bf16.msra.mxu0 %v693
  %920 = vmatprep.subr.bf16.mxu0 0
  %921 = vmatpush2.bf16.msra.mxu0 %v692
  %922 = vmatprep.mubr.bf16.mxu0 %v367
  %923 = vmatmul.mubr.bf16.gmra.mxu0 %v366
  %v924 = vpop.f32.mrf.mxu0
  %v925 = vadd.f32 %v828, %v924
  %v926 = vpop.f32.mrf.mxu0
  %v927 = vpop.f32.mrf.mxu0
  %v928 = vadd.f32 %v831, %v927
  %v929 = vpop.f32.mrf.mxu0
  %930 = vmatprep.mubr.bf16.mxu0 %v374
  %931 = vmatmul.mubr.bf16.gmra.mxu0 %v373
  %v932 = vpop.f32.mrf.mxu0
  %v933 = vadd.f32 %v836, %v932
  %v934 = vpop.f32.mrf.mxu0
  %v935 = vpop.f32.mrf.mxu0
  %v936 = vadd.f32 %v839, %v935
  %v937 = vpop.f32.mrf.mxu0
  %938 = vmatprep.mubr.bf16.mxu0 %v381
  %939 = vmatmul.mubr.bf16.gmra.mxu0 %v380
  %v940 = vpop.f32.mrf.mxu0
  %v941 = vadd.f32 %v844, %v940
  %v942 = vpop.f32.mrf.mxu0
  %v943 = vpop.f32.mrf.mxu0
  %v944 = vadd.f32 %v847, %v943
  %v945 = vpop.f32.mrf.mxu0
  %946 = vmatprep.mubr.bf16.mxu0 %v388
  %947 = vmatmul.mubr.bf16.gmra.mxu0 %v387
  %v948 = vpop.f32.mrf.mxu0
  %v949 = vadd.f32 %v852, %v948
  %v950 = vpop.f32.mrf.mxu0
  %v951 = vpop.f32.mrf.mxu0
  %v952 = vadd.f32 %v855, %v951
  %v953 = vpop.f32.mrf.mxu0
  %954 = vmatprep.mubr.bf16.mxu0 %v395
  %955 = vmatmul.mubr.bf16.gmra.mxu0 %v394
  %v956 = vpop.f32.mrf.mxu0
  %v957 = vadd.f32 %v860, %v956
  %v958 = vpop.f32.mrf.mxu0
  %v959 = vpop.f32.mrf.mxu0
  %v960 = vadd.f32 %v863, %v959
  %v961 = vpop.f32.mrf.mxu0
  %962 = vmatprep.mubr.bf16.mxu0 %v402
  %963 = vmatmul.mubr.bf16.gmra.mxu0 %v401
  %v964 = vpop.f32.mrf.mxu0
  %v965 = vadd.f32 %v868, %v964
  %v966 = vpop.f32.mrf.mxu0
  %v967 = vpop.f32.mrf.mxu0
  %v968 = vadd.f32 %v871, %v967
  %v969 = vpop.f32.mrf.mxu0
  %970 = vmatprep.mubr.bf16.mxu0 %v409
  %971 = vmatmul.mubr.bf16.gmra.mxu0 %v408
  %v972 = vpop.f32.mrf.mxu0
  %v973 = vadd.f32 %v876, %v972
  %v974 = vpop.f32.mrf.mxu0
  %v975 = vpop.f32.mrf.mxu0
  %v976 = vadd.f32 %v879, %v975
  %v977 = vpop.f32.mrf.mxu0
  %978 = vmatprep.mubr.bf16.mxu0 %v416
  %979 = vmatmul.mubr.bf16.gmra.mxu0 %v415
  %v980 = vpop.f32.mrf.mxu0
  %v981 = vadd.f32 %v884, %v980
  %v982 = vpop.f32.mrf.mxu0
  %v983 = vpop.f32.mrf.mxu0
  %v984 = vadd.f32 %v887, %v983
  %v985 = vpop.f32.mrf.mxu0
  %986 = vdwg.mxu0
  %987 = vmatprep.subr.bf16.mxu0 0
  %988 = vmatpush1.bf16.msra.mxu0 %v707
  %989 = vmatprep.subr.bf16.mxu0 0
  %990 = vmatpush1.bf16.msra.mxu0 %v706
  %991 = vmatprep.subr.bf16.mxu0 0
  %992 = vmatpush1.bf16.msra.mxu0 %v705
  %993 = vmatprep.subr.bf16.mxu0 0
  %994 = vmatpush1.bf16.msra.mxu0 %v704
  %995 = vmatprep.subr.bf16.mxu0 0
  %996 = vmatpush1.bf16.msra.mxu0 %v703
  %997 = vmatprep.subr.bf16.mxu0 0
  %998 = vmatpush1.bf16.msra.mxu0 %v702
  %999 = vmatprep.subr.bf16.mxu0 0
  %1000 = vmatpush1.bf16.msra.mxu0 %v701
  %1001 = vmatprep.subr.bf16.mxu0 0
  %1002 = vmatpush1.bf16.msra.mxu0 %v700
  %1003 = vmatprep.subr.bf16.mxu0 0
  %1004 = vmatpush2.bf16.msra.mxu0 %v715
  %1005 = vmatprep.subr.bf16.mxu0 0
  %1006 = vmatpush2.bf16.msra.mxu0 %v714
  %1007 = vmatprep.subr.bf16.mxu0 0
  %1008 = vmatpush2.bf16.msra.mxu0 %v713
  %1009 = vmatprep.subr.bf16.mxu0 0
  %1010 = vmatpush2.bf16.msra.mxu0 %v712
  %1011 = vmatprep.subr.bf16.mxu0 0
  %1012 = vmatpush2.bf16.msra.mxu0 %v711
  %1013 = vmatprep.subr.bf16.mxu0 0
  %1014 = vmatpush2.bf16.msra.mxu0 %v710
  %1015 = vmatprep.subr.bf16.mxu0 0
  %1016 = vmatpush2.bf16.msra.mxu0 %v709
  %1017 = vmatprep.subr.bf16.mxu0 0
  %1018 = vmatpush2.bf16.msra.mxu0 %v708
  %1019 = vmatprep.mubr.bf16.mxu0 %v369
  %1020 = vmatmul.mubr.bf16.gmra.mxu0 %v368
  %v1021 = vpop.f32.mrf.mxu0
  %v1022 = vadd.f32 %v925, %v1021
  %v1023 = vpop.f32.mrf.mxu0
  %v1024 = vpop.f32.mrf.mxu0
  %v1025 = vadd.f32 %v928, %v1024
  %v1026 = vpop.f32.mrf.mxu0
  %1027 = vmatprep.mubr.bf16.mxu0 %v376
  %1028 = vmatmul.mubr.bf16.gmra.mxu0 %v375
  %v1029 = vpop.f32.mrf.mxu0
  %v1030 = vadd.f32 %v933, %v1029
  %v1031 = vpop.f32.mrf.mxu0
  %v1032 = vpop.f32.mrf.mxu0
  %v1033 = vadd.f32 %v936, %v1032
  %v1034 = vpop.f32.mrf.mxu0
  %1035 = vmatprep.mubr.bf16.mxu0 %v383
  %1036 = vmatmul.mubr.bf16.gmra.mxu0 %v382
  %v1037 = vpop.f32.mrf.mxu0
  %v1038 = vadd.f32 %v941, %v1037
  %v1039 = vpop.f32.mrf.mxu0
  %v1040 = vpop.f32.mrf.mxu0
  %v1041 = vadd.f32 %v944, %v1040
  %v1042 = vpop.f32.mrf.mxu0
  %1043 = vmatprep.mubr.bf16.mxu0 %v390
  %1044 = vmatmul.mubr.bf16.gmra.mxu0 %v389
  %v1045 = vpop.f32.mrf.mxu0
  %v1046 = vadd.f32 %v949, %v1045
  %v1047 = vpop.f32.mrf.mxu0
  %v1048 = vpop.f32.mrf.mxu0
  %v1049 = vadd.f32 %v952, %v1048
  %v1050 = vpop.f32.mrf.mxu0
  %1051 = vmatprep.mubr.bf16.mxu0 %v397
  %1052 = vmatmul.mubr.bf16.gmra.mxu0 %v396
  %v1053 = vpop.f32.mrf.mxu0
  %v1054 = vadd.f32 %v957, %v1053
  %v1055 = vpop.f32.mrf.mxu0
  %v1056 = vpop.f32.mrf.mxu0
  %v1057 = vadd.f32 %v960, %v1056
  %v1058 = vpop.f32.mrf.mxu0
  %1059 = vmatprep.mubr.bf16.mxu0 %v404
  %1060 = vmatmul.mubr.bf16.gmra.mxu0 %v403
  %v1061 = vpop.f32.mrf.mxu0
  %v1062 = vadd.f32 %v965, %v1061
  %v1063 = vpop.f32.mrf.mxu0
  %v1064 = vpop.f32.mrf.mxu0
  %v1065 = vadd.f32 %v968, %v1064
  %v1066 = vpop.f32.mrf.mxu0
  %1067 = vmatprep.mubr.bf16.mxu0 %v411
  %1068 = vmatmul.mubr.bf16.gmra.mxu0 %v410
  %v1069 = vpop.f32.mrf.mxu0
  %v1070 = vadd.f32 %v973, %v1069
  %v1071 = vpop.f32.mrf.mxu0
  %v1072 = vpop.f32.mrf.mxu0
  %v1073 = vadd.f32 %v976, %v1072
  %v1074 = vpop.f32.mrf.mxu0
  %1075 = vmatprep.mubr.bf16.mxu0 %v418
  %1076 = vmatmul.mubr.bf16.gmra.mxu0 %v417
  %v1077 = vpop.f32.mrf.mxu0
  %v1078 = vadd.f32 %v981, %v1077
  %v1079 = vpop.f32.mrf.mxu0
  %v1080 = vpop.f32.mrf.mxu0
  %v1081 = vadd.f32 %v984, %v1080
  %v1082 = vpop.f32.mrf.mxu0
  %1083 = vdwg.mxu0
  %1084 = vmatprep.subr.bf16.mxu0 0
  %1085 = vmatpush1.bf16.msra.mxu0 0
  %1086 = vmatprep.subr.bf16.mxu0 0
  %1087 = vmatpush1.bf16.msra.mxu0 0
  %1088 = vmatprep.subr.bf16.mxu0 0
  %1089 = vmatpush1.bf16.msra.mxu0 0
  %1090 = vmatprep.subr.bf16.mxu0 0
  %1091 = vmatpush1.bf16.msra.mxu0 0
  %1092 = vmatprep.subr.bf16.mxu0 0
  %1093 = vmatpush1.bf16.msra.mxu0 0
  %1094 = vmatprep.subr.bf16.mxu0 0
  %1095 = vmatpush1.bf16.msra.mxu0 0
  %1096 = vmatprep.subr.bf16.mxu0 0
  %1097 = vmatpush1.bf16.msra.mxu0 %v717
  %1098 = vmatprep.subr.bf16.mxu0 0
  %1099 = vmatpush1.bf16.msra.mxu0 %v716
  %1100 = vmatprep.subr.bf16.mxu0 0
  %1101 = vmatpush2.bf16.msra.mxu0 0
  %1102 = vmatprep.subr.bf16.mxu0 0
  %1103 = vmatpush2.bf16.msra.mxu0 0
  %1104 = vmatprep.subr.bf16.mxu0 0
  %1105 = vmatpush2.bf16.msra.mxu0 0
  %1106 = vmatprep.subr.bf16.mxu0 0
  %1107 = vmatpush2.bf16.msra.mxu0 0
  %1108 = vmatprep.subr.bf16.mxu0 0
  %1109 = vmatpush2.bf16.msra.mxu0 0
  %1110 = vmatprep.subr.bf16.mxu0 0
  %1111 = vmatpush2.bf16.msra.mxu0 0
  %1112 = vmatprep.subr.bf16.mxu0 0
  %1113 = vmatpush2.bf16.msra.mxu0 0
  %1114 = vmatprep.subr.bf16.mxu0 0
  %1115 = vmatpush2.bf16.msra.mxu0 0
  %1116 = vmatprep.mubr.bf16.mxu0 0
  %1117 = vmatmul.mubr.bf16.gmra.mxu0 %v770
  %v1118 = vpop.f32.mrf.mxu0
  %v1119 = vadd.f32 %v1022, %v1118
  %v1120 = vpop.f32.mrf.mxu0
  %v1121 = vpop.f32.mrf.mxu0
  %v1122 = vadd.f32 %v1025, %v1121
  %v1123 = vpop.f32.mrf.mxu0
  %1124 = vmatprep.mubr.bf16.mxu0 0
  %1125 = vmatmul.mubr.bf16.gmra.mxu0 %v773
  %v1126 = vpop.f32.mrf.mxu0
  %v1127 = vadd.f32 %v1030, %v1126
  %v1128 = vpop.f32.mrf.mxu0
  %v1129 = vpop.f32.mrf.mxu0
  %v1130 = vadd.f32 %v1033, %v1129
  %v1131 = vpop.f32.mrf.mxu0
  %1132 = vmatprep.mubr.bf16.mxu0 0
  %1133 = vmatmul.mubr.bf16.gmra.mxu0 %v776
  %v1134 = vpop.f32.mrf.mxu0
  %v1135 = vadd.f32 %v1038, %v1134
  %v1136 = vpop.f32.mrf.mxu0
  %v1137 = vpop.f32.mrf.mxu0
  %v1138 = vadd.f32 %v1041, %v1137
  %v1139 = vpop.f32.mrf.mxu0
  %1140 = vmatprep.mubr.bf16.mxu0 0
  %1141 = vmatmul.mubr.bf16.gmra.mxu0 %v779
  %v1142 = vpop.f32.mrf.mxu0
  %v1143 = vadd.f32 %v1046, %v1142
  %v1144 = vpop.f32.mrf.mxu0
  %v1145 = vpop.f32.mrf.mxu0
  %v1146 = vadd.f32 %v1049, %v1145
  %v1147 = vpop.f32.mrf.mxu0
  %1148 = vmatprep.mubr.bf16.mxu0 0
  %1149 = vmatmul.mubr.bf16.gmra.mxu0 %v782
  %v1150 = vpop.f32.mrf.mxu0
  %v1151 = vadd.f32 %v1054, %v1150
  %v1152 = vpop.f32.mrf.mxu0
  %v1153 = vpop.f32.mrf.mxu0
  %v1154 = vadd.f32 %v1057, %v1153
  %v1155 = vpop.f32.mrf.mxu0
  %1156 = vmatprep.mubr.bf16.mxu0 0
  %1157 = vmatmul.mubr.bf16.gmra.mxu0 %v785
  %v1158 = vpop.f32.mrf.mxu0
  %v1159 = vadd.f32 %v1062, %v1158
  %v1160 = vpop.f32.mrf.mxu0
  %v1161 = vpop.f32.mrf.mxu0
  %v1162 = vadd.f32 %v1065, %v1161
  %v1163 = vpop.f32.mrf.mxu0
  %1164 = vmatprep.mubr.bf16.mxu0 0
  %1165 = vmatmul.mubr.bf16.gmra.mxu0 %v788
  %v1166 = vpop.f32.mrf.mxu0
  %v1167 = vadd.f32 %v1070, %v1166
  %v1168 = vpop.f32.mrf.mxu0
  %v1169 = vpop.f32.mrf.mxu0
  %v1170 = vadd.f32 %v1073, %v1169
  %v1171 = vpop.f32.mrf.mxu0
  %1172 = vmatprep.mubr.bf16.mxu0 0
  %1173 = vmatmul.mubr.bf16.gmra.mxu0 %v791
  %v1174 = vpop.f32.mrf.mxu0
  %v1175 = vadd.f32 %v1078, %v1174
  %v1176 = vpop.f32.mrf.mxu0
  %v1177 = vpop.f32.mrf.mxu0
  %v1178 = vadd.f32 %v1081, %v1177
  %v1179 = vpop.f32.mrf.mxu0
  %1180 = vdwg.mxu0
  %v1181 = vld [vmem:[%s1] sm:$0xff]
  %v1182 = vld [vmem:[%s1 + $0x8] sm:$0xff]
  %v1183 = vld [vmem:[%s1 + $0x10] sm:$0xff]
  %v1184 = vld [vmem:[%s1 + $0x18] sm:$0xf]
  %v1185 = vld [vmem:[%s1 + $0x1c] sm:$0xff]
  %v1186 = vld [vmem:[%s1 + $0x24] sm:$0xff]
  %v1187 = vld [vmem:[%s1 + $0x2c] sm:$0xff]
  %v1188 = vld [vmem:[%s1 + $0x34] sm:$0xf]
  %v1189 = vld [vmem:[%s1 + $0x38] sm:$0xff]
  %v1190 = vld [vmem:[%s1 + $0x40] sm:$0xff]
  %v1191 = vld [vmem:[%s1 + $0x48] sm:$0xff]
  %v1192 = vld [vmem:[%s1 + $0x50] sm:$0xf]
  %v1193 = vld [vmem:[%s1 + $0x54] sm:$0xff]
  %v1194 = vld [vmem:[%s1 + $0x5c] sm:$0xff]
  %v1195 = vld [vmem:[%s1 + $0x64] sm:$0xff]
  %v1196 = vld [vmem:[%s1 + $0x6c] sm:$0xf]
  %v1197 = vld [vmem:[%s1 + $0x70] sm:$0xff]
  %v1198 = vld [vmem:[%s1 + $0x78] sm:$0xff]
  %v1199 = vld [vmem:[%s1 + $0x80] sm:$0xff]
  %v1200 = vld [vmem:[%s1 + $0x88] sm:$0xf]
  %v1201 = vld [vmem:[%s1 + $0x8c] sm:$0xff]
  %v1202 = vld [vmem:[%s1 + $0x94] sm:$0xff]
  %v1203 = vld [vmem:[%s1 + $0x9c] sm:$0xff]
  %v1204 = vld [vmem:[%s1 + $0xa4] sm:$0xf]
  %v1205 = vld [vmem:[%s1 + $0xa8] sm:$0xff]
  %v1206 = vld [vmem:[%s1 + $0xb0] sm:$0xff]
  %v1207 = vld [vmem:[%s1 + $0xb8] sm:$0xff]
  %v1208 = vld [vmem:[%s1 + $0xc0] sm:$0xf]
  %v1209 = vld [vmem:[%s1 + $0xc4] sm:$0xff]
  %v1210 = vld [vmem:[%s1 + $0xcc] sm:$0xff]
  %v1211 = vld [vmem:[%s1 + $0xd4] sm:$0xff]
  %v1212 = vld [vmem:[%s1 + $0xdc] sm:$0xf]
  %v1213 = vld [vmem:[%s1 + $0xe0] sm:$0xff]
  %v1214 = vld [vmem:[%s1 + $0xe8] sm:$0xff]
  %v1215 = vld [vmem:[%s1 + $0xf0] sm:$0xff]
  %v1216 = vld [vmem:[%s1 + $0xf8] sm:$0xf]
  %v1217 = vld [vmem:[%s1 + $0xfc] sm:$0xff]
  %v1218 = vld [vmem:[%s1 + $0x104] sm:$0xff]
  %v1219 = vld [vmem:[%s1 + $0x10c] sm:$0xff]
  %v1220 = vld [vmem:[%s1 + $0x114] sm:$0xf]
  %v1221 = vld [vmem:[%s1 + $0x118] sm:$0xff]
  %v1222 = vld [vmem:[%s1 + $0x120] sm:$0xff]
  %v1223 = vld [vmem:[%s1 + $0x128] sm:$0xff]
  %v1224 = vld [vmem:[%s1 + $0x130] sm:$0xf]
  %v1225 = vld [vmem:[%s1 + $0x134] sm:$0xff]
  %v1226 = vld [vmem:[%s1 + $0x13c] sm:$0xff]
  %v1227 = vld [vmem:[%s1 + $0x144] sm:$0xff]
  %v1228 = vld [vmem:[%s1 + $0x14c] sm:$0xf]
  %v1229 = vld [vmem:[%s1 + $0x150] sm:$0xff]
  %v1230 = vld [vmem:[%s1 + $0x158] sm:$0xff]
  %v1231 = vld [vmem:[%s1 + $0x160] sm:$0xff]
  %v1232 = vld [vmem:[%s1 + $0x168] sm:$0xf]
  %v1233 = vld [vmem:[%s1 + $0x16c] sm:$0xff]
  %v1234 = vld [vmem:[%s1 + $0x174] sm:$0xff]
  %v1235 = vld [vmem:[%s1 + $0x17c] sm:$0xff]
  %v1236 = vld [vmem:[%s1 + $0x184] sm:$0xf]
  %v1237 = vld [vmem:[%s1 + $0x188] sm:$0xff]
  %v1238 = vld [vmem:[%s1 + $0x190] sm:$0xff]
  %v1239 = vld [vmem:[%s1 + $0x198] sm:$0xff]
  %v1240 = vld [vmem:[%s1 + $0x1a0] sm:$0xf]
  %v1241 = vld [vmem:[%s1 + $0x1a4] sm:$0xff]
  %v1242 = vld [vmem:[%s1 + $0x1ac] sm:$0xff]
  %v1243 = vld [vmem:[%s1 + $0x1b4] sm:$0xff]
  %v1244 = vld [vmem:[%s1 + $0x1bc] sm:$0xf]
  %v1309 = vunpack.c.l.b16 %v1181
  %v1310 = vunpack.c.h.b16 %v1181
  %v1311 = vunpack.c.l.b16 %v1182
  %v1312 = vunpack.c.h.b16 %v1182
  %v1313 = vunpack.c.l.b16 %v1183
  %v1314 = vunpack.c.h.b16 %v1183
  %v1315 = vunpack.c.l.b16 %v1184
  %v1316 = vunpack.c.l.b16 %v1185
  %v1317 = vunpack.c.h.b16 %v1185
  %v1318 = vunpack.c.l.b16 %v1186
  %v1319 = vunpack.c.h.b16 %v1186
  %v1320 = vunpack.c.l.b16 %v1187
  %v1321 = vunpack.c.h.b16 %v1187
  %v1322 = vunpack.c.l.b16 %v1188
  %v1323 = vunpack.c.l.b16 %v1189
  %v1324 = vunpack.c.h.b16 %v1189
  %v1325 = vunpack.c.l.b16 %v1190
  %v1326 = vunpack.c.h.b16 %v1190
  %v1327 = vunpack.c.l.b16 %v1191
  %v1328 = vunpack.c.h.b16 %v1191
  %v1329 = vunpack.c.l.b16 %v1192
  %v1330 = vunpack.c.l.b16 %v1193
  %v1331 = vunpack.c.h.b16 %v1193
  %v1332 = vunpack.c.l.b16 %v1194
  %v1333 = vunpack.c.h.b16 %v1194
  %v1334 = vunpack.c.l.b16 %v1195
  %v1335 = vunpack.c.h.b16 %v1195
  %v1336 = vunpack.c.l.b16 %v1196
  %v1337 = vunpack.c.l.b16 %v1197
  %v1338 = vunpack.c.h.b16 %v1197
  %v1339 = vunpack.c.l.b16 %v1198
  %v1340 = vunpack.c.h.b16 %v1198
  %v1341 = vunpack.c.l.b16 %v1199
  %v1342 = vunpack.c.h.b16 %v1199
  %v1343 = vunpack.c.l.b16 %v1200
  %v1344 = vunpack.c.l.b16 %v1201
  %v1345 = vunpack.c.h.b16 %v1201
  %v1346 = vunpack.c.l.b16 %v1202
  %v1347 = vunpack.c.h.b16 %v1202
  %v1348 = vunpack.c.l.b16 %v1203
  %v1349 = vunpack.c.h.b16 %v1203
  %v1350 = vunpack.c.l.b16 %v1204
  %v1351 = vunpack.c.l.b16 %v1205
  %v1352 = vunpack.c.h.b16 %v1205
  %v1353 = vunpack.c.l.b16 %v1206
  %v1354 = vunpack.c.h.b16 %v1206
  %v1355 = vunpack.c.l.b16 %v1207
  %v1356 = vunpack.c.h.b16 %v1207
  %v1357 = vunpack.c.l.b16 %v1208
  %v1358 = vunpack.c.l.b16 %v1209
  %v1359 = vunpack.c.h.b16 %v1209
  %v1360 = vunpack.c.l.b16 %v1210
  %v1361 = vunpack.c.h.b16 %v1210
  %v1362 = vunpack.c.l.b16 %v1211
  %v1363 = vunpack.c.h.b16 %v1211
  %v1364 = vunpack.c.l.b16 %v1212
  %v1365 = vunpack.c.l.b16 %v1213
  %v1366 = vunpack.c.h.b16 %v1213
  %v1367 = vunpack.c.l.b16 %v1214
  %v1368 = vunpack.c.h.b16 %v1214
  %v1369 = vunpack.c.l.b16 %v1215
  %v1370 = vunpack.c.h.b16 %v1215
  %v1371 = vunpack.c.l.b16 %v1216
  %v1372 = vunpack.c.l.b16 %v1217
  %v1373 = vunpack.c.h.b16 %v1217
  %v1374 = vunpack.c.l.b16 %v1218
  %v1375 = vunpack.c.h.b16 %v1218
  %v1376 = vunpack.c.l.b16 %v1219
  %v1377 = vunpack.c.h.b16 %v1219
  %v1378 = vunpack.c.l.b16 %v1220
  %v1379 = vunpack.c.l.b16 %v1221
  %v1380 = vunpack.c.h.b16 %v1221
  %v1381 = vunpack.c.l.b16 %v1222
  %v1382 = vunpack.c.h.b16 %v1222
  %v1383 = vunpack.c.l.b16 %v1223
  %v1384 = vunpack.c.h.b16 %v1223
  %v1385 = vunpack.c.l.b16 %v1224
  %v1386 = vunpack.c.l.b16 %v1225
  %v1387 = vunpack.c.h.b16 %v1225
  %v1388 = vunpack.c.l.b16 %v1226
  %v1389 = vunpack.c.h.b16 %v1226
  %v1390 = vunpack.c.l.b16 %v1227
  %v1391 = vunpack.c.h.b16 %v1227
  %v1392 = vunpack.c.l.b16 %v1228
  %v1393 = vunpack.c.l.b16 %v1229
  %v1394 = vunpack.c.h.b16 %v1229
  %v1395 = vunpack.c.l.b16 %v1230
  %v1396 = vunpack.c.h.b16 %v1230
  %v1397 = vunpack.c.l.b16 %v1231
  %v1398 = vunpack.c.h.b16 %v1231
  %v1399 = vunpack.c.l.b16 %v1232
  %v1400 = vunpack.c.l.b16 %v1233
  %v1401 = vunpack.c.h.b16 %v1233
  %v1402 = vunpack.c.l.b16 %v1234
  %v1403 = vunpack.c.h.b16 %v1234
  %v1404 = vunpack.c.l.b16 %v1235
  %v1405 = vunpack.c.h.b16 %v1235
  %v1406 = vunpack.c.l.b16 %v1236
  %v1407 = vunpack.c.l.b16 %v1237
  %v1408 = vunpack.c.h.b16 %v1237
  %v1409 = vunpack.c.l.b16 %v1238
  %v1410 = vunpack.c.h.b16 %v1238
  %v1411 = vunpack.c.l.b16 %v1239
  %v1412 = vunpack.c.h.b16 %v1239
  %v1413 = vunpack.c.l.b16 %v1240
  %v1414 = vunpack.c.l.b16 %v1241
  %v1415 = vunpack.c.h.b16 %v1241
  %v1416 = vunpack.c.l.b16 %v1242
  %v1417 = vunpack.c.h.b16 %v1242
  %v1418 = vunpack.c.l.b16 %v1243
  %v1419 = vunpack.c.h.b16 %v1243
  %v1420 = vunpack.c.l.b16 %v1244
  %v1421 = vpack.c.b16 %v1316, %v1309
  %v1422 = vpack.c.b16 %v1317, %v1310
  %v1423 = vpack.c.b16 %v1318, %v1311
  %v1424 = vpack.c.b16 %v1319, %v1312
  %v1425 = vpack.c.b16 %v1320, %v1313
  %v1426 = vpack.c.b16 %v1321, %v1314
  %v1427 = vpack.c.b16 %v1322, %v1315
  %v1428 = vpack.c.b16 %v1330, %v1323
  %v1429 = vpack.c.b16 %v1331, %v1324
  %v1430 = vpack.c.b16 %v1332, %v1325
  %v1431 = vpack.c.b16 %v1333, %v1326
  %v1432 = vpack.c.b16 %v1334, %v1327
  %v1433 = vpack.c.b16 %v1335, %v1328
  %v1434 = vpack.c.b16 %v1336, %v1329
  %v1435 = vpack.c.b16 %v1344, %v1337
  %v1436 = vpack.c.b16 %v1345, %v1338
  %v1437 = vpack.c.b16 %v1346, %v1339
  %v1438 = vpack.c.b16 %v1347, %v1340
  %v1439 = vpack.c.b16 %v1348, %v1341
  %v1440 = vpack.c.b16 %v1349, %v1342
  %v1441 = vpack.c.b16 %v1350, %v1343
  %v1442 = vpack.c.b16 %v1358, %v1351
  %v1443 = vpack.c.b16 %v1359, %v1352
  %v1444 = vpack.c.b16 %v1360, %v1353
  %v1445 = vpack.c.b16 %v1361, %v1354
  %v1446 = vpack.c.b16 %v1362, %v1355
  %v1447 = vpack.c.b16 %v1363, %v1356
  %v1448 = vpack.c.b16 %v1364, %v1357
  %v1449 = vpack.c.b16 %v1372, %v1365
  %v1450 = vpack.c.b16 %v1373, %v1366
  %v1451 = vpack.c.b16 %v1374, %v1367
  %v1452 = vpack.c.b16 %v1375, %v1368
  %v1453 = vpack.c.b16 %v1376, %v1369
  %v1454 = vpack.c.b16 %v1377, %v1370
  %v1455 = vpack.c.b16 %v1378, %v1371
  %v1456 = vpack.c.b16 %v1386, %v1379
  %v1457 = vpack.c.b16 %v1387, %v1380
  %v1458 = vpack.c.b16 %v1388, %v1381
  %v1459 = vpack.c.b16 %v1389, %v1382
  %v1460 = vpack.c.b16 %v1390, %v1383
  %v1461 = vpack.c.b16 %v1391, %v1384
  %v1462 = vpack.c.b16 %v1392, %v1385
  %v1463 = vpack.c.b16 %v1400, %v1393
  %v1464 = vpack.c.b16 %v1401, %v1394
  %v1465 = vpack.c.b16 %v1402, %v1395
  %v1466 = vpack.c.b16 %v1403, %v1396
  %v1467 = vpack.c.b16 %v1404, %v1397
  %v1468 = vpack.c.b16 %v1405, %v1398
  %v1469 = vpack.c.b16 %v1406, %v1399
  %v1470 = vpack.c.b16 %v1414, %v1407
  %v1471 = vpack.c.b16 %v1415, %v1408
  %v1472 = vpack.c.b16 %v1416, %v1409
  %v1473 = vpack.c.b16 %v1417, %v1410
  %v1474 = vpack.c.b16 %v1418, %v1411
  %v1475 = vpack.c.b16 %v1419, %v1412
  %v1476 = vpack.c.b16 %v1420, %v1413
  %v1526 = vsel %vm768, %v1427, 0
  %v1529 = vsel %vm768, %v1434, 0
  %v1532 = vsel %vm768, %v1441, 0
  %v1535 = vsel %vm768, %v1448, 0
  %v1538 = vsel %vm768, %v1455, 0
  %v1541 = vsel %vm768, %v1462, 0
  %v1544 = vsel %vm768, %v1469, 0
  %v1547 = vsel %vm768, %v1476, 0
  %1549 = vmatprep.subr.bf16.mxu0 0
  %1550 = vmatpush1.bf16.msra.mxu0 %v675
  %1551 = vmatprep.subr.bf16.mxu0 0
  %1552 = vmatpush1.bf16.msra.mxu0 %v674
  %1553 = vmatprep.subr.bf16.mxu0 0
  %1554 = vmatpush1.bf16.msra.mxu0 %v673
  %1555 = vmatprep.subr.bf16.mxu0 0
  %1556 = vmatpush1.bf16.msra.mxu0 %v672
  %1557 = vmatprep.subr.bf16.mxu0 0
  %1558 = vmatpush1.bf16.msra.mxu0 %v671
  %1559 = vmatprep.subr.bf16.mxu0 0
  %1560 = vmatpush1.bf16.msra.mxu0 %v670
  %1561 = vmatprep.subr.bf16.mxu0 0
  %1562 = vmatpush1.bf16.msra.mxu0 %v669
  %1563 = vmatprep.subr.bf16.mxu0 0
  %1564 = vmatpush1.bf16.msra.mxu0 %v668
  %1565 = vmatprep.subr.bf16.mxu0 0
  %1566 = vmatpush2.bf16.msra.mxu0 %v683
  %1567 = vmatprep.subr.bf16.mxu0 0
  %1568 = vmatpush2.bf16.msra.mxu0 %v682
  %1569 = vmatprep.subr.bf16.mxu0 0
  %1570 = vmatpush2.bf16.msra.mxu0 %v681
  %1571 = vmatprep.subr.bf16.mxu0 0
  %1572 = vmatpush2.bf16.msra.mxu0 %v680
  %1573 = vmatprep.subr.bf16.mxu0 0
  %1574 = vmatpush2.bf16.msra.mxu0 %v679
  %1575 = vmatprep.subr.bf16.mxu0 0
  %1576 = vmatpush2.bf16.msra.mxu0 %v678
  %1577 = vmatprep.subr.bf16.mxu0 0
  %1578 = vmatpush2.bf16.msra.mxu0 %v677
  %1579 = vmatprep.subr.bf16.mxu0 0
  %1580 = vmatpush2.bf16.msra.mxu0 %v676
  %1581 = vmatprep.mubr.bf16.mxu0 %v1422
  %1582 = vmatmul.mubr.bf16.gmra.mxu0 %v1421
  %v1583 = vpop.f32.mrf.mxu0
  %v1584 = vadd.f32 0.0, %v1583
  %v1585 = vpop.f32.mrf.mxu0
  %v1586 = vpop.f32.mrf.mxu0
  %v1587 = vadd.f32 0.0, %v1586
  %v1588 = vpop.f32.mrf.mxu0
  %1589 = vmatprep.mubr.bf16.mxu0 %v1429
  %1590 = vmatmul.mubr.bf16.gmra.mxu0 %v1428
  %v1591 = vpop.f32.mrf.mxu0
  %v1592 = vadd.f32 0.0, %v1591
  %v1593 = vpop.f32.mrf.mxu0
  %v1594 = vpop.f32.mrf.mxu0
  %v1595 = vadd.f32 0.0, %v1594
  %v1596 = vpop.f32.mrf.mxu0
  %1597 = vmatprep.mubr.bf16.mxu0 %v1436
  %1598 = vmatmul.mubr.bf16.gmra.mxu0 %v1435
  %v1599 = vpop.f32.mrf.mxu0
  %v1600 = vadd.f32 0.0, %v1599
  %v1601 = vpop.f32.mrf.mxu0
  %v1602 = vpop.f32.mrf.mxu0
  %v1603 = vadd.f32 0.0, %v1602
  %v1604 = vpop.f32.mrf.mxu0
  %1605 = vmatprep.mubr.bf16.mxu0 %v1443
  %1606 = vmatmul.mubr.bf16.gmra.mxu0 %v1442
  %v1607 = vpop.f32.mrf.mxu0
  %v1608 = vadd.f32 0.0, %v1607
  %v1609 = vpop.f32.mrf.mxu0
  %v1610 = vpop.f32.mrf.mxu0
  %v1611 = vadd.f32 0.0, %v1610
  %v1612 = vpop.f32.mrf.mxu0
  %1613 = vmatprep.mubr.bf16.mxu0 %v1450
  %1614 = vmatmul.mubr.bf16.gmra.mxu0 %v1449
  %v1615 = vpop.f32.mrf.mxu0
  %v1616 = vadd.f32 0.0, %v1615
  %v1617 = vpop.f32.mrf.mxu0
  %v1618 = vpop.f32.mrf.mxu0
  %v1619 = vadd.f32 0.0, %v1618
  %v1620 = vpop.f32.mrf.mxu0
  %1621 = vmatprep.mubr.bf16.mxu0 %v1457
  %1622 = vmatmul.mubr.bf16.gmra.mxu0 %v1456
  %v1623 = vpop.f32.mrf.mxu0
  %v1624 = vadd.f32 0.0, %v1623
  %v1625 = vpop.f32.mrf.mxu0
  %v1626 = vpop.f32.mrf.mxu0
  %v1627 = vadd.f32 0.0, %v1626
  %v1628 = vpop.f32.mrf.mxu0
  %1629 = vmatprep.mubr.bf16.mxu0 %v1464
  %1630 = vmatmul.mubr.bf16.gmra.mxu0 %v1463
  %v1631 = vpop.f32.mrf.mxu0
  %v1632 = vadd.f32 0.0, %v1631
  %v1633 = vpop.f32.mrf.mxu0
  %v1634 = vpop.f32.mrf.mxu0
  %v1635 = vadd.f32 0.0, %v1634
  %v1636 = vpop.f32.mrf.mxu0
  %1637 = vmatprep.mubr.bf16.mxu0 %v1471
  %1638 = vmatmul.mubr.bf16.gmra.mxu0 %v1470
  %v1639 = vpop.f32.mrf.mxu0
  %v1640 = vadd.f32 0.0, %v1639
  %v1641 = vpop.f32.mrf.mxu0
  %v1642 = vpop.f32.mrf.mxu0
  %v1643 = vadd.f32 0.0, %v1642
  %v1644 = vpop.f32.mrf.mxu0
  %1645 = vdwg.mxu0
  %1646 = vmatprep.subr.bf16.mxu0 0
  %1647 = vmatpush1.bf16.msra.mxu0 %v691
  %1648 = vmatprep.subr.bf16.mxu0 0
  %1649 = vmatpush1.bf16.msra.mxu0 %v690
  %1650 = vmatprep.subr.bf16.mxu0 0
  %1651 = vmatpush1.bf16.msra.mxu0 %v689
  %1652 = vmatprep.subr.bf16.mxu0 0
  %1653 = vmatpush1.bf16.msra.mxu0 %v688
  %1654 = vmatprep.subr.bf16.mxu0 0
  %1655 = vmatpush1.bf16.msra.mxu0 %v687
  %1656 = vmatprep.subr.bf16.mxu0 0
  %1657 = vmatpush1.bf16.msra.mxu0 %v686
  %1658 = vmatprep.subr.bf16.mxu0 0
  %1659 = vmatpush1.bf16.msra.mxu0 %v685
  %1660 = vmatprep.subr.bf16.mxu0 0
  %1661 = vmatpush1.bf16.msra.mxu0 %v684
  %1662 = vmatprep.subr.bf16.mxu0 0
  %1663 = vmatpush2.bf16.msra.mxu0 %v699
  %1664 = vmatprep.subr.bf16.mxu0 0
  %1665 = vmatpush2.bf16.msra.mxu0 %v698
  %1666 = vmatprep.subr.bf16.mxu0 0
  %1667 = vmatpush2.bf16.msra.mxu0 %v697
  %1668 = vmatprep.subr.bf16.mxu0 0
  %1669 = vmatpush2.bf16.msra.mxu0 %v696
  %1670 = vmatprep.subr.bf16.mxu0 0
  %1671 = vmatpush2.bf16.msra.mxu0 %v695
  %1672 = vmatprep.subr.bf16.mxu0 0
  %1673 = vmatpush2.bf16.msra.mxu0 %v694
  %1674 = vmatprep.subr.bf16.mxu0 0
  %1675 = vmatpush2.bf16.msra.mxu0 %v693
  %1676 = vmatprep.subr.bf16.mxu0 0
  %1677 = vmatpush2.bf16.msra.mxu0 %v692
  %1678 = vmatprep.mubr.bf16.mxu0 %v1424
  %1679 = vmatmul.mubr.bf16.gmra.mxu0 %v1423
  %v1680 = vpop.f32.mrf.mxu0
  %v1681 = vadd.f32 %v1584, %v1680
  %v1682 = vpop.f32.mrf.mxu0
  %v1683 = vpop.f32.mrf.mxu0
  %v1684 = vadd.f32 %v1587, %v1683
  %v1685 = vpop.f32.mrf.mxu0
  %1686 = vmatprep.mubr.bf16.mxu0 %v1431
  %1687 = vmatmul.mubr.bf16.gmra.mxu0 %v1430
  %v1688 = vpop.f32.mrf.mxu0
  %v1689 = vadd.f32 %v1592, %v1688
  %v1690 = vpop.f32.mrf.mxu0
  %v1691 = vpop.f32.mrf.mxu0
  %v1692 = vadd.f32 %v1595, %v1691
  %v1693 = vpop.f32.mrf.mxu0
  %1694 = vmatprep.mubr.bf16.mxu0 %v1438
  %1695 = vmatmul.mubr.bf16.gmra.mxu0 %v1437
  %v1696 = vpop.f32.mrf.mxu0
  %v1697 = vadd.f32 %v1600, %v1696
  %v1698 = vpop.f32.mrf.mxu0
  %v1699 = vpop.f32.mrf.mxu0
  %v1700 = vadd.f32 %v1603, %v1699
  %v1701 = vpop.f32.mrf.mxu0
  %1702 = vmatprep.mubr.bf16.mxu0 %v1445
  %1703 = vmatmul.mubr.bf16.gmra.mxu0 %v1444
  %v1704 = vpop.f32.mrf.mxu0
  %v1705 = vadd.f32 %v1608, %v1704
  %v1706 = vpop.f32.mrf.mxu0
  %v1707 = vpop.f32.mrf.mxu0
  %v1708 = vadd.f32 %v1611, %v1707
  %v1709 = vpop.f32.mrf.mxu0
  %1710 = vmatprep.mubr.bf16.mxu0 %v1452
  %1711 = vmatmul.mubr.bf16.gmra.mxu0 %v1451
  %v1712 = vpop.f32.mrf.mxu0
  %v1713 = vadd.f32 %v1616, %v1712
  %v1714 = vpop.f32.mrf.mxu0
  %v1715 = vpop.f32.mrf.mxu0
  %v1716 = vadd.f32 %v1619, %v1715
  %v1717 = vpop.f32.mrf.mxu0
  %1718 = vmatprep.mubr.bf16.mxu0 %v1459
  %1719 = vmatmul.mubr.bf16.gmra.mxu0 %v1458
  %v1720 = vpop.f32.mrf.mxu0
  %v1721 = vadd.f32 %v1624, %v1720
  %v1722 = vpop.f32.mrf.mxu0
  %v1723 = vpop.f32.mrf.mxu0
  %v1724 = vadd.f32 %v1627, %v1723
  %v1725 = vpop.f32.mrf.mxu0
  %1726 = vmatprep.mubr.bf16.mxu0 %v1466
  %1727 = vmatmul.mubr.bf16.gmra.mxu0 %v1465
  %v1728 = vpop.f32.mrf.mxu0
  %v1729 = vadd.f32 %v1632, %v1728
  %v1730 = vpop.f32.mrf.mxu0
  %v1731 = vpop.f32.mrf.mxu0
  %v1732 = vadd.f32 %v1635, %v1731
  %v1733 = vpop.f32.mrf.mxu0
  %1734 = vmatprep.mubr.bf16.mxu0 %v1473
  %1735 = vmatmul.mubr.bf16.gmra.mxu0 %v1472
  %v1736 = vpop.f32.mrf.mxu0
  %v1737 = vadd.f32 %v1640, %v1736
  %v1738 = vpop.f32.mrf.mxu0
  %v1739 = vpop.f32.mrf.mxu0
  %v1740 = vadd.f32 %v1643, %v1739
  %v1741 = vpop.f32.mrf.mxu0
  %1742 = vdwg.mxu0
  %1743 = vmatprep.subr.bf16.mxu0 0
  %1744 = vmatpush1.bf16.msra.mxu0 %v707
  %1745 = vmatprep.subr.bf16.mxu0 0
  %1746 = vmatpush1.bf16.msra.mxu0 %v706
  %1747 = vmatprep.subr.bf16.mxu0 0
  %1748 = vmatpush1.bf16.msra.mxu0 %v705
  %1749 = vmatprep.subr.bf16.mxu0 0
  %1750 = vmatpush1.bf16.msra.mxu0 %v704
  %1751 = vmatprep.subr.bf16.mxu0 0
  %1752 = vmatpush1.bf16.msra.mxu0 %v703
  %1753 = vmatprep.subr.bf16.mxu0 0
  %1754 = vmatpush1.bf16.msra.mxu0 %v702
  %1755 = vmatprep.subr.bf16.mxu0 0
  %1756 = vmatpush1.bf16.msra.mxu0 %v701
  %1757 = vmatprep.subr.bf16.mxu0 0
  %1758 = vmatpush1.bf16.msra.mxu0 %v700
  %1759 = vmatprep.subr.bf16.mxu0 0
  %1760 = vmatpush2.bf16.msra.mxu0 %v715
  %1761 = vmatprep.subr.bf16.mxu0 0
  %1762 = vmatpush2.bf16.msra.mxu0 %v714
  %1763 = vmatprep.subr.bf16.mxu0 0
  %1764 = vmatpush2.bf16.msra.mxu0 %v713
  %1765 = vmatprep.subr.bf16.mxu0 0
  %1766 = vmatpush2.bf16.msra.mxu0 %v712
  %1767 = vmatprep.subr.bf16.mxu0 0
  %1768 = vmatpush2.bf16.msra.mxu0 %v711
  %1769 = vmatprep.subr.bf16.mxu0 0
  %1770 = vmatpush2.bf16.msra.mxu0 %v710
  %1771 = vmatprep.subr.bf16.mxu0 0
  %1772 = vmatpush2.bf16.msra.mxu0 %v709
  %1773 = vmatprep.subr.bf16.mxu0 0
  %1774 = vmatpush2.bf16.msra.mxu0 %v708
  %1775 = vmatprep.mubr.bf16.mxu0 %v1426
  %1776 = vmatmul.mubr.bf16.gmra.mxu0 %v1425
  %v1777 = vpop.f32.mrf.mxu0
  %v1778 = vadd.f32 %v1681, %v1777
  %v1779 = vpop.f32.mrf.mxu0
  %v1780 = vpop.f32.mrf.mxu0
  %v1781 = vadd.f32 %v1684, %v1780
  %v1782 = vpop.f32.mrf.mxu0
  %1783 = vmatprep.mubr.bf16.mxu0 %v1433
  %1784 = vmatmul.mubr.bf16.gmra.mxu0 %v1432
  %v1785 = vpop.f32.mrf.mxu0
  %v1786 = vadd.f32 %v1689, %v1785
  %v1787 = vpop.f32.mrf.mxu0
  %v1788 = vpop.f32.mrf.mxu0
  %v1789 = vadd.f32 %v1692, %v1788
  %v1790 = vpop.f32.mrf.mxu0
  %1791 = vmatprep.mubr.bf16.mxu0 %v1440
  %1792 = vmatmul.mubr.bf16.gmra.mxu0 %v1439
  %v1793 = vpop.f32.mrf.mxu0
  %v1794 = vadd.f32 %v1697, %v1793
  %v1795 = vpop.f32.mrf.mxu0
  %v1796 = vpop.f32.mrf.mxu0
  %v1797 = vadd.f32 %v1700, %v1796
  %v1798 = vpop.f32.mrf.mxu0
  %1799 = vmatprep.mubr.bf16.mxu0 %v1447
  %1800 = vmatmul.mubr.bf16.gmra.mxu0 %v1446
  %v1801 = vpop.f32.mrf.mxu0
  %v1802 = vadd.f32 %v1705, %v1801
  %v1803 = vpop.f32.mrf.mxu0
  %v1804 = vpop.f32.mrf.mxu0
  %v1805 = vadd.f32 %v1708, %v1804
  %v1806 = vpop.f32.mrf.mxu0
  %1807 = vmatprep.mubr.bf16.mxu0 %v1454
  %1808 = vmatmul.mubr.bf16.gmra.mxu0 %v1453
  %v1809 = vpop.f32.mrf.mxu0
  %v1810 = vadd.f32 %v1713, %v1809
  %v1811 = vpop.f32.mrf.mxu0
  %v1812 = vpop.f32.mrf.mxu0
  %v1813 = vadd.f32 %v1716, %v1812
  %v1814 = vpop.f32.mrf.mxu0
  %1815 = vmatprep.mubr.bf16.mxu0 %v1461
  %1816 = vmatmul.mubr.bf16.gmra.mxu0 %v1460
  %v1817 = vpop.f32.mrf.mxu0
  %v1818 = vadd.f32 %v1721, %v1817
  %v1819 = vpop.f32.mrf.mxu0
  %v1820 = vpop.f32.mrf.mxu0
  %v1821 = vadd.f32 %v1724, %v1820
  %v1822 = vpop.f32.mrf.mxu0
  %1823 = vmatprep.mubr.bf16.mxu0 %v1468
  %1824 = vmatmul.mubr.bf16.gmra.mxu0 %v1467
  %v1825 = vpop.f32.mrf.mxu0
  %v1826 = vadd.f32 %v1729, %v1825
  %v1827 = vpop.f32.mrf.mxu0
  %v1828 = vpop.f32.mrf.mxu0
  %v1829 = vadd.f32 %v1732, %v1828
  %v1830 = vpop.f32.mrf.mxu0
  %1831 = vmatprep.mubr.bf16.mxu0 %v1475
  %1832 = vmatmul.mubr.bf16.gmra.mxu0 %v1474
  %v1833 = vpop.f32.mrf.mxu0
  %v1834 = vadd.f32 %v1737, %v1833
  %v1835 = vpop.f32.mrf.mxu0
  %v1836 = vpop.f32.mrf.mxu0
  %v1837 = vadd.f32 %v1740, %v1836
  %v1838 = vpop.f32.mrf.mxu0
  %1839 = vdwg.mxu0
  %1840 = vmatprep.subr.bf16.mxu0 0
  %1841 = vmatpush1.bf16.msra.mxu0 0
  %1842 = vmatprep.subr.bf16.mxu0 0
  %1843 = vmatpush1.bf16.msra.mxu0 0
  %1844 = vmatprep.subr.bf16.mxu0 0
  %1845 = vmatpush1.bf16.msra.mxu0 0
  %1846 = vmatprep.subr.bf16.mxu0 0
  %1847 = vmatpush1.bf16.msra.mxu0 0
  %1848 = vmatprep.subr.bf16.mxu0 0
  %1849 = vmatpush1.bf16.msra.mxu0 0
  %1850 = vmatprep.subr.bf16.mxu0 0
  %1851 = vmatpush1.bf16.msra.mxu0 0
  %1852 = vmatprep.subr.bf16.mxu0 0
  %1853 = vmatpush1.bf16.msra.mxu0 %v717
  %1854 = vmatprep.subr.bf16.mxu0 0
  %1855 = vmatpush1.bf16.msra.mxu0 %v716
  %1856 = vmatprep.subr.bf16.mxu0 0
  %1857 = vmatpush2.bf16.msra.mxu0 0
  %1858 = vmatprep.subr.bf16.mxu0 0
  %1859 = vmatpush2.bf16.msra.mxu0 0
  %1860 = vmatprep.subr.bf16.mxu0 0
  %1861 = vmatpush2.bf16.msra.mxu0 0
  %1862 = vmatprep.subr.bf16.mxu0 0
  %1863 = vmatpush2.bf16.msra.mxu0 0
  %1864 = vmatprep.subr.bf16.mxu0 0
  %1865 = vmatpush2.bf16.msra.mxu0 0
  %1866 = vmatprep.subr.bf16.mxu0 0
  %1867 = vmatpush2.bf16.msra.mxu0 0
  %1868 = vmatprep.subr.bf16.mxu0 0
  %1869 = vmatpush2.bf16.msra.mxu0 0
  %1870 = vmatprep.subr.bf16.mxu0 0
  %1871 = vmatpush2.bf16.msra.mxu0 0
  %1872 = vmatprep.mubr.bf16.mxu0 0
  %1873 = vmatmul.mubr.bf16.gmra.mxu0 %v1526
  %v1874 = vpop.f32.mrf.mxu0
  %v1875 = vadd.f32 %v1778, %v1874
  %v1876 = vpop.f32.mrf.mxu0
  %v1877 = vpop.f32.mrf.mxu0
  %v1878 = vadd.f32 %v1781, %v1877
  %v1879 = vpop.f32.mrf.mxu0
  %1880 = vmatprep.mubr.bf16.mxu0 0
  %1881 = vmatmul.mubr.bf16.gmra.mxu0 %v1529
  %v1882 = vpop.f32.mrf.mxu0
  %v1883 = vadd.f32 %v1786, %v1882
  %v1884 = vpop.f32.mrf.mxu0
  %v1885 = vpop.f32.mrf.mxu0
  %v1886 = vadd.f32 %v1789, %v1885
  %v1887 = vpop.f32.mrf.mxu0
  %1888 = vmatprep.mubr.bf16.mxu0 0
  %1889 = vmatmul.mubr.bf16.gmra.mxu0 %v1532
  %v1890 = vpop.f32.mrf.mxu0
  %v1891 = vadd.f32 %v1794, %v1890
  %v1892 = vpop.f32.mrf.mxu0
  %v1893 = vpop.f32.mrf.mxu0
  %v1894 = vadd.f32 %v1797, %v1893
  %v1895 = vpop.f32.mrf.mxu0
  %1896 = vmatprep.mubr.bf16.mxu0 0
  %1897 = vmatmul.mubr.bf16.gmra.mxu0 %v1535
  %v1898 = vpop.f32.mrf.mxu0
  %v1899 = vadd.f32 %v1802, %v1898
  %v1900 = vpop.f32.mrf.mxu0
  %v1901 = vpop.f32.mrf.mxu0
  %v1902 = vadd.f32 %v1805, %v1901
  %v1903 = vpop.f32.mrf.mxu0
  %1904 = vmatprep.mubr.bf16.mxu0 0
  %1905 = vmatmul.mubr.bf16.gmra.mxu0 %v1538
  %v1906 = vpop.f32.mrf.mxu0
  %v1907 = vadd.f32 %v1810, %v1906
  %v1908 = vpop.f32.mrf.mxu0
  %v1909 = vpop.f32.mrf.mxu0
  %v1910 = vadd.f32 %v1813, %v1909
  %v1911 = vpop.f32.mrf.mxu0
  %1912 = vmatprep.mubr.bf16.mxu0 0
  %1913 = vmatmul.mubr.bf16.gmra.mxu0 %v1541
  %v1914 = vpop.f32.mrf.mxu0
  %v1915 = vadd.f32 %v1818, %v1914
  %v1916 = vpop.f32.mrf.mxu0
  %v1917 = vpop.f32.mrf.mxu0
  %v1918 = vadd.f32 %v1821, %v1917
  %v1919 = vpop.f32.mrf.mxu0
  %1920 = vmatprep.mubr.bf16.mxu0 0
  %1921 = vmatmul.mubr.bf16.gmra.mxu0 %v1544
  %v1922 = vpop.f32.mrf.mxu0
  %v1923 = vadd.f32 %v1826, %v1922
  %v1924 = vpop.f32.mrf.mxu0
  %v1925 = vpop.f32.mrf.mxu0
  %v1926 = vadd.f32 %v1829, %v1925
  %v1927 = vpop.f32.mrf.mxu0
  %1928 = vmatprep.mubr.bf16.mxu0 0
  %1929 = vmatmul.mubr.bf16.gmra.mxu0 %v1547
  %v1930 = vpop.f32.mrf.mxu0
  %v1931 = vadd.f32 %v1834, %v1930
  %v1932 = vpop.f32.mrf.mxu0
  %v1933 = vpop.f32.mrf.mxu0
  %v1934 = vadd.f32 %v1837, %v1933
  %v1935 = vpop.f32.mrf.mxu0
  %1936 = vdwg.mxu0
  %v1937 = vmax.f32 %v1119, %v1875
  %v1938 = vmax.f32 %v1122, %v1878
  %v1939 = vmax.f32 %v1127, %v1883
  %v1940 = vmax.f32 %v1130, %v1886
  %v1941 = vmax.f32 %v1135, %v1891
  %v1942 = vmax.f32 %v1138, %v1894
  %v1943 = vmax.f32 %v1143, %v1899
  %v1944 = vmax.f32 %v1146, %v1902
  %v1945 = vmax.f32 %v1151, %v1907
  %v1946 = vmax.f32 %v1154, %v1910
  %v1947 = vmax.f32 %v1159, %v1915
  %v1948 = vmax.f32 %v1162, %v1918
  %v1949 = vmax.f32 %v1167, %v1923
  %v1950 = vmax.f32 %v1170, %v1926
  %v1951 = vmax.f32 %v1175, %v1931
  %v1952 = vmax.f32 %v1178, %v1934
  %v1953 = vld [vmem:[%s2] sm:$0xff]
  %v1954 = vld [vmem:[%s2 + $0x8] sm:$0xff]
  %v1955 = vld [vmem:[%s2 + $0x10] sm:$0xff]
  %v1956 = vld [vmem:[%s2 + $0x18] sm:$0xf]
  %v1957 = vld [vmem:[%s2 + $0x1c] sm:$0xff]
  %v1958 = vld [vmem:[%s2 + $0x24] sm:$0xff]
  %v1959 = vld [vmem:[%s2 + $0x2c] sm:$0xff]
  %v1960 = vld [vmem:[%s2 + $0x34] sm:$0xf]
  %v1961 = vld [vmem:[%s2 + $0x38] sm:$0xff]
  %v1962 = vld [vmem:[%s2 + $0x40] sm:$0xff]
  %v1963 = vld [vmem:[%s2 + $0x48] sm:$0xff]
  %v1964 = vld [vmem:[%s2 + $0x50] sm:$0xf]
  %v1965 = vld [vmem:[%s2 + $0x54] sm:$0xff]
  %v1966 = vld [vmem:[%s2 + $0x5c] sm:$0xff]
  %v1967 = vld [vmem:[%s2 + $0x64] sm:$0xff]
  %v1968 = vld [vmem:[%s2 + $0x6c] sm:$0xf]
  %v1969 = vld [vmem:[%s2 + $0x70] sm:$0xff]
  %v1970 = vld [vmem:[%s2 + $0x78] sm:$0xff]
  %v1971 = vld [vmem:[%s2 + $0x80] sm:$0xff]
  %v1972 = vld [vmem:[%s2 + $0x88] sm:$0xf]
  %v1973 = vld [vmem:[%s2 + $0x8c] sm:$0xff]
  %v1974 = vld [vmem:[%s2 + $0x94] sm:$0xff]
  %v1975 = vld [vmem:[%s2 + $0x9c] sm:$0xff]
  %v1976 = vld [vmem:[%s2 + $0xa4] sm:$0xf]
  %v1977 = vld [vmem:[%s2 + $0xa8] sm:$0xff]
  %v1978 = vld [vmem:[%s2 + $0xb0] sm:$0xff]
  %v1979 = vld [vmem:[%s2 + $0xb8] sm:$0xff]
  %v1980 = vld [vmem:[%s2 + $0xc0] sm:$0xf]
  %v1981 = vld [vmem:[%s2 + $0xc4] sm:$0xff]
  %v1982 = vld [vmem:[%s2 + $0xcc] sm:$0xff]
  %v1983 = vld [vmem:[%s2 + $0xd4] sm:$0xff]
  %v1984 = vld [vmem:[%s2 + $0xdc] sm:$0xf]
  %v1985 = vld [vmem:[%s2 + $0xe0] sm:$0xff]
  %v1986 = vld [vmem:[%s2 + $0xe8] sm:$0xff]
  %v1987 = vld [vmem:[%s2 + $0xf0] sm:$0xff]
  %v1988 = vld [vmem:[%s2 + $0xf8] sm:$0xf]
  %v1989 = vld [vmem:[%s2 + $0xfc] sm:$0xff]
  %v1990 = vld [vmem:[%s2 + $0x104] sm:$0xff]
  %v1991 = vld [vmem:[%s2 + $0x10c] sm:$0xff]
  %v1992 = vld [vmem:[%s2 + $0x114] sm:$0xf]
  %v1993 = vld [vmem:[%s2 + $0x118] sm:$0xff]
  %v1994 = vld [vmem:[%s2 + $0x120] sm:$0xff]
  %v1995 = vld [vmem:[%s2 + $0x128] sm:$0xff]
  %v1996 = vld [vmem:[%s2 + $0x130] sm:$0xf]
  %v1997 = vld [vmem:[%s2 + $0x134] sm:$0xff]
  %v1998 = vld [vmem:[%s2 + $0x13c] sm:$0xff]
  %v1999 = vld [vmem:[%s2 + $0x144] sm:$0xff]
  %v2000 = vld [vmem:[%s2 + $0x14c] sm:$0xf]
  %v2001 = vld [vmem:[%s2 + $0x150] sm:$0xff]
  %v2002 = vld [vmem:[%s2 + $0x158] sm:$0xff]
  %v2003 = vld [vmem:[%s2 + $0x160] sm:$0xff]
  %v2004 = vld [vmem:[%s2 + $0x168] sm:$0xf]
  %v2005 = vld [vmem:[%s2 + $0x16c] sm:$0xff]
  %v2006 = vld [vmem:[%s2 + $0x174] sm:$0xff]
  %v2007 = vld [vmem:[%s2 + $0x17c] sm:$0xff]
  %v2008 = vld [vmem:[%s2 + $0x184] sm:$0xf]
  %v2009 = vld [vmem:[%s2 + $0x188] sm:$0xff]
  %v2010 = vld [vmem:[%s2 + $0x190] sm:$0xff]
  %v2011 = vld [vmem:[%s2 + $0x198] sm:$0xff]
  %v2012 = vld [vmem:[%s2 + $0x1a0] sm:$0xf]
  %v2013 = vld [vmem:[%s2 + $0x1a4] sm:$0xff]
  %v2014 = vld [vmem:[%s2 + $0x1ac] sm:$0xff]
  %v2015 = vld [vmem:[%s2 + $0x1b4] sm:$0xff]
  %v2016 = vld [vmem:[%s2 + $0x1bc] sm:$0xf]
  %v2081 = vunpack.c.l.b16 %v1953
  %v2082 = vunpack.c.h.b16 %v1953
  %v2083 = vunpack.c.l.b16 %v1954
  %v2084 = vunpack.c.h.b16 %v1954
  %v2085 = vunpack.c.l.b16 %v1955
  %v2086 = vunpack.c.h.b16 %v1955
  %v2087 = vunpack.c.l.b16 %v1956
  %v2088 = vunpack.c.l.b16 %v1957
  %v2089 = vunpack.c.h.b16 %v1957
  %v2090 = vunpack.c.l.b16 %v1958
  %v2091 = vunpack.c.h.b16 %v1958
  %v2092 = vunpack.c.l.b16 %v1959
  %v2093 = vunpack.c.h.b16 %v1959
  %v2094 = vunpack.c.l.b16 %v1960
  %v2095 = vunpack.c.l.b16 %v1961
  %v2096 = vunpack.c.h.b16 %v1961
  %v2097 = vunpack.c.l.b16 %v1962
  %v2098 = vunpack.c.h.b16 %v1962
  %v2099 = vunpack.c.l.b16 %v1963
  %v2100 = vunpack.c.h.b16 %v1963
  %v2101 = vunpack.c.l.b16 %v1964
  %v2102 = vunpack.c.l.b16 %v1965
  %v2103 = vunpack.c.h.b16 %v1965
  %v2104 = vunpack.c.l.b16 %v1966
  %v2105 = vunpack.c.h.b16 %v1966
  %v2106 = vunpack.c.l.b16 %v1967
  %v2107 = vunpack.c.h.b16 %v1967
  %v2108 = vunpack.c.l.b16 %v1968
  %v2109 = vunpack.c.l.b16 %v1969
  %v2110 = vunpack.c.h.b16 %v1969
  %v2111 = vunpack.c.l.b16 %v1970
  %v2112 = vunpack.c.h.b16 %v1970
  %v2113 = vunpack.c.l.b16 %v1971
  %v2114 = vunpack.c.h.b16 %v1971
  %v2115 = vunpack.c.l.b16 %v1972
  %v2116 = vunpack.c.l.b16 %v1973
  %v2117 = vunpack.c.h.b16 %v1973
  %v2118 = vunpack.c.l.b16 %v1974
  %v2119 = vunpack.c.h.b16 %v1974
  %v2120 = vunpack.c.l.b16 %v1975
  %v2121 = vunpack.c.h.b16 %v1975
  %v2122 = vunpack.c.l.b16 %v1976
  %v2123 = vunpack.c.l.b16 %v1977
  %v2124 = vunpack.c.h.b16 %v1977
  %v2125 = vunpack.c.l.b16 %v1978
  %v2126 = vunpack.c.h.b16 %v1978
  %v2127 = vunpack.c.l.b16 %v1979
  %v2128 = vunpack.c.h.b16 %v1979
  %v2129 = vunpack.c.l.b16 %v1980
  %v2130 = vunpack.c.l.b16 %v1981
  %v2131 = vunpack.c.h.b16 %v1981
  %v2132 = vunpack.c.l.b16 %v1982
  %v2133 = vunpack.c.h.b16 %v1982
  %v2134 = vunpack.c.l.b16 %v1983
  %v2135 = vunpack.c.h.b16 %v1983
  %v2136 = vunpack.c.l.b16 %v1984
  %v2137 = vunpack.c.l.b16 %v1985
  %v2138 = vunpack.c.h.b16 %v1985
  %v2139 = vunpack.c.l.b16 %v1986
  %v2140 = vunpack.c.h.b16 %v1986
  %v2141 = vunpack.c.l.b16 %v1987
  %v2142 = vunpack.c.h.b16 %v1987
  %v2143 = vunpack.c.l.b16 %v1988
  %v2144 = vunpack.c.l.b16 %v1989
  %v2145 = vunpack.c.h.b16 %v1989
  %v2146 = vunpack.c.l.b16 %v1990
  %v2147 = vunpack.c.h.b16 %v1990
  %v2148 = vunpack.c.l.b16 %v1991
  %v2149 = vunpack.c.h.b16 %v1991
  %v2150 = vunpack.c.l.b16 %v1992
  %v2151 = vunpack.c.l.b16 %v1993
  %v2152 = vunpack.c.h.b16 %v1993
  %v2153 = vunpack.c.l.b16 %v1994
  %v2154 = vunpack.c.h.b16 %v1994
  %v2155 = vunpack.c.l.b16 %v1995
  %v2156 = vunpack.c.h.b16 %v1995
  %v2157 = vunpack.c.l.b16 %v1996
  %v2158 = vunpack.c.l.b16 %v1997
  %v2159 = vunpack.c.h.b16 %v1997
  %v2160 = vunpack.c.l.b16 %v1998
  %v2161 = vunpack.c.h.b16 %v1998
  %v2162 = vunpack.c.l.b16 %v1999
  %v2163 = vunpack.c.h.b16 %v1999
  %v2164 = vunpack.c.l.b16 %v2000
  %v2165 = vunpack.c.l.b16 %v2001
  %v2166 = vunpack.c.h.b16 %v2001
  %v2167 = vunpack.c.l.b16 %v2002
  %v2168 = vunpack.c.h.b16 %v2002
  %v2169 = vunpack.c.l.b16 %v2003
  %v2170 = vunpack.c.h.b16 %v2003
  %v2171 = vunpack.c.l.b16 %v2004
  %v2172 = vunpack.c.l.b16 %v2005
  %v2173 = vunpack.c.h.b16 %v2005
  %v2174 = vunpack.c.l.b16 %v2006
  %v2175 = vunpack.c.h.b16 %v2006
  %v2176 = vunpack.c.l.b16 %v2007
  %v2177 = vunpack.c.h.b16 %v2007
  %v2178 = vunpack.c.l.b16 %v2008
  %v2179 = vunpack.c.l.b16 %v2009
  %v2180 = vunpack.c.h.b16 %v2009
  %v2181 = vunpack.c.l.b16 %v2010
  %v2182 = vunpack.c.h.b16 %v2010
  %v2183 = vunpack.c.l.b16 %v2011
  %v2184 = vunpack.c.h.b16 %v2011
  %v2185 = vunpack.c.l.b16 %v2012
  %v2186 = vunpack.c.l.b16 %v2013
  %v2187 = vunpack.c.h.b16 %v2013
  %v2188 = vunpack.c.l.b16 %v2014
  %v2189 = vunpack.c.h.b16 %v2014
  %v2190 = vunpack.c.l.b16 %v2015
  %v2191 = vunpack.c.h.b16 %v2015
  %v2192 = vunpack.c.l.b16 %v2016
  %v2193 = vpack.c.b16 %v2088, %v2081
  %v2194 = vpack.c.b16 %v2089, %v2082
  %v2195 = vpack.c.b16 %v2090, %v2083
  %v2196 = vpack.c.b16 %v2091, %v2084
  %v2197 = vpack.c.b16 %v2092, %v2085
  %v2198 = vpack.c.b16 %v2093, %v2086
  %v2199 = vpack.c.b16 %v2094, %v2087
  %v2200 = vpack.c.b16 %v2102, %v2095
  %v2201 = vpack.c.b16 %v2103, %v2096
  %v2202 = vpack.c.b16 %v2104, %v2097
  %v2203 = vpack.c.b16 %v2105, %v2098
  %v2204 = vpack.c.b16 %v2106, %v2099
  %v2205 = vpack.c.b16 %v2107, %v2100
  %v2206 = vpack.c.b16 %v2108, %v2101
  %v2207 = vpack.c.b16 %v2116, %v2109
  %v2208 = vpack.c.b16 %v2117, %v2110
  %v2209 = vpack.c.b16 %v2118, %v2111
  %v2210 = vpack.c.b16 %v2119, %v2112
  %v2211 = vpack.c.b16 %v2120, %v2113
  %v2212 = vpack.c.b16 %v2121, %v2114
  %v2213 = vpack.c.b16 %v2122, %v2115
  %v2214 = vpack.c.b16 %v2130, %v2123
  %v2215 = vpack.c.b16 %v2131, %v2124
  %v2216 = vpack.c.b16 %v2132, %v2125
  %v2217 = vpack.c.b16 %v2133, %v2126
  %v2218 = vpack.c.b16 %v2134, %v2127
  %v2219 = vpack.c.b16 %v2135, %v2128
  %v2220 = vpack.c.b16 %v2136, %v2129
  %v2221 = vpack.c.b16 %v2144, %v2137
  %v2222 = vpack.c.b16 %v2145, %v2138
  %v2223 = vpack.c.b16 %v2146, %v2139
  %v2224 = vpack.c.b16 %v2147, %v2140
  %v2225 = vpack.c.b16 %v2148, %v2141
  %v2226 = vpack.c.b16 %v2149, %v2142
  %v2227 = vpack.c.b16 %v2150, %v2143
  %v2228 = vpack.c.b16 %v2158, %v2151
  %v2229 = vpack.c.b16 %v2159, %v2152
  %v2230 = vpack.c.b16 %v2160, %v2153
  %v2231 = vpack.c.b16 %v2161, %v2154
  %v2232 = vpack.c.b16 %v2162, %v2155
  %v2233 = vpack.c.b16 %v2163, %v2156
  %v2234 = vpack.c.b16 %v2164, %v2157
  %v2235 = vpack.c.b16 %v2172, %v2165
  %v2236 = vpack.c.b16 %v2173, %v2166
  %v2237 = vpack.c.b16 %v2174, %v2167
  %v2238 = vpack.c.b16 %v2175, %v2168
  %v2239 = vpack.c.b16 %v2176, %v2169
  %v2240 = vpack.c.b16 %v2177, %v2170
  %v2241 = vpack.c.b16 %v2178, %v2171
  %v2242 = vpack.c.b16 %v2186, %v2179
  %v2243 = vpack.c.b16 %v2187, %v2180
  %v2244 = vpack.c.b16 %v2188, %v2181
  %v2245 = vpack.c.b16 %v2189, %v2182
  %v2246 = vpack.c.b16 %v2190, %v2183
  %v2247 = vpack.c.b16 %v2191, %v2184
  %v2248 = vpack.c.b16 %v2192, %v2185
  %v2298 = vsel %vm768, %v2199, 0
  %v2301 = vsel %vm768, %v2206, 0
  %v2304 = vsel %vm768, %v2213, 0
  %v2307 = vsel %vm768, %v2220, 0
  %v2310 = vsel %vm768, %v2227, 0
  %v2313 = vsel %vm768, %v2234, 0
  %v2316 = vsel %vm768, %v2241, 0
  %v2319 = vsel %vm768, %v2248, 0
  %2321 = vmatprep.subr.bf16.mxu0 0
  %2322 = vmatpush1.bf16.msra.mxu0 %v675
  %2323 = vmatprep.subr.bf16.mxu0 0
  %2324 = vmatpush1.bf16.msra.mxu0 %v674
  %2325 = vmatprep.subr.bf16.mxu0 0
  %2326 = vmatpush1.bf16.msra.mxu0 %v673
  %2327 = vmatprep.subr.bf16.mxu0 0
  %2328 = vmatpush1.bf16.msra.mxu0 %v672
  %2329 = vmatprep.subr.bf16.mxu0 0
  %2330 = vmatpush1.bf16.msra.mxu0 %v671
  %2331 = vmatprep.subr.bf16.mxu0 0
  %2332 = vmatpush1.bf16.msra.mxu0 %v670
  %2333 = vmatprep.subr.bf16.mxu0 0
  %2334 = vmatpush1.bf16.msra.mxu0 %v669
  %2335 = vmatprep.subr.bf16.mxu0 0
  %2336 = vmatpush1.bf16.msra.mxu0 %v668
  %2337 = vmatprep.subr.bf16.mxu0 0
  %2338 = vmatpush2.bf16.msra.mxu0 %v683
  %2339 = vmatprep.subr.bf16.mxu0 0
  %2340 = vmatpush2.bf16.msra.mxu0 %v682
  %2341 = vmatprep.subr.bf16.mxu0 0
  %2342 = vmatpush2.bf16.msra.mxu0 %v681
  %2343 = vmatprep.subr.bf16.mxu0 0
  %2344 = vmatpush2.bf16.msra.mxu0 %v680
  %2345 = vmatprep.subr.bf16.mxu0 0
  %2346 = vmatpush2.bf16.msra.mxu0 %v679
  %2347 = vmatprep.subr.bf16.mxu0 0
  %2348 = vmatpush2.bf16.msra.mxu0 %v678
  %2349 = vmatprep.subr.bf16.mxu0 0
  %2350 = vmatpush2.bf16.msra.mxu0 %v677
  %2351 = vmatprep.subr.bf16.mxu0 0
  %2352 = vmatpush2.bf16.msra.mxu0 %v676
  %2353 = vmatprep.mubr.bf16.mxu0 %v2194
  %2354 = vmatmul.mubr.bf16.gmra.mxu0 %v2193
  %v2355 = vpop.f32.mrf.mxu0
  %v2356 = vadd.f32 0.0, %v2355
  %v2357 = vpop.f32.mrf.mxu0
  %v2358 = vpop.f32.mrf.mxu0
  %v2359 = vadd.f32 0.0, %v2358
  %v2360 = vpop.f32.mrf.mxu0
  %2361 = vmatprep.mubr.bf16.mxu0 %v2201
  %2362 = vmatmul.mubr.bf16.gmra.mxu0 %v2200
  %v2363 = vpop.f32.mrf.mxu0
  %v2364 = vadd.f32 0.0, %v2363
  %v2365 = vpop.f32.mrf.mxu0
  %v2366 = vpop.f32.mrf.mxu0
  %v2367 = vadd.f32 0.0, %v2366
  %v2368 = vpop.f32.mrf.mxu0
  %2369 = vmatprep.mubr.bf16.mxu0 %v2208
  %2370 = vmatmul.mubr.bf16.gmra.mxu0 %v2207
  %v2371 = vpop.f32.mrf.mxu0
  %v2372 = vadd.f32 0.0, %v2371
  %v2373 = vpop.f32.mrf.mxu0
  %v2374 = vpop.f32.mrf.mxu0
  %v2375 = vadd.f32 0.0, %v2374
  %v2376 = vpop.f32.mrf.mxu0
  %2377 = vmatprep.mubr.bf16.mxu0 %v2215
  %2378 = vmatmul.mubr.bf16.gmra.mxu0 %v2214
  %v2379 = vpop.f32.mrf.mxu0
  %v2380 = vadd.f32 0.0, %v2379
  %v2381 = vpop.f32.mrf.mxu0
  %v2382 = vpop.f32.mrf.mxu0
  %v2383 = vadd.f32 0.0, %v2382
  %v2384 = vpop.f32.mrf.mxu0
  %2385 = vmatprep.mubr.bf16.mxu0 %v2222
  %2386 = vmatmul.mubr.bf16.gmra.mxu0 %v2221
  %v2387 = vpop.f32.mrf.mxu0
  %v2388 = vadd.f32 0.0, %v2387
  %v2389 = vpop.f32.mrf.mxu0
  %v2390 = vpop.f32.mrf.mxu0
  %v2391 = vadd.f32 0.0, %v2390
  %v2392 = vpop.f32.mrf.mxu0
  %2393 = vmatprep.mubr.bf16.mxu0 %v2229
  %2394 = vmatmul.mubr.bf16.gmra.mxu0 %v2228
  %v2395 = vpop.f32.mrf.mxu0
  %v2396 = vadd.f32 0.0, %v2395
  %v2397 = vpop.f32.mrf.mxu0
  %v2398 = vpop.f32.mrf.mxu0
  %v2399 = vadd.f32 0.0, %v2398
  %v2400 = vpop.f32.mrf.mxu0
  %2401 = vmatprep.mubr.bf16.mxu0 %v2236
  %2402 = vmatmul.mubr.bf16.gmra.mxu0 %v2235
  %v2403 = vpop.f32.mrf.mxu0
  %v2404 = vadd.f32 0.0, %v2403
  %v2405 = vpop.f32.mrf.mxu0
  %v2406 = vpop.f32.mrf.mxu0
  %v2407 = vadd.f32 0.0, %v2406
  %v2408 = vpop.f32.mrf.mxu0
  %2409 = vmatprep.mubr.bf16.mxu0 %v2243
  %2410 = vmatmul.mubr.bf16.gmra.mxu0 %v2242
  %v2411 = vpop.f32.mrf.mxu0
  %v2412 = vadd.f32 0.0, %v2411
  %v2413 = vpop.f32.mrf.mxu0
  %v2414 = vpop.f32.mrf.mxu0
  %v2415 = vadd.f32 0.0, %v2414
  %v2416 = vpop.f32.mrf.mxu0
  %2417 = vdwg.mxu0
  %2418 = vmatprep.subr.bf16.mxu0 0
  %2419 = vmatpush1.bf16.msra.mxu0 %v691
  %2420 = vmatprep.subr.bf16.mxu0 0
  %2421 = vmatpush1.bf16.msra.mxu0 %v690
  %2422 = vmatprep.subr.bf16.mxu0 0
  %2423 = vmatpush1.bf16.msra.mxu0 %v689
  %2424 = vmatprep.subr.bf16.mxu0 0
  %2425 = vmatpush1.bf16.msra.mxu0 %v688
  %2426 = vmatprep.subr.bf16.mxu0 0
  %2427 = vmatpush1.bf16.msra.mxu0 %v687
  %2428 = vmatprep.subr.bf16.mxu0 0
  %2429 = vmatpush1.bf16.msra.mxu0 %v686
  %2430 = vmatprep.subr.bf16.mxu0 0
  %2431 = vmatpush1.bf16.msra.mxu0 %v685
  %2432 = vmatprep.subr.bf16.mxu0 0
  %2433 = vmatpush1.bf16.msra.mxu0 %v684
  %2434 = vmatprep.subr.bf16.mxu0 0
  %2435 = vmatpush2.bf16.msra.mxu0 %v699
  %2436 = vmatprep.subr.bf16.mxu0 0
  %2437 = vmatpush2.bf16.msra.mxu0 %v698
  %2438 = vmatprep.subr.bf16.mxu0 0
  %2439 = vmatpush2.bf16.msra.mxu0 %v697
  %2440 = vmatprep.subr.bf16.mxu0 0
  %2441 = vmatpush2.bf16.msra.mxu0 %v696
  %2442 = vmatprep.subr.bf16.mxu0 0
  %2443 = vmatpush2.bf16.msra.mxu0 %v695
  %2444 = vmatprep.subr.bf16.mxu0 0
  %2445 = vmatpush2.bf16.msra.mxu0 %v694
  %2446 = vmatprep.subr.bf16.mxu0 0
  %2447 = vmatpush2.bf16.msra.mxu0 %v693
  %2448 = vmatprep.subr.bf16.mxu0 0
  %2449 = vmatpush2.bf16.msra.mxu0 %v692
  %2450 = vmatprep.mubr.bf16.mxu0 %v2196
  %2451 = vmatmul.mubr.bf16.gmra.mxu0 %v2195
  %v2452 = vpop.f32.mrf.mxu0
  %v2453 = vadd.f32 %v2356, %v2452
  %v2454 = vpop.f32.mrf.mxu0
  %v2455 = vpop.f32.mrf.mxu0
  %v2456 = vadd.f32 %v2359, %v2455
  %v2457 = vpop.f32.mrf.mxu0
  %2458 = vmatprep.mubr.bf16.mxu0 %v2203
  %2459 = vmatmul.mubr.bf16.gmra.mxu0 %v2202
  %v2460 = vpop.f32.mrf.mxu0
  %v2461 = vadd.f32 %v2364, %v2460
  %v2462 = vpop.f32.mrf.mxu0
  %v2463 = vpop.f32.mrf.mxu0
  %v2464 = vadd.f32 %v2367, %v2463
  %v2465 = vpop.f32.mrf.mxu0
  %2466 = vmatprep.mubr.bf16.mxu0 %v2210
  %2467 = vmatmul.mubr.bf16.gmra.mxu0 %v2209
  %v2468 = vpop.f32.mrf.mxu0
  %v2469 = vadd.f32 %v2372, %v2468
  %v2470 = vpop.f32.mrf.mxu0
  %v2471 = vpop.f32.mrf.mxu0
  %v2472 = vadd.f32 %v2375, %v2471
  %v2473 = vpop.f32.mrf.mxu0
  %2474 = vmatprep.mubr.bf16.mxu0 %v2217
  %2475 = vmatmul.mubr.bf16.gmra.mxu0 %v2216
  %v2476 = vpop.f32.mrf.mxu0
  %v2477 = vadd.f32 %v2380, %v2476
  %v2478 = vpop.f32.mrf.mxu0
  %v2479 = vpop.f32.mrf.mxu0
  %v2480 = vadd.f32 %v2383, %v2479
  %v2481 = vpop.f32.mrf.mxu0
  %2482 = vmatprep.mubr.bf16.mxu0 %v2224
  %2483 = vmatmul.mubr.bf16.gmra.mxu0 %v2223
  %v2484 = vpop.f32.mrf.mxu0
  %v2485 = vadd.f32 %v2388, %v2484
  %v2486 = vpop.f32.mrf.mxu0
  %v2487 = vpop.f32.mrf.mxu0
  %v2488 = vadd.f32 %v2391, %v2487
  %v2489 = vpop.f32.mrf.mxu0
  %2490 = vmatprep.mubr.bf16.mxu0 %v2231
  %2491 = vmatmul.mubr.bf16.gmra.mxu0 %v2230
  %v2492 = vpop.f32.mrf.mxu0
  %v2493 = vadd.f32 %v2396, %v2492
  %v2494 = vpop.f32.mrf.mxu0
  %v2495 = vpop.f32.mrf.mxu0
  %v2496 = vadd.f32 %v2399, %v2495
  %v2497 = vpop.f32.mrf.mxu0
  %2498 = vmatprep.mubr.bf16.mxu0 %v2238
  %2499 = vmatmul.mubr.bf16.gmra.mxu0 %v2237
  %v2500 = vpop.f32.mrf.mxu0
  %v2501 = vadd.f32 %v2404, %v2500
  %v2502 = vpop.f32.mrf.mxu0
  %v2503 = vpop.f32.mrf.mxu0
  %v2504 = vadd.f32 %v2407, %v2503
  %v2505 = vpop.f32.mrf.mxu0
  %2506 = vmatprep.mubr.bf16.mxu0 %v2245
  %2507 = vmatmul.mubr.bf16.gmra.mxu0 %v2244
  %v2508 = vpop.f32.mrf.mxu0
  %v2509 = vadd.f32 %v2412, %v2508
  %v2510 = vpop.f32.mrf.mxu0
  %v2511 = vpop.f32.mrf.mxu0
  %v2512 = vadd.f32 %v2415, %v2511
  %v2513 = vpop.f32.mrf.mxu0
  %2514 = vdwg.mxu0
  %2515 = vmatprep.subr.bf16.mxu0 0
  %2516 = vmatpush1.bf16.msra.mxu0 %v707
  %2517 = vmatprep.subr.bf16.mxu0 0
  %2518 = vmatpush1.bf16.msra.mxu0 %v706
  %2519 = vmatprep.subr.bf16.mxu0 0
  %2520 = vmatpush1.bf16.msra.mxu0 %v705
  %2521 = vmatprep.subr.bf16.mxu0 0
  %2522 = vmatpush1.bf16.msra.mxu0 %v704
  %2523 = vmatprep.subr.bf16.mxu0 0
  %2524 = vmatpush1.bf16.msra.mxu0 %v703
  %2525 = vmatprep.subr.bf16.mxu0 0
  %2526 = vmatpush1.bf16.msra.mxu0 %v702
  %2527 = vmatprep.subr.bf16.mxu0 0
  %2528 = vmatpush1.bf16.msra.mxu0 %v701
  %2529 = vmatprep.subr.bf16.mxu0 0
  %2530 = vmatpush1.bf16.msra.mxu0 %v700
  %2531 = vmatprep.subr.bf16.mxu0 0
  %2532 = vmatpush2.bf16.msra.mxu0 %v715
  %2533 = vmatprep.subr.bf16.mxu0 0
  %2534 = vmatpush2.bf16.msra.mxu0 %v714
  %2535 = vmatprep.subr.bf16.mxu0 0
  %2536 = vmatpush2.bf16.msra.mxu0 %v713
  %2537 = vmatprep.subr.bf16.mxu0 0
  %2538 = vmatpush2.bf16.msra.mxu0 %v712
  %2539 = vmatprep.subr.bf16.mxu0 0
  %2540 = vmatpush2.bf16.msra.mxu0 %v711
  %2541 = vmatprep.subr.bf16.mxu0 0
  %2542 = vmatpush2.bf16.msra.mxu0 %v710
  %2543 = vmatprep.subr.bf16.mxu0 0
  %2544 = vmatpush2.bf16.msra.mxu0 %v709
  %2545 = vmatprep.subr.bf16.mxu0 0
  %2546 = vmatpush2.bf16.msra.mxu0 %v708
  %2547 = vmatprep.mubr.bf16.mxu0 %v2198
  %2548 = vmatmul.mubr.bf16.gmra.mxu0 %v2197
  %v2549 = vpop.f32.mrf.mxu0
  %v2550 = vadd.f32 %v2453, %v2549
  %v2551 = vpop.f32.mrf.mxu0
  %v2552 = vpop.f32.mrf.mxu0
  %v2553 = vadd.f32 %v2456, %v2552
  %v2554 = vpop.f32.mrf.mxu0
  %2555 = vmatprep.mubr.bf16.mxu0 %v2205
  %2556 = vmatmul.mubr.bf16.gmra.mxu0 %v2204
  %v2557 = vpop.f32.mrf.mxu0
  %v2558 = vadd.f32 %v2461, %v2557
  %v2559 = vpop.f32.mrf.mxu0
  %v2560 = vpop.f32.mrf.mxu0
  %v2561 = vadd.f32 %v2464, %v2560
  %v2562 = vpop.f32.mrf.mxu0
  %2563 = vmatprep.mubr.bf16.mxu0 %v2212
  %2564 = vmatmul.mubr.bf16.gmra.mxu0 %v2211
  %v2565 = vpop.f32.mrf.mxu0
  %v2566 = vadd.f32 %v2469, %v2565
  %v2567 = vpop.f32.mrf.mxu0
  %v2568 = vpop.f32.mrf.mxu0
  %v2569 = vadd.f32 %v2472, %v2568
  %v2570 = vpop.f32.mrf.mxu0
  %2571 = vmatprep.mubr.bf16.mxu0 %v2219
  %2572 = vmatmul.mubr.bf16.gmra.mxu0 %v2218
  %v2573 = vpop.f32.mrf.mxu0
  %v2574 = vadd.f32 %v2477, %v2573
  %v2575 = vpop.f32.mrf.mxu0
  %v2576 = vpop.f32.mrf.mxu0
  %v2577 = vadd.f32 %v2480, %v2576
  %v2578 = vpop.f32.mrf.mxu0
  %2579 = vmatprep.mubr.bf16.mxu0 %v2226
  %2580 = vmatmul.mubr.bf16.gmra.mxu0 %v2225
  %v2581 = vpop.f32.mrf.mxu0
  %v2582 = vadd.f32 %v2485, %v2581
  %v2583 = vpop.f32.mrf.mxu0
  %v2584 = vpop.f32.mrf.mxu0
  %v2585 = vadd.f32 %v2488, %v2584
  %v2586 = vpop.f32.mrf.mxu0
  %2587 = vmatprep.mubr.bf16.mxu0 %v2233
  %2588 = vmatmul.mubr.bf16.gmra.mxu0 %v2232
  %v2589 = vpop.f32.mrf.mxu0
  %v2590 = vadd.f32 %v2493, %v2589
  %v2591 = vpop.f32.mrf.mxu0
  %v2592 = vpop.f32.mrf.mxu0
  %v2593 = vadd.f32 %v2496, %v2592
  %v2594 = vpop.f32.mrf.mxu0
  %2595 = vmatprep.mubr.bf16.mxu0 %v2240
  %2596 = vmatmul.mubr.bf16.gmra.mxu0 %v2239
  %v2597 = vpop.f32.mrf.mxu0
  %v2598 = vadd.f32 %v2501, %v2597
  %v2599 = vpop.f32.mrf.mxu0
  %v2600 = vpop.f32.mrf.mxu0
  %v2601 = vadd.f32 %v2504, %v2600
  %v2602 = vpop.f32.mrf.mxu0
  %2603 = vmatprep.mubr.bf16.mxu0 %v2247
  %2604 = vmatmul.mubr.bf16.gmra.mxu0 %v2246
  %v2605 = vpop.f32.mrf.mxu0
  %v2606 = vadd.f32 %v2509, %v2605
  %v2607 = vpop.f32.mrf.mxu0
  %v2608 = vpop.f32.mrf.mxu0
  %v2609 = vadd.f32 %v2512, %v2608
  %v2610 = vpop.f32.mrf.mxu0
  %2611 = vdwg.mxu0
  %2612 = vmatprep.subr.bf16.mxu0 0
  %2613 = vmatpush1.bf16.msra.mxu0 0
  %2614 = vmatprep.subr.bf16.mxu0 0
  %2615 = vmatpush1.bf16.msra.mxu0 0
  %2616 = vmatprep.subr.bf16.mxu0 0
  %2617 = vmatpush1.bf16.msra.mxu0 0
  %2618 = vmatprep.subr.bf16.mxu0 0
  %2619 = vmatpush1.bf16.msra.mxu0 0
  %2620 = vmatprep.subr.bf16.mxu0 0
  %2621 = vmatpush1.bf16.msra.mxu0 0
  %2622 = vmatprep.subr.bf16.mxu0 0
  %2623 = vmatpush1.bf16.msra.mxu0 0
  %2624 = vmatprep.subr.bf16.mxu0 0
  %2625 = vmatpush1.bf16.msra.mxu0 %v717
  %2626 = vmatprep.subr.bf16.mxu0 0
  %2627 = vmatpush1.bf16.msra.mxu0 %v716
  %2628 = vmatprep.subr.bf16.mxu0 0
  %2629 = vmatpush2.bf16.msra.mxu0 0
  %2630 = vmatprep.subr.bf16.mxu0 0
  %2631 = vmatpush2.bf16.msra.mxu0 0
  %2632 = vmatprep.subr.bf16.mxu0 0
  %2633 = vmatpush2.bf16.msra.mxu0 0
  %2634 = vmatprep.subr.bf16.mxu0 0
  %2635 = vmatpush2.bf16.msra.mxu0 0
  %2636 = vmatprep.subr.bf16.mxu0 0
  %2637 = vmatpush2.bf16.msra.mxu0 0
  %2638 = vmatprep.subr.bf16.mxu0 0
  %2639 = vmatpush2.bf16.msra.mxu0 0
  %2640 = vmatprep.subr.bf16.mxu0 0
  %2641 = vmatpush2.bf16.msra.mxu0 0
  %2642 = vmatprep.subr.bf16.mxu0 0
  %2643 = vmatpush2.bf16.msra.mxu0 0
  %2644 = vmatprep.mubr.bf16.mxu0 0
  %2645 = vmatmul.mubr.bf16.gmra.mxu0 %v2298
  %v2646 = vpop.f32.mrf.mxu0
  %v2647 = vadd.f32 %v2550, %v2646
  %v2648 = vpop.f32.mrf.mxu0
  %v2649 = vpop.f32.mrf.mxu0
  %v2650 = vadd.f32 %v2553, %v2649
  %v2651 = vpop.f32.mrf.mxu0
  %2652 = vmatprep.mubr.bf16.mxu0 0
  %2653 = vmatmul.mubr.bf16.gmra.mxu0 %v2301
  %v2654 = vpop.f32.mrf.mxu0
  %v2655 = vadd.f32 %v2558, %v2654
  %v2656 = vpop.f32.mrf.mxu0
  %v2657 = vpop.f32.mrf.mxu0
  %v2658 = vadd.f32 %v2561, %v2657
  %v2659 = vpop.f32.mrf.mxu0
  %2660 = vmatprep.mubr.bf16.mxu0 0
  %2661 = vmatmul.mubr.bf16.gmra.mxu0 %v2304
  %v2662 = vpop.f32.mrf.mxu0
  %v2663 = vadd.f32 %v2566, %v2662
  %v2664 = vpop.f32.mrf.mxu0
  %v2665 = vpop.f32.mrf.mxu0
  %v2666 = vadd.f32 %v2569, %v2665
  %v2667 = vpop.f32.mrf.mxu0
  %2668 = vmatprep.mubr.bf16.mxu0 0
  %2669 = vmatmul.mubr.bf16.gmra.mxu0 %v2307
  %v2670 = vpop.f32.mrf.mxu0
  %v2671 = vadd.f32 %v2574, %v2670
  %v2672 = vpop.f32.mrf.mxu0
  %v2673 = vpop.f32.mrf.mxu0
  %v2674 = vadd.f32 %v2577, %v2673
  %v2675 = vpop.f32.mrf.mxu0
  %2676 = vmatprep.mubr.bf16.mxu0 0
  %2677 = vmatmul.mubr.bf16.gmra.mxu0 %v2310
  %v2678 = vpop.f32.mrf.mxu0
  %v2679 = vadd.f32 %v2582, %v2678
  %v2680 = vpop.f32.mrf.mxu0
  %v2681 = vpop.f32.mrf.mxu0
  %v2682 = vadd.f32 %v2585, %v2681
  %v2683 = vpop.f32.mrf.mxu0
  %2684 = vmatprep.mubr.bf16.mxu0 0
  %2685 = vmatmul.mubr.bf16.gmra.mxu0 %v2313
  %v2686 = vpop.f32.mrf.mxu0
  %v2687 = vadd.f32 %v2590, %v2686
  %v2688 = vpop.f32.mrf.mxu0
  %v2689 = vpop.f32.mrf.mxu0
  %v2690 = vadd.f32 %v2593, %v2689
  %v2691 = vpop.f32.mrf.mxu0
  %2692 = vmatprep.mubr.bf16.mxu0 0
  %2693 = vmatmul.mubr.bf16.gmra.mxu0 %v2316
  %v2694 = vpop.f32.mrf.mxu0
  %v2695 = vadd.f32 %v2598, %v2694
  %v2696 = vpop.f32.mrf.mxu0
  %v2697 = vpop.f32.mrf.mxu0
  %v2698 = vadd.f32 %v2601, %v2697
  %v2699 = vpop.f32.mrf.mxu0
  %2700 = vmatprep.mubr.bf16.mxu0 0
  %2701 = vmatmul.mubr.bf16.gmra.mxu0 %v2319
  %v2702 = vpop.f32.mrf.mxu0
  %v2703 = vadd.f32 %v2606, %v2702
  %v2704 = vpop.f32.mrf.mxu0
  %v2705 = vpop.f32.mrf.mxu0
  %v2706 = vadd.f32 %v2609, %v2705
  %v2707 = vpop.f32.mrf.mxu0
  %2708 = vdwg.mxu0
  %v2709 = vld [vmem:[%s3] sm:$0xff]
  %v2710 = vld [vmem:[%s3 + $0x8] sm:$0xff]
  %v2711 = vld [vmem:[%s3 + $0x10] sm:$0xff]
  %v2712 = vld [vmem:[%s3 + $0x18] sm:$0xf]
  %v2713 = vld [vmem:[%s3 + $0x1c] sm:$0xff]
  %v2714 = vld [vmem:[%s3 + $0x24] sm:$0xff]
  %v2715 = vld [vmem:[%s3 + $0x2c] sm:$0xff]
  %v2716 = vld [vmem:[%s3 + $0x34] sm:$0xf]
  %v2717 = vld [vmem:[%s3 + $0x38] sm:$0xff]
  %v2718 = vld [vmem:[%s3 + $0x40] sm:$0xff]
  %v2719 = vld [vmem:[%s3 + $0x48] sm:$0xff]
  %v2720 = vld [vmem:[%s3 + $0x50] sm:$0xf]
  %v2721 = vld [vmem:[%s3 + $0x54] sm:$0xff]
  %v2722 = vld [vmem:[%s3 + $0x5c] sm:$0xff]
  %v2723 = vld [vmem:[%s3 + $0x64] sm:$0xff]
  %v2724 = vld [vmem:[%s3 + $0x6c] sm:$0xf]
  %v2725 = vld [vmem:[%s3 + $0x70] sm:$0xff]
  %v2726 = vld [vmem:[%s3 + $0x78] sm:$0xff]
  %v2727 = vld [vmem:[%s3 + $0x80] sm:$0xff]
  %v2728 = vld [vmem:[%s3 + $0x88] sm:$0xf]
  %v2729 = vld [vmem:[%s3 + $0x8c] sm:$0xff]
  %v2730 = vld [vmem:[%s3 + $0x94] sm:$0xff]
  %v2731 = vld [vmem:[%s3 + $0x9c] sm:$0xff]
  %v2732 = vld [vmem:[%s3 + $0xa4] sm:$0xf]
  %v2733 = vld [vmem:[%s3 + $0xa8] sm:$0xff]
  %v2734 = vld [vmem:[%s3 + $0xb0] sm:$0xff]
  %v2735 = vld [vmem:[%s3 + $0xb8] sm:$0xff]
  %v2736 = vld [vmem:[%s3 + $0xc0] sm:$0xf]
  %v2737 = vld [vmem:[%s3 + $0xc4] sm:$0xff]
  %v2738 = vld [vmem:[%s3 + $0xcc] sm:$0xff]
  %v2739 = vld [vmem:[%s3 + $0xd4] sm:$0xff]
  %v2740 = vld [vmem:[%s3 + $0xdc] sm:$0xf]
  %v2741 = vld [vmem:[%s3 + $0xe0] sm:$0xff]
  %v2742 = vld [vmem:[%s3 + $0xe8] sm:$0xff]
  %v2743 = vld [vmem:[%s3 + $0xf0] sm:$0xff]
  %v2744 = vld [vmem:[%s3 + $0xf8] sm:$0xf]
  %v2745 = vld [vmem:[%s3 + $0xfc] sm:$0xff]
  %v2746 = vld [vmem:[%s3 + $0x104] sm:$0xff]
  %v2747 = vld [vmem:[%s3 + $0x10c] sm:$0xff]
  %v2748 = vld [vmem:[%s3 + $0x114] sm:$0xf]
  %v2749 = vld [vmem:[%s3 + $0x118] sm:$0xff]
  %v2750 = vld [vmem:[%s3 + $0x120] sm:$0xff]
  %v2751 = vld [vmem:[%s3 + $0x128] sm:$0xff]
  %v2752 = vld [vmem:[%s3 + $0x130] sm:$0xf]
  %v2753 = vld [vmem:[%s3 + $0x134] sm:$0xff]
  %v2754 = vld [vmem:[%s3 + $0x13c] sm:$0xff]
  %v2755 = vld [vmem:[%s3 + $0x144] sm:$0xff]
  %v2756 = vld [vmem:[%s3 + $0x14c] sm:$0xf]
  %v2757 = vld [vmem:[%s3 + $0x150] sm:$0xff]
  %v2758 = vld [vmem:[%s3 + $0x158] sm:$0xff]
  %v2759 = vld [vmem:[%s3 + $0x160] sm:$0xff]
  %v2760 = vld [vmem:[%s3 + $0x168] sm:$0xf]
  %v2761 = vld [vmem:[%s3 + $0x16c] sm:$0xff]
  %v2762 = vld [vmem:[%s3 + $0x174] sm:$0xff]
  %v2763 = vld [vmem:[%s3 + $0x17c] sm:$0xff]
  %v2764 = vld [vmem:[%s3 + $0x184] sm:$0xf]
  %v2765 = vld [vmem:[%s3 + $0x188] sm:$0xff]
  %v2766 = vld [vmem:[%s3 + $0x190] sm:$0xff]
  %v2767 = vld [vmem:[%s3 + $0x198] sm:$0xff]
  %v2768 = vld [vmem:[%s3 + $0x1a0] sm:$0xf]
  %v2769 = vld [vmem:[%s3 + $0x1a4] sm:$0xff]
  %v2770 = vld [vmem:[%s3 + $0x1ac] sm:$0xff]
  %v2771 = vld [vmem:[%s3 + $0x1b4] sm:$0xff]
  %v2772 = vld [vmem:[%s3 + $0x1bc] sm:$0xf]
  %v2837 = vunpack.c.l.b16 %v2709
  %v2838 = vunpack.c.h.b16 %v2709
  %v2839 = vunpack.c.l.b16 %v2710
  %v2840 = vunpack.c.h.b16 %v2710
  %v2841 = vunpack.c.l.b16 %v2711
  %v2842 = vunpack.c.h.b16 %v2711
  %v2843 = vunpack.c.l.b16 %v2712
  %v2844 = vunpack.c.l.b16 %v2713
  %v2845 = vunpack.c.h.b16 %v2713
  %v2846 = vunpack.c.l.b16 %v2714
  %v2847 = vunpack.c.h.b16 %v2714
  %v2848 = vunpack.c.l.b16 %v2715
  %v2849 = vunpack.c.h.b16 %v2715
  %v2850 = vunpack.c.l.b16 %v2716
  %v2851 = vunpack.c.l.b16 %v2717
  %v2852 = vunpack.c.h.b16 %v2717
  %v2853 = vunpack.c.l.b16 %v2718
  %v2854 = vunpack.c.h.b16 %v2718
  %v2855 = vunpack.c.l.b16 %v2719
  %v2856 = vunpack.c.h.b16 %v2719
  %v2857 = vunpack.c.l.b16 %v2720
  %v2858 = vunpack.c.l.b16 %v2721
  %v2859 = vunpack.c.h.b16 %v2721
  %v2860 = vunpack.c.l.b16 %v2722
  %v2861 = vunpack.c.h.b16 %v2722
  %v2862 = vunpack.c.l.b16 %v2723
  %v2863 = vunpack.c.h.b16 %v2723
  %v2864 = vunpack.c.l.b16 %v2724
  %v2865 = vunpack.c.l.b16 %v2725
  %v2866 = vunpack.c.h.b16 %v2725
  %v2867 = vunpack.c.l.b16 %v2726
  %v2868 = vunpack.c.h.b16 %v2726
  %v2869 = vunpack.c.l.b16 %v2727
  %v2870 = vunpack.c.h.b16 %v2727
  %v2871 = vunpack.c.l.b16 %v2728
  %v2872 = vunpack.c.l.b16 %v2729
  %v2873 = vunpack.c.h.b16 %v2729
  %v2874 = vunpack.c.l.b16 %v2730
  %v2875 = vunpack.c.h.b16 %v2730
  %v2876 = vunpack.c.l.b16 %v2731
  %v2877 = vunpack.c.h.b16 %v2731
  %v2878 = vunpack.c.l.b16 %v2732
  %v2879 = vunpack.c.l.b16 %v2733
  %v2880 = vunpack.c.h.b16 %v2733
  %v2881 = vunpack.c.l.b16 %v2734
  %v2882 = vunpack.c.h.b16 %v2734
  %v2883 = vunpack.c.l.b16 %v2735
  %v2884 = vunpack.c.h.b16 %v2735
  %v2885 = vunpack.c.l.b16 %v2736
  %v2886 = vunpack.c.l.b16 %v2737
  %v2887 = vunpack.c.h.b16 %v2737
  %v2888 = vunpack.c.l.b16 %v2738
  %v2889 = vunpack.c.h.b16 %v2738
  %v2890 = vunpack.c.l.b16 %v2739
  %v2891 = vunpack.c.h.b16 %v2739
  %v2892 = vunpack.c.l.b16 %v2740
  %v2893 = vunpack.c.l.b16 %v2741
  %v2894 = vunpack.c.h.b16 %v2741
  %v2895 = vunpack.c.l.b16 %v2742
  %v2896 = vunpack.c.h.b16 %v2742
  %v2897 = vunpack.c.l.b16 %v2743
  %v2898 = vunpack.c.h.b16 %v2743
  %v2899 = vunpack.c.l.b16 %v2744
  %v2900 = vunpack.c.l.b16 %v2745
  %v2901 = vunpack.c.h.b16 %v2745
  %v2902 = vunpack.c.l.b16 %v2746
  %v2903 = vunpack.c.h.b16 %v2746
  %v2904 = vunpack.c.l.b16 %v2747
  %v2905 = vunpack.c.h.b16 %v2747
  %v2906 = vunpack.c.l.b16 %v2748
  %v2907 = vunpack.c.l.b16 %v2749
  %v2908 = vunpack.c.h.b16 %v2749
  %v2909 = vunpack.c.l.b16 %v2750
  %v2910 = vunpack.c.h.b16 %v2750
  %v2911 = vunpack.c.l.b16 %v2751
  %v2912 = vunpack.c.h.b16 %v2751
  %v2913 = vunpack.c.l.b16 %v2752
  %v2914 = vunpack.c.l.b16 %v2753
  %v2915 = vunpack.c.h.b16 %v2753
  %v2916 = vunpack.c.l.b16 %v2754
  %v2917 = vunpack.c.h.b16 %v2754
  %v2918 = vunpack.c.l.b16 %v2755
  %v2919 = vunpack.c.h.b16 %v2755
  %v2920 = vunpack.c.l.b16 %v2756
  %v2921 = vunpack.c.l.b16 %v2757
  %v2922 = vunpack.c.h.b16 %v2757
  %v2923 = vunpack.c.l.b16 %v2758
  %v2924 = vunpack.c.h.b16 %v2758
  %v2925 = vunpack.c.l.b16 %v2759
  %v2926 = vunpack.c.h.b16 %v2759
  %v2927 = vunpack.c.l.b16 %v2760
  %v2928 = vunpack.c.l.b16 %v2761
  %v2929 = vunpack.c.h.b16 %v2761
  %v2930 = vunpack.c.l.b16 %v2762
  %v2931 = vunpack.c.h.b16 %v2762
  %v2932 = vunpack.c.l.b16 %v2763
  %v2933 = vunpack.c.h.b16 %v2763
  %v2934 = vunpack.c.l.b16 %v2764
  %v2935 = vunpack.c.l.b16 %v2765
  %v2936 = vunpack.c.h.b16 %v2765
  %v2937 = vunpack.c.l.b16 %v2766
  %v2938 = vunpack.c.h.b16 %v2766
  %v2939 = vunpack.c.l.b16 %v2767
  %v2940 = vunpack.c.h.b16 %v2767
  %v2941 = vunpack.c.l.b16 %v2768
  %v2942 = vunpack.c.l.b16 %v2769
  %v2943 = vunpack.c.h.b16 %v2769
  %v2944 = vunpack.c.l.b16 %v2770
  %v2945 = vunpack.c.h.b16 %v2770
  %v2946 = vunpack.c.l.b16 %v2771
  %v2947 = vunpack.c.h.b16 %v2771
  %v2948 = vunpack.c.l.b16 %v2772
  %v2949 = vpack.c.b16 %v2844, %v2837
  %v2950 = vpack.c.b16 %v2845, %v2838
  %v2951 = vpack.c.b16 %v2846, %v2839
  %v2952 = vpack.c.b16 %v2847, %v2840
  %v2953 = vpack.c.b16 %v2848, %v2841
  %v2954 = vpack.c.b16 %v2849, %v2842
  %v2955 = vpack.c.b16 %v2850, %v2843
  %v2956 = vpack.c.b16 %v2858, %v2851
  %v2957 = vpack.c.b16 %v2859, %v2852
  %v2958 = vpack.c.b16 %v2860, %v2853
  %v2959 = vpack.c.b16 %v2861, %v2854
  %v2960 = vpack.c.b16 %v2862, %v2855
  %v2961 = vpack.c.b16 %v2863, %v2856
  %v2962 = vpack.c.b16 %v2864, %v2857
  %v2963 = vpack.c.b16 %v2872, %v2865
  %v2964 = vpack.c.b16 %v2873, %v2866
  %v2965 = vpack.c.b16 %v2874, %v2867
  %v2966 = vpack.c.b16 %v2875, %v2868
  %v2967 = vpack.c.b16 %v2876, %v2869
  %v2968 = vpack.c.b16 %v2877, %v2870
  %v2969 = vpack.c.b16 %v2878, %v2871
  %v2970 = vpack.c.b16 %v2886, %v2879
  %v2971 = vpack.c.b16 %v2887, %v2880
  %v2972 = vpack.c.b16 %v2888, %v2881
  %v2973 = vpack.c.b16 %v2889, %v2882
  %v2974 = vpack.c.b16 %v2890, %v2883
  %v2975 = vpack.c.b16 %v2891, %v2884
  %v2976 = vpack.c.b16 %v2892, %v2885
  %v2977 = vpack.c.b16 %v2900, %v2893
  %v2978 = vpack.c.b16 %v2901, %v2894
  %v2979 = vpack.c.b16 %v2902, %v2895
  %v2980 = vpack.c.b16 %v2903, %v2896
  %v2981 = vpack.c.b16 %v2904, %v2897
  %v2982 = vpack.c.b16 %v2905, %v2898
  %v2983 = vpack.c.b16 %v2906, %v2899
  %v2984 = vpack.c.b16 %v2914, %v2907
  %v2985 = vpack.c.b16 %v2915, %v2908
  %v2986 = vpack.c.b16 %v2916, %v2909
  %v2987 = vpack.c.b16 %v2917, %v2910
  %v2988 = vpack.c.b16 %v2918, %v2911
  %v2989 = vpack.c.b16 %v2919, %v2912
  %v2990 = vpack.c.b16 %v2920, %v2913
  %v2991 = vpack.c.b16 %v2928, %v2921
  %v2992 = vpack.c.b16 %v2929, %v2922
  %v2993 = vpack.c.b16 %v2930, %v2923
  %v2994 = vpack.c.b16 %v2931, %v2924
  %v2995 = vpack.c.b16 %v2932, %v2925
  %v2996 = vpack.c.b16 %v2933, %v2926
  %v2997 = vpack.c.b16 %v2934, %v2927
  %v2998 = vpack.c.b16 %v2942, %v2935
  %v2999 = vpack.c.b16 %v2943, %v2936
  %v3000 = vpack.c.b16 %v2944, %v2937
  %v3001 = vpack.c.b16 %v2945, %v2938
  %v3002 = vpack.c.b16 %v2946, %v2939
  %v3003 = vpack.c.b16 %v2947, %v2940
  %v3004 = vpack.c.b16 %v2948, %v2941
  %v3054 = vsel %vm768, %v2955, 0
  %v3057 = vsel %vm768, %v2962, 0
  %v3060 = vsel %vm768, %v2969, 0
  %v3063 = vsel %vm768, %v2976, 0
  %v3066 = vsel %vm768, %v2983, 0
  %v3069 = vsel %vm768, %v2990, 0
  %v3072 = vsel %vm768, %v2997, 0
  %v3075 = vsel %vm768, %v3004, 0
  %3077 = vmatprep.subr.bf16.mxu0 0
  %3078 = vmatpush1.bf16.msra.mxu0 %v675
  %3079 = vmatprep.subr.bf16.mxu0 0
  %3080 = vmatpush1.bf16.msra.mxu0 %v674
  %3081 = vmatprep.subr.bf16.mxu0 0
  %3082 = vmatpush1.bf16.msra.mxu0 %v673
  %3083 = vmatprep.subr.bf16.mxu0 0
  %3084 = vmatpush1.bf16.msra.mxu0 %v672
  %3085 = vmatprep.subr.bf16.mxu0 0
  %3086 = vmatpush1.bf16.msra.mxu0 %v671
  %3087 = vmatprep.subr.bf16.mxu0 0
  %3088 = vmatpush1.bf16.msra.mxu0 %v670
  %3089 = vmatprep.subr.bf16.mxu0 0
  %3090 = vmatpush1.bf16.msra.mxu0 %v669
  %3091 = vmatprep.subr.bf16.mxu0 0
  %3092 = vmatpush1.bf16.msra.mxu0 %v668
  %3093 = vmatprep.subr.bf16.mxu0 0
  %3094 = vmatpush2.bf16.msra.mxu0 %v683
  %3095 = vmatprep.subr.bf16.mxu0 0
  %3096 = vmatpush2.bf16.msra.mxu0 %v682
  %3097 = vmatprep.subr.bf16.mxu0 0
  %3098 = vmatpush2.bf16.msra.mxu0 %v681
  %3099 = vmatprep.subr.bf16.mxu0 0
  %3100 = vmatpush2.bf16.msra.mxu0 %v680
  %3101 = vmatprep.subr.bf16.mxu0 0
  %3102 = vmatpush2.bf16.msra.mxu0 %v679
  %3103 = vmatprep.subr.bf16.mxu0 0
  %3104 = vmatpush2.bf16.msra.mxu0 %v678
  %3105 = vmatprep.subr.bf16.mxu0 0
  %3106 = vmatpush2.bf16.msra.mxu0 %v677
  %3107 = vmatprep.subr.bf16.mxu0 0
  %3108 = vmatpush2.bf16.msra.mxu0 %v676
  %3109 = vmatprep.mubr.bf16.mxu0 %v2950
  %3110 = vmatmul.mubr.bf16.gmra.mxu0 %v2949
  %v3111 = vpop.f32.mrf.mxu0
  %v3112 = vadd.f32 0.0, %v3111
  %v3113 = vpop.f32.mrf.mxu0
  %v3114 = vpop.f32.mrf.mxu0
  %v3115 = vadd.f32 0.0, %v3114
  %v3116 = vpop.f32.mrf.mxu0
  %3117 = vmatprep.mubr.bf16.mxu0 %v2957
  %3118 = vmatmul.mubr.bf16.gmra.mxu0 %v2956
  %v3119 = vpop.f32.mrf.mxu0
  %v3120 = vadd.f32 0.0, %v3119
  %v3121 = vpop.f32.mrf.mxu0
  %v3122 = vpop.f32.mrf.mxu0
  %v3123 = vadd.f32 0.0, %v3122
  %v3124 = vpop.f32.mrf.mxu0
  %3125 = vmatprep.mubr.bf16.mxu0 %v2964
  %3126 = vmatmul.mubr.bf16.gmra.mxu0 %v2963
  %v3127 = vpop.f32.mrf.mxu0
  %v3128 = vadd.f32 0.0, %v3127
  %v3129 = vpop.f32.mrf.mxu0
  %v3130 = vpop.f32.mrf.mxu0
  %v3131 = vadd.f32 0.0, %v3130
  %v3132 = vpop.f32.mrf.mxu0
  %3133 = vmatprep.mubr.bf16.mxu0 %v2971
  %3134 = vmatmul.mubr.bf16.gmra.mxu0 %v2970
  %v3135 = vpop.f32.mrf.mxu0
  %v3136 = vadd.f32 0.0, %v3135
  %v3137 = vpop.f32.mrf.mxu0
  %v3138 = vpop.f32.mrf.mxu0
  %v3139 = vadd.f32 0.0, %v3138
  %v3140 = vpop.f32.mrf.mxu0
  %3141 = vmatprep.mubr.bf16.mxu0 %v2978
  %3142 = vmatmul.mubr.bf16.gmra.mxu0 %v2977
  %v3143 = vpop.f32.mrf.mxu0
  %v3144 = vadd.f32 0.0, %v3143
  %v3145 = vpop.f32.mrf.mxu0
  %v3146 = vpop.f32.mrf.mxu0
  %v3147 = vadd.f32 0.0, %v3146
  %v3148 = vpop.f32.mrf.mxu0
  %3149 = vmatprep.mubr.bf16.mxu0 %v2985
  %3150 = vmatmul.mubr.bf16.gmra.mxu0 %v2984
  %v3151 = vpop.f32.mrf.mxu0
  %v3152 = vadd.f32 0.0, %v3151
  %v3153 = vpop.f32.mrf.mxu0
  %v3154 = vpop.f32.mrf.mxu0
  %v3155 = vadd.f32 0.0, %v3154
  %v3156 = vpop.f32.mrf.mxu0
  %3157 = vmatprep.mubr.bf16.mxu0 %v2992
  %3158 = vmatmul.mubr.bf16.gmra.mxu0 %v2991
  %v3159 = vpop.f32.mrf.mxu0
  %v3160 = vadd.f32 0.0, %v3159
  %v3161 = vpop.f32.mrf.mxu0
  %v3162 = vpop.f32.mrf.mxu0
  %v3163 = vadd.f32 0.0, %v3162
  %v3164 = vpop.f32.mrf.mxu0
  %3165 = vmatprep.mubr.bf16.mxu0 %v2999
  %3166 = vmatmul.mubr.bf16.gmra.mxu0 %v2998
  %v3167 = vpop.f32.mrf.mxu0
  %v3168 = vadd.f32 0.0, %v3167
  %v3169 = vpop.f32.mrf.mxu0
  %v3170 = vpop.f32.mrf.mxu0
  %v3171 = vadd.f32 0.0, %v3170
  %v3172 = vpop.f32.mrf.mxu0
  %3173 = vdwg.mxu0
  %3174 = vmatprep.subr.bf16.mxu0 0
  %3175 = vmatpush1.bf16.msra.mxu0 %v691
  %3176 = vmatprep.subr.bf16.mxu0 0
  %3177 = vmatpush1.bf16.msra.mxu0 %v690
  %3178 = vmatprep.subr.bf16.mxu0 0
  %3179 = vmatpush1.bf16.msra.mxu0 %v689
  %3180 = vmatprep.subr.bf16.mxu0 0
  %3181 = vmatpush1.bf16.msra.mxu0 %v688
  %3182 = vmatprep.subr.bf16.mxu0 0
  %3183 = vmatpush1.bf16.msra.mxu0 %v687
  %3184 = vmatprep.subr.bf16.mxu0 0
  %3185 = vmatpush1.bf16.msra.mxu0 %v686
  %3186 = vmatprep.subr.bf16.mxu0 0
  %3187 = vmatpush1.bf16.msra.mxu0 %v685
  %3188 = vmatprep.subr.bf16.mxu0 0
  %3189 = vmatpush1.bf16.msra.mxu0 %v684
  %3190 = vmatprep.subr.bf16.mxu0 0
  %3191 = vmatpush2.bf16.msra.mxu0 %v699
  %3192 = vmatprep.subr.bf16.mxu0 0
  %3193 = vmatpush2.bf16.msra.mxu0 %v698
  %3194 = vmatprep.subr.bf16.mxu0 0
  %3195 = vmatpush2.bf16.msra.mxu0 %v697
  %3196 = vmatprep.subr.bf16.mxu0 0
  %3197 = vmatpush2.bf16.msra.mxu0 %v696
  %3198 = vmatprep.subr.bf16.mxu0 0
  %3199 = vmatpush2.bf16.msra.mxu0 %v695
  %3200 = vmatprep.subr.bf16.mxu0 0
  %3201 = vmatpush2.bf16.msra.mxu0 %v694
  %3202 = vmatprep.subr.bf16.mxu0 0
  %3203 = vmatpush2.bf16.msra.mxu0 %v693
  %3204 = vmatprep.subr.bf16.mxu0 0
  %3205 = vmatpush2.bf16.msra.mxu0 %v692
  %3206 = vmatprep.mubr.bf16.mxu0 %v2952
  %3207 = vmatmul.mubr.bf16.gmra.mxu0 %v2951
  %v3208 = vpop.f32.mrf.mxu0
  %v3209 = vadd.f32 %v3112, %v3208
  %v3210 = vpop.f32.mrf.mxu0
  %v3211 = vpop.f32.mrf.mxu0
  %v3212 = vadd.f32 %v3115, %v3211
  %v3213 = vpop.f32.mrf.mxu0
  %3214 = vmatprep.mubr.bf16.mxu0 %v2959
  %3215 = vmatmul.mubr.bf16.gmra.mxu0 %v2958
  %v3216 = vpop.f32.mrf.mxu0
  %v3217 = vadd.f32 %v3120, %v3216
  %v3218 = vpop.f32.mrf.mxu0
  %v3219 = vpop.f32.mrf.mxu0
  %v3220 = vadd.f32 %v3123, %v3219
  %v3221 = vpop.f32.mrf.mxu0
  %3222 = vmatprep.mubr.bf16.mxu0 %v2966
  %3223 = vmatmul.mubr.bf16.gmra.mxu0 %v2965
  %v3224 = vpop.f32.mrf.mxu0
  %v3225 = vadd.f32 %v3128, %v3224
  %v3226 = vpop.f32.mrf.mxu0
  %v3227 = vpop.f32.mrf.mxu0
  %v3228 = vadd.f32 %v3131, %v3227
  %v3229 = vpop.f32.mrf.mxu0
  %3230 = vmatprep.mubr.bf16.mxu0 %v2973
  %3231 = vmatmul.mubr.bf16.gmra.mxu0 %v2972
  %v3232 = vpop.f32.mrf.mxu0
  %v3233 = vadd.f32 %v3136, %v3232
  %v3234 = vpop.f32.mrf.mxu0
  %v3235 = vpop.f32.mrf.mxu0
  %v3236 = vadd.f32 %v3139, %v3235
  %v3237 = vpop.f32.mrf.mxu0
  %3238 = vmatprep.mubr.bf16.mxu0 %v2980
  %3239 = vmatmul.mubr.bf16.gmra.mxu0 %v2979
  %v3240 = vpop.f32.mrf.mxu0
  %v3241 = vadd.f32 %v3144, %v3240
  %v3242 = vpop.f32.mrf.mxu0
  %v3243 = vpop.f32.mrf.mxu0
  %v3244 = vadd.f32 %v3147, %v3243
  %v3245 = vpop.f32.mrf.mxu0
  %3246 = vmatprep.mubr.bf16.mxu0 %v2987
  %3247 = vmatmul.mubr.bf16.gmra.mxu0 %v2986
  %v3248 = vpop.f32.mrf.mxu0
  %v3249 = vadd.f32 %v3152, %v3248
  %v3250 = vpop.f32.mrf.mxu0
  %v3251 = vpop.f32.mrf.mxu0
  %v3252 = vadd.f32 %v3155, %v3251
  %v3253 = vpop.f32.mrf.mxu0
  %3254 = vmatprep.mubr.bf16.mxu0 %v2994
  %3255 = vmatmul.mubr.bf16.gmra.mxu0 %v2993
  %v3256 = vpop.f32.mrf.mxu0
  %v3257 = vadd.f32 %v3160, %v3256
  %v3258 = vpop.f32.mrf.mxu0
  %v3259 = vpop.f32.mrf.mxu0
  %v3260 = vadd.f32 %v3163, %v3259
  %v3261 = vpop.f32.mrf.mxu0
  %3262 = vmatprep.mubr.bf16.mxu0 %v3001
  %3263 = vmatmul.mubr.bf16.gmra.mxu0 %v3000
  %v3264 = vpop.f32.mrf.mxu0
  %v3265 = vadd.f32 %v3168, %v3264
  %v3266 = vpop.f32.mrf.mxu0
  %v3267 = vpop.f32.mrf.mxu0
  %v3268 = vadd.f32 %v3171, %v3267
  %v3269 = vpop.f32.mrf.mxu0
  %3270 = vdwg.mxu0
  %3271 = vmatprep.subr.bf16.mxu0 0
  %3272 = vmatpush1.bf16.msra.mxu0 %v707
  %3273 = vmatprep.subr.bf16.mxu0 0
  %3274 = vmatpush1.bf16.msra.mxu0 %v706
  %3275 = vmatprep.subr.bf16.mxu0 0
  %3276 = vmatpush1.bf16.msra.mxu0 %v705
  %3277 = vmatprep.subr.bf16.mxu0 0
  %3278 = vmatpush1.bf16.msra.mxu0 %v704
  %3279 = vmatprep.subr.bf16.mxu0 0
  %3280 = vmatpush1.bf16.msra.mxu0 %v703
  %3281 = vmatprep.subr.bf16.mxu0 0
  %3282 = vmatpush1.bf16.msra.mxu0 %v702
  %3283 = vmatprep.subr.bf16.mxu0 0
  %3284 = vmatpush1.bf16.msra.mxu0 %v701
  %3285 = vmatprep.subr.bf16.mxu0 0
  %3286 = vmatpush1.bf16.msra.mxu0 %v700
  %3287 = vmatprep.subr.bf16.mxu0 0
  %3288 = vmatpush2.bf16.msra.mxu0 %v715
  %3289 = vmatprep.subr.bf16.mxu0 0
  %3290 = vmatpush2.bf16.msra.mxu0 %v714
  %3291 = vmatprep.subr.bf16.mxu0 0
  %3292 = vmatpush2.bf16.msra.mxu0 %v713
  %3293 = vmatprep.subr.bf16.mxu0 0
  %3294 = vmatpush2.bf16.msra.mxu0 %v712
  %3295 = vmatprep.subr.bf16.mxu0 0
  %3296 = vmatpush2.bf16.msra.mxu0 %v711
  %3297 = vmatprep.subr.bf16.mxu0 0
  %3298 = vmatpush2.bf16.msra.mxu0 %v710
  %3299 = vmatprep.subr.bf16.mxu0 0
  %3300 = vmatpush2.bf16.msra.mxu0 %v709
  %3301 = vmatprep.subr.bf16.mxu0 0
  %3302 = vmatpush2.bf16.msra.mxu0 %v708
  %3303 = vmatprep.mubr.bf16.mxu0 %v2954
  %3304 = vmatmul.mubr.bf16.gmra.mxu0 %v2953
  %v3305 = vpop.f32.mrf.mxu0
  %v3306 = vadd.f32 %v3209, %v3305
  %v3307 = vpop.f32.mrf.mxu0
  %v3308 = vpop.f32.mrf.mxu0
  %v3309 = vadd.f32 %v3212, %v3308
  %v3310 = vpop.f32.mrf.mxu0
  %3311 = vmatprep.mubr.bf16.mxu0 %v2961
  %3312 = vmatmul.mubr.bf16.gmra.mxu0 %v2960
  %v3313 = vpop.f32.mrf.mxu0
  %v3314 = vadd.f32 %v3217, %v3313
  %v3315 = vpop.f32.mrf.mxu0
  %v3316 = vpop.f32.mrf.mxu0
  %v3317 = vadd.f32 %v3220, %v3316
  %v3318 = vpop.f32.mrf.mxu0
  %3319 = vmatprep.mubr.bf16.mxu0 %v2968
  %3320 = vmatmul.mubr.bf16.gmra.mxu0 %v2967
  %v3321 = vpop.f32.mrf.mxu0
  %v3322 = vadd.f32 %v3225, %v3321
  %v3323 = vpop.f32.mrf.mxu0
  %v3324 = vpop.f32.mrf.mxu0
  %v3325 = vadd.f32 %v3228, %v3324
  %v3326 = vpop.f32.mrf.mxu0
  %3327 = vmatprep.mubr.bf16.mxu0 %v2975
  %3328 = vmatmul.mubr.bf16.gmra.mxu0 %v2974
  %v3329 = vpop.f32.mrf.mxu0
  %v3330 = vadd.f32 %v3233, %v3329
  %v3331 = vpop.f32.mrf.mxu0
  %v3332 = vpop.f32.mrf.mxu0
  %v3333 = vadd.f32 %v3236, %v3332
  %v3334 = vpop.f32.mrf.mxu0
  %3335 = vmatprep.mubr.bf16.mxu0 %v2982
  %3336 = vmatmul.mubr.bf16.gmra.mxu0 %v2981
  %v3337 = vpop.f32.mrf.mxu0
  %v3338 = vadd.f32 %v3241, %v3337
  %v3339 = vpop.f32.mrf.mxu0
  %v3340 = vpop.f32.mrf.mxu0
  %v3341 = vadd.f32 %v3244, %v3340
  %v3342 = vpop.f32.mrf.mxu0
  %3343 = vmatprep.mubr.bf16.mxu0 %v2989
  %3344 = vmatmul.mubr.bf16.gmra.mxu0 %v2988
  %v3345 = vpop.f32.mrf.mxu0
  %v3346 = vadd.f32 %v3249, %v3345
  %v3347 = vpop.f32.mrf.mxu0
  %v3348 = vpop.f32.mrf.mxu0
  %v3349 = vadd.f32 %v3252, %v3348
  %v3350 = vpop.f32.mrf.mxu0
  %3351 = vmatprep.mubr.bf16.mxu0 %v2996
  %3352 = vmatmul.mubr.bf16.gmra.mxu0 %v2995
  %v3353 = vpop.f32.mrf.mxu0
  %v3354 = vadd.f32 %v3257, %v3353
  %v3355 = vpop.f32.mrf.mxu0
  %v3356 = vpop.f32.mrf.mxu0
  %v3357 = vadd.f32 %v3260, %v3356
  %v3358 = vpop.f32.mrf.mxu0
  %3359 = vmatprep.mubr.bf16.mxu0 %v3003
  %3360 = vmatmul.mubr.bf16.gmra.mxu0 %v3002
  %v3361 = vpop.f32.mrf.mxu0
  %v3362 = vadd.f32 %v3265, %v3361
  %v3363 = vpop.f32.mrf.mxu0
  %v3364 = vpop.f32.mrf.mxu0
  %v3365 = vadd.f32 %v3268, %v3364
  %v3366 = vpop.f32.mrf.mxu0
  %3367 = vdwg.mxu0
  %3368 = vmatprep.subr.bf16.mxu0 0
  %3369 = vmatpush1.bf16.msra.mxu0 0
  %3370 = vmatprep.subr.bf16.mxu0 0
  %3371 = vmatpush1.bf16.msra.mxu0 0
  %3372 = vmatprep.subr.bf16.mxu0 0
  %3373 = vmatpush1.bf16.msra.mxu0 0
  %3374 = vmatprep.subr.bf16.mxu0 0
  %3375 = vmatpush1.bf16.msra.mxu0 0
  %3376 = vmatprep.subr.bf16.mxu0 0
  %3377 = vmatpush1.bf16.msra.mxu0 0
  %3378 = vmatprep.subr.bf16.mxu0 0
  %3379 = vmatpush1.bf16.msra.mxu0 0
  %3380 = vmatprep.subr.bf16.mxu0 0
  %3381 = vmatpush1.bf16.msra.mxu0 %v717
  %3382 = vmatprep.subr.bf16.mxu0 0
  %3383 = vmatpush1.bf16.msra.mxu0 %v716
  %3384 = vmatprep.subr.bf16.mxu0 0
  %3385 = vmatpush2.bf16.msra.mxu0 0
  %3386 = vmatprep.subr.bf16.mxu0 0
  %3387 = vmatpush2.bf16.msra.mxu0 0
  %3388 = vmatprep.subr.bf16.mxu0 0
  %3389 = vmatpush2.bf16.msra.mxu0 0
  %3390 = vmatprep.subr.bf16.mxu0 0
  %3391 = vmatpush2.bf16.msra.mxu0 0
  %3392 = vmatprep.subr.bf16.mxu0 0
  %3393 = vmatpush2.bf16.msra.mxu0 0
  %3394 = vmatprep.subr.bf16.mxu0 0
  %3395 = vmatpush2.bf16.msra.mxu0 0
  %3396 = vmatprep.subr.bf16.mxu0 0
  %3397 = vmatpush2.bf16.msra.mxu0 0
  %3398 = vmatprep.subr.bf16.mxu0 0
  %3399 = vmatpush2.bf16.msra.mxu0 0
  %3400 = vmatprep.mubr.bf16.mxu0 0
  %3401 = vmatmul.mubr.bf16.gmra.mxu0 %v3054
  %v3402 = vpop.f32.mrf.mxu0
  %v3403 = vadd.f32 %v3306, %v3402
  %v3404 = vpop.f32.mrf.mxu0
  %v3405 = vpop.f32.mrf.mxu0
  %v3406 = vadd.f32 %v3309, %v3405
  %v3407 = vpop.f32.mrf.mxu0
  %3408 = vmatprep.mubr.bf16.mxu0 0
  %3409 = vmatmul.mubr.bf16.gmra.mxu0 %v3057
  %v3410 = vpop.f32.mrf.mxu0
  %v3411 = vadd.f32 %v3314, %v3410
  %v3412 = vpop.f32.mrf.mxu0
  %v3413 = vpop.f32.mrf.mxu0
  %v3414 = vadd.f32 %v3317, %v3413
  %v3415 = vpop.f32.mrf.mxu0
  %3416 = vmatprep.mubr.bf16.mxu0 0
  %3417 = vmatmul.mubr.bf16.gmra.mxu0 %v3060
  %v3418 = vpop.f32.mrf.mxu0
  %v3419 = vadd.f32 %v3322, %v3418
  %v3420 = vpop.f32.mrf.mxu0
  %v3421 = vpop.f32.mrf.mxu0
  %v3422 = vadd.f32 %v3325, %v3421
  %v3423 = vpop.f32.mrf.mxu0
  %3424 = vmatprep.mubr.bf16.mxu0 0
  %3425 = vmatmul.mubr.bf16.gmra.mxu0 %v3063
  %v3426 = vpop.f32.mrf.mxu0
  %v3427 = vadd.f32 %v3330, %v3426
  %v3428 = vpop.f32.mrf.mxu0
  %v3429 = vpop.f32.mrf.mxu0
  %v3430 = vadd.f32 %v3333, %v3429
  %v3431 = vpop.f32.mrf.mxu0
  %3432 = vmatprep.mubr.bf16.mxu0 0
  %3433 = vmatmul.mubr.bf16.gmra.mxu0 %v3066
  %v3434 = vpop.f32.mrf.mxu0
  %v3435 = vadd.f32 %v3338, %v3434
  %v3436 = vpop.f32.mrf.mxu0
  %v3437 = vpop.f32.mrf.mxu0
  %v3438 = vadd.f32 %v3341, %v3437
  %v3439 = vpop.f32.mrf.mxu0
  %3440 = vmatprep.mubr.bf16.mxu0 0
  %3441 = vmatmul.mubr.bf16.gmra.mxu0 %v3069
  %v3442 = vpop.f32.mrf.mxu0
  %v3443 = vadd.f32 %v3346, %v3442
  %v3444 = vpop.f32.mrf.mxu0
  %v3445 = vpop.f32.mrf.mxu0
  %v3446 = vadd.f32 %v3349, %v3445
  %v3447 = vpop.f32.mrf.mxu0
  %3448 = vmatprep.mubr.bf16.mxu0 0
  %3449 = vmatmul.mubr.bf16.gmra.mxu0 %v3072
  %v3450 = vpop.f32.mrf.mxu0
  %v3451 = vadd.f32 %v3354, %v3450
  %v3452 = vpop.f32.mrf.mxu0
  %v3453 = vpop.f32.mrf.mxu0
  %v3454 = vadd.f32 %v3357, %v3453
  %v3455 = vpop.f32.mrf.mxu0
  %3456 = vmatprep.mubr.bf16.mxu0 0
  %3457 = vmatmul.mubr.bf16.gmra.mxu0 %v3075
  %v3458 = vpop.f32.mrf.mxu0
  %v3459 = vadd.f32 %v3362, %v3458
  %v3460 = vpop.f32.mrf.mxu0
  %v3461 = vpop.f32.mrf.mxu0
  %v3462 = vadd.f32 %v3365, %v3461
  %v3463 = vpop.f32.mrf.mxu0
  %3464 = vdwg.mxu0
  %v3465 = vmax.f32 %v2647, %v3403
  %v3466 = vmax.f32 %v2650, %v3406
  %v3467 = vmax.f32 %v2655, %v3411
  %v3468 = vmax.f32 %v2658, %v3414
  %v3469 = vmax.f32 %v2663, %v3419
  %v3470 = vmax.f32 %v2666, %v3422
  %v3471 = vmax.f32 %v2671, %v3427
  %v3472 = vmax.f32 %v2674, %v3430
  %v3473 = vmax.f32 %v2679, %v3435
  %v3474 = vmax.f32 %v2682, %v3438
  %v3475 = vmax.f32 %v2687, %v3443
  %v3476 = vmax.f32 %v2690, %v3446
  %v3477 = vmax.f32 %v2695, %v3451
  %v3478 = vmax.f32 %v2698, %v3454
  %v3479 = vmax.f32 %v2703, %v3459
  %v3480 = vmax.f32 %v2706, %v3462
  %v3481 = vmax.f32 %v1937, %v3465
  %v3482 = vmax.f32 %v1938, %v3466
  %v3483 = vmax.f32 %v1939, %v3467
  %v3484 = vmax.f32 %v1940, %v3468
  %v3485 = vmax.f32 %v1941, %v3469
  %v3486 = vmax.f32 %v1942, %v3470
  %v3487 = vmax.f32 %v1943, %v3471
  %v3488 = vmax.f32 %v1944, %v3472
  %v3489 = vmax.f32 %v1945, %v3473
  %v3490 = vmax.f32 %v1946, %v3474
  %v3491 = vmax.f32 %v1947, %v3475
  %v3492 = vmax.f32 %v1948, %v3476
  %v3493 = vmax.f32 %v1949, %v3477
  %v3494 = vmax.f32 %v1950, %v3478
  %v3495 = vmax.f32 %v1951, %v3479
  %v3496 = vmax.f32 %v1952, %v3480
  %v3497 = vld [vmem:[%s5] sm:$0x1]
  %v3499 = vlaneseq
  %v3500 = vshrl.u32 %v3499, 7
  %v3501 = vsub.s32 0, %v3500
  %v3502 = vrot.slane %v3497, %v3501
  %v3504 = vadd.f32 %v3481, %v3502
  %v3505 = vadd.f32 %v3482, %v3502
  %v3506 = vadd.f32 %v3483, %v3502
  %v3507 = vadd.f32 %v3484, %v3502
  %v3508 = vadd.f32 %v3485, %v3502
  %v3509 = vadd.f32 %v3486, %v3502
  %v3510 = vadd.f32 %v3487, %v3502
  %v3511 = vadd.f32 %v3488, %v3502
  %v3512 = vadd.f32 %v3489, %v3502
  %v3513 = vadd.f32 %v3490, %v3502
  %v3514 = vadd.f32 %v3491, %v3502
  %v3515 = vadd.f32 %v3492, %v3502
  %v3516 = vadd.f32 %v3493, %v3502
  %v3517 = vadd.f32 %v3494, %v3502
  %v3518 = vadd.f32 %v3495, %v3502
  %v3519 = vadd.f32 %v3496, %v3502
  %v3520 = vpack.c.bf16 %v3505, %v3504
  %v3521 = vpack.c.bf16 %v3507, %v3506
  %v3522 = vpack.c.bf16 %v3509, %v3508
  %v3523 = vpack.c.bf16 %v3511, %v3510
  %v3524 = vpack.c.bf16 %v3513, %v3512
  %v3525 = vpack.c.bf16 %v3515, %v3514
  %v3526 = vpack.c.bf16 %v3517, %v3516
  %v3527 = vpack.c.bf16 %v3519, %v3518
  %v3536 = vunpack.c.l.b16 %v3520
  %v3537 = vunpack.c.h.b16 %v3520
  %v3538 = vunpack.c.l.b16 %v3521
  %v3539 = vunpack.c.h.b16 %v3521
  %v3540 = vunpack.c.l.b16 %v3522
  %v3541 = vunpack.c.h.b16 %v3522
  %v3542 = vunpack.c.l.b16 %v3523
  %v3543 = vunpack.c.h.b16 %v3523
  %v3544 = vunpack.c.l.b16 %v3524
  %v3545 = vunpack.c.h.b16 %v3524
  %v3546 = vunpack.c.l.b16 %v3525
  %v3547 = vunpack.c.h.b16 %v3525
  %v3548 = vunpack.c.l.b16 %v3526
  %v3549 = vunpack.c.h.b16 %v3526
  %v3550 = vunpack.c.l.b16 %v3527
  %v3551 = vunpack.c.h.b16 %v3527
  %v3552 = vpack.c.b16 %v3536, %v3536
  %v3553 = vpack.c.b16 %v3537, %v3537
  %v3554 = vpack.c.b16 %v3538, %v3538
  %v3555 = vpack.c.b16 %v3539, %v3539
  %v3556 = vpack.c.b16 %v3540, %v3540
  %v3557 = vpack.c.b16 %v3541, %v3541
  %v3558 = vpack.c.b16 %v3542, %v3542
  %v3559 = vpack.c.b16 %v3543, %v3543
  %v3560 = vpack.c.b16 %v3544, %v3544
  %v3561 = vpack.c.b16 %v3545, %v3545
  %v3562 = vpack.c.b16 %v3546, %v3546
  %v3563 = vpack.c.b16 %v3547, %v3547
  %v3564 = vpack.c.b16 %v3548, %v3548
  %v3565 = vpack.c.b16 %v3549, %v3549
  %v3566 = vpack.c.b16 %v3550, %v3550
  %v3567 = vpack.c.b16 %v3551, %v3551
  %vm3584 = vcmask 257024
  %3585 = vst.msk [vmem:[%s6] sm:$0xf] %vm3584, %v3552
  %3586 = vst.msk [vmem:[%s6 + $0x4] sm:$0xf] %vm3584, %v3553
  %3587 = vst.msk [vmem:[%s6 + $0x8] sm:$0xf] %vm3584, %v3554
  %3588 = vst.msk [vmem:[%s6 + $0xc] sm:$0xf] %vm3584, %v3555
  %3589 = vst.msk [vmem:[%s6 + $0x10] sm:$0xf] %vm3584, %v3556
  %3590 = vst.msk [vmem:[%s6 + $0x14] sm:$0xf] %vm3584, %v3557
  %3591 = vst.msk [vmem:[%s6 + $0x18] sm:$0xf] %vm3584, %v3558
  %3592 = vst.msk [vmem:[%s6 + $0x1c] sm:$0xf] %vm3584, %v3559
  %3593 = vst.msk [vmem:[%s6 + $0x20] sm:$0xf] %vm3584, %v3560
  %3594 = vst.msk [vmem:[%s6 + $0x24] sm:$0xf] %vm3584, %v3561
  %3595 = vst.msk [vmem:[%s6 + $0x28] sm:$0xf] %vm3584, %v3562
  %3596 = vst.msk [vmem:[%s6 + $0x2c] sm:$0xf] %vm3584, %v3563
  %3597 = vst.msk [vmem:[%s6 + $0x30] sm:$0xf] %vm3584, %v3564
  %3598 = vst.msk [vmem:[%s6 + $0x34] sm:$0xf] %vm3584, %v3565
  %3599 = vst.msk [vmem:[%s6 + $0x38] sm:$0xf] %vm3584, %v3566
  %3600 = vst.msk [vmem:[%s6 + $0x3c] sm:$0xf] %vm3584, %v3567
  // Predicated region
  $region26: #{hgl_forward.5} parent=0 // pred_check
    _
  $region27: #{hgl_forward.5} parent=0 // pred_check_branch
    %3602 = sbr.rel (0) target = $region29
  $region28: #{hgl_forward.5} parent=0 // pred_region
    _
  $region29: #{hgl_forward.5} parent=0 // pred_fallthru
    _
  // Predicated region
  $region30: #{hgl_forward.5} parent=0 // pred_check
    _
  $region31: #{hgl_forward.5} parent=0 // pred_check_branch
    %3604 = sbr.rel (0) target = $region33
  $region32: #{hgl_forward.5} parent=0 // pred_region
    _
  $region33: #{hgl_forward.5} parent=0 // pred_fallthru
    _

// kernel: hgl_forward.6
$region0: #{hgl_forward.6}
  #allocation0 [shape = 'u32[]', space=smem, size = 0x4, offset = 0x4, fixed_abs, tag = 'smem constant byte address 0x4 - core index']
  #allocation1 [shape = 'u32[144,128]{1,0:T(1,128)}', space=vmem, size = 0x12000, scoped, tag = 'internal scratch']
  %s0 = inlined_call_operand.vmem [shape: bf16[32,800], index: 0, kind: input, shape index: {}]
  %s1 = inlined_call_operand.vmem [shape: bf16[32,800], index: 1, kind: input, shape index: {}]
  %s2 = inlined_call_operand.vmem [shape: bf16[32,800], index: 2, kind: input, shape index: {}]
  %s3 = inlined_call_operand.vmem [shape: bf16[32,800], index: 3, kind: input, shape index: {}]
  %s4 = inlined_call_operand.vmem [shape: bf16[800,64], index: 4, kind: input, shape index: {}]
  %s5 = inlined_call_operand.vmem [shape: f32[1,64], index: 5, kind: input, shape index: {}]
  %s6 = inlined_call_operand.vmem [shape: bf16[32,64], index: 6, kind: output, shape index: {}]
  %s7 = sld [smem:[#allocation0]]
  $region34: #{hgl_forward.6} parent=0
    _
  %s9 = ssub.s32 1, %s7
  %s10 = scalar_select 0, %s9, %s7
  // Predicated region
  $region2: #{hgl_forward.6} parent=0 // pred_check
    _
  $region3: #{hgl_forward.6} parent=0 // pred_check_branch
    %12 = sbr.rel (0) target = $region5
  $region4: #{hgl_forward.6} parent=0 // pred_region
    _
  $region5: #{hgl_forward.6} parent=0 // pred_fallthru
    _
  // Predicated region
  $region6: #{hgl_forward.6} parent=0 // pred_check
    _
  $region7: #{hgl_forward.6} parent=0 // pred_check_branch
    %14 = sbr.rel (0) target = $region9
  $region8: #{hgl_forward.6} parent=0 // pred_region
    _
  $region9: #{hgl_forward.6} parent=0 // pred_fallthru
    _
  // Predicated region
  $region10: #{hgl_forward.6} parent=0 // pred_check
    _
  $region11: #{hgl_forward.6} parent=0 // pred_check_branch
    %16 = sbr.rel (0) target = $region13
  $region12: #{hgl_forward.6} parent=0 // pred_region
    _
  $region13: #{hgl_forward.6} parent=0 // pred_fallthru
    _
  // Predicated region
  $region14: #{hgl_forward.6} parent=0 // pred_check
    _
  $region15: #{hgl_forward.6} parent=0 // pred_check_branch
    %18 = sbr.rel (0) target = $region17
  $region16: #{hgl_forward.6} parent=0 // pred_region
    _
  $region17: #{hgl_forward.6} parent=0 // pred_fallthru
    _
  // Predicated region
  $region18: #{hgl_forward.6} parent=0 // pred_check
    _
  $region19: #{hgl_forward.6} parent=0 // pred_check_branch
    %20 = sbr.rel (0) target = $region21
  $region20: #{hgl_forward.6} parent=0 // pred_region
    _
  $region21: #{hgl_forward.6} parent=0 // pred_fallthru
    _
  // Predicated region
  $region22: #{hgl_forward.6} parent=0 // pred_check
    _
  $region23: #{hgl_forward.6} parent=0 // pred_check_branch
    %22 = sbr.rel (0) target = $region25
  $region24: #{hgl_forward.6} parent=0 // pred_region
    _
  $region25: #{hgl_forward.6} parent=0 // pred_fallthru
    _
  %v24 = vld [vmem:[%s4] sm:$0xf]
  %v25 = vld [vmem:[%s4 + $0x4] sm:$0xf]
  %v26 = vld [vmem:[%s4 + $0x8] sm:$0xf]
  %v27 = vld [vmem:[%s4 + $0xc] sm:$0xf]
  %v28 = vld [vmem:[%s4 + $0x10] sm:$0xf]
  %v29 = vld [vmem:[%s4 + $0x14] sm:$0xf]
  %v30 = vld [vmem:[%s4 + $0x18] sm:$0xf]
  %v31 = vld [vmem:[%s4 + $0x1c] sm:$0xf]
  %v32 = vld [vmem:[%s4 + $0x20] sm:$0xf]
  %v33 = vld [vmem:[%s4 + $0x24] sm:$0xf]
  %v34 = vld [vmem:[%s4 + $0x28] sm:$0xf]
  %v35 = vld [vmem:[%s4 + $0x2c] sm:$0xf]
  %v36 = vld [vmem:[%s4 + $0x30] sm:$0xf]
  %v37 = vld [vmem:[%s4 + $0x34] sm:$0xf]
  %v38 = vld [vmem:[%s4 + $0x38] sm:$0xf]
  %v39 = vld [vmem:[%s4 + $0x3c] sm:$0xf]
  %v40 = vld [vmem:[%s4 + $0x40] sm:$0xf]
  %v41 = vld [vmem:[%s4 + $0x44] sm:$0xf]
  %v42 = vld [vmem:[%s4 + $0x48] sm:$0xf]
  %v43 = vld [vmem:[%s4 + $0x4c] sm:$0xf]
  %v44 = vld [vmem:[%s4 + $0x50] sm:$0xf]
  %v45 = vld [vmem:[%s4 + $0x54] sm:$0xf]
  %v46 = vld [vmem:[%s4 + $0x58] sm:$0xf]
  %v47 = vld [vmem:[%s4 + $0x5c] sm:$0xf]
  %v48 = vld [vmem:[%s4 + $0x60] sm:$0xf]
  %v49 = vld [vmem:[%s4 + $0x64] sm:$0xf]
  %v50 = vld [vmem:[%s4 + $0x68] sm:$0xf]
  %v51 = vld [vmem:[%s4 + $0x6c] sm:$0xf]
  %v52 = vld [vmem:[%s4 + $0x70] sm:$0xf]
  %v53 = vld [vmem:[%s4 + $0x74] sm:$0xf]
  %v54 = vld [vmem:[%s4 + $0x78] sm:$0xf]
  %v55 = vld [vmem:[%s4 + $0x7c] sm:$0xf]
  %v56 = vld [vmem:[%s4 + $0x80] sm:$0xf]
  %v57 = vld [vmem:[%s4 + $0x84] sm:$0xf]
  %v58 = vld [vmem:[%s4 + $0x88] sm:$0xf]
  %v59 = vld [vmem:[%s4 + $0x8c] sm:$0xf]
  %v60 = vld [vmem:[%s4 + $0x90] sm:$0xf]
  %v61 = vld [vmem:[%s4 + $0x94] sm:$0xf]
  %v62 = vld [vmem:[%s4 + $0x98] sm:$0xf]
  %v63 = vld [vmem:[%s4 + $0x9c] sm:$0xf]
  %v64 = vld [vmem:[%s4 + $0xa0] sm:$0xf]
  %v65 = vld [vmem:[%s4 + $0xa4] sm:$0xf]
  %v66 = vld [vmem:[%s4 + $0xa8] sm:$0xf]
  %v67 = vld [vmem:[%s4 + $0xac] sm:$0xf]
  %v68 = vld [vmem:[%s4 + $0xb0] sm:$0xf]
  %v69 = vld [vmem:[%s4 + $0xb4] sm:$0xf]
  %v70 = vld [vmem:[%s4 + $0xb8] sm:$0xf]
  %v71 = vld [vmem:[%s4 + $0xbc] sm:$0xf]
  %v72 = vld [vmem:[%s4 + $0xc0] sm:$0xf]
  %v73 = vld [vmem:[%s4 + $0xc4] sm:$0xf]
  %v74 = vld [vmem:[%s4 + $0xc8] sm:$0xf]
  %v75 = vld [vmem:[%s4 + $0xcc] sm:$0xf]
  %v76 = vld [vmem:[%s4 + $0xd0] sm:$0xf]
  %v77 = vld [vmem:[%s4 + $0xd4] sm:$0xf]
  %v78 = vld [vmem:[%s4 + $0xd8] sm:$0xf]
  %v79 = vld [vmem:[%s4 + $0xdc] sm:$0xf]
  %v80 = vld [vmem:[%s4 + $0xe0] sm:$0xf]
  %v81 = vld [vmem:[%s4 + $0xe4] sm:$0xf]
  %v82 = vld [vmem:[%s4 + $0xe8] sm:$0xf]
  %v83 = vld [vmem:[%s4 + $0xec] sm:$0xf]
  %v84 = vld [vmem:[%s4 + $0xf0] sm:$0xf]
  %v85 = vld [vmem:[%s4 + $0xf4] sm:$0xf]
  %v86 = vld [vmem:[%s4 + $0xf8] sm:$0xf]
  %v87 = vld [vmem:[%s4 + $0xfc] sm:$0xf]
  %v88 = vld [vmem:[%s4 + $0x100] sm:$0xf]
  %v89 = vld [vmem:[%s4 + $0x104] sm:$0xf]
  %v90 = vld [vmem:[%s4 + $0x108] sm:$0xf]
  %v91 = vld [vmem:[%s4 + $0x10c] sm:$0xf]
  %v92 = vld [vmem:[%s4 + $0x110] sm:$0xf]
  %v93 = vld [vmem:[%s4 + $0x114] sm:$0xf]
  %v94 = vld [vmem:[%s4 + $0x118] sm:$0xf]
  %v95 = vld [vmem:[%s4 + $0x11c] sm:$0xf]
  %v96 = vld [vmem:[%s4 + $0x120] sm:$0xf]
  %v97 = vld [vmem:[%s4 + $0x124] sm:$0xf]
  %v98 = vld [vmem:[%s4 + $0x128] sm:$0xf]
  %v99 = vld [vmem:[%s4 + $0x12c] sm:$0xf]
  %v100 = vld [vmem:[%s4 + $0x130] sm:$0xf]
  %v101 = vld [vmem:[%s4 + $0x134] sm:$0xf]
  %v102 = vld [vmem:[%s4 + $0x138] sm:$0xf]
  %v103 = vld [vmem:[%s4 + $0x13c] sm:$0xf]
  %v104 = vld [vmem:[%s4 + $0x140] sm:$0xf]
  %v105 = vld [vmem:[%s4 + $0x144] sm:$0xf]
  %v106 = vld [vmem:[%s4 + $0x148] sm:$0xf]
  %v107 = vld [vmem:[%s4 + $0x14c] sm:$0xf]
  %v108 = vld [vmem:[%s4 + $0x150] sm:$0xf]
  %v109 = vld [vmem:[%s4 + $0x154] sm:$0xf]
  %v110 = vld [vmem:[%s4 + $0x158] sm:$0xf]
  %v111 = vld [vmem:[%s4 + $0x15c] sm:$0xf]
  %v112 = vld [vmem:[%s4 + $0x160] sm:$0xf]
  %v113 = vld [vmem:[%s4 + $0x164] sm:$0xf]
  %v114 = vld [vmem:[%s4 + $0x168] sm:$0xf]
  %v115 = vld [vmem:[%s4 + $0x16c] sm:$0xf]
  %v116 = vld [vmem:[%s4 + $0x170] sm:$0xf]
  %v117 = vld [vmem:[%s4 + $0x174] sm:$0xf]
  %v118 = vld [vmem:[%s4 + $0x178] sm:$0xf]
  %v119 = vld [vmem:[%s4 + $0x17c] sm:$0xf]
  %v120 = vld [vmem:[%s4 + $0x180] sm:$0xf]
  %v121 = vld [vmem:[%s4 + $0x184] sm:$0xf]
  %v122 = vld [vmem:[%s4 + $0x188] sm:$0xf]
  %v123 = vld [vmem:[%s4 + $0x18c] sm:$0xf]
  %v124 = vld [vmem:[%s0] sm:$0xff]
  %v125 = vld [vmem:[%s0 + $0x8] sm:$0xff]
  %v126 = vld [vmem:[%s0 + $0x10] sm:$0xff]
  %v127 = vld [vmem:[%s0 + $0x18] sm:$0xf]
  %v128 = vld [vmem:[%s0 + $0x1c] sm:$0xff]
  %v129 = vld [vmem:[%s0 + $0x24] sm:$0xff]
  %v130 = vld [vmem:[%s0 + $0x2c] sm:$0xff]
  %v131 = vld [vmem:[%s0 + $0x34] sm:$0xf]
  %v132 = vld [vmem:[%s0 + $0x38] sm:$0xff]
  %v133 = vld [vmem:[%s0 + $0x40] sm:$0xff]
  %v134 = vld [vmem:[%s0 + $0x48] sm:$0xff]
  %v135 = vld [vmem:[%s0 + $0x50] sm:$0xf]
  %v136 = vld [vmem:[%s0 + $0x54] sm:$0xff]
  %v137 = vld [vmem:[%s0 + $0x5c] sm:$0xff]
  %v138 = vld [vmem:[%s0 + $0x64] sm:$0xff]
  %v139 = vld [vmem:[%s0 + $0x6c] sm:$0xf]
  %v156 = vunpack.c.l.b16 %v124
  %v157 = vunpack.c.h.b16 %v124
  %v158 = vunpack.c.l.b16 %v125
  %v159 = vunpack.c.h.b16 %v125
  %v160 = vunpack.c.l.b16 %v126
  %v161 = vunpack.c.h.b16 %v126
  %v162 = vunpack.c.l.b16 %v127
  %v163 = vunpack.c.l.b16 %v128
  %v164 = vunpack.c.h.b16 %v128
  %v165 = vunpack.c.l.b16 %v129
  %v166 = vunpack.c.h.b16 %v129
  %v167 = vunpack.c.l.b16 %v130
  %v168 = vunpack.c.h.b16 %v130
  %v169 = vunpack.c.l.b16 %v131
  %v170 = vunpack.c.l.b16 %v132
  %v171 = vunpack.c.h.b16 %v132
  %v172 = vunpack.c.l.b16 %v133
  %v173 = vunpack.c.h.b16 %v133
  %v174 = vunpack.c.l.b16 %v134
  %v175 = vunpack.c.h.b16 %v134
  %v176 = vunpack.c.l.b16 %v135
  %v177 = vunpack.c.l.b16 %v136
  %v178 = vunpack.c.h.b16 %v136
  %v179 = vunpack.c.l.b16 %v137
  %v180 = vunpack.c.h.b16 %v137
  %v181 = vunpack.c.l.b16 %v138
  %v182 = vunpack.c.h.b16 %v138
  %v183 = vunpack.c.l.b16 %v139
  %v184 = vpack.c.b16 %v163, %v156
  %v185 = vpack.c.b16 %v164, %v157
  %v186 = vpack.c.b16 %v165, %v158
  %v187 = vpack.c.b16 %v166, %v159
  %v188 = vpack.c.b16 %v167, %v160
  %v189 = vpack.c.b16 %v168, %v161
  %v190 = vpack.c.b16 %v169, %v162
  %v191 = vpack.c.b16 %v177, %v170
  %v192 = vpack.c.b16 %v178, %v171
  %v193 = vpack.c.b16 %v179, %v172
  %v194 = vpack.c.b16 %v180, %v173
  %v195 = vpack.c.b16 %v181, %v174
  %v196 = vpack.c.b16 %v182, %v175
  %v197 = vpack.c.b16 %v183, %v176
  %v310 = vunpack.c.l.b16 %v24
  %v311 = vunpack.c.l.b16 %v25
  %v312 = vunpack.c.l.b16 %v26
  %v313 = vunpack.c.l.b16 %v27
  %v314 = vunpack.c.l.b16 %v28
  %v315 = vunpack.c.l.b16 %v29
  %v316 = vunpack.c.l.b16 %v30
  %v317 = vunpack.c.l.b16 %v31
  %v318 = vunpack.c.l.b16 %v32
  %v319 = vunpack.c.l.b16 %v33
  %v320 = vunpack.c.l.b16 %v34
  %v321 = vunpack.c.l.b16 %v35
  %v322 = vunpack.c.l.b16 %v36
  %v323 = vunpack.c.l.b16 %v37
  %v324 = vunpack.c.l.b16 %v38
  %v325 = vunpack.c.l.b16 %v39
  %v326 = vunpack.c.l.b16 %v40
  %v327 = vunpack.c.l.b16 %v41
  %v328 = vunpack.c.l.b16 %v42
  %v329 = vunpack.c.l.b16 %v43
  %v330 = vunpack.c.l.b16 %v44
  %v331 = vunpack.c.l.b16 %v45
  %v332 = vunpack.c.l.b16 %v46
  %v333 = vunpack.c.l.b16 %v47
  %v334 = vunpack.c.l.b16 %v48
  %v335 = vunpack.c.l.b16 %v49
  %v336 = vunpack.c.l.b16 %v50
  %v337 = vunpack.c.l.b16 %v51
  %v338 = vunpack.c.l.b16 %v52
  %v339 = vunpack.c.l.b16 %v53
  %v340 = vunpack.c.l.b16 %v54
  %v341 = vunpack.c.l.b16 %v55
  %v342 = vunpack.c.l.b16 %v56
  %v343 = vunpack.c.l.b16 %v57
  %v344 = vunpack.c.l.b16 %v58
  %v345 = vunpack.c.l.b16 %v59
  %v346 = vunpack.c.l.b16 %v60
  %v347 = vunpack.c.l.b16 %v61
  %v348 = vunpack.c.l.b16 %v62
  %v349 = vunpack.c.l.b16 %v63
  %v350 = vunpack.c.l.b16 %v64
  %v351 = vunpack.c.l.b16 %v65
  %v352 = vunpack.c.l.b16 %v66
  %v353 = vunpack.c.l.b16 %v67
  %v354 = vunpack.c.l.b16 %v68
  %v355 = vunpack.c.l.b16 %v69
  %v356 = vunpack.c.l.b16 %v70
  %v357 = vunpack.c.l.b16 %v71
  %v358 = vunpack.c.l.b16 %v72
  %v359 = vunpack.c.l.b16 %v73
  %v360 = vunpack.c.l.b16 %v74
  %v361 = vunpack.c.l.b16 %v75
  %v362 = vunpack.c.l.b16 %v76
  %v363 = vunpack.c.l.b16 %v77
  %v364 = vunpack.c.l.b16 %v78
  %v365 = vunpack.c.l.b16 %v79
  %v366 = vunpack.c.l.b16 %v80
  %v367 = vunpack.c.l.b16 %v81
  %v368 = vunpack.c.l.b16 %v82
  %v369 = vunpack.c.l.b16 %v83
  %v370 = vunpack.c.l.b16 %v84
  %v371 = vunpack.c.l.b16 %v85
  %v372 = vunpack.c.l.b16 %v86
  %v373 = vunpack.c.l.b16 %v87
  %v374 = vunpack.c.l.b16 %v88
  %v375 = vunpack.c.l.b16 %v89
  %v376 = vunpack.c.l.b16 %v90
  %v377 = vunpack.c.l.b16 %v91
  %v378 = vunpack.c.l.b16 %v92
  %v379 = vunpack.c.l.b16 %v93
  %v380 = vunpack.c.l.b16 %v94
  %v381 = vunpack.c.l.b16 %v95
  %v382 = vunpack.c.l.b16 %v96
  %v383 = vunpack.c.l.b16 %v97
  %v384 = vunpack.c.l.b16 %v98
  %v385 = vunpack.c.l.b16 %v99
  %v386 = vunpack.c.l.b16 %v100
  %v387 = vunpack.c.l.b16 %v101
  %v388 = vunpack.c.l.b16 %v102
  %v389 = vunpack.c.l.b16 %v103
  %v390 = vunpack.c.l.b16 %v104
  %v391 = vunpack.c.l.b16 %v105
  %v392 = vunpack.c.l.b16 %v106
  %v393 = vunpack.c.l.b16 %v107
  %v394 = vunpack.c.l.b16 %v108
  %v395 = vunpack.c.l.b16 %v109
  %v396 = vunpack.c.l.b16 %v110
  %v397 = vunpack.c.l.b16 %v111
  %v398 = vunpack.c.l.b16 %v112
  %v399 = vunpack.c.l.b16 %v113
  %v400 = vunpack.c.l.b16 %v114
  %v401 = vunpack.c.l.b16 %v115
  %v402 = vunpack.c.l.b16 %v116
  %v403 = vunpack.c.l.b16 %v117
  %v404 = vunpack.c.l.b16 %v118
  %v405 = vunpack.c.l.b16 %v119
  %v406 = vunpack.c.l.b16 %v120
  %v407 = vunpack.c.l.b16 %v121
  %v408 = vunpack.c.l.b16 %v122
  %v409 = vunpack.c.l.b16 %v123
  %v410 = vpack.c.b16 %v311, %v310
  %v411 = vpack.c.b16 %v313, %v312
  %v412 = vpack.c.b16 %v315, %v314
  %v413 = vpack.c.b16 %v317, %v316
  %v414 = vpack.c.b16 %v319, %v318
  %v415 = vpack.c.b16 %v321, %v320
  %v416 = vpack.c.b16 %v323, %v322
  %v417 = vpack.c.b16 %v325, %v324
  %v418 = vpack.c.b16 %v327, %v326
  %v419 = vpack.c.b16 %v329, %v328
  %v420 = vpack.c.b16 %v331, %v330
  %v421 = vpack.c.b16 %v333, %v332
  %v422 = vpack.c.b16 %v335, %v334
  %v423 = vpack.c.b16 %v337, %v336
  %v424 = vpack.c.b16 %v339, %v338
  %v425 = vpack.c.b16 %v341, %v340
  %v426 = vpack.c.b16 %v343, %v342
  %v427 = vpack.c.b16 %v345, %v344
  %v428 = vpack.c.b16 %v347, %v346
  %v429 = vpack.c.b16 %v349, %v348
  %v430 = vpack.c.b16 %v351, %v350
  %v431 = vpack.c.b16 %v353, %v352
  %v432 = vpack.c.b16 %v355, %v354
  %v433 = vpack.c.b16 %v357, %v356
  %v434 = vpack.c.b16 %v359, %v358
  %v435 = vpack.c.b16 %v361, %v360
  %v436 = vpack.c.b16 %v363, %v362
  %v437 = vpack.c.b16 %v365, %v364
  %v438 = vpack.c.b16 %v367, %v366
  %v439 = vpack.c.b16 %v369, %v368
  %v440 = vpack.c.b16 %v371, %v370
  %v441 = vpack.c.b16 %v373, %v372
  %v442 = vpack.c.b16 %v375, %v374
  %v443 = vpack.c.b16 %v377, %v376
  %v444 = vpack.c.b16 %v379, %v378
  %v445 = vpack.c.b16 %v381, %v380
  %v446 = vpack.c.b16 %v383, %v382
  %v447 = vpack.c.b16 %v385, %v384
  %v448 = vpack.c.b16 %v387, %v386
  %v449 = vpack.c.b16 %v389, %v388
  %v450 = vpack.c.b16 %v391, %v390
  %v451 = vpack.c.b16 %v393, %v392
  %v452 = vpack.c.b16 %v395, %v394
  %v453 = vpack.c.b16 %v397, %v396
  %v454 = vpack.c.b16 %v399, %v398
  %v455 = vpack.c.b16 %v401, %v400
  %v456 = vpack.c.b16 %v403, %v402
  %v457 = vpack.c.b16 %v405, %v404
  %v458 = vpack.c.b16 %v407, %v406
  %v459 = vpack.c.b16 %v409, %v408
  %vm510 = vcmask 261120
  %v512 = vsel %vm510, %v190, 0
  %v515 = vsel %vm510, %v197, 0
  %517 = vmatprep.subr.bf16.mxu0 0
  %518 = vmatpush1.bf16.msra.mxu0 %v417
  %519 = vmatprep.subr.bf16.mxu0 0
  %520 = vmatpush1.bf16.msra.mxu0 %v416
  %521 = vmatprep.subr.bf16.mxu0 0
  %522 = vmatpush1.bf16.msra.mxu0 %v415
  %523 = vmatprep.subr.bf16.mxu0 0
  %524 = vmatpush1.bf16.msra.mxu0 %v414
  %525 = vmatprep.subr.bf16.mxu0 0
  %526 = vmatpush1.bf16.msra.mxu0 %v413
  %527 = vmatprep.subr.bf16.mxu0 0
  %528 = vmatpush1.bf16.msra.mxu0 %v412
  %529 = vmatprep.subr.bf16.mxu0 0
  %530 = vmatpush1.bf16.msra.mxu0 %v411
  %531 = vmatprep.subr.bf16.mxu0 0
  %532 = vmatpush1.bf16.msra.mxu0 %v410
  %533 = vmatprep.subr.bf16.mxu0 0
  %534 = vmatpush2.bf16.msra.mxu0 %v425
  %535 = vmatprep.subr.bf16.mxu0 0
  %536 = vmatpush2.bf16.msra.mxu0 %v424
  %537 = vmatprep.subr.bf16.mxu0 0
  %538 = vmatpush2.bf16.msra.mxu0 %v423
  %539 = vmatprep.subr.bf16.mxu0 0
  %540 = vmatpush2.bf16.msra.mxu0 %v422
  %541 = vmatprep.subr.bf16.mxu0 0
  %542 = vmatpush2.bf16.msra.mxu0 %v421
  %543 = vmatprep.subr.bf16.mxu0 0
  %544 = vmatpush2.bf16.msra.mxu0 %v420
  %545 = vmatprep.subr.bf16.mxu0 0
  %546 = vmatpush2.bf16.msra.mxu0 %v419
  %547 = vmatprep.subr.bf16.mxu0 0
  %548 = vmatpush2.bf16.msra.mxu0 %v418
  %549 = vmatprep.mubr.bf16.mxu0 %v185
  %550 = vmatmul.mubr.bf16.gmra.mxu0 %v184
  %v551 = vpop.f32.mrf.mxu0
  %v552 = vadd.f32 0.0, %v551
  %v553 = vpop.f32.mrf.mxu0
  %v554 = vpop.f32.mrf.mxu0
  %v555 = vadd.f32 0.0, %v554
  %v556 = vpop.f32.mrf.mxu0
  %557 = vmatprep.mubr.bf16.mxu0 %v192
  %558 = vmatmul.mubr.bf16.gmra.mxu0 %v191
  %v559 = vpop.f32.mrf.mxu0
  %v560 = vadd.f32 0.0, %v559
  %v561 = vpop.f32.mrf.mxu0
  %v562 = vpop.f32.mrf.mxu0
  %v563 = vadd.f32 0.0, %v562
  %v564 = vpop.f32.mrf.mxu0
  %565 = vdwg.mxu0
  %566 = vmatprep.subr.bf16.mxu0 0
  %567 = vmatpush1.bf16.msra.mxu0 %v433
  %568 = vmatprep.subr.bf16.mxu0 0
  %569 = vmatpush1.bf16.msra.mxu0 %v432
  %570 = vmatprep.subr.bf16.mxu0 0
  %571 = vmatpush1.bf16.msra.mxu0 %v431
  %572 = vmatprep.subr.bf16.mxu0 0
  %573 = vmatpush1.bf16.msra.mxu0 %v430
  %574 = vmatprep.subr.bf16.mxu0 0
  %575 = vmatpush1.bf16.msra.mxu0 %v429
  %576 = vmatprep.subr.bf16.mxu0 0
  %577 = vmatpush1.bf16.msra.mxu0 %v428
  %578 = vmatprep.subr.bf16.mxu0 0
  %579 = vmatpush1.bf16.msra.mxu0 %v427
  %580 = vmatprep.subr.bf16.mxu0 0
  %581 = vmatpush1.bf16.msra.mxu0 %v426
  %582 = vmatprep.subr.bf16.mxu0 0
  %583 = vmatpush2.bf16.msra.mxu0 %v441
  %584 = vmatprep.subr.bf16.mxu0 0
  %585 = vmatpush2.bf16.msra.mxu0 %v440
  %586 = vmatprep.subr.bf16.mxu0 0
  %587 = vmatpush2.bf16.msra.mxu0 %v439
  %588 = vmatprep.subr.bf16.mxu0 0
  %589 = vmatpush2.bf16.msra.mxu0 %v438
  %590 = vmatprep.subr.bf16.mxu0 0
  %591 = vmatpush2.bf16.msra.mxu0 %v437
  %592 = vmatprep.subr.bf16.mxu0 0
  %593 = vmatpush2.bf16.msra.mxu0 %v436
  %594 = vmatprep.subr.bf16.mxu0 0
  %595 = vmatpush2.bf16.msra.mxu0 %v435
  %596 = vmatprep.subr.bf16.mxu0 0
  %597 = vmatpush2.bf16.msra.mxu0 %v434
  %598 = vmatprep.mubr.bf16.mxu0 %v187
  %599 = vmatmul.mubr.bf16.gmra.mxu0 %v186
  %v600 = vpop.f32.mrf.mxu0
  %v601 = vadd.f32 %v552, %v600
  %v602 = vpop.f32.mrf.mxu0
  %v603 = vpop.f32.mrf.mxu0
  %v604 = vadd.f32 %v555, %v603
  %v605 = vpop.f32.mrf.mxu0
  %606 = vmatprep.mubr.bf16.mxu0 %v194
  %607 = vmatmul.mubr.bf16.gmra.mxu0 %v193
  %v608 = vpop.f32.mrf.mxu0
  %v609 = vadd.f32 %v560, %v608
  %v610 = vpop.f32.mrf.mxu0
  %v611 = vpop.f32.mrf.mxu0
  %v612 = vadd.f32 %v563, %v611
  %v613 = vpop.f32.mrf.mxu0
  %614 = vdwg.mxu0
  %615 = vmatprep.subr.bf16.mxu0 0
  %616 = vmatpush1.bf16.msra.mxu0 %v449
  %617 = vmatprep.subr.bf16.mxu0 0
  %618 = vmatpush1.bf16.msra.mxu0 %v448
  %619 = vmatprep.subr.bf16.mxu0 0
  %620 = vmatpush1.bf16.msra.mxu0 %v447
  %621 = vmatprep.subr.bf16.mxu0 0
  %622 = vmatpush1.bf16.msra.mxu0 %v446
  %623 = vmatprep.subr.bf16.mxu0 0
  %624 = vmatpush1.bf16.msra.mxu0 %v445
  %625 = vmatprep.subr.bf16.mxu0 0
  %626 = vmatpush1.bf16.msra.mxu0 %v444
  %627 = vmatprep.subr.bf16.mxu0 0
  %628 = vmatpush1.bf16.msra.mxu0 %v443
  %629 = vmatprep.subr.bf16.mxu0 0
  %630 = vmatpush1.bf16.msra.mxu0 %v442
  %631 = vmatprep.subr.bf16.mxu0 0
  %632 = vmatpush2.bf16.msra.mxu0 %v457
  %633 = vmatprep.subr.bf16.mxu0 0
  %634 = vmatpush2.bf16.msra.mxu0 %v456
  %635 = vmatprep.subr.bf16.mxu0 0
  %636 = vmatpush2.bf16.msra.mxu0 %v455
  %637 = vmatprep.subr.bf16.mxu0 0
  %638 = vmatpush2.bf16.msra.mxu0 %v454
  %639 = vmatprep.subr.bf16.mxu0 0
  %640 = vmatpush2.bf16.msra.mxu0 %v453
  %641 = vmatprep.subr.bf16.mxu0 0
  %642 = vmatpush2.bf16.msra.mxu0 %v452
  %643 = vmatprep.subr.bf16.mxu0 0
  %644 = vmatpush2.bf16.msra.mxu0 %v451
  %645 = vmatprep.subr.bf16.mxu0 0
  %646 = vmatpush2.bf16.msra.mxu0 %v450
  %647 = vmatprep.mubr.bf16.mxu0 %v189
  %648 = vmatmul.mubr.bf16.gmra.mxu0 %v188
  %v649 = vpop.f32.mrf.mxu0
  %v650 = vadd.f32 %v601, %v649
  %v651 = vpop.f32.mrf.mxu0
  %v652 = vpop.f32.mrf.mxu0
  %v653 = vadd.f32 %v604, %v652
  %v654 = vpop.f32.mrf.mxu0
  %655 = vmatprep.mubr.bf16.mxu0 %v196
  %656 = vmatmul.mubr.bf16.gmra.mxu0 %v195
  %v657 = vpop.f32.mrf.mxu0
  %v658 = vadd.f32 %v609, %v657
  %v659 = vpop.f32.mrf.mxu0
  %v660 = vpop.f32.mrf.mxu0
  %v661 = vadd.f32 %v612, %v660
  %v662 = vpop.f32.mrf.mxu0
  %663 = vdwg.mxu0
  %664 = vmatprep.subr.bf16.mxu0 0
  %665 = vmatpush1.bf16.msra.mxu0 0
  %666 = vmatprep.subr.bf16.mxu0 0
  %667 = vmatpush1.bf16.msra.mxu0 0
  %668 = vmatprep.subr.bf16.mxu0 0
  %669 = vmatpush1.bf16.msra.mxu0 0
  %670 = vmatprep.subr.bf16.mxu0 0
  %671 = vmatpush1.bf16.msra.mxu0 0
  %672 = vmatprep.subr.bf16.mxu0 0
  %673 = vmatpush1.bf16.msra.mxu0 0
  %674 = vmatprep.subr.bf16.mxu0 0
  %675 = vmatpush1.bf16.msra.mxu0 0
  %676 = vmatprep.subr.bf16.mxu0 0
  %677 = vmatpush1.bf16.msra.mxu0 %v459
  %678 = vmatprep.subr.bf16.mxu0 0
  %679 = vmatpush1.bf16.msra.mxu0 %v458
  %680 = vmatprep.subr.bf16.mxu0 0
  %681 = vmatpush2.bf16.msra.mxu0 0
  %682 = vmatprep.subr.bf16.mxu0 0
  %683 = vmatpush2.bf16.msra.mxu0 0
  %684 = vmatprep.subr.bf16.mxu0 0
  %685 = vmatpush2.bf16.msra.mxu0 0
  %686 = vmatprep.subr.bf16.mxu0 0
  %687 = vmatpush2.bf16.msra.mxu0 0
  %688 = vmatprep.subr.bf16.mxu0 0
  %689 = vmatpush2.bf16.msra.mxu0 0
  %690 = vmatprep.subr.bf16.mxu0 0
  %691 = vmatpush2.bf16.msra.mxu0 0
  %692 = vmatprep.subr.bf16.mxu0 0
  %693 = vmatpush2.bf16.msra.mxu0 0
  %694 = vmatprep.subr.bf16.mxu0 0
  %695 = vmatpush2.bf16.msra.mxu0 0
  %696 = vmatprep.mubr.bf16.mxu0 0
  %697 = vmatmul.mubr.bf16.gmra.mxu0 %v512
  %v698 = vpop.f32.mrf.mxu0
  %v699 = vadd.f32 %v650, %v698
  %v700 = vpop.f32.mrf.mxu0
  %v701 = vpop.f32.mrf.mxu0
  %v702 = vadd.f32 %v653, %v701
  %v703 = vpop.f32.mrf.mxu0
  %704 = vmatprep.mubr.bf16.mxu0 0
  %705 = vmatmul.mubr.bf16.gmra.mxu0 %v515
  %v706 = vpop.f32.mrf.mxu0
  %v707 = vadd.f32 %v658, %v706
  %v708 = vpop.f32.mrf.mxu0
  %v709 = vpop.f32.mrf.mxu0
  %v710 = vadd.f32 %v661, %v709
  %v711 = vpop.f32.mrf.mxu0
  %712 = vdwg.mxu0
  %v713 = vld [vmem:[%s1] sm:$0xff]
  %v714 = vld [vmem:[%s1 + $0x8] sm:$0xff]
  %v715 = vld [vmem:[%s1 + $0x10] sm:$0xff]
  %v716 = vld [vmem:[%s1 + $0x18] sm:$0xf]
  %v717 = vld [vmem:[%s1 + $0x1c] sm:$0xff]
  %v718 = vld [vmem:[%s1 + $0x24] sm:$0xff]
  %v719 = vld [vmem:[%s1 + $0x2c] sm:$0xff]
  %v720 = vld [vmem:[%s1 + $0x34] sm:$0xf]
  %v721 = vld [vmem:[%s1 + $0x38] sm:$0xff]
  %v722 = vld [vmem:[%s1 + $0x40] sm:$0xff]
  %v723 = vld [vmem:[%s1 + $0x48] sm:$0xff]
  %v724 = vld [vmem:[%s1 + $0x50] sm:$0xf]
  %v725 = vld [vmem:[%s1 + $0x54] sm:$0xff]
  %v726 = vld [vmem:[%s1 + $0x5c] sm:$0xff]
  %v727 = vld [vmem:[%s1 + $0x64] sm:$0xff]
  %v728 = vld [vmem:[%s1 + $0x6c] sm:$0xf]
  %v745 = vunpack.c.l.b16 %v713
  %v746 = vunpack.c.h.b16 %v713
  %v747 = vunpack.c.l.b16 %v714
  %v748 = vunpack.c.h.b16 %v714
  %v749 = vunpack.c.l.b16 %v715
  %v750 = vunpack.c.h.b16 %v715
  %v751 = vunpack.c.l.b16 %v716
  %v752 = vunpack.c.l.b16 %v717
  %v753 = vunpack.c.h.b16 %v717
  %v754 = vunpack.c.l.b16 %v718
  %v755 = vunpack.c.h.b16 %v718
  %v756 = vunpack.c.l.b16 %v719
  %v757 = vunpack.c.h.b16 %v719
  %v758 = vunpack.c.l.b16 %v720
  %v759 = vunpack.c.l.b16 %v721
  %v760 = vunpack.c.h.b16 %v721
  %v761 = vunpack.c.l.b16 %v722
  %v762 = vunpack.c.h.b16 %v722
  %v763 = vunpack.c.l.b16 %v723
  %v764 = vunpack.c.h.b16 %v723
  %v765 = vunpack.c.l.b16 %v724
  %v766 = vunpack.c.l.b16 %v725
  %v767 = vunpack.c.h.b16 %v725
  %v768 = vunpack.c.l.b16 %v726
  %v769 = vunpack.c.h.b16 %v726
  %v770 = vunpack.c.l.b16 %v727
  %v771 = vunpack.c.h.b16 %v727
  %v772 = vunpack.c.l.b16 %v728
  %v773 = vpack.c.b16 %v752, %v745
  %v774 = vpack.c.b16 %v753, %v746
  %v775 = vpack.c.b16 %v754, %v747
  %v776 = vpack.c.b16 %v755, %v748
  %v777 = vpack.c.b16 %v756, %v749
  %v778 = vpack.c.b16 %v757, %v750
  %v779 = vpack.c.b16 %v758, %v751
  %v780 = vpack.c.b16 %v766, %v759
  %v781 = vpack.c.b16 %v767, %v760
  %v782 = vpack.c.b16 %v768, %v761
  %v783 = vpack.c.b16 %v769, %v762
  %v784 = vpack.c.b16 %v770, %v763
  %v785 = vpack.c.b16 %v771, %v764
  %v786 = vpack.c.b16 %v772, %v765
  %v800 = vsel %vm510, %v779, 0
  %v803 = vsel %vm510, %v786, 0
  %805 = vmatprep.subr.bf16.mxu0 0
  %806 = vmatpush1.bf16.msra.mxu0 %v417
  %807 = vmatprep.subr.bf16.mxu0 0
  %808 = vmatpush1.bf16.msra.mxu0 %v416
  %809 = vmatprep.subr.bf16.mxu0 0
  %810 = vmatpush1.bf16.msra.mxu0 %v415
  %811 = vmatprep.subr.bf16.mxu0 0
  %812 = vmatpush1.bf16.msra.mxu0 %v414
  %813 = vmatprep.subr.bf16.mxu0 0
  %814 = vmatpush1.bf16.msra.mxu0 %v413
  %815 = vmatprep.subr.bf16.mxu0 0
  %816 = vmatpush1.bf16.msra.mxu0 %v412
  %817 = vmatprep.subr.bf16.mxu0 0
  %818 = vmatpush1.bf16.msra.mxu0 %v411
  %819 = vmatprep.subr.bf16.mxu0 0
  %820 = vmatpush1.bf16.msra.mxu0 %v410
  %821 = vmatprep.subr.bf16.mxu0 0
  %822 = vmatpush2.bf16.msra.mxu0 %v425
  %823 = vmatprep.subr.bf16.mxu0 0
  %824 = vmatpush2.bf16.msra.mxu0 %v424
  %825 = vmatprep.subr.bf16.mxu0 0
  %826 = vmatpush2.bf16.msra.mxu0 %v423
  %827 = vmatprep.subr.bf16.mxu0 0
  %828 = vmatpush2.bf16.msra.mxu0 %v422
  %829 = vmatprep.subr.bf16.mxu0 0
  %830 = vmatpush2.bf16.msra.mxu0 %v421
  %831 = vmatprep.subr.bf16.mxu0 0
  %832 = vmatpush2.bf16.msra.mxu0 %v420
  %833 = vmatprep.subr.bf16.mxu0 0
  %834 = vmatpush2.bf16.msra.mxu0 %v419
  %835 = vmatprep.subr.bf16.mxu0 0
  %836 = vmatpush2.bf16.msra.mxu0 %v418
  %837 = vmatprep.mubr.bf16.mxu0 %v774
  %838 = vmatmul.mubr.bf16.gmra.mxu0 %v773
  %v839 = vpop.f32.mrf.mxu0
  %v840 = vadd.f32 0.0, %v839
  %v841 = vpop.f32.mrf.mxu0
  %v842 = vpop.f32.mrf.mxu0
  %v843 = vadd.f32 0.0, %v842
  %v844 = vpop.f32.mrf.mxu0
  %845 = vmatprep.mubr.bf16.mxu0 %v781
  %846 = vmatmul.mubr.bf16.gmra.mxu0 %v780
  %v847 = vpop.f32.mrf.mxu0
  %v848 = vadd.f32 0.0, %v847
  %v849 = vpop.f32.mrf.mxu0
  %v850 = vpop.f32.mrf.mxu0
  %v851 = vadd.f32 0.0, %v850
  %v852 = vpop.f32.mrf.mxu0
  %853 = vdwg.mxu0
  %854 = vmatprep.subr.bf16.mxu0 0
  %855 = vmatpush1.bf16.msra.mxu0 %v433
  %856 = vmatprep.subr.bf16.mxu0 0
  %857 = vmatpush1.bf16.msra.mxu0 %v432
  %858 = vmatprep.subr.bf16.mxu0 0
  %859 = vmatpush1.bf16.msra.mxu0 %v431
  %860 = vmatprep.subr.bf16.mxu0 0
  %861 = vmatpush1.bf16.msra.mxu0 %v430
  %862 = vmatprep.subr.bf16.mxu0 0
  %863 = vmatpush1.bf16.msra.mxu0 %v429
  %864 = vmatprep.subr.bf16.mxu0 0
  %865 = vmatpush1.bf16.msra.mxu0 %v428
  %866 = vmatprep.subr.bf16.mxu0 0
  %867 = vmatpush1.bf16.msra.mxu0 %v427
  %868 = vmatprep.subr.bf16.mxu0 0
  %869 = vmatpush1.bf16.msra.mxu0 %v426
  %870 = vmatprep.subr.bf16.mxu0 0
  %871 = vmatpush2.bf16.msra.mxu0 %v441
  %872 = vmatprep.subr.bf16.mxu0 0
  %873 = vmatpush2.bf16.msra.mxu0 %v440
  %874 = vmatprep.subr.bf16.mxu0 0
  %875 = vmatpush2.bf16.msra.mxu0 %v439
  %876 = vmatprep.subr.bf16.mxu0 0
  %877 = vmatpush2.bf16.msra.mxu0 %v438
  %878 = vmatprep.subr.bf16.mxu0 0
  %879 = vmatpush2.bf16.msra.mxu0 %v437
  %880 = vmatprep.subr.bf16.mxu0 0
  %881 = vmatpush2.bf16.msra.mxu0 %v436
  %882 = vmatprep.subr.bf16.mxu0 0
  %883 = vmatpush2.bf16.msra.mxu0 %v435
  %884 = vmatprep.subr.bf16.mxu0 0
  %885 = vmatpush2.bf16.msra.mxu0 %v434
  %886 = vmatprep.mubr.bf16.mxu0 %v776
  %887 = vmatmul.mubr.bf16.gmra.mxu0 %v775
  %v888 = vpop.f32.mrf.mxu0
  %v889 = vadd.f32 %v840, %v888
  %v890 = vpop.f32.mrf.mxu0
  %v891 = vpop.f32.mrf.mxu0
  %v892 = vadd.f32 %v843, %v891
  %v893 = vpop.f32.mrf.mxu0
  %894 = vmatprep.mubr.bf16.mxu0 %v783
  %895 = vmatmul.mubr.bf16.gmra.mxu0 %v782
  %v896 = vpop.f32.mrf.mxu0
  %v897 = vadd.f32 %v848, %v896
  %v898 = vpop.f32.mrf.mxu0
  %v899 = vpop.f32.mrf.mxu0
  %v900 = vadd.f32 %v851, %v899
  %v901 = vpop.f32.mrf.mxu0
  %902 = vdwg.mxu0
  %903 = vmatprep.subr.bf16.mxu0 0
  %904 = vmatpush1.bf16.msra.mxu0 %v449
  %905 = vmatprep.subr.bf16.mxu0 0
  %906 = vmatpush1.bf16.msra.mxu0 %v448
  %907 = vmatprep.subr.bf16.mxu0 0
  %908 = vmatpush1.bf16.msra.mxu0 %v447
  %909 = vmatprep.subr.bf16.mxu0 0
  %910 = vmatpush1.bf16.msra.mxu0 %v446
  %911 = vmatprep.subr.bf16.mxu0 0
  %912 = vmatpush1.bf16.msra.mxu0 %v445
  %913 = vmatprep.subr.bf16.mxu0 0
  %914 = vmatpush1.bf16.msra.mxu0 %v444
  %915 = vmatprep.subr.bf16.mxu0 0
  %916 = vmatpush1.bf16.msra.mxu0 %v443
  %917 = vmatprep.subr.bf16.mxu0 0
  %918 = vmatpush1.bf16.msra.mxu0 %v442
  %919 = vmatprep.subr.bf16.mxu0 0
  %920 = vmatpush2.bf16.msra.mxu0 %v457
  %921 = vmatprep.subr.bf16.mxu0 0
  %922 = vmatpush2.bf16.msra.mxu0 %v456
  %923 = vmatprep.subr.bf16.mxu0 0
  %924 = vmatpush2.bf16.msra.mxu0 %v455
  %925 = vmatprep.subr.bf16.mxu0 0
  %926 = vmatpush2.bf16.msra.mxu0 %v454
  %927 = vmatprep.subr.bf16.mxu0 0
  %928 = vmatpush2.bf16.msra.mxu0 %v453
  %929 = vmatprep.subr.bf16.mxu0 0
  %930 = vmatpush2.bf16.msra.mxu0 %v452
  %931 = vmatprep.subr.bf16.mxu0 0
  %932 = vmatpush2.bf16.msra.mxu0 %v451
  %933 = vmatprep.subr.bf16.mxu0 0
  %934 = vmatpush2.bf16.msra.mxu0 %v450
  %935 = vmatprep.mubr.bf16.mxu0 %v778
  %936 = vmatmul.mubr.bf16.gmra.mxu0 %v777
  %v937 = vpop.f32.mrf.mxu0
  %v938 = vadd.f32 %v889, %v937
  %v939 = vpop.f32.mrf.mxu0
  %v940 = vpop.f32.mrf.mxu0
  %v941 = vadd.f32 %v892, %v940
  %v942 = vpop.f32.mrf.mxu0
  %943 = vmatprep.mubr.bf16.mxu0 %v785
  %944 = vmatmul.mubr.bf16.gmra.mxu0 %v784
  %v945 = vpop.f32.mrf.mxu0
  %v946 = vadd.f32 %v897, %v945
  %v947 = vpop.f32.mrf.mxu0
  %v948 = vpop.f32.mrf.mxu0
  %v949 = vadd.f32 %v900, %v948
  %v950 = vpop.f32.mrf.mxu0
  %951 = vdwg.mxu0
  %952 = vmatprep.subr.bf16.mxu0 0
  %953 = vmatpush1.bf16.msra.mxu0 0
  %954 = vmatprep.subr.bf16.mxu0 0
  %955 = vmatpush1.bf16.msra.mxu0 0
  %956 = vmatprep.subr.bf16.mxu0 0
  %957 = vmatpush1.bf16.msra.mxu0 0
  %958 = vmatprep.subr.bf16.mxu0 0
  %959 = vmatpush1.bf16.msra.mxu0 0
  %960 = vmatprep.subr.bf16.mxu0 0
  %961 = vmatpush1.bf16.msra.mxu0 0
  %962 = vmatprep.subr.bf16.mxu0 0
  %963 = vmatpush1.bf16.msra.mxu0 0
  %964 = vmatprep.subr.bf16.mxu0 0
  %965 = vmatpush1.bf16.msra.mxu0 %v459
  %966 = vmatprep.subr.bf16.mxu0 0
  %967 = vmatpush1.bf16.msra.mxu0 %v458
  %968 = vmatprep.subr.bf16.mxu0 0
  %969 = vmatpush2.bf16.msra.mxu0 0
  %970 = vmatprep.subr.bf16.mxu0 0
  %971 = vmatpush2.bf16.msra.mxu0 0
  %972 = vmatprep.subr.bf16.mxu0 0
  %973 = vmatpush2.bf16.msra.mxu0 0
  %974 = vmatprep.subr.bf16.mxu0 0
  %975 = vmatpush2.bf16.msra.mxu0 0
  %976 = vmatprep.subr.bf16.mxu0 0
  %977 = vmatpush2.bf16.msra.mxu0 0
  %978 = vmatprep.subr.bf16.mxu0 0
  %979 = vmatpush2.bf16.msra.mxu0 0
  %980 = vmatprep.subr.bf16.mxu0 0
  %981 = vmatpush2.bf16.msra.mxu0 0
  %982 = vmatprep.subr.bf16.mxu0 0
  %983 = vmatpush2.bf16.msra.mxu0 0
  %984 = vmatprep.mubr.bf16.mxu0 0
  %985 = vmatmul.mubr.bf16.gmra.mxu0 %v800
  %v986 = vpop.f32.mrf.mxu0
  %v987 = vadd.f32 %v938, %v986
  %v988 = vpop.f32.mrf.mxu0
  %v989 = vpop.f32.mrf.mxu0
  %v990 = vadd.f32 %v941, %v989
  %v991 = vpop.f32.mrf.mxu0
  %992 = vmatprep.mubr.bf16.mxu0 0
  %993 = vmatmul.mubr.bf16.gmra.mxu0 %v803
  %v994 = vpop.f32.mrf.mxu0
  %v995 = vadd.f32 %v946, %v994
  %v996 = vpop.f32.mrf.mxu0
  %v997 = vpop.f32.mrf.mxu0
  %v998 = vadd.f32 %v949, %v997
  %v999 = vpop.f32.mrf.mxu0
  %1000 = vdwg.mxu0
  %v1001 = vmax.f32 %v699, %v987
  %v1002 = vmax.f32 %v702, %v990
  %v1003 = vmax.f32 %v707, %v995
  %v1004 = vmax.f32 %v710, %v998
  %v1005 = vld [vmem:[%s2] sm:$0xff]
  %v1006 = vld [vmem:[%s2 + $0x8] sm:$0xff]
  %v1007 = vld [vmem:[%s2 + $0x10] sm:$0xff]
  %v1008 = vld [vmem:[%s2 + $0x18] sm:$0xf]
  %v1009 = vld [vmem:[%s2 + $0x1c] sm:$0xff]
  %v1010 = vld [vmem:[%s2 + $0x24] sm:$0xff]
  %v1011 = vld [vmem:[%s2 + $0x2c] sm:$0xff]
  %v1012 = vld [vmem:[%s2 + $0x34] sm:$0xf]
  %v1013 = vld [vmem:[%s2 + $0x38] sm:$0xff]
  %v1014 = vld [vmem:[%s2 + $0x40] sm:$0xff]
  %v1015 = vld [vmem:[%s2 + $0x48] sm:$0xff]
  %v1016 = vld [vmem:[%s2 + $0x50] sm:$0xf]
  %v1017 = vld [vmem:[%s2 + $0x54] sm:$0xff]
  %v1018 = vld [vmem:[%s2 + $0x5c] sm:$0xff]
  %v1019 = vld [vmem:[%s2 + $0x64] sm:$0xff]
  %v1020 = vld [vmem:[%s2 + $0x6c] sm:$0xf]
  %v1037 = vunpack.c.l.b16 %v1005
  %v1038 = vunpack.c.h.b16 %v1005
  %v1039 = vunpack.c.l.b16 %v1006
  %v1040 = vunpack.c.h.b16 %v1006
  %v1041 = vunpack.c.l.b16 %v1007
  %v1042 = vunpack.c.h.b16 %v1007
  %v1043 = vunpack.c.l.b16 %v1008
  %v1044 = vunpack.c.l.b16 %v1009
  %v1045 = vunpack.c.h.b16 %v1009
  %v1046 = vunpack.c.l.b16 %v1010
  %v1047 = vunpack.c.h.b16 %v1010
  %v1048 = vunpack.c.l.b16 %v1011
  %v1049 = vunpack.c.h.b16 %v1011
  %v1050 = vunpack.c.l.b16 %v1012
  %v1051 = vunpack.c.l.b16 %v1013
  %v1052 = vunpack.c.h.b16 %v1013
  %v1053 = vunpack.c.l.b16 %v1014
  %v1054 = vunpack.c.h.b16 %v1014
  %v1055 = vunpack.c.l.b16 %v1015
  %v1056 = vunpack.c.h.b16 %v1015
  %v1057 = vunpack.c.l.b16 %v1016
  %v1058 = vunpack.c.l.b16 %v1017
  %v1059 = vunpack.c.h.b16 %v1017
  %v1060 = vunpack.c.l.b16 %v1018
  %v1061 = vunpack.c.h.b16 %v1018
  %v1062 = vunpack.c.l.b16 %v1019
  %v1063 = vunpack.c.h.b16 %v1019
  %v1064 = vunpack.c.l.b16 %v1020
  %v1065 = vpack.c.b16 %v1044, %v1037
  %v1066 = vpack.c.b16 %v1045, %v1038
  %v1067 = vpack.c.b16 %v1046, %v1039
  %v1068 = vpack.c.b16 %v1047, %v1040
  %v1069 = vpack.c.b16 %v1048, %v1041
  %v1070 = vpack.c.b16 %v1049, %v1042
  %v1071 = vpack.c.b16 %v1050, %v1043
  %v1072 = vpack.c.b16 %v1058, %v1051
  %v1073 = vpack.c.b16 %v1059, %v1052
  %v1074 = vpack.c.b16 %v1060, %v1053
  %v1075 = vpack.c.b16 %v1061, %v1054
  %v1076 = vpack.c.b16 %v1062, %v1055
  %v1077 = vpack.c.b16 %v1063, %v1056
  %v1078 = vpack.c.b16 %v1064, %v1057
  %v1092 = vsel %vm510, %v1071, 0
  %v1095 = vsel %vm510, %v1078, 0
  %1097 = vmatprep.subr.bf16.mxu0 0
  %1098 = vmatpush1.bf16.msra.mxu0 %v417
  %1099 = vmatprep.subr.bf16.mxu0 0
  %1100 = vmatpush1.bf16.msra.mxu0 %v416
  %1101 = vmatprep.subr.bf16.mxu0 0
  %1102 = vmatpush1.bf16.msra.mxu0 %v415
  %1103 = vmatprep.subr.bf16.mxu0 0
  %1104 = vmatpush1.bf16.msra.mxu0 %v414
  %1105 = vmatprep.subr.bf16.mxu0 0
  %1106 = vmatpush1.bf16.msra.mxu0 %v413
  %1107 = vmatprep.subr.bf16.mxu0 0
  %1108 = vmatpush1.bf16.msra.mxu0 %v412
  %1109 = vmatprep.subr.bf16.mxu0 0
  %1110 = vmatpush1.bf16.msra.mxu0 %v411
  %1111 = vmatprep.subr.bf16.mxu0 0
  %1112 = vmatpush1.bf16.msra.mxu0 %v410
  %1113 = vmatprep.subr.bf16.mxu0 0
  %1114 = vmatpush2.bf16.msra.mxu0 %v425
  %1115 = vmatprep.subr.bf16.mxu0 0
  %1116 = vmatpush2.bf16.msra.mxu0 %v424
  %1117 = vmatprep.subr.bf16.mxu0 0
  %1118 = vmatpush2.bf16.msra.mxu0 %v423
  %1119 = vmatprep.subr.bf16.mxu0 0
  %1120 = vmatpush2.bf16.msra.mxu0 %v422
  %1121 = vmatprep.subr.bf16.mxu0 0
  %1122 = vmatpush2.bf16.msra.mxu0 %v421
  %1123 = vmatprep.subr.bf16.mxu0 0
  %1124 = vmatpush2.bf16.msra.mxu0 %v420
  %1125 = vmatprep.subr.bf16.mxu0 0
  %1126 = vmatpush2.bf16.msra.mxu0 %v419
  %1127 = vmatprep.subr.bf16.mxu0 0
  %1128 = vmatpush2.bf16.msra.mxu0 %v418
  %1129 = vmatprep.mubr.bf16.mxu0 %v1066
  %1130 = vmatmul.mubr.bf16.gmra.mxu0 %v1065
  %v1131 = vpop.f32.mrf.mxu0
  %v1132 = vadd.f32 0.0, %v1131
  %v1133 = vpop.f32.mrf.mxu0
  %v1134 = vpop.f32.mrf.mxu0
  %v1135 = vadd.f32 0.0, %v1134
  %v1136 = vpop.f32.mrf.mxu0
  %1137 = vmatprep.mubr.bf16.mxu0 %v1073
  %1138 = vmatmul.mubr.bf16.gmra.mxu0 %v1072
  %v1139 = vpop.f32.mrf.mxu0
  %v1140 = vadd.f32 0.0, %v1139
  %v1141 = vpop.f32.mrf.mxu0
  %v1142 = vpop.f32.mrf.mxu0
  %v1143 = vadd.f32 0.0, %v1142
  %v1144 = vpop.f32.mrf.mxu0
  %1145 = vdwg.mxu0
  %1146 = vmatprep.subr.bf16.mxu0 0
  %1147 = vmatpush1.bf16.msra.mxu0 %v433
  %1148 = vmatprep.subr.bf16.mxu0 0
  %1149 = vmatpush1.bf16.msra.mxu0 %v432
  %1150 = vmatprep.subr.bf16.mxu0 0
  %1151 = vmatpush1.bf16.msra.mxu0 %v431
  %1152 = vmatprep.subr.bf16.mxu0 0
  %1153 = vmatpush1.bf16.msra.mxu0 %v430
  %1154 = vmatprep.subr.bf16.mxu0 0
  %1155 = vmatpush1.bf16.msra.mxu0 %v429
  %1156 = vmatprep.subr.bf16.mxu0 0
  %1157 = vmatpush1.bf16.msra.mxu0 %v428
  %1158 = vmatprep.subr.bf16.mxu0 0
  %1159 = vmatpush1.bf16.msra.mxu0 %v427
  %1160 = vmatprep.subr.bf16.mxu0 0
  %1161 = vmatpush1.bf16.msra.mxu0 %v426
  %1162 = vmatprep.subr.bf16.mxu0 0
  %1163 = vmatpush2.bf16.msra.mxu0 %v441
  %1164 = vmatprep.subr.bf16.mxu0 0
  %1165 = vmatpush2.bf16.msra.mxu0 %v440
  %1166 = vmatprep.subr.bf16.mxu0 0
  %1167 = vmatpush2.bf16.msra.mxu0 %v439
  %1168 = vmatprep.subr.bf16.mxu0 0
  %1169 = vmatpush2.bf16.msra.mxu0 %v438
  %1170 = vmatprep.subr.bf16.mxu0 0
  %1171 = vmatpush2.bf16.msra.mxu0 %v437
  %1172 = vmatprep.subr.bf16.mxu0 0
  %1173 = vmatpush2.bf16.msra.mxu0 %v436
  %1174 = vmatprep.subr.bf16.mxu0 0
  %1175 = vmatpush2.bf16.msra.mxu0 %v435
  %1176 = vmatprep.subr.bf16.mxu0 0
  %1177 = vmatpush2.bf16.msra.mxu0 %v434
  %1178 = vmatprep.mubr.bf16.mxu0 %v1068
  %1179 = vmatmul.mubr.bf16.gmra.mxu0 %v1067
  %v1180 = vpop.f32.mrf.mxu0
  %v1181 = vadd.f32 %v1132, %v1180
  %v1182 = vpop.f32.mrf.mxu0
  %v1183 = vpop.f32.mrf.mxu0
  %v1184 = vadd.f32 %v1135, %v1183
  %v1185 = vpop.f32.mrf.mxu0
  %1186 = vmatprep.mubr.bf16.mxu0 %v1075
  %1187 = vmatmul.mubr.bf16.gmra.mxu0 %v1074
  %v1188 = vpop.f32.mrf.mxu0
  %v1189 = vadd.f32 %v1140, %v1188
  %v1190 = vpop.f32.mrf.mxu0
  %v1191 = vpop.f32.mrf.mxu0
  %v1192 = vadd.f32 %v1143, %v1191
  %v1193 = vpop.f32.mrf.mxu0
  %1194 = vdwg.mxu0
  %1195 = vmatprep.subr.bf16.mxu0 0
  %1196 = vmatpush1.bf16.msra.mxu0 %v449
  %1197 = vmatprep.subr.bf16.mxu0 0
  %1198 = vmatpush1.bf16.msra.mxu0 %v448
  %1199 = vmatprep.subr.bf16.mxu0 0
  %1200 = vmatpush1.bf16.msra.mxu0 %v447
  %1201 = vmatprep.subr.bf16.mxu0 0
  %1202 = vmatpush1.bf16.msra.mxu0 %v446
  %1203 = vmatprep.subr.bf16.mxu0 0
  %1204 = vmatpush1.bf16.msra.mxu0 %v445
  %1205 = vmatprep.subr.bf16.mxu0 0
  %1206 = vmatpush1.bf16.msra.mxu0 %v444
  %1207 = vmatprep.subr.bf16.mxu0 0
  %1208 = vmatpush1.bf16.msra.mxu0 %v443
  %1209 = vmatprep.subr.bf16.mxu0 0
  %1210 = vmatpush1.bf16.msra.mxu0 %v442
  %1211 = vmatprep.subr.bf16.mxu0 0
  %1212 = vmatpush2.bf16.msra.mxu0 %v457
  %1213 = vmatprep.subr.bf16.mxu0 0
  %1214 = vmatpush2.bf16.msra.mxu0 %v456
  %1215 = vmatprep.subr.bf16.mxu0 0
  %1216 = vmatpush2.bf16.msra.mxu0 %v455
  %1217 = vmatprep.subr.bf16.mxu0 0
  %1218 = vmatpush2.bf16.msra.mxu0 %v454
  %1219 = vmatprep.subr.bf16.mxu0 0
  %1220 = vmatpush2.bf16.msra.mxu0 %v453
  %1221 = vmatprep.subr.bf16.mxu0 0
  %1222 = vmatpush2.bf16.msra.mxu0 %v452
  %1223 = vmatprep.subr.bf16.mxu0 0
  %1224 = vmatpush2.bf16.msra.mxu0 %v451
  %1225 = vmatprep.subr.bf16.mxu0 0
  %1226 = vmatpush2.bf16.msra.mxu0 %v450
  %1227 = vmatprep.mubr.bf16.mxu0 %v1070
  %1228 = vmatmul.mubr.bf16.gmra.mxu0 %v1069
  %v1229 = vpop.f32.mrf.mxu0
  %v1230 = vadd.f32 %v1181, %v1229
  %v1231 = vpop.f32.mrf.mxu0
  %v1232 = vpop.f32.mrf.mxu0
  %v1233 = vadd.f32 %v1184, %v1232
  %v1234 = vpop.f32.mrf.mxu0
  %1235 = vmatprep.mubr.bf16.mxu0 %v1077
  %1236 = vmatmul.mubr.bf16.gmra.mxu0 %v1076
  %v1237 = vpop.f32.mrf.mxu0
  %v1238 = vadd.f32 %v1189, %v1237
  %v1239 = vpop.f32.mrf.mxu0
  %v1240 = vpop.f32.mrf.mxu0
  %v1241 = vadd.f32 %v1192, %v1240
  %v1242 = vpop.f32.mrf.mxu0
  %1243 = vdwg.mxu0
  %1244 = vmatprep.subr.bf16.mxu0 0
  %1245 = vmatpush1.bf16.msra.mxu0 0
  %1246 = vmatprep.subr.bf16.mxu0 0
  %1247 = vmatpush1.bf16.msra.mxu0 0
  %1248 = vmatprep.subr.bf16.mxu0 0
  %1249 = vmatpush1.bf16.msra.mxu0 0
  %1250 = vmatprep.subr.bf16.mxu0 0
  %1251 = vmatpush1.bf16.msra.mxu0 0
  %1252 = vmatprep.subr.bf16.mxu0 0
  %1253 = vmatpush1.bf16.msra.mxu0 0
  %1254 = vmatprep.subr.bf16.mxu0 0
  %1255 = vmatpush1.bf16.msra.mxu0 0
  %1256 = vmatprep.subr.bf16.mxu0 0
  %1257 = vmatpush1.bf16.msra.mxu0 %v459
  %1258 = vmatprep.subr.bf16.mxu0 0
  %1259 = vmatpush1.bf16.msra.mxu0 %v458
  %1260 = vmatprep.subr.bf16.mxu0 0
  %1261 = vmatpush2.bf16.msra.mxu0 0
  %1262 = vmatprep.subr.bf16.mxu0 0
  %1263 = vmatpush2.bf16.msra.mxu0 0
  %1264 = vmatprep.subr.bf16.mxu0 0
  %1265 = vmatpush2.bf16.msra.mxu0 0
  %1266 = vmatprep.subr.bf16.mxu0 0
  %1267 = vmatpush2.bf16.msra.mxu0 0
  %1268 = vmatprep.subr.bf16.mxu0 0
  %1269 = vmatpush2.bf16.msra.mxu0 0
  %1270 = vmatprep.subr.bf16.mxu0 0
  %1271 = vmatpush2.bf16.msra.mxu0 0
  %1272 = vmatprep.subr.bf16.mxu0 0
  %1273 = vmatpush2.bf16.msra.mxu0 0
  %1274 = vmatprep.subr.bf16.mxu0 0
  %1275 = vmatpush2.bf16.msra.mxu0 0
  %1276 = vmatprep.mubr.bf16.mxu0 0
  %1277 = vmatmul.mubr.bf16.gmra.mxu0 %v1092
  %v1278 = vpop.f32.mrf.mxu0
  %v1279 = vadd.f32 %v1230, %v1278
  %v1280 = vpop.f32.mrf.mxu0
  %v1281 = vpop.f32.mrf.mxu0
  %v1282 = vadd.f32 %v1233, %v1281
  %v1283 = vpop.f32.mrf.mxu0
  %1284 = vmatprep.mubr.bf16.mxu0 0
  %1285 = vmatmul.mubr.bf16.gmra.mxu0 %v1095
  %v1286 = vpop.f32.mrf.mxu0
  %v1287 = vadd.f32 %v1238, %v1286
  %v1288 = vpop.f32.mrf.mxu0
  %v1289 = vpop.f32.mrf.mxu0
  %v1290 = vadd.f32 %v1241, %v1289
  %v1291 = vpop.f32.mrf.mxu0
  %1292 = vdwg.mxu0
  %v1293 = vld [vmem:[%s3] sm:$0xff]
  %v1294 = vld [vmem:[%s3 + $0x8] sm:$0xff]
  %v1295 = vld [vmem:[%s3 + $0x10] sm:$0xff]
  %v1296 = vld [vmem:[%s3 + $0x18] sm:$0xf]
  %v1297 = vld [vmem:[%s3 + $0x1c] sm:$0xff]
  %v1298 = vld [vmem:[%s3 + $0x24] sm:$0xff]
  %v1299 = vld [vmem:[%s3 + $0x2c] sm:$0xff]
  %v1300 = vld [vmem:[%s3 + $0x34] sm:$0xf]
  %v1301 = vld [vmem:[%s3 + $0x38] sm:$0xff]
  %v1302 = vld [vmem:[%s3 + $0x40] sm:$0xff]
  %v1303 = vld [vmem:[%s3 + $0x48] sm:$0xff]
  %v1304 = vld [vmem:[%s3 + $0x50] sm:$0xf]
  %v1305 = vld [vmem:[%s3 + $0x54] sm:$0xff]
  %v1306 = vld [vmem:[%s3 + $0x5c] sm:$0xff]
  %v1307 = vld [vmem:[%s3 + $0x64] sm:$0xff]
  %v1308 = vld [vmem:[%s3 + $0x6c] sm:$0xf]
  %v1325 = vunpack.c.l.b16 %v1293
  %v1326 = vunpack.c.h.b16 %v1293
  %v1327 = vunpack.c.l.b16 %v1294
  %v1328 = vunpack.c.h.b16 %v1294
  %v1329 = vunpack.c.l.b16 %v1295
  %v1330 = vunpack.c.h.b16 %v1295
  %v1331 = vunpack.c.l.b16 %v1296
  %v1332 = vunpack.c.l.b16 %v1297
  %v1333 = vunpack.c.h.b16 %v1297
  %v1334 = vunpack.c.l.b16 %v1298
  %v1335 = vunpack.c.h.b16 %v1298
  %v1336 = vunpack.c.l.b16 %v1299
  %v1337 = vunpack.c.h.b16 %v1299
  %v1338 = vunpack.c.l.b16 %v1300
  %v1339 = vunpack.c.l.b16 %v1301
  %v1340 = vunpack.c.h.b16 %v1301
  %v1341 = vunpack.c.l.b16 %v1302
  %v1342 = vunpack.c.h.b16 %v1302
  %v1343 = vunpack.c.l.b16 %v1303
  %v1344 = vunpack.c.h.b16 %v1303
  %v1345 = vunpack.c.l.b16 %v1304
  %v1346 = vunpack.c.l.b16 %v1305
  %v1347 = vunpack.c.h.b16 %v1305
  %v1348 = vunpack.c.l.b16 %v1306
  %v1349 = vunpack.c.h.b16 %v1306
  %v1350 = vunpack.c.l.b16 %v1307
  %v1351 = vunpack.c.h.b16 %v1307
  %v1352 = vunpack.c.l.b16 %v1308
  %v1353 = vpack.c.b16 %v1332, %v1325
  %v1354 = vpack.c.b16 %v1333, %v1326
  %v1355 = vpack.c.b16 %v1334, %v1327
  %v1356 = vpack.c.b16 %v1335, %v1328
  %v1357 = vpack.c.b16 %v1336, %v1329
  %v1358 = vpack.c.b16 %v1337, %v1330
  %v1359 = vpack.c.b16 %v1338, %v1331
  %v1360 = vpack.c.b16 %v1346, %v1339
  %v1361 = vpack.c.b16 %v1347, %v1340
  %v1362 = vpack.c.b16 %v1348, %v1341
  %v1363 = vpack.c.b16 %v1349, %v1342
  %v1364 = vpack.c.b16 %v1350, %v1343
  %v1365 = vpack.c.b16 %v1351, %v1344
  %v1366 = vpack.c.b16 %v1352, %v1345
  %v1380 = vsel %vm510, %v1359, 0
  %v1383 = vsel %vm510, %v1366, 0
  %1385 = vmatprep.subr.bf16.mxu0 0
  %1386 = vmatpush1.bf16.msra.mxu0 %v417
  %1387 = vmatprep.subr.bf16.mxu0 0
  %1388 = vmatpush1.bf16.msra.mxu0 %v416
  %1389 = vmatprep.subr.bf16.mxu0 0
  %1390 = vmatpush1.bf16.msra.mxu0 %v415
  %1391 = vmatprep.subr.bf16.mxu0 0
  %1392 = vmatpush1.bf16.msra.mxu0 %v414
  %1393 = vmatprep.subr.bf16.mxu0 0
  %1394 = vmatpush1.bf16.msra.mxu0 %v413
  %1395 = vmatprep.subr.bf16.mxu0 0
  %1396 = vmatpush1.bf16.msra.mxu0 %v412
  %1397 = vmatprep.subr.bf16.mxu0 0
  %1398 = vmatpush1.bf16.msra.mxu0 %v411
  %1399 = vmatprep.subr.bf16.mxu0 0
  %1400 = vmatpush1.bf16.msra.mxu0 %v410
  %1401 = vmatprep.subr.bf16.mxu0 0
  %1402 = vmatpush2.bf16.msra.mxu0 %v425
  %1403 = vmatprep.subr.bf16.mxu0 0
  %1404 = vmatpush2.bf16.msra.mxu0 %v424
  %1405 = vmatprep.subr.bf16.mxu0 0
  %1406 = vmatpush2.bf16.msra.mxu0 %v423
  %1407 = vmatprep.subr.bf16.mxu0 0
  %1408 = vmatpush2.bf16.msra.mxu0 %v422
  %1409 = vmatprep.subr.bf16.mxu0 0
  %1410 = vmatpush2.bf16.msra.mxu0 %v421
  %1411 = vmatprep.subr.bf16.mxu0 0
  %1412 = vmatpush2.bf16.msra.mxu0 %v420
  %1413 = vmatprep.subr.bf16.mxu0 0
  %1414 = vmatpush2.bf16.msra.mxu0 %v419
  %1415 = vmatprep.subr.bf16.mxu0 0
  %1416 = vmatpush2.bf16.msra.mxu0 %v418
  %1417 = vmatprep.mubr.bf16.mxu0 %v1354
  %1418 = vmatmul.mubr.bf16.gmra.mxu0 %v1353
  %v1419 = vpop.f32.mrf.mxu0
  %v1420 = vadd.f32 0.0, %v1419
  %v1421 = vpop.f32.mrf.mxu0
  %v1422 = vpop.f32.mrf.mxu0
  %v1423 = vadd.f32 0.0, %v1422
  %v1424 = vpop.f32.mrf.mxu0
  %1425 = vmatprep.mubr.bf16.mxu0 %v1361
  %1426 = vmatmul.mubr.bf16.gmra.mxu0 %v1360
  %v1427 = vpop.f32.mrf.mxu0
  %v1428 = vadd.f32 0.0, %v1427
  %v1429 = vpop.f32.mrf.mxu0
  %v1430 = vpop.f32.mrf.mxu0
  %v1431 = vadd.f32 0.0, %v1430
  %v1432 = vpop.f32.mrf.mxu0
  %1433 = vdwg.mxu0
  %1434 = vmatprep.subr.bf16.mxu0 0
  %1435 = vmatpush1.bf16.msra.mxu0 %v433
  %1436 = vmatprep.subr.bf16.mxu0 0
  %1437 = vmatpush1.bf16.msra.mxu0 %v432
  %1438 = vmatprep.subr.bf16.mxu0 0
  %1439 = vmatpush1.bf16.msra.mxu0 %v431
  %1440 = vmatprep.subr.bf16.mxu0 0
  %1441 = vmatpush1.bf16.msra.mxu0 %v430
  %1442 = vmatprep.subr.bf16.mxu0 0
  %1443 = vmatpush1.bf16.msra.mxu0 %v429
  %1444 = vmatprep.subr.bf16.mxu0 0
  %1445 = vmatpush1.bf16.msra.mxu0 %v428
  %1446 = vmatprep.subr.bf16.mxu0 0
  %1447 = vmatpush1.bf16.msra.mxu0 %v427
  %1448 = vmatprep.subr.bf16.mxu0 0
  %1449 = vmatpush1.bf16.msra.mxu0 %v426
  %1450 = vmatprep.subr.bf16.mxu0 0
  %1451 = vmatpush2.bf16.msra.mxu0 %v441
  %1452 = vmatprep.subr.bf16.mxu0 0
  %1453 = vmatpush2.bf16.msra.mxu0 %v440
  %1454 = vmatprep.subr.bf16.mxu0 0
  %1455 = vmatpush2.bf16.msra.mxu0 %v439
  %1456 = vmatprep.subr.bf16.mxu0 0
  %1457 = vmatpush2.bf16.msra.mxu0 %v438
  %1458 = vmatprep.subr.bf16.mxu0 0
  %1459 = vmatpush2.bf16.msra.mxu0 %v437
  %1460 = vmatprep.subr.bf16.mxu0 0
  %1461 = vmatpush2.bf16.msra.mxu0 %v436
  %1462 = vmatprep.subr.bf16.mxu0 0
  %1463 = vmatpush2.bf16.msra.mxu0 %v435
  %1464 = vmatprep.subr.bf16.mxu0 0
  %1465 = vmatpush2.bf16.msra.mxu0 %v434
  %1466 = vmatprep.mubr.bf16.mxu0 %v1356
  %1467 = vmatmul.mubr.bf16.gmra.mxu0 %v1355
  %v1468 = vpop.f32.mrf.mxu0
  %v1469 = vadd.f32 %v1420, %v1468
  %v1470 = vpop.f32.mrf.mxu0
  %v1471 = vpop.f32.mrf.mxu0
  %v1472 = vadd.f32 %v1423, %v1471
  %v1473 = vpop.f32.mrf.mxu0
  %1474 = vmatprep.mubr.bf16.mxu0 %v1363
  %1475 = vmatmul.mubr.bf16.gmra.mxu0 %v1362
  %v1476 = vpop.f32.mrf.mxu0
  %v1477 = vadd.f32 %v1428, %v1476
  %v1478 = vpop.f32.mrf.mxu0
  %v1479 = vpop.f32.mrf.mxu0
  %v1480 = vadd.f32 %v1431, %v1479
  %v1481 = vpop.f32.mrf.mxu0
  %1482 = vdwg.mxu0
  %1483 = vmatprep.subr.bf16.mxu0 0
  %1484 = vmatpush1.bf16.msra.mxu0 %v449
  %1485 = vmatprep.subr.bf16.mxu0 0
  %1486 = vmatpush1.bf16.msra.mxu0 %v448
  %1487 = vmatprep.subr.bf16.mxu0 0
  %1488 = vmatpush1.bf16.msra.mxu0 %v447
  %1489 = vmatprep.subr.bf16.mxu0 0
  %1490 = vmatpush1.bf16.msra.mxu0 %v446
  %1491 = vmatprep.subr.bf16.mxu0 0
  %1492 = vmatpush1.bf16.msra.mxu0 %v445
  %1493 = vmatprep.subr.bf16.mxu0 0
  %1494 = vmatpush1.bf16.msra.mxu0 %v444
  %1495 = vmatprep.subr.bf16.mxu0 0
  %1496 = vmatpush1.bf16.msra.mxu0 %v443
  %1497 = vmatprep.subr.bf16.mxu0 0
  %1498 = vmatpush1.bf16.msra.mxu0 %v442
  %1499 = vmatprep.subr.bf16.mxu0 0
  %1500 = vmatpush2.bf16.msra.mxu0 %v457
  %1501 = vmatprep.subr.bf16.mxu0 0
  %1502 = vmatpush2.bf16.msra.mxu0 %v456
  %1503 = vmatprep.subr.bf16.mxu0 0
  %1504 = vmatpush2.bf16.msra.mxu0 %v455
  %1505 = vmatprep.subr.bf16.mxu0 0
  %1506 = vmatpush2.bf16.msra.mxu0 %v454
  %1507 = vmatprep.subr.bf16.mxu0 0
  %1508 = vmatpush2.bf16.msra.mxu0 %v453
  %1509 = vmatprep.subr.bf16.mxu0 0
  %1510 = vmatpush2.bf16.msra.mxu0 %v452
  %1511 = vmatprep.subr.bf16.mxu0 0
  %1512 = vmatpush2.bf16.msra.mxu0 %v451
  %1513 = vmatprep.subr.bf16.mxu0 0
  %1514 = vmatpush2.bf16.msra.mxu0 %v450
  %1515 = vmatprep.mubr.bf16.mxu0 %v1358
  %1516 = vmatmul.mubr.bf16.gmra.mxu0 %v1357
  %v1517 = vpop.f32.mrf.mxu0
  %v1518 = vadd.f32 %v1469, %v1517
  %v1519 = vpop.f32.mrf.mxu0
  %v1520 = vpop.f32.mrf.mxu0
  %v1521 = vadd.f32 %v1472, %v1520
  %v1522 = vpop.f32.mrf.mxu0
  %1523 = vmatprep.mubr.bf16.mxu0 %v1365
  %1524 = vmatmul.mubr.bf16.gmra.mxu0 %v1364
  %v1525 = vpop.f32.mrf.mxu0
  %v1526 = vadd.f32 %v1477, %v1525
  %v1527 = vpop.f32.mrf.mxu0
  %v1528 = vpop.f32.mrf.mxu0
  %v1529 = vadd.f32 %v1480, %v1528
  %v1530 = vpop.f32.mrf.mxu0
  %1531 = vdwg.mxu0
  %1532 = vmatprep.subr.bf16.mxu0 0
  %1533 = vmatpush1.bf16.msra.mxu0 0
  %1534 = vmatprep.subr.bf16.mxu0 0
  %1535 = vmatpush1.bf16.msra.mxu0 0
  %1536 = vmatprep.subr.bf16.mxu0 0
  %1537 = vmatpush1.bf16.msra.mxu0 0
  %1538 = vmatprep.subr.bf16.mxu0 0
  %1539 = vmatpush1.bf16.msra.mxu0 0
  %1540 = vmatprep.subr.bf16.mxu0 0
  %1541 = vmatpush1.bf16.msra.mxu0 0
  %1542 = vmatprep.subr.bf16.mxu0 0
  %1543 = vmatpush1.bf16.msra.mxu0 0
  %1544 = vmatprep.subr.bf16.mxu0 0
  %1545 = vmatpush1.bf16.msra.mxu0 %v459
  %1546 = vmatprep.subr.bf16.mxu0 0
  %1547 = vmatpush1.bf16.msra.mxu0 %v458
  %1548 = vmatprep.subr.bf16.mxu0 0
  %1549 = vmatpush2.bf16.msra.mxu0 0
  %1550 = vmatprep.subr.bf16.mxu0 0
  %1551 = vmatpush2.bf16.msra.mxu0 0
  %1552 = vmatprep.subr.bf16.mxu0 0
  %1553 = vmatpush2.bf16.msra.mxu0 0
  %1554 = vmatprep.subr.bf16.mxu0 0
  %1555 = vmatpush2.bf16.msra.mxu0 0
  %1556 = vmatprep.subr.bf16.mxu0 0
  %1557 = vmatpush2.bf16.msra.mxu0 0
  %1558 = vmatprep.subr.bf16.mxu0 0
  %1559 = vmatpush2.bf16.msra.mxu0 0
  %1560 = vmatprep.subr.bf16.mxu0 0
  %1561 = vmatpush2.bf16.msra.mxu0 0
  %1562 = vmatprep.subr.bf16.mxu0 0
  %1563 = vmatpush2.bf16.msra.mxu0 0
  %1564 = vmatprep.mubr.bf16.mxu0 0
  %1565 = vmatmul.mubr.bf16.gmra.mxu0 %v1380
  %v1566 = vpop.f32.mrf.mxu0
  %v1567 = vadd.f32 %v1518, %v1566
  %v1568 = vpop.f32.mrf.mxu0
  %v1569 = vpop.f32.mrf.mxu0
  %v1570 = vadd.f32 %v1521, %v1569
  %v1571 = vpop.f32.mrf.mxu0
  %1572 = vmatprep.mubr.bf16.mxu0 0
  %1573 = vmatmul.mubr.bf16.gmra.mxu0 %v1383
  %v1574 = vpop.f32.mrf.mxu0
  %v1575 = vadd.f32 %v1526, %v1574
  %v1576 = vpop.f32.mrf.mxu0
  %v1577 = vpop.f32.mrf.mxu0
  %v1578 = vadd.f32 %v1529, %v1577
  %v1579 = vpop.f32.mrf.mxu0
  %1580 = vdwg.mxu0
  %v1581 = vmax.f32 %v1279, %v1567
  %v1582 = vmax.f32 %v1282, %v1570
  %v1583 = vmax.f32 %v1287, %v1575
  %v1584 = vmax.f32 %v1290, %v1578
  %v1585 = vmax.f32 %v1001, %v1581
  %v1586 = vmax.f32 %v1002, %v1582
  %v1587 = vmax.f32 %v1003, %v1583
  %v1588 = vmax.f32 %v1004, %v1584
  %v1589 = vld [vmem:[%s5] sm:$0x1]
  %v1591 = vlaneseq
  %v1592 = vshrl.u32 %v1591, 7
  %v1593 = vsub.s32 0, %v1592
  %v1594 = vrot.slane %v1589, %v1593
  %v1596 = vadd.f32 %v1585, %v1594
  %v1597 = vadd.f32 %v1586, %v1594
  %v1598 = vadd.f32 %v1587, %v1594
  %v1599 = vadd.f32 %v1588, %v1594
  %v1600 = vpack.c.bf16 %v1597, %v1596
  %v1601 = vpack.c.bf16 %v1599, %v1598
  %v1604 = vunpack.c.l.b16 %v1600
  %v1605 = vunpack.c.h.b16 %v1600
  %v1606 = vunpack.c.l.b16 %v1601
  %v1607 = vunpack.c.h.b16 %v1601
  %v1608 = vpack.c.b16 %v1604, %v1604
  %v1609 = vpack.c.b16 %v1605, %v1605
  %v1610 = vpack.c.b16 %v1606, %v1606
  %v1611 = vpack.c.b16 %v1607, %v1607
  %vm1616 = vcmask 519168
  %1617 = vst.msk [vmem:[%s6] sm:$0xf] %vm1616, %v1608
  %1618 = vst.msk [vmem:[%s6 + $0x4] sm:$0xf] %vm1616, %v1609
  %1619 = vst.msk [vmem:[%s6 + $0x8] sm:$0xf] %vm1616, %v1610
  %1620 = vst.msk [vmem:[%s6 + $0xc] sm:$0xf] %vm1616, %v1611
  // Predicated region
  $region26: #{hgl_forward.6} parent=0 // pred_check
    _
  $region27: #{hgl_forward.6} parent=0 // pred_check_branch
    %1622 = sbr.rel (0) target = $region29
  $region28: #{hgl_forward.6} parent=0 // pred_region
    _
  $region29: #{hgl_forward.6} parent=0 // pred_fallthru
    _
  // Predicated region
  $region30: #{hgl_forward.6} parent=0 // pred_check
    _
  $region31: #{hgl_forward.6} parent=0 // pred_check_branch
    %1624 = sbr.rel (0) target = $region33
  $region32: #{hgl_forward.6} parent=0 // pred_region
    _
  $region33: #{hgl_forward.6} parent=0 // pred_fallthru
    _

// kernel: hgl_forward.7
$region0: #{hgl_forward.7}
  #allocation0 [shape = 'u32[]', space=smem, size = 0x4, offset = 0x4, fixed_abs, tag = 'smem constant byte address 0x4 - core index']
  #allocation1 [shape = 'u32[144,128]{1,0:T(1,128)}', space=vmem, size = 0x12000, scoped, tag = 'internal scratch']
  %s0 = inlined_call_operand.vmem [shape: bf16[2,1024], index: 0, kind: input, shape index: {}]
  %s1 = inlined_call_operand.vmem [shape: bf16[1024,10], index: 1, kind: input, shape index: {}]
  %s2 = inlined_call_operand.vmem [shape: f32[1,10], index: 2, kind: input, shape index: {}]
  %s3 = inlined_call_operand.hbm [shape: f32[2,10], index: 3, kind: output, shape index: {}]
  %s4 = sld [smem:[#allocation0]]
  $region22: #{hgl_forward.7} parent=0
    _
  %s6 = ssub.s32 1, %s4
  %s7 = scalar_select 0, %s6, %s4
  $region1: #{hgl_forward.7} parent=0
    #allocation2 [shape = 'u8[1024]{0}', space=vmem, size = 0x400, scoped, tag = 'output window, operand 0, single buffered']
    #allocation3 [shape = 's32[1]{0}', space=sflag, size = 0x4, scoped, tag = 'scoped memory for hgl_forward.7']
    %8 = vsyncpa [#allocation3], 0
    // Predicated region
    $region2: #{hgl_forward.7} parent=1 // pred_check
      _
    $region3: #{hgl_forward.7} parent=1 // pred_check_branch
      %10 = sbr.rel (0) target = $region5
    $region4: #{hgl_forward.7} parent=1 // pred_region
      _
    $region5: #{hgl_forward.7} parent=1 // pred_fallthru
      _
    // Predicated region
    $region6: #{hgl_forward.7} parent=1 // pred_check
      _
    $region7: #{hgl_forward.7} parent=1 // pred_check_branch
      %12 = sbr.rel (0) target = $region9
    $region8: #{hgl_forward.7} parent=1 // pred_region
      _
    $region9: #{hgl_forward.7} parent=1 // pred_fallthru
      _
    // Predicated region
    $region10: #{hgl_forward.7} parent=1 // pred_check
      _
    $region11: #{hgl_forward.7} parent=1 // pred_check_branch
      %14 = sbr.rel (0) target = $region13
    $region12: #{hgl_forward.7} parent=1 // pred_region
      _
    $region13: #{hgl_forward.7} parent=1 // pred_fallthru
      _
    %v16 = vld [vmem:[%s0] sm:$0xff]
    %v17 = vld [vmem:[%s1] sm:$0xf]
    %v18 = vld [vmem:[%s1 + $0x4] sm:$0xf]
    %v19 = vld [vmem:[%s1 + $0x8] sm:$0xf]
    %v20 = vld [vmem:[%s1 + $0xc] sm:$0xf]
    %v21 = vld [vmem:[%s1 + $0x10] sm:$0xf]
    %v22 = vld [vmem:[%s1 + $0x14] sm:$0xf]
    %v23 = vld [vmem:[%s1 + $0x18] sm:$0xf]
    %v24 = vld [vmem:[%s1 + $0x1c] sm:$0xf]
    %v25 = vld [vmem:[%s1 + $0x20] sm:$0xf]
    %v26 = vld [vmem:[%s1 + $0x24] sm:$0xf]
    %v27 = vld [vmem:[%s1 + $0x28] sm:$0xf]
    %v28 = vld [vmem:[%s1 + $0x2c] sm:$0xf]
    %v29 = vld [vmem:[%s1 + $0x30] sm:$0xf]
    %v30 = vld [vmem:[%s1 + $0x34] sm:$0xf]
    %v31 = vld [vmem:[%s1 + $0x38] sm:$0xf]
    %v32 = vld [vmem:[%s1 + $0x3c] sm:$0xf]
    %v33 = vld [vmem:[%s1 + $0x40] sm:$0xf]
    %v34 = vld [vmem:[%s1 + $0x44] sm:$0xf]
    %v35 = vld [vmem:[%s1 + $0x48] sm:$0xf]
    %v36 = vld [vmem:[%s1 + $0x4c] sm:$0xf]
    %v37 = vld [vmem:[%s1 + $0x50] sm:$0xf]
    %v38 = vld [vmem:[%s1 + $0x54] sm:$0xf]
    %v39 = vld [vmem:[%s1 + $0x58] sm:$0xf]
    %v40 = vld [vmem:[%s1 + $0x5c] sm:$0xf]
    %v41 = vld [vmem:[%s1 + $0x60] sm:$0xf]
    %v42 = vld [vmem:[%s1 + $0x64] sm:$0xf]
    %v43 = vld [vmem:[%s1 + $0x68] sm:$0xf]
    %v44 = vld [vmem:[%s1 + $0x6c] sm:$0xf]
    %v45 = vld [vmem:[%s1 + $0x70] sm:$0xf]
    %v46 = vld [vmem:[%s1 + $0x74] sm:$0xf]
    %v47 = vld [vmem:[%s1 + $0x78] sm:$0xf]
    %v48 = vld [vmem:[%s1 + $0x7c] sm:$0xf]
    %v49 = vld [vmem:[%s1 + $0x80] sm:$0xf]
    %v50 = vld [vmem:[%s1 + $0x84] sm:$0xf]
    %v51 = vld [vmem:[%s1 + $0x88] sm:$0xf]
    %v52 = vld [vmem:[%s1 + $0x8c] sm:$0xf]
    %v53 = vld [vmem:[%s1 + $0x90] sm:$0xf]
    %v54 = vld [vmem:[%s1 + $0x94] sm:$0xf]
    %v55 = vld [vmem:[%s1 + $0x98] sm:$0xf]
    %v56 = vld [vmem:[%s1 + $0x9c] sm:$0xf]
    %v57 = vld [vmem:[%s1 + $0xa0] sm:$0xf]
    %v58 = vld [vmem:[%s1 + $0xa4] sm:$0xf]
    %v59 = vld [vmem:[%s1 + $0xa8] sm:$0xf]
    %v60 = vld [vmem:[%s1 + $0xac] sm:$0xf]
    %v61 = vld [vmem:[%s1 + $0xb0] sm:$0xf]
    %v62 = vld [vmem:[%s1 + $0xb4] sm:$0xf]
    %v63 = vld [vmem:[%s1 + $0xb8] sm:$0xf]
    %v64 = vld [vmem:[%s1 + $0xbc] sm:$0xf]
    %v65 = vld [vmem:[%s1 + $0xc0] sm:$0xf]
    %v66 = vld [vmem:[%s1 + $0xc4] sm:$0xf]
    %v67 = vld [vmem:[%s1 + $0xc8] sm:$0xf]
    %v68 = vld [vmem:[%s1 + $0xcc] sm:$0xf]
    %v69 = vld [vmem:[%s1 + $0xd0] sm:$0xf]
    %v70 = vld [vmem:[%s1 + $0xd4] sm:$0xf]
    %v71 = vld [vmem:[%s1 + $0xd8] sm:$0xf]
    %v72 = vld [vmem:[%s1 + $0xdc] sm:$0xf]
    %v73 = vld [vmem:[%s1 + $0xe0] sm:$0xf]
    %v74 = vld [vmem:[%s1 + $0xe4] sm:$0xf]
    %v75 = vld [vmem:[%s1 + $0xe8] sm:$0xf]
    %v76 = vld [vmem:[%s1 + $0xec] sm:$0xf]
    %v77 = vld [vmem:[%s1 + $0xf0] sm:$0xf]
    %v78 = vld [vmem:[%s1 + $0xf4] sm:$0xf]
    %v79 = vld [vmem:[%s1 + $0xf8] sm:$0xf]
    %v80 = vld [vmem:[%s1 + $0xfc] sm:$0xf]
    %v81 = vld [vmem:[%s1 + $0x100] sm:$0xf]
    %v82 = vld [vmem:[%s1 + $0x104] sm:$0xf]
    %v83 = vld [vmem:[%s1 + $0x108] sm:$0xf]
    %v84 = vld [vmem:[%s1 + $0x10c] sm:$0xf]
    %v85 = vld [vmem:[%s1 + $0x110] sm:$0xf]
    %v86 = vld [vmem:[%s1 + $0x114] sm:$0xf]
    %v87 = vld [vmem:[%s1 + $0x118] sm:$0xf]
    %v88 = vld [vmem:[%s1 + $0x11c] sm:$0xf]
    %v89 = vld [vmem:[%s1 + $0x120] sm:$0xf]
    %v90 = vld [vmem:[%s1 + $0x124] sm:$0xf]
    %v91 = vld [vmem:[%s1 + $0x128] sm:$0xf]
    %v92 = vld [vmem:[%s1 + $0x12c] sm:$0xf]
    %v93 = vld [vmem:[%s1 + $0x130] sm:$0xf]
    %v94 = vld [vmem:[%s1 + $0x134] sm:$0xf]
    %v95 = vld [vmem:[%s1 + $0x138] sm:$0xf]
    %v96 = vld [vmem:[%s1 + $0x13c] sm:$0xf]
    %v97 = vld [vmem:[%s1 + $0x140] sm:$0xf]
    %v98 = vld [vmem:[%s1 + $0x144] sm:$0xf]
    %v99 = vld [vmem:[%s1 + $0x148] sm:$0xf]
    %v100 = vld [vmem:[%s1 + $0x14c] sm:$0xf]
    %v101 = vld [vmem:[%s1 + $0x150] sm:$0xf]
    %v102 = vld [vmem:[%s1 + $0x154] sm:$0xf]
    %v103 = vld [vmem:[%s1 + $0x158] sm:$0xf]
    %v104 = vld [vmem:[%s1 + $0x15c] sm:$0xf]
    %v105 = vld [vmem:[%s1 + $0x160] sm:$0xf]
    %v106 = vld [vmem:[%s1 + $0x164] sm:$0xf]
    %v107 = vld [vmem:[%s1 + $0x168] sm:$0xf]
    %v108 = vld [vmem:[%s1 + $0x16c] sm:$0xf]
    %v109 = vld [vmem:[%s1 + $0x170] sm:$0xf]
    %v110 = vld [vmem:[%s1 + $0x174] sm:$0xf]
    %v111 = vld [vmem:[%s1 + $0x178] sm:$0xf]
    %v112 = vld [vmem:[%s1 + $0x17c] sm:$0xf]
    %v113 = vld [vmem:[%s1 + $0x180] sm:$0xf]
    %v114 = vld [vmem:[%s1 + $0x184] sm:$0xf]
    %v115 = vld [vmem:[%s1 + $0x188] sm:$0xf]
    %v116 = vld [vmem:[%s1 + $0x18c] sm:$0xf]
    %v117 = vld [vmem:[%s1 + $0x190] sm:$0xf]
    %v118 = vld [vmem:[%s1 + $0x194] sm:$0xf]
    %v119 = vld [vmem:[%s1 + $0x198] sm:$0xf]
    %v120 = vld [vmem:[%s1 + $0x19c] sm:$0xf]
    %v121 = vld [vmem:[%s1 + $0x1a0] sm:$0xf]
    %v122 = vld [vmem:[%s1 + $0x1a4] sm:$0xf]
    %v123 = vld [vmem:[%s1 + $0x1a8] sm:$0xf]
    %v124 = vld [vmem:[%s1 + $0x1ac] sm:$0xf]
    %v125 = vld [vmem:[%s1 + $0x1b0] sm:$0xf]
    %v126 = vld [vmem:[%s1 + $0x1b4] sm:$0xf]
    %v127 = vld [vmem:[%s1 + $0x1b8] sm:$0xf]
    %v128 = vld [vmem:[%s1 + $0x1bc] sm:$0xf]
    %v129 = vld [vmem:[%s1 + $0x1c0] sm:$0xf]
    %v130 = vld [vmem:[%s1 + $0x1c4] sm:$0xf]
    %v131 = vld [vmem:[%s1 + $0x1c8] sm:$0xf]
    %v132 = vld [vmem:[%s1 + $0x1cc] sm:$0xf]
    %v133 = vld [vmem:[%s1 + $0x1d0] sm:$0xf]
    %v134 = vld [vmem:[%s1 + $0x1d4] sm:$0xf]
    %v135 = vld [vmem:[%s1 + $0x1d8] sm:$0xf]
    %v136 = vld [vmem:[%s1 + $0x1dc] sm:$0xf]
    %v137 = vld [vmem:[%s1 + $0x1e0] sm:$0xf]
    %v138 = vld [vmem:[%s1 + $0x1e4] sm:$0xf]
    %v139 = vld [vmem:[%s1 + $0x1e8] sm:$0xf]
    %v140 = vld [vmem:[%s1 + $0x1ec] sm:$0xf]
    %v141 = vld [vmem:[%s1 + $0x1f0] sm:$0xf]
    %v142 = vld [vmem:[%s1 + $0x1f4] sm:$0xf]
    %v143 = vld [vmem:[%s1 + $0x1f8] sm:$0xf]
    %v144 = vld [vmem:[%s1 + $0x1fc] sm:$0xf]
    %v145 = vld [vmem:[%s2] sm:$0x1]
    %v147 = vlaneseq
    %v148 = vshrl.u32 %v147, 7
    %v149 = vsub.s32 0, %v148
    %v150 = vrot.slane %v145, %v149
    %v153 = vcombine.high %v16, %v16
    %v155 = vunpack.c.l.s4 1966171168
    %v156 = vunpack.c.0.s8 %v155
    %v157 = vlaneseq
    %v158 = vshrl.u32 %v157, 7
    %v159 = vsub.s32 %v156, %v158
    %v160 = vrot.slane %v16, %v159
    %v162 = vunpack.c.l.s4 1966171168
    %v163 = vunpack.c.0.s8 %v162
    %v164 = vlaneseq
    %v165 = vshrl.u32 %v164, 7
    %v166 = vsub.s32 %v163, %v165
    %v167 = vrot.slane %v153, %v166
    %v168 = vcombine.high %v160, %v160
    %v169 = vcombine.high %v167, %v167
    %v171 = vunpack.c.l.s4 1966171168
    %v172 = vunpack.c.0.s8 %v171
    %v173 = vlaneseq
    %v174 = vshrl.u32 %v173, 7
    %v175 = vsub.s32 %v172, %v174
    %v176 = vrot.slane %v160, %v175
    %v178 = vunpack.c.l.s4 1966171168
    %v179 = vunpack.c.0.s8 %v178
    %v180 = vlaneseq
    %v181 = vshrl.u32 %v180, 7
    %v182 = vsub.s32 %v179, %v181
    %v183 = vrot.slane %v167, %v182
    %v185 = vunpack.c.l.s4 1966171168
    %v186 = vunpack.c.0.s8 %v185
    %v187 = vlaneseq
    %v188 = vshrl.u32 %v187, 7
    %v189 = vsub.s32 %v186, %v188
    %v190 = vrot.slane %v168, %v189
    %v192 = vunpack.c.l.s4 1966171168
    %v193 = vunpack.c.0.s8 %v192
    %v194 = vlaneseq
    %v195 = vshrl.u32 %v194, 7
    %v196 = vsub.s32 %v193, %v195
    %v197 = vrot.slane %v169, %v196
    %v198 = vcombine.high %v176, %v176
    %v199 = vcombine.high %v183, %v183
    %v200 = vcombine.high %v190, %v190
    %v201 = vcombine.high %v197, %v197
    %v338 = vunpack.c.l.b16 %v17
    %v339 = vunpack.c.l.b16 %v18
    %v340 = vunpack.c.l.b16 %v19
    %v341 = vunpack.c.l.b16 %v20
    %v342 = vunpack.c.l.b16 %v21
    %v343 = vunpack.c.l.b16 %v22
    %v344 = vunpack.c.l.b16 %v23
    %v345 = vunpack.c.l.b16 %v24
    %v346 = vunpack.c.l.b16 %v25
    %v347 = vunpack.c.l.b16 %v26
    %v348 = vunpack.c.l.b16 %v27
    %v349 = vunpack.c.l.b16 %v28
    %v350 = vunpack.c.l.b16 %v29
    %v351 = vunpack.c.l.b16 %v30
    %v352 = vunpack.c.l.b16 %v31
    %v353 = vunpack.c.l.b16 %v32
    %v354 = vunpack.c.l.b16 %v33
    %v355 = vunpack.c.l.b16 %v34
    %v356 = vunpack.c.l.b16 %v35
    %v357 = vunpack.c.l.b16 %v36
    %v358 = vunpack.c.l.b16 %v37
    %v359 = vunpack.c.l.b16 %v38
    %v360 = vunpack.c.l.b16 %v39
    %v361 = vunpack.c.l.b16 %v40
    %v362 = vunpack.c.l.b16 %v41
    %v363 = vunpack.c.l.b16 %v42
    %v364 = vunpack.c.l.b16 %v43
    %v365 = vunpack.c.l.b16 %v44
    %v366 = vunpack.c.l.b16 %v45
    %v367 = vunpack.c.l.b16 %v46
    %v368 = vunpack.c.l.b16 %v47
    %v369 = vunpack.c.l.b16 %v48
    %v370 = vunpack.c.l.b16 %v49
    %v371 = vunpack.c.l.b16 %v50
    %v372 = vunpack.c.l.b16 %v51
    %v373 = vunpack.c.l.b16 %v52
    %v374 = vunpack.c.l.b16 %v53
    %v375 = vunpack.c.l.b16 %v54
    %v376 = vunpack.c.l.b16 %v55
    %v377 = vunpack.c.l.b16 %v56
    %v378 = vunpack.c.l.b16 %v57
    %v379 = vunpack.c.l.b16 %v58
    %v380 = vunpack.c.l.b16 %v59
    %v381 = vunpack.c.l.b16 %v60
    %v382 = vunpack.c.l.b16 %v61
    %v383 = vunpack.c.l.b16 %v62
    %v384 = vunpack.c.l.b16 %v63
    %v385 = vunpack.c.l.b16 %v64
    %v386 = vunpack.c.l.b16 %v65
    %v387 = vunpack.c.l.b16 %v66
    %v388 = vunpack.c.l.b16 %v67
    %v389 = vunpack.c.l.b16 %v68
    %v390 = vunpack.c.l.b16 %v69
    %v391 = vunpack.c.l.b16 %v70
    %v392 = vunpack.c.l.b16 %v71
    %v393 = vunpack.c.l.b16 %v72
    %v394 = vunpack.c.l.b16 %v73
    %v395 = vunpack.c.l.b16 %v74
    %v396 = vunpack.c.l.b16 %v75
    %v397 = vunpack.c.l.b16 %v76
    %v398 = vunpack.c.l.b16 %v77
    %v399 = vunpack.c.l.b16 %v78
    %v400 = vunpack.c.l.b16 %v79
    %v401 = vunpack.c.l.b16 %v80
    %v402 = vunpack.c.l.b16 %v81
    %v403 = vunpack.c.l.b16 %v82
    %v404 = vunpack.c.l.b16 %v83
    %v405 = vunpack.c.l.b16 %v84
    %v406 = vunpack.c.l.b16 %v85
    %v407 = vunpack.c.l.b16 %v86
    %v408 = vunpack.c.l.b16 %v87
    %v409 = vunpack.c.l.b16 %v88
    %v410 = vunpack.c.l.b16 %v89
    %v411 = vunpack.c.l.b16 %v90
    %v412 = vunpack.c.l.b16 %v91
    %v413 = vunpack.c.l.b16 %v92
    %v414 = vunpack.c.l.b16 %v93
    %v415 = vunpack.c.l.b16 %v94
    %v416 = vunpack.c.l.b16 %v95
    %v417 = vunpack.c.l.b16 %v96
    %v418 = vunpack.c.l.b16 %v97
    %v419 = vunpack.c.l.b16 %v98
    %v420 = vunpack.c.l.b16 %v99
    %v421 = vunpack.c.l.b16 %v100
    %v422 = vunpack.c.l.b16 %v101
    %v423 = vunpack.c.l.b16 %v102
    %v424 = vunpack.c.l.b16 %v103
    %v425 = vunpack.c.l.b16 %v104
    %v426 = vunpack.c.l.b16 %v105
    %v427 = vunpack.c.l.b16 %v106
    %v428 = vunpack.c.l.b16 %v107
    %v429 = vunpack.c.l.b16 %v108
    %v430 = vunpack.c.l.b16 %v109
    %v431 = vunpack.c.l.b16 %v110
    %v432 = vunpack.c.l.b16 %v111
    %v433 = vunpack.c.l.b16 %v112
    %v434 = vunpack.c.l.b16 %v113
    %v435 = vunpack.c.l.b16 %v114
    %v436 = vunpack.c.l.b16 %v115
    %v437 = vunpack.c.l.b16 %v116
    %v438 = vunpack.c.l.b16 %v117
    %v439 = vunpack.c.l.b16 %v118
    %v440 = vunpack.c.l.b16 %v119
    %v441 = vunpack.c.l.b16 %v120
    %v442 = vunpack.c.l.b16 %v121
    %v443 = vunpack.c.l.b16 %v122
    %v444 = vunpack.c.l.b16 %v123
    %v445 = vunpack.c.l.b16 %v124
    %v446 = vunpack.c.l.b16 %v125
    %v447 = vunpack.c.l.b16 %v126
    %v448 = vunpack.c.l.b16 %v127
    %v449 = vunpack.c.l.b16 %v128
    %v450 = vunpack.c.l.b16 %v129
    %v451 = vunpack.c.l.b16 %v130
    %v452 = vunpack.c.l.b16 %v131
    %v453 = vunpack.c.l.b16 %v132
    %v454 = vunpack.c.l.b16 %v133
    %v455 = vunpack.c.l.b16 %v134
    %v456 = vunpack.c.l.b16 %v135
    %v457 = vunpack.c.l.b16 %v136
    %v458 = vunpack.c.l.b16 %v137
    %v459 = vunpack.c.l.b16 %v138
    %v460 = vunpack.c.l.b16 %v139
    %v461 = vunpack.c.l.b16 %v140
    %v462 = vunpack.c.l.b16 %v141
    %v463 = vunpack.c.l.b16 %v142
    %v464 = vunpack.c.l.b16 %v143
    %v465 = vunpack.c.l.b16 %v144
    %v466 = vpack.c.b16 %v339, %v338
    %v467 = vpack.c.b16 %v341, %v340
    %v468 = vpack.c.b16 %v343, %v342
    %v469 = vpack.c.b16 %v345, %v344
    %v470 = vpack.c.b16 %v347, %v346
    %v471 = vpack.c.b16 %v349, %v348
    %v472 = vpack.c.b16 %v351, %v350
    %v473 = vpack.c.b16 %v353, %v352
    %v474 = vpack.c.b16 %v355, %v354
    %v475 = vpack.c.b16 %v357, %v356
    %v476 = vpack.c.b16 %v359, %v358
    %v477 = vpack.c.b16 %v361, %v360
    %v478 = vpack.c.b16 %v363, %v362
    %v479 = vpack.c.b16 %v365, %v364
    %v480 = vpack.c.b16 %v367, %v366
    %v481 = vpack.c.b16 %v369, %v368
    %v482 = vpack.c.b16 %v371, %v370
    %v483 = vpack.c.b16 %v373, %v372
    %v484 = vpack.c.b16 %v375, %v374
    %v485 = vpack.c.b16 %v377, %v376
    %v486 = vpack.c.b16 %v379, %v378
    %v487 = vpack.c.b16 %v381, %v380
    %v488 = vpack.c.b16 %v383, %v382
    %v489 = vpack.c.b16 %v385, %v384
    %v490 = vpack.c.b16 %v387, %v386
    %v491 = vpack.c.b16 %v389, %v388
    %v492 = vpack.c.b16 %v391, %v390
    %v493 = vpack.c.b16 %v393, %v392
    %v494 = vpack.c.b16 %v395, %v394
    %v495 = vpack.c.b16 %v397, %v396
    %v496 = vpack.c.b16 %v399, %v398
    %v497 = vpack.c.b16 %v401, %v400
    %v498 = vpack.c.b16 %v403, %v402
    %v499 = vpack.c.b16 %v405, %v404
    %v500 = vpack.c.b16 %v407, %v406
    %v501 = vpack.c.b16 %v409, %v408
    %v502 = vpack.c.b16 %v411, %v410
    %v503 = vpack.c.b16 %v413, %v412
    %v504 = vpack.c.b16 %v415, %v414
    %v505 = vpack.c.b16 %v417, %v416
    %v506 = vpack.c.b16 %v419, %v418
    %v507 = vpack.c.b16 %v421, %v420
    %v508 = vpack.c.b16 %v423, %v422
    %v509 = vpack.c.b16 %v425, %v424
    %v510 = vpack.c.b16 %v427, %v426
    %v511 = vpack.c.b16 %v429, %v428
    %v512 = vpack.c.b16 %v431, %v430
    %v513 = vpack.c.b16 %v433, %v432
    %v514 = vpack.c.b16 %v435, %v434
    %v515 = vpack.c.b16 %v437, %v436
    %v516 = vpack.c.b16 %v439, %v438
    %v517 = vpack.c.b16 %v441, %v440
    %v518 = vpack.c.b16 %v443, %v442
    %v519 = vpack.c.b16 %v445, %v444
    %v520 = vpack.c.b16 %v447, %v446
    %v521 = vpack.c.b16 %v449, %v448
    %v522 = vpack.c.b16 %v451, %v450
    %v523 = vpack.c.b16 %v453, %v452
    %v524 = vpack.c.b16 %v455, %v454
    %v525 = vpack.c.b16 %v457, %v456
    %v526 = vpack.c.b16 %v459, %v458
    %v527 = vpack.c.b16 %v461, %v460
    %v528 = vpack.c.b16 %v463, %v462
    %v529 = vpack.c.b16 %v465, %v464
    %594 = vmatprep.subr.bf16.mxu0 0
    %595 = vmatpush1.bf16.msra.mxu0 %v473
    %596 = vmatprep.subr.bf16.mxu0 0
    %597 = vmatpush1.bf16.msra.mxu0 %v472
    %598 = vmatprep.subr.bf16.mxu0 0
    %599 = vmatpush1.bf16.msra.mxu0 %v471
    %600 = vmatprep.subr.bf16.mxu0 0
    %601 = vmatpush1.bf16.msra.mxu0 %v470
    %602 = vmatprep.subr.bf16.mxu0 0
    %603 = vmatpush1.bf16.msra.mxu0 %v469
    %604 = vmatprep.subr.bf16.mxu0 0
    %605 = vmatpush1.bf16.msra.mxu0 %v468
    %606 = vmatprep.subr.bf16.mxu0 0
    %607 = vmatpush1.bf16.msra.mxu0 %v467
    %608 = vmatprep.subr.bf16.mxu0 0
    %609 = vmatpush1.bf16.msra.mxu0 %v466
    %610 = vmatprep.subr.bf16.mxu0 0
    %611 = vmatpush2.bf16.msra.mxu0 %v481
    %612 = vmatprep.subr.bf16.mxu0 0
    %613 = vmatpush2.bf16.msra.mxu0 %v480
    %614 = vmatprep.subr.bf16.mxu0 0
    %615 = vmatpush2.bf16.msra.mxu0 %v479
    %616 = vmatprep.subr.bf16.mxu0 0
    %617 = vmatpush2.bf16.msra.mxu0 %v478
    %618 = vmatprep.subr.bf16.mxu0 0
    %619 = vmatpush2.bf16.msra.mxu0 %v477
    %620 = vmatprep.subr.bf16.mxu0 0
    %621 = vmatpush2.bf16.msra.mxu0 %v476
    %622 = vmatprep.subr.bf16.mxu0 0
    %623 = vmatpush2.bf16.msra.mxu0 %v475
    %624 = vmatprep.subr.bf16.mxu0 0
    %625 = vmatpush2.bf16.msra.mxu0 %v474
    %626 = vmatprep.mubr.bf16.mxu0 %v190
    %627 = vmatmul.mubr.bf16.gmra.mxu0 %v176
    %v628 = vpop.f32.mrf.mxu0
    %v629 = vadd.f32 %v150, %v628
    %v630 = vpop.f32.mrf.mxu0
    %v631 = vpop.f32.mrf.mxu0
    %v632 = vpop.f32.mrf.mxu0
    %633 = vdwg.mxu0
    %634 = vmatprep.subr.bf16.mxu0 0
    %635 = vmatpush1.bf16.msra.mxu0 %v489
    %636 = vmatprep.subr.bf16.mxu0 0
    %637 = vmatpush1.bf16.msra.mxu0 %v488
    %638 = vmatprep.subr.bf16.mxu0 0
    %639 = vmatpush1.bf16.msra.mxu0 %v487
    %640 = vmatprep.subr.bf16.mxu0 0
    %641 = vmatpush1.bf16.msra.mxu0 %v486
    %642 = vmatprep.subr.bf16.mxu0 0
    %643 = vmatpush1.bf16.msra.mxu0 %v485
    %644 = vmatprep.subr.bf16.mxu0 0
    %645 = vmatpush1.bf16.msra.mxu0 %v484
    %646 = vmatprep.subr.bf16.mxu0 0
    %647 = vmatpush1.bf16.msra.mxu0 %v483
    %648 = vmatprep.subr.bf16.mxu0 0
    %649 = vmatpush1.bf16.msra.mxu0 %v482
    %650 = vmatprep.subr.bf16.mxu0 0
    %651 = vmatpush2.bf16.msra.mxu0 %v497
    %652 = vmatprep.subr.bf16.mxu0 0
    %653 = vmatpush2.bf16.msra.mxu0 %v496
    %654 = vmatprep.subr.bf16.mxu0 0
    %655 = vmatpush2.bf16.msra.mxu0 %v495
    %656 = vmatprep.subr.bf16.mxu0 0
    %657 = vmatpush2.bf16.msra.mxu0 %v494
    %658 = vmatprep.subr.bf16.mxu0 0
    %659 = vmatpush2.bf16.msra.mxu0 %v493
    %660 = vmatprep.subr.bf16.mxu0 0
    %661 = vmatpush2.bf16.msra.mxu0 %v492
    %662 = vmatprep.subr.bf16.mxu0 0
    %663 = vmatpush2.bf16.msra.mxu0 %v491
    %664 = vmatprep.subr.bf16.mxu0 0
    %665 = vmatpush2.bf16.msra.mxu0 %v490
    %666 = vmatprep.mubr.bf16.mxu0 %v200
    %667 = vmatmul.mubr.bf16.gmra.mxu0 %v198
    %v668 = vpop.f32.mrf.mxu0
    %v669 = vadd.f32 %v629, %v668
    %v670 = vpop.f32.mrf.mxu0
    %v671 = vpop.f32.mrf.mxu0
    %v672 = vpop.f32.mrf.mxu0
    %673 = vdwg.mxu0
    %674 = vmatprep.subr.bf16.mxu0 0
    %675 = vmatpush1.bf16.msra.mxu0 %v505
    %676 = vmatprep.subr.bf16.mxu0 0
    %677 = vmatpush1.bf16.msra.mxu0 %v504
    %678 = vmatprep.subr.bf16.mxu0 0
    %679 = vmatpush1.bf16.msra.mxu0 %v503
    %680 = vmatprep.subr.bf16.mxu0 0
    %681 = vmatpush1.bf16.msra.mxu0 %v502
    %682 = vmatprep.subr.bf16.mxu0 0
    %683 = vmatpush1.bf16.msra.mxu0 %v501
    %684 = vmatprep.subr.bf16.mxu0 0
    %685 = vmatpush1.bf16.msra.mxu0 %v500
    %686 = vmatprep.subr.bf16.mxu0 0
    %687 = vmatpush1.bf16.msra.mxu0 %v499
    %688 = vmatprep.subr.bf16.mxu0 0
    %689 = vmatpush1.bf16.msra.mxu0 %v498
    %690 = vmatprep.subr.bf16.mxu0 0
    %691 = vmatpush2.bf16.msra.mxu0 %v513
    %692 = vmatprep.subr.bf16.mxu0 0
    %693 = vmatpush2.bf16.msra.mxu0 %v512
    %694 = vmatprep.subr.bf16.mxu0 0
    %695 = vmatpush2.bf16.msra.mxu0 %v511
    %696 = vmatprep.subr.bf16.mxu0 0
    %697 = vmatpush2.bf16.msra.mxu0 %v510
    %698 = vmatprep.subr.bf16.mxu0 0
    %699 = vmatpush2.bf16.msra.mxu0 %v509
    %700 = vmatprep.subr.bf16.mxu0 0
    %701 = vmatpush2.bf16.msra.mxu0 %v508
    %702 = vmatprep.subr.bf16.mxu0 0
    %703 = vmatpush2.bf16.msra.mxu0 %v507
    %704 = vmatprep.subr.bf16.mxu0 0
    %705 = vmatpush2.bf16.msra.mxu0 %v506
    %706 = vmatprep.mubr.bf16.mxu0 %v197
    %707 = vmatmul.mubr.bf16.gmra.mxu0 %v183
    %v708 = vpop.f32.mrf.mxu0
    %v709 = vadd.f32 %v669, %v708
    %v710 = vpop.f32.mrf.mxu0
    %v711 = vpop.f32.mrf.mxu0
    %v712 = vpop.f32.mrf.mxu0
    %713 = vdwg.mxu0
    %714 = vmatprep.subr.bf16.mxu0 0
    %715 = vmatpush1.bf16.msra.mxu0 %v521
    %716 = vmatprep.subr.bf16.mxu0 0
    %717 = vmatpush1.bf16.msra.mxu0 %v520
    %718 = vmatprep.subr.bf16.mxu0 0
    %719 = vmatpush1.bf16.msra.mxu0 %v519
    %720 = vmatprep.subr.bf16.mxu0 0
    %721 = vmatpush1.bf16.msra.mxu0 %v518
    %722 = vmatprep.subr.bf16.mxu0 0
    %723 = vmatpush1.bf16.msra.mxu0 %v517
    %724 = vmatprep.subr.bf16.mxu0 0
    %725 = vmatpush1.bf16.msra.mxu0 %v516
    %726 = vmatprep.subr.bf16.mxu0 0
    %727 = vmatpush1.bf16.msra.mxu0 %v515
    %728 = vmatprep.subr.bf16.mxu0 0
    %729 = vmatpush1.bf16.msra.mxu0 %v514
    %730 = vmatprep.subr.bf16.mxu0 0
    %731 = vmatpush2.bf16.msra.mxu0 %v529
    %732 = vmatprep.subr.bf16.mxu0 0
    %733 = vmatpush2.bf16.msra.mxu0 %v528
    %734 = vmatprep.subr.bf16.mxu0 0
    %735 = vmatpush2.bf16.msra.mxu0 %v527
    %736 = vmatprep.subr.bf16.mxu0 0
    %737 = vmatpush2.bf16.msra.mxu0 %v526
    %738 = vmatprep.subr.bf16.mxu0 0
    %739 = vmatpush2.bf16.msra.mxu0 %v525
    %740 = vmatprep.subr.bf16.mxu0 0
    %741 = vmatpush2.bf16.msra.mxu0 %v524
    %742 = vmatprep.subr.bf16.mxu0 0
    %743 = vmatpush2.bf16.msra.mxu0 %v523
    %744 = vmatprep.subr.bf16.mxu0 0
    %745 = vmatpush2.bf16.msra.mxu0 %v522
    %746 = vmatprep.mubr.bf16.mxu0 %v201
    %747 = vmatmul.mubr.bf16.gmra.mxu0 %v199
    %v748 = vpop.f32.mrf.mxu0
    %v749 = vadd.f32 %v709, %v748
    %v750 = vpop.f32.mrf.mxu0
    %v751 = vpop.f32.mrf.mxu0
    %v752 = vpop.f32.mrf.mxu0
    %753 = vdwg.mxu0
    %vm754 = vcmask 74752
    %755 = vst.msk [vmem:[#allocation2] sm:$0x3] %vm754, %v749
    // Predicated region
    $region14: #{hgl_forward.7} parent=1 // pred_check
      _
    $region15: #{hgl_forward.7} parent=1 // pred_check_branch
      %757 = sbr.rel (0) target = $region17
    $region16: #{hgl_forward.7} parent=1 // pred_region
      %s759 = ssub.s32 32, 32
      %760 = vsyncadd [#allocation3], %s759
      %s762 = sshll.u32 [#allocation2], 4
      %s763 = int_to_ptr.vmem [resolvable:$true] %s762
      %765 = dma.vmem_to_hbm [thread:$0]  %s763, 32, %s3, [#allocation3]
    $region17: #{hgl_forward.7} parent=1 // pred_fallthru
      _
    // Predicated region
    $region18: #{hgl_forward.7} parent=1 // pred_check
      _
    $region19: #{hgl_forward.7} parent=1 // pred_check_branch
      %767 = sbr.rel (0) target = $region21
    $region20: #{hgl_forward.7} parent=1 // pred_region
      %768 = dma.done [#allocation3], 32
    $region21: #{hgl_forward.7} parent=1 // pred_fallthru
      _
    %769 = vsyncpa [#allocation3], 1

</llo_original>
